<compile_context>
chip_gen: v7x
topology: tpu7x:2x2x1
jax: 0.10.0
libtpu: 0.0.40
codegen_flags: <defaults>
</compile_context>

<pallas_src>
import functools

import jax
import jax.numpy as jnp
from jax.experimental import pallas as pl
from jax.experimental.pallas import tpu as pltpu


def _round_up(x, m):
    return (x + m - 1) // m * m


def _cdiv(a, b):
    return -(-a // b)


# ----------------------------------------------------------------------------
# Hoisted layer-0 input projection: one big (N, D) @ (D, 4Hp) matmul + bias.
# ----------------------------------------------------------------------------
def _in_proj_kernel(x_ref, w_ref, b_ref, o_ref):
    x = x_ref[...].astype(w_ref.dtype)          # no-op cast when weights are f32
    y = jnp.dot(x, w_ref[...], preferred_element_type=jnp.float32) + b_ref[...]
    o_ref[...] = y.astype(o_ref.dtype)


def input_projection(x2d, w, b, out_dtype=jnp.float32):
    """x2d: (N, D), w: (D, G), b: (1, G) -> (N, G) in out_dtype, tiled over rows."""
    N, D = x2d.shape
    G = w.shape[1]
    out_bytes = jnp.dtype(out_dtype).itemsize
    # Size the row block against the (rb, G) output block so the double-buffered
    # output stays ~<=2 MiB/buffer even at large hidden dims (review item).
    rb = min(512, max(8, ((2 * 1024 * 1024) // max(1, G * out_bytes)) // 8 * 8))
    rb = min(rb, N)                     # N is a multiple of 8 (Bp is padded)
    wbytes = jnp.dtype(w.dtype).itemsize
    est = 2 * (rb * D * 4 + D * G * wbytes + G * 4 + rb * G * out_bytes)
    vmem_limit = int(min(64 << 20, max(32 << 20, 2 * est)))
    return pl.pallas_call(
        _in_proj_kernel,
        out_shape=jax.ShapeDtypeStruct((N, G), out_dtype),
        grid=(pl.cdiv(N, rb),),
        in_specs=[
            pl.BlockSpec((rb, D), lambda i: (i, 0)),
            pl.BlockSpec((D, G), lambda i: (0, 0)),
            pl.BlockSpec((1, G), lambda i: (0, 0)),
        ],
        out_specs=pl.BlockSpec((rb, G), lambda i: (i, 0)),
        compiler_params=pltpu.CompilerParams(
            dimension_semantics=("parallel",),
            vmem_limit_bytes=vmem_limit),
    )(x2d, w, b)


# ----------------------------------------------------------------------------
# Fused multi-layer LSTM recurrence + final FC.
#   grid = (batch_blocks, T/TT); TT timesteps are unrolled inside the kernel.
#   inputs : gates0 (Tp, Bp, 4Hp) time-major (= x @ W_ih0 + b0, optionally bf16)
#            w_hh0 (Hp, 4Hp)
#            per layer l>=1: w_ih_l (Hp, 4Hp), w_hh_l (Hp, 4Hp), b_l (1, 4Hp)
#            fc_w (Hp, O), fc_b (1, O)
#   output : y (Tp, Bp, O) f32, written back once per TT-chunk
#   scratch: per layer h, c (batch_block, Hp) f32, persistent across time chunks.
# ----------------------------------------------------------------------------
def _make_fused_lstm_fc_kernel(num_layers, hp, tt):
    n_mid = 3 * (num_layers - 1)
    n_in = 2 + n_mid + 2

    def kernel(*args):
        g0_ref = args[0]
        whh0_ref = args[1]
        mid = args[2:2 + n_mid]
        fcw_ref = args[n_in - 2]
        fcb_ref = args[n_in - 1]
        out_ref = args[n_in]
        scratch = args[n_in + 1:]
        h_refs = scratch[0::2]
        c_refs = scratch[1::2]

        wdt = whh0_ref.dtype

        # New batch block starts -> reset the recurrent state.
        @pl.when(pl.program_id(1) == 0)
        def _():
            for layer in range(num_layers):
                h_refs[layer][...] = jnp.zeros_like(h_refs[layer])
                c_refs[layer][...] = jnp.zeros_like(c_refs[layer])

        def sigm(x):
            # One EUP tanh instead of exp + divide (halves EUP pushes per gate).
            return 0.5 * jnp.tanh(0.5 * x) + 0.5

        def cell(gates, c_prev):
            # PyTorch gate order [i, f, g, o]; every slice is 128-lane aligned.
            i_g = sigm(gates[:, 0 * hp:1 * hp])
            f_g = sigm(gates[:, 1 * hp:2 * hp])
            g_g = jnp.tanh(gates[:, 2 * hp:3 * hp])
            o_g = sigm(gates[:, 3 * hp:4 * hp])
            c_new = f_g * c_prev + i_g * g_g
            h_new = o_g * jnp.tanh(c_new)
            return h_new, c_new

        # Load persistent state once per chunk; keep it in vregs across TT steps.
        h = [h_refs[layer][...] for layer in range(num_layers)]
        c = [c_refs[layer][...] for layer in range(num_layers)]

        for tl in range(tt):                       # fully unrolled time chunk
            # Layer 0: input projection was hoisted; only the recurrent matmul.
            gates = g0_ref[tl].astype(jnp.float32) + jnp.dot(
                h[0].astype(wdt), whh0_ref[...],
                preferred_element_type=jnp.float32)
            h[0], c[0] = cell(gates, c[0])
            x_l = h[0]

            # Layers >= 1: two dots (no concat on the critical path).
            for layer in range(1, num_layers):
                wih_ref = mid[3 * (layer - 1)]
                whh_ref = mid[3 * (layer - 1) + 1]
                b_ref = mid[3 * (layer - 1) + 2]
                gates = (
                    jnp.dot(x_l.astype(wdt), wih_ref[...],
                            preferred_element_type=jnp.float32)
                    + jnp.dot(h[layer].astype(wdt), whh_ref[...],
                              preferred_element_type=jnp.float32)
                    + b_ref[...])
                h[layer], c[layer] = cell(gates, c[layer])
                x_l = h[layer]

            # Fused FC; stores land in the VMEM output block, flushed per chunk.
            out_ref[tl] = (
                jnp.dot(x_l.astype(fcw_ref.dtype), fcw_ref[...],
                        preferred_element_type=jnp.float32) + fcb_ref[...])

        # Persist state once per chunk (not per timestep).
        for layer in range(num_layers):
            h_refs[layer][...] = h[layer]
            c_refs[layer][...] = c[layer]

    return kernel


def lstm_stack_forward(gates0_tm, w_hh0, mid, fc_w, fc_b, *,
                       batch_block, time_block):
    """gates0_tm: (Tp, Bp, 4Hp) time-major; returns (Tp, Bp, O) f32."""
    Tp, Bp, G4 = gates0_tm.shape
    Hp = G4 // 4
    O = fc_w.shape[1]
    num_layers = 1 + len(mid) // 3
    nb = Bp // batch_block
    nt = Tp // time_block

    in_specs = [
        pl.BlockSpec((time_block, batch_block, G4), lambda b, t: (t, b, 0)),
        pl.BlockSpec((Hp, G4), lambda b, t: (0, 0)),
    ]
    for _ in range(num_layers - 1):
        in_specs.append(pl.BlockSpec((Hp, G4), lambda b, t: (0, 0)))   # W_ih_l
        in_specs.append(pl.BlockSpec((Hp, G4), lambda b, t: (0, 0)))   # W_hh_l
        in_specs.append(pl.BlockSpec((1, G4), lambda b, t: (0, 0)))    # bias_l
    in_specs.append(pl.BlockSpec((Hp, O), lambda b, t: (0, 0)))
    in_specs.append(pl.BlockSpec((1, O), lambda b, t: (0, 0)))

    scratch = []
    for _ in range(num_layers):
        scratch.append(pltpu.VMEM((batch_block, Hp), jnp.float32))  # h (f32)
        scratch.append(pltpu.VMEM((batch_block, Hp), jnp.float32))  # c (f32)

    # Explicit scoped-VMEM limit (never below defaults, <= 64 MiB for v7x).
    wbytes = jnp.dtype(w_hh0.dtype).itemsize
    gbytes = jnp.dtype(gates0_tm.dtype).itemsize
    weight_bytes = (Hp * G4 * (1 + 2 * (num_layers - 1)) * wbytes
                    + (num_layers - 1) * G4 * 4 + Hp * O * wbytes + O * 4)
    block_bytes = (time_block * batch_block * G4 * gbytes
                   + time_block * batch_block * O * 4)
    scratch_bytes = 2 * num_layers * batch_block * Hp * 4
    est = 2 * (weight_bytes + block_bytes) + scratch_bytes
    vmem_limit = int(min(64 << 20, max(32 << 20, 2 * est)))

    return pl.pallas_call(
        _make_fused_lstm_fc_kernel(num_layers, Hp, time_block),
        out_shape=jax.ShapeDtypeStruct((Tp, Bp, O), jnp.float32),
        grid=(nb, nt),
        in_specs=in_specs,
        out_specs=pl.BlockSpec((time_block, batch_block, O),
                               lambda b, t: (t, b, 0)),
        scratch_shapes=scratch,
        compiler_params=pltpu.CompilerParams(
            # batch blocks independent (both TCs on v7x / megacore); time serial.
            dimension_semantics=("parallel", "arbitrary"),
            vmem_limit_bytes=vmem_limit),
    )(gates0_tm, w_hh0, *mid, fc_w, fc_b)


# ----------------------------------------------------------------------------
# Tiling heuristics.
# ----------------------------------------------------------------------------
def _has_multiple_tensorcores():
    # v7x has 2 TensorCores/chip; v4/v5p megacore also profits from >=2 parallel
    # batch blocks.  v5e/v6e (single TC) keep a single block (less grid overhead).
    try:
        kind = jax.devices()[0].device_kind.lower()
    except Exception:
        return False
    return any(tag in kind for tag in ("v7", "v4", "v5p"))


def _choose_batch_block(B, hp, prefer_two_blocks):
    max_block = 64 if hp >= 512 else 128      # bound vreg pressure at large Hp
    if prefer_two_blocks and B >= 16:
        n_blocks = max(2, _cdiv(B, max_block))
    else:
        n_blocks = max(1, _cdiv(B, max_block))
    return _round_up(_cdiv(B, n_blocks), 8)


def _choose_time_block(T, batch_block, hp, gate_itemsize, max_tt=16):
    # Amortize ~0.35us/grid step; keep one gates0 chunk <= ~4 MiB so the
    # double-buffered chunk + resident weights stay well inside scoped VMEM.
    per_step = batch_block * 4 * hp * gate_itemsize
    tt = max(1, (4 * 1024 * 1024) // max(1, per_step))
    return int(max(1, min(T, max_tt, tt)))


# ----------------------------------------------------------------------------
# Parameter init (PyTorch-shaped, pre-transposed) and padding/stacking prep.
# ----------------------------------------------------------------------------
def init_lstm_model_params(key, input_dim, hidden_dim=64, layer_dim=2, output_dim=1):
    """uniform(-1/sqrt(H), 1/sqrt(H)) init; weights stored as (in, 4H) / (H, 4H)."""
    k = 1.0 / jnp.sqrt(jnp.asarray(hidden_dim, jnp.float32))
    params = {"lstm": []}
    for layer in range(layer_dim):
        d_in = input_dim if layer == 0 else hidden_dim
        key, k1, k2, k3, k4 = jax.random.split(key, 5)
        w_ih = jax.random.uniform(k1, (d_in, 4 * hidden_dim), jnp.float32, -k, k)
        w_hh = jax.random.uniform(k2, (hidden_dim, 4 * hidden_dim), jnp.float32, -k, k)
        b_ih = jax.random.uniform(k3, (4 * hidden_dim,), jnp.float32, -k, k)
        b_hh = jax.random.uniform(k4, (4 * hidden_dim,), jnp.float32, -k, k)
        params["lstm"].append(
            {"w_ih": w_ih, "w_hh": w_hh, "bias": (b_ih + b_hh)[None, :]})
    key, k5, k6 = jax.random.split(key, 3)
    params["fc_w"] = jax.random.uniform(k5, (hidden_dim, output_dim), jnp.float32, -k, k)
    params["fc_b"] = jax.random.uniform(k6, (1, output_dim), jnp.float32, -k, k)
    return params


def _pad_gate_cols(w, h, hp):
    """Pad each of the 4 gate column blocks [i|f|g|o] from width h to hp with zeros."""
    lead = w.shape[:-1]
    w4 = w.reshape(lead + (4, h))
    pad = [(0, 0)] * (len(lead) + 1) + [(0, hp - h)]
    return jnp.pad(w4, pad).reshape(lead + (4 * hp,))


def prepare_padded_params(params, use_bf16_weights=False):
    """Pad H to a multiple of 128 lanes; optionally cast weights to bf16.

    Zero padding is exactly neutral: padded gate columns give i=f=o=0.5, g=0,
    so padded h/c columns stay identically 0 and never leak into real columns.
    """
    H = params["lstm"][0]["w_hh"].shape[0]
    Hp = _round_up(H, 128)
    wdt = jnp.bfloat16 if use_bf16_weights else jnp.float32

    l0 = params["lstm"][0]
    w_ih0 = _pad_gate_cols(l0["w_ih"], H, Hp)                                   # (D, 4Hp)
    b0 = _pad_gate_cols(l0["bias"], H, Hp)                                      # (1, 4Hp)
    w_hh0 = _pad_gate_cols(jnp.pad(l0["w_hh"], ((0, Hp - H), (0, 0))), H, Hp)   # (Hp, 4Hp)

    mid = []
    for lp in params["lstm"][1:]:
        w_ih = _pad_gate_cols(jnp.pad(lp["w_ih"], ((0, Hp - H), (0, 0))), H, Hp)
        w_hh = _pad_gate_cols(jnp.pad(lp["w_hh"], ((0, Hp - H), (0, 0))), H, Hp)
        mid.append(w_ih.astype(wdt))                                            # (Hp, 4Hp)
        mid.append(w_hh.astype(wdt))                                            # (Hp, 4Hp)
        mid.append(_pad_gate_cols(lp["bias"], H, Hp).astype(jnp.float32))       # (1, 4Hp)

    return {
        "w_ih0": w_ih0.astype(wdt),
        "b0": b0.astype(jnp.float32),
        "w_hh0": w_hh0.astype(wdt),
        "mid": mid,
        "fc_w": jnp.pad(params["fc_w"], ((0, Hp - H), (0, 0))).astype(wdt),     # (Hp, O)
        "fc_b": params["fc_b"].astype(jnp.float32),                             # (1, O)
    }


# ----------------------------------------------------------------------------
# Forward pass.
# ----------------------------------------------------------------------------
@functools.partial(jax.jit, static_argnames=("last_timestep_only", "use_bf16_gates"))
def lstm_model_forward(padded, x, last_timestep_only=False, use_bf16_gates=False):
    """x: (B, T, D) f32 -> (B, T, O), or (B, O) if last_timestep_only."""
    x = x.astype(jnp.float32)
    B, T, D = x.shape
    Hp = padded["w_hh0"].shape[0]

    batch_block = _choose_batch_block(B, Hp, _has_multiple_tensorcores())
    Bp = _round_up(B, batch_block)

    gdtype = jnp.bfloat16 if use_bf16_gates else jnp.float32
    time_block = _choose_time_block(T, batch_block, Hp, jnp.dtype(gdtype).itemsize)
    Tp = _round_up(T, time_block)

    if Bp != B:
        x = jnp.pad(x, ((0, Bp - B), (0, 0), (0, 0)))
    # Time-major layout: x is 4Hp/D times smaller than gates0, so this one small
    # transpose buys dense (batch_block, 4Hp) per-step tiles in the recurrence.
    x_tm = jnp.transpose(x, (1, 0, 2))                                  # (T, Bp, D)
    if Tp != T:
        x_tm = jnp.pad(x_tm, ((0, Tp - T), (0, 0), (0, 0)))

    # Hoisted layer-0 input projection: one MXU-friendly matmul over Tp*Bp rows.
    gates0 = input_projection(x_tm.reshape(Tp * Bp, D), padded["w_ih0"],
                              padded["b0"], out_dtype=gdtype)
    gates0 = gates0.reshape(Tp, Bp, 4 * Hp)

    # Fused multi-layer recurrence + FC; only the tiny (Tp, Bp, O) result leaves.
    y_tm = lstm_stack_forward(gates0, padded["w_hh0"], padded["mid"],
                              padded["fc_w"], padded["fc_b"],
                              batch_block=batch_block, time_block=time_block)

    y = jnp.transpose(y_tm[:T], (1, 0, 2))[:B]                          # O lanes: tiny
    if last_timestep_only:
        return y[:, -1, :]
    return y


# ----------------------------------------------------------------------------
# Pure-JAX reference (correctness check only).
# ----------------------------------------------------------------------------
def lstm_model_reference(params, x, last_timestep_only=False):
    x = x.astype(jnp.float32)
    B, T, _ = x.shape
    H = params["lstm"][0]["w_hh"].shape[0]
    seq = jnp.transpose(x, (1, 0, 2))
    for lp in params["lstm"]:
        w_ih, w_hh, bias = lp["w_ih"], lp["w_hh"], lp["bias"]

        def step(carry, x_t, w_ih=w_ih, w_hh=w_hh, bias=bias):
            h, c = carry
            gates = x_t @ w_ih + h @ w_hh + bias
            i = jax.nn.sigmoid(gates[:, 0 * H:1 * H])
            f = jax.nn.sigmoid(gates[:, 1 * H:2 * H])
            g = jnp.tanh(gates[:, 2 * H:3 * H])
            o = jax.nn.sigmoid(gates[:, 3 * H:4 * H])
            c = f * c + i * g
            h = o * jnp.tanh(c)
            return (h, c), h

        init = (jnp.zeros((B, H), jnp.float32), jnp.zeros((B, H), jnp.float32))
        _, seq = jax.lax.scan(step, init, seq)
    out = jnp.transpose(seq, (1, 0, 2))
    if last_timestep_only:
        out = out[:, -1, :]
    return out @ params["fc_w"] + params["fc_b"]


if __name__ == "__main__":
    def run_case(batch, seq, input_dim, hidden_dim, layer_dim, output_dim,
                 use_bf16, atol, rtol, tag, check_last=False):
        key = jax.random.PRNGKey(0)
        pkey, xkey = jax.random.split(key)
        params = init_lstm_model_params(pkey, input_dim, hidden_dim=hidden_dim,
                                        layer_dim=layer_dim, output_dim=output_dim)
        padded = prepare_padded_params(params, use_bf16_weights=use_bf16)
        x = jax.random.normal(xkey, (batch, seq, input_dim), jnp.float32)

        out = jax.block_until_ready(
            lstm_model_forward(padded, x, use_bf16_gates=use_bf16))
        assert out.shape == (batch, seq, output_dim), (tag, out.shape)
        assert bool(jnp.all(jnp.isfinite(out))), tag

        ref = lstm_model_reference(params, x)
        err = float(jnp.max(jnp.abs(out - ref)))
        assert jnp.allclose(out, ref, atol=atol, rtol=rtol), (tag, err)

        if check_last:
            out_last = jax.block_until_ready(
                lstm_model_forward(padded, x, last_timestep_only=True,
                                   use_bf16_gates=use_bf16))
            assert out_last.shape == (batch, output_dim), (tag, out_last.shape)
            assert jnp.allclose(out_last, ref[:, -1, :], atol=atol, rtol=rtol), tag

    # Small config matching the module defaults.  Tight f32 tolerance: only MXU
    # summation order and the tanh-form sigmoid differ from the reference.
    run_case(batch=2, seq=8, input_dim=4, hidden_dim=32, layer_dim=2,
             output_dim=1, use_bf16=False, atol=1e-4, rtol=1e-4,
             tag="small_f32", check_last=True)

    # Multi-chunk / padded config: several TT time chunks (state carried across
    # chunks), padded batch and time, and a partial final projection row block.
    run_case(batch=20, seq=40, input_dim=6, hidden_dim=32, layer_dim=2,
             output_dim=1, use_bf16=False, atol=1e-4, rtol=1e-4,
             tag="multi_chunk_f32")

    # bf16 weights + bf16 gates0 path (halves weight VMEM and the gates0 HBM
    # roundtrip); looser tolerance since pre-activations are rounded to bf16.
    run_case(batch=2, seq=8, input_dim=4, hidden_dim=32, layer_dim=2,
             output_dim=1, use_bf16=True, atol=2e-2, rtol=2e-2,
             tag="small_bf16")

    print("KERNEL_OK")
</pallas_src>

<mosaic_0001>
module attributes {stable_mosaic.version = 11 : i64} {
  func.func @_in_proj_kernel(%arg0: i32, %arg1: memref<64x4xf32, #tpu.memory_space<vmem>>, %arg2: memref<4x512xf32, #tpu.memory_space<vmem>>, %arg3: memref<1x512xf32, #tpu.memory_space<vmem>>, %arg4: memref<64x512xf32, #tpu.memory_space<vmem>>) attributes {dimension_semantics = [#tpu.dimension_semantics<parallel>], iteration_bounds = array<i64: 1>, scalar_prefetch = 0 : i64, scratch_operands = 0 : i64, tpu.core_type = #tpu.core_type<tc>, window_params = [{transform_indices = @transform_0, window_bounds = array<i64: 64, 4>}, {pipeline_mode = #tpu.pipeline_mode<synchronous>, transform_indices = @transform_1, window_bounds = array<i64: 4, 512>}, {pipeline_mode = #tpu.pipeline_mode<synchronous>, transform_indices = @transform_2, window_bounds = array<i64: 1, 512>}, {transform_indices = @transform_3, window_bounds = array<i64: 64, 512>}]} {
    %c0 = arith.constant 0 : index
    %c0_0 = arith.constant 0 : index
    %0 = vector.load %arg1[%c0, %c0_0] : memref<64x4xf32, #tpu.memory_space<vmem>>, vector<64x4xf32>
    %c0_1 = arith.constant 0 : index
    %c0_2 = arith.constant 0 : index
    %1 = vector.load %arg2[%c0_1, %c0_2] : memref<4x512xf32, #tpu.memory_space<vmem>>, vector<4x512xf32>
    %cst = arith.constant dense<0.000000e+00> : vector<64x512xf32>
    %2 = tpu.matmul %0, %1, %cst {dimension_numbers = #tpu.dot_dimension_numbers<[1], [0], [0], [1], [0, 0, 1, 1], [], []>} : vector<64x4xf32>, vector<4x512xf32>, vector<64x512xf32> -> vector<64x512xf32>
    %c0_3 = arith.constant 0 : index
    %c0_4 = arith.constant 0 : index
    %3 = vector.load %arg3[%c0_3, %c0_4] : memref<1x512xf32, #tpu.memory_space<vmem>>, vector<1x512xf32>
    %4 = vector.broadcast %3 : vector<1x512xf32> to vector<64x512xf32>
    %5 = arith.addf %2, %4 : vector<64x512xf32>
    %c0_5 = arith.constant 0 : index
    %c0_6 = arith.constant 0 : index
    %6 = vector.load %arg4[%c0_5, %c0_6] : memref<64x512xf32, #tpu.memory_space<vmem>>, vector<64x512xf32>
    tpu.vector_store %arg4[%c0_5, %c0_6], %5 {strides = array<i32>} : memref<64x512xf32, #tpu.memory_space<vmem>>, vector<64x512xf32>,
    return
  }
  func.func @transform_0(%arg0: i32) -> (i32, i32) {
    %c0_i32 = arith.constant 0 : i32
    %c0_i32_0 = arith.constant 0 : i32
    return %arg0, %c0_i32 : i32, i32
  }
  func.func @transform_1(%arg0: i32) -> (i32, i32) {
    %c0_i32 = arith.constant 0 : i32
    %c0_i32_0 = arith.constant 0 : i32
    %c0_i32_1 = arith.constant 0 : i32
    return %c0_i32, %c0_i32_0 : i32, i32
  }
  func.func @transform_2(%arg0: i32) -> (i32, i32) {
    %c0_i32 = arith.constant 0 : i32
    %c0_i32_0 = arith.constant 0 : i32
    %c0_i32_1 = arith.constant 0 : i32
    return %c0_i32, %c0_i32_0 : i32, i32
  }
  func.func @transform_3(%arg0: i32) -> (i32, i32) {
    %c0_i32 = arith.constant 0 : i32
    %c0_i32_0 = arith.constant 0 : i32
    return %arg0, %c0_i32 : i32, i32
  }
}

module attributes {stable_mosaic.version = 11 : i64} {
  func.func @kernel(%arg0: i32, %arg1: i32, %arg2: memref<8x8x512xf32, #tpu.memory_space<vmem>>, %arg3: memref<128x512xf32, #tpu.memory_space<vmem>>, %arg4: memref<128x512xf32, #tpu.memory_space<vmem>>, %arg5: memref<128x512xf32, #tpu.memory_space<vmem>>, %arg6: memref<1x512xf32, #tpu.memory_space<vmem>>, %arg7: memref<128x1xf32, #tpu.memory_space<vmem>>, %arg8: memref<1x1xf32, #tpu.memory_space<vmem>>, %arg9: memref<8x8x1xf32, #tpu.memory_space<vmem>>, %arg10: memref<8x128xf32, #tpu.memory_space<vmem>>, %arg11: memref<8x128xf32, #tpu.memory_space<vmem>>, %arg12: memref<8x128xf32, #tpu.memory_space<vmem>>, %arg13: memref<8x128xf32, #tpu.memory_space<vmem>>) attributes {dimension_semantics = [#tpu.dimension_semantics<parallel>, #tpu.dimension_semantics<arbitrary>], iteration_bounds = array<i64: 1, 1>, scalar_prefetch = 0 : i64, scratch_operands = 4 : i64, tpu.core_type = #tpu.core_type<tc>, window_params = [{transform_indices = @transform_0, window_bounds = array<i64: 8, 8, 512>}, {pipeline_mode = #tpu.pipeline_mode<synchronous>, transform_indices = @transform_1, window_bounds = array<i64: 128, 512>}, {pipeline_mode = #tpu.pipeline_mode<synchronous>, transform_indices = @transform_2, window_bounds = array<i64: 128, 512>}, {pipeline_mode = #tpu.pipeline_mode<synchronous>, transform_indices = @transform_3, window_bounds = array<i64: 128, 512>}, {pipeline_mode = #tpu.pipeline_mode<synchronous>, transform_indices = @transform_4, window_bounds = array<i64: 1, 512>}, {pipeline_mode = #tpu.pipeline_mode<synchronous>, transform_indices = @transform_5, window_bounds = array<i64: 128, 1>}, {pipeline_mode = #tpu.pipeline_mode<synchronous>, transform_indices = @transform_6, window_bounds = array<i64: 1, 1>}, {transform_indices = @transform_7, window_bounds = array<i64: 8, 8, 1>}]} {
    %c0_i32 = arith.constant 0 : i32
    %0 = arith.cmpi eq, %arg1, %c0_i32 : i32
    %1 = arith.extui %0 : i1 to i32
    %c0_i32_0 = arith.constant 0 : i32
    %2 = arith.cmpi ne, %1, %c0_i32_0 : i32
    scf.if %2 {
      %cst_328 = arith.constant 0.000000e+00 : f32
      %675 = vector.broadcast %cst_328 : f32 to vector<8x128xf32>
      %c0_329 = arith.constant 0 : index
      %c0_330 = arith.constant 0 : index
      %676 = vector.load %arg10[%c0_329, %c0_330] : memref<8x128xf32, #tpu.memory_space<vmem>>, vector<8x128xf32>
      tpu.vector_store %arg10[%c0_329, %c0_330], %675 {strides = array<i32>} : memref<8x128xf32, #tpu.memory_space<vmem>>, vector<8x128xf32>,
      %cst_331 = arith.constant 0.000000e+00 : f32
      %677 = vector.broadcast %cst_331 : f32 to vector<8x128xf32>
      %c0_332 = arith.constant 0 : index
      %c0_333 = arith.constant 0 : index
      %678 = vector.load %arg11[%c0_332, %c0_333] : memref<8x128xf32, #tpu.memory_space<vmem>>, vector<8x128xf32>
      tpu.vector_store %arg11[%c0_332, %c0_333], %677 {strides = array<i32>} : memref<8x128xf32, #tpu.memory_space<vmem>>, vector<8x128xf32>,
      %cst_334 = arith.constant 0.000000e+00 : f32
      %679 = vector.broadcast %cst_334 : f32 to vector<8x128xf32>
      %c0_335 = arith.constant 0 : index
      %c0_336 = arith.constant 0 : index
      %680 = vector.load %arg12[%c0_335, %c0_336] : memref<8x128xf32, #tpu.memory_space<vmem>>, vector<8x128xf32>
      tpu.vector_store %arg12[%c0_335, %c0_336], %679 {strides = array<i32>} : memref<8x128xf32, #tpu.memory_space<vmem>>, vector<8x128xf32>,
      %cst_337 = arith.constant 0.000000e+00 : f32
      %681 = vector.broadcast %cst_337 : f32 to vector<8x128xf32>
      %c0_338 = arith.constant 0 : index
      %c0_339 = arith.constant 0 : index
      %682 = vector.load %arg13[%c0_338, %c0_339] : memref<8x128xf32, #tpu.memory_space<vmem>>, vector<8x128xf32>
      tpu.vector_store %arg13[%c0_338, %c0_339], %681 {strides = array<i32>} : memref<8x128xf32, #tpu.memory_space<vmem>>, vector<8x128xf32>,
    } else {
    }
    %c0 = arith.constant 0 : index
    %c0_1 = arith.constant 0 : index
    %3 = vector.load %arg10[%c0, %c0_1] : memref<8x128xf32, #tpu.memory_space<vmem>>, vector<8x128xf32>
    %c0_2 = arith.constant 0 : index
    %c0_3 = arith.constant 0 : index
    %4 = vector.load %arg12[%c0_2, %c0_3] : memref<8x128xf32, #tpu.memory_space<vmem>>, vector<8x128xf32>
    %c0_4 = arith.constant 0 : index
    %c0_5 = arith.constant 0 : index
    %5 = vector.load %arg11[%c0_4, %c0_5] : memref<8x128xf32, #tpu.memory_space<vmem>>, vector<8x128xf32>
    %c0_6 = arith.constant 0 : index
    %c0_7 = arith.constant 0 : index
    %6 = vector.load %arg13[%c0_6, %c0_7] : memref<8x128xf32, #tpu.memory_space<vmem>>, vector<8x128xf32>
    %c0_8 = arith.constant 0 : index
    %c0_9 = arith.constant 0 : index
    %c0_10 = arith.constant 0 : index
    %7 = vector.load %arg2[%c0_8, %c0_9, %c0_10] : memref<8x8x512xf32, #tpu.memory_space<vmem>>, vector<1x8x512xf32>
    %8 = vector.shape_cast %7 : vector<1x8x512xf32> to vector<8x512xf32>
    %c0_11 = arith.constant 0 : index
    %c0_12 = arith.constant 0 : index
    %9 = vector.load %arg3[%c0_11, %c0_12] : memref<128x512xf32, #tpu.memory_space<vmem>>, vector<128x512xf32>
    %cst = arith.constant dense<0.000000e+00> : vector<8x512xf32>
    %10 = tpu.matmul %3, %9, %cst {dimension_numbers = #tpu.dot_dimension_numbers<[1], [0], [0], [1], [0, 0, 1, 1], [], []>} : vector<8x128xf32>, vector<128x512xf32>, vector<8x512xf32> -> vector<8x512xf32>
    %11 = arith.addf %8, %10 : vector<8x512xf32>
    %12 = vector.extract_strided_slice %11 {offsets = [0, 0], sizes = [8, 128], strides = [1, 1]} : vector<8x512xf32> to vector<8x128xf32>
    %cst_13 = arith.constant 5.000000e-01 : f32
    %13 = vector.broadcast %cst_13 : f32 to vector<8x128xf32>
    %14 = arith.mulf %13, %12 : vector<8x128xf32>
    %15 = math.tanh %14 : vector<8x128xf32>
    %cst_14 = arith.constant 5.000000e-01 : f32
    %16 = vector.broadcast %cst_14 : f32 to vector<8x128xf32>
    %17 = arith.mulf %16, %15 : vector<8x128xf32>
    %cst_15 = arith.constant 5.000000e-01 : f32
    %18 = vector.broadcast %cst_15 : f32 to vector<8x128xf32>
    %19 = arith.addf %17, %18 : vector<8x128xf32>
    %20 = vector.extract_strided_slice %11 {offsets = [0, 128], sizes = [8, 128], strides = [1, 1]} : vector<8x512xf32> to vector<8x128xf32>
    %cst_16 = arith.constant 5.000000e-01 : f32
    %21 = vector.broadcast %cst_16 : f32 to vector<8x128xf32>
    %22 = arith.mulf %21, %20 : vector<8x128xf32>
    %23 = math.tanh %22 : vector<8x128xf32>
    %cst_17 = arith.constant 5.000000e-01 : f32
    %24 = vector.broadcast %cst_17 : f32 to vector<8x128xf32>
    %25 = arith.mulf %24, %23 : vector<8x128xf32>
    %cst_18 = arith.constant 5.000000e-01 : f32
    %26 = vector.broadcast %cst_18 : f32 to vector<8x128xf32>
    %27 = arith.addf %25, %26 : vector<8x128xf32>
    %28 = vector.extract_strided_slice %11 {offsets = [0, 256], sizes = [8, 128], strides = [1, 1]} : vector<8x512xf32> to vector<8x128xf32>
    %29 = math.tanh %28 : vector<8x128xf32>
    %30 = vector.extract_strided_slice %11 {offsets = [0, 384], sizes = [8, 128], strides = [1, 1]} : vector<8x512xf32> to vector<8x128xf32>
    %cst_19 = arith.constant 5.000000e-01 : f32
    %31 = vector.broadcast %cst_19 : f32 to vector<8x128xf32>
    %32 = arith.mulf %31, %30 : vector<8x128xf32>
    %33 = math.tanh %32 : vector<8x128xf32>
    %cst_20 = arith.constant 5.000000e-01 : f32
    %34 = vector.broadcast %cst_20 : f32 to vector<8x128xf32>
    %35 = arith.mulf %34, %33 : vector<8x128xf32>
    %cst_21 = arith.constant 5.000000e-01 : f32
    %36 = vector.broadcast %cst_21 : f32 to vector<8x128xf32>
    %37 = arith.addf %35, %36 : vector<8x128xf32>
    %38 = arith.mulf %27, %5 : vector<8x128xf32>
    %39 = arith.mulf %19, %29 : vector<8x128xf32>
    %40 = arith.addf %38, %39 : vector<8x128xf32>
    %41 = math.tanh %40 : vector<8x128xf32>
    %42 = arith.mulf %37, %41 : vector<8x128xf32>
    %c0_22 = arith.constant 0 : index
    %c0_23 = arith.constant 0 : index
    %43 = vector.load %arg4[%c0_22, %c0_23] : memref<128x512xf32, #tpu.memory_space<vmem>>, vector<128x512xf32>
    %cst_24 = arith.constant dense<0.000000e+00> : vector<8x512xf32>
    %44 = tpu.matmul %42, %43, %cst_24 {dimension_numbers = #tpu.dot_dimension_numbers<[1], [0], [0], [1], [0, 0, 1, 1], [], []>} : vector<8x128xf32>, vector<128x512xf32>, vector<8x512xf32> -> vector<8x512xf32>
    %c0_25 = arith.constant 0 : index
    %c0_26 = arith.constant 0 : index
    %45 = vector.load %arg5[%c0_25, %c0_26] : memref<128x512xf32, #tpu.memory_space<vmem>>, vector<128x512xf32>
    %cst_27 = arith.constant dense<0.000000e+00> : vector<8x512xf32>
    %46 = tpu.matmul %4, %45, %cst_27 {dimension_numbers = #tpu.dot_dimension_numbers<[1], [0], [0], [1], [0, 0, 1, 1], [], []>} : vector<8x128xf32>, vector<128x512xf32>, vector<8x512xf32> -> vector<8x512xf32>
    %47 = arith.addf %44, %46 : vector<8x512xf32>
    %c0_28 = arith.constant 0 : index
    %c0_29 = arith.constant 0 : index
    %48 = vector.load %arg6[%c0_28, %c0_29] : memref<1x512xf32, #tpu.memory_space<vmem>>, vector<1x512xf32>
    %49 = vector.broadcast %48 : vector<1x512xf32> to vector<8x512xf32>
    %50 = arith.addf %47, %49 : vector<8x512xf32>
    %51 = vector.extract_strided_slice %50 {offsets = [0, 0], sizes = [8, 128], strides = [1, 1]} : vector<8x512xf32> to vector<8x128xf32>
    %cst_30 = arith.constant 5.000000e-01 : f32
    %52 = vector.broadcast %cst_30 : f32 to vector<8x128xf32>
    %53 = arith.mulf %52, %51 : vector<8x128xf32>
    %54 = math.tanh %53 : vector<8x128xf32>
    %cst_31 = arith.constant 5.000000e-01 : f32
    %55 = vector.broadcast %cst_31 : f32 to vector<8x128xf32>
    %56 = arith.mulf %55, %54 : vector<8x128xf32>
    %cst_32 = arith.constant 5.000000e-01 : f32
    %57 = vector.broadcast %cst_32 : f32 to vector<8x128xf32>
    %58 = arith.addf %56, %57 : vector<8x128xf32>
    %59 = vector.extract_strided_slice %50 {offsets = [0, 128], sizes = [8, 128], strides = [1, 1]} : vector<8x512xf32> to vector<8x128xf32>
    %cst_33 = arith.constant 5.000000e-01 : f32
    %60 = vector.broadcast %cst_33 : f32 to vector<8x128xf32>
    %61 = arith.mulf %60, %59 : vector<8x128xf32>
    %62 = math.tanh %61 : vector<8x128xf32>
    %cst_34 = arith.constant 5.000000e-01 : f32
    %63 = vector.broadcast %cst_34 : f32 to vector<8x128xf32>
    %64 = arith.mulf %63, %62 : vector<8x128xf32>
    %cst_35 = arith.constant 5.000000e-01 : f32
    %65 = vector.broadcast %cst_35 : f32 to vector<8x128xf32>
    %66 = arith.addf %64, %65 : vector<8x128xf32>
    %67 = vector.extract_strided_slice %50 {offsets = [0, 256], sizes = [8, 128], strides = [1, 1]} : vector<8x512xf32> to vector<8x128xf32>
    %68 = math.tanh %67 : vector<8x128xf32>
    %69 = vector.extract_strided_slice %50 {offsets = [0, 384], sizes = [8, 128], strides = [1, 1]} : vector<8x512xf32> to vector<8x128xf32>
    %cst_36 = arith.constant 5.000000e-01 : f32
    %70 = vector.broadcast %cst_36 : f32 to vector<8x128xf32>
    %71 = arith.mulf %70, %69 : vector<8x128xf32>
    %72 = math.tanh %71 : vector<8x128xf32>
    %cst_37 = arith.constant 5.000000e-01 : f32
    %73 = vector.broadcast %cst_37 : f32 to vector<8x128xf32>
    %74 = arith.mulf %73, %72 : vector<8x128xf32>
    %cst_38 = arith.constant 5.000000e-01 : f32
    %75 = vector.broadcast %cst_38 : f32 to vector<8x128xf32>
    %76 = arith.addf %74, %75 : vector<8x128xf32>
    %77 = arith.mulf %66, %6 : vector<8x128xf32>
    %78 = arith.mulf %58, %68 : vector<8x128xf32>
    %79 = arith.addf %77, %78 : vector<8x128xf32>
    %80 = math.tanh %79 : vector<8x128xf32>
    %81 = arith.mulf %76, %80 : vector<8x128xf32>
    %c0_39 = arith.constant 0 : index
    %c0_40 = arith.constant 0 : index
    %82 = vector.load %arg7[%c0_39, %c0_40] : memref<128x1xf32, #tpu.memory_space<vmem>>, vector<128x1xf32>
    %cst_41 = arith.constant dense<0.000000e+00> : vector<8x1xf32>
    %83 = tpu.matmul %81, %82, %cst_41 {dimension_numbers = #tpu.dot_dimension_numbers<[1], [0], [0], [1], [0, 0, 1, 1], [], []>} : vector<8x128xf32>, vector<128x1xf32>, vector<8x1xf32> -> vector<8x1xf32>
    %c0_42 = arith.constant 0 : index
    %c0_43 = arith.constant 0 : index
    %84 = vector.load %arg8[%c0_42, %c0_43] : memref<1x1xf32, #tpu.memory_space<vmem>>, vector<1x1xf32>
    %85 = vector.broadcast %84 : vector<1x1xf32> to vector<8x1xf32>
    %86 = arith.addf %83, %85 : vector<8x1xf32>
    %c0_44 = arith.constant 0 : index
    %c0_45 = arith.constant 0 : index
    %c0_46 = arith.constant 0 : index
    %87 = vector.load %arg9[%c0_44, %c0_45, %c0_46] : memref<8x8x1xf32, #tpu.memory_space<vmem>>, vector<1x8x1xf32>
    %88 = vector.shape_cast %87 : vector<1x8x1xf32> to vector<8x1xf32>
    %89 = vector.shape_cast %86 : vector<8x1xf32> to vector<1x8x1xf32>
    tpu.vector_store %arg9[%c0_44, %c0_45, %c0_46], %89 {strides = array<i32>} : memref<8x8x1xf32, #tpu.memory_space<vmem>>, vector<1x8x1xf32>,
    %c1 = arith.constant 1 : index
    %c0_47 = arith.constant 0 : index
    %c0_48 = arith.constant 0 : index
    %90 = vector.load %arg2[%c1, %c0_47, %c0_48] : memref<8x8x512xf32, #tpu.memory_space<vmem>>, vector<1x8x512xf32>
    %91 = vector.shape_cast %90 : vector<1x8x512xf32> to vector<8x512xf32>
    %c0_49 = arith.constant 0 : index
    %c0_50 = arith.constant 0 : index
    %92 = vector.load %arg3[%c0_49, %c0_50] : memref<128x512xf32, #tpu.memory_space<vmem>>, vector<128x512xf32>
    %cst_51 = arith.constant dense<0.000000e+00> : vector<8x512xf32>
    %93 = tpu.matmul %42, %92, %cst_51 {dimension_numbers = #tpu.dot_dimension_numbers<[1], [0], [0], [1], [0, 0, 1, 1], [], []>} : vector<8x128xf32>, vector<128x512xf32>, vector<8x512xf32> -> vector<8x512xf32>
    %94 = arith.addf %91, %93 : vector<8x512xf32>
    %95 = vector.extract_strided_slice %94 {offsets = [0, 0], sizes = [8, 128], strides = [1, 1]} : vector<8x512xf32> to vector<8x128xf32>
    %cst_52 = arith.constant 5.000000e-01 : f32
    %96 = vector.broadcast %cst_52 : f32 to vector<8x128xf32>
    %97 = arith.mulf %96, %95 : vector<8x128xf32>
    %98 = math.tanh %97 : vector<8x128xf32>
    %cst_53 = arith.constant 5.000000e-01 : f32
    %99 = vector.broadcast %cst_53 : f32 to vector<8x128xf32>
    %100 = arith.mulf %99, %98 : vector<8x128xf32>
    %cst_54 = arith.constant 5.000000e-01 : f32
    %101 = vector.broadcast %cst_54 : f32 to vector<8x128xf32>
    %102 = arith.addf %100, %101 : vector<8x128xf32>
    %103 = vector.extract_strided_slice %94 {offsets = [0, 128], sizes = [8, 128], strides = [1, 1]} : vector<8x512xf32> to vector<8x128xf32>
    %cst_55 = arith.constant 5.000000e-01 : f32
    %104 = vector.broadcast %cst_55 : f32 to vector<8x128xf32>
    %105 = arith.mulf %104, %103 : vector<8x128xf32>
    %106 = math.tanh %105 : vector<8x128xf32>
    %cst_56 = arith.constant 5.000000e-01 : f32
    %107 = vector.broadcast %cst_56 : f32 to vector<8x128xf32>
    %108 = arith.mulf %107, %106 : vector<8x128xf32>
    %cst_57 = arith.constant 5.000000e-01 : f32
    %109 = vector.broadcast %cst_57 : f32 to vector<8x128xf32>
    %110 = arith.addf %108, %109 : vector<8x128xf32>
    %111 = vector.extract_strided_slice %94 {offsets = [0, 256], sizes = [8, 128], strides = [1, 1]} : vector<8x512xf32> to vector<8x128xf32>
    %112 = math.tanh %111 : vector<8x128xf32>
    %113 = vector.extract_strided_slice %94 {offsets = [0, 384], sizes = [8, 128], strides = [1, 1]} : vector<8x512xf32> to vector<8x128xf32>
    %cst_58 = arith.constant 5.000000e-01 : f32
    %114 = vector.broadcast %cst_58 : f32 to vector<8x128xf32>
    %115 = arith.mulf %114, %113 : vector<8x128xf32>
    %116 = math.tanh %115 : vector<8x128xf32>
    %cst_59 = arith.constant 5.000000e-01 : f32
    %117 = vector.broadcast %cst_59 : f32 to vector<8x128xf32>
    %118 = arith.mulf %117, %116 : vector<8x128xf32>
    %cst_60 = arith.constant 5.000000e-01 : f32
    %119 = vector.broadcast %cst_60 : f32 to vector<8x128xf32>
    %120 = arith.addf %118, %119 : vector<8x128xf32>
    %121 = arith.mulf %110, %40 : vector<8x128xf32>
    %122 = arith.mulf %102, %112 : vector<8x128xf32>
    %123 = arith.addf %121, %122 : vector<8x128xf32>
    %124 = math.tanh %123 : vector<8x128xf32>
    %125 = arith.mulf %120, %124 : vector<8x128xf32>
    %c0_61 = arith.constant 0 : index
    %c0_62 = arith.constant 0 : index
    %126 = vector.load %arg4[%c0_61, %c0_62] : memref<128x512xf32, #tpu.memory_space<vmem>>, vector<128x512xf32>
    %cst_63 = arith.constant dense<0.000000e+00> : vector<8x512xf32>
    %127 = tpu.matmul %125, %126, %cst_63 {dimension_numbers = #tpu.dot_dimension_numbers<[1], [0], [0], [1], [0, 0, 1, 1], [], []>} : vector<8x128xf32>, vector<128x512xf32>, vector<8x512xf32> -> vector<8x512xf32>
    %c0_64 = arith.constant 0 : index
    %c0_65 = arith.constant 0 : index
    %128 = vector.load %arg5[%c0_64, %c0_65] : memref<128x512xf32, #tpu.memory_space<vmem>>, vector<128x512xf32>
    %cst_66 = arith.constant dense<0.000000e+00> : vector<8x512xf32>
    %129 = tpu.matmul %81, %128, %cst_66 {dimension_numbers = #tpu.dot_dimension_numbers<[1], [0], [0], [1], [0, 0, 1, 1], [], []>} : vector<8x128xf32>, vector<128x512xf32>, vector<8x512xf32> -> vector<8x512xf32>
    %130 = arith.addf %127, %129 : vector<8x512xf32>
    %c0_67 = arith.constant 0 : index
    %c0_68 = arith.constant 0 : index
    %131 = vector.load %arg6[%c0_67, %c0_68] : memref<1x512xf32, #tpu.memory_space<vmem>>, vector<1x512xf32>
    %132 = vector.broadcast %131 : vector<1x512xf32> to vector<8x512xf32>
    %133 = arith.addf %130, %132 : vector<8x512xf32>
    %134 = vector.extract_strided_slice %133 {offsets = [0, 0], sizes = [8, 128], strides = [1, 1]} : vector<8x512xf32> to vector<8x128xf32>
    %cst_69 = arith.constant 5.000000e-01 : f32
    %135 = vector.broadcast %cst_69 : f32 to vector<8x128xf32>
    %136 = arith.mulf %135, %134 : vector<8x128xf32>
    %137 = math.tanh %136 : vector<8x128xf32>
    %cst_70 = arith.constant 5.000000e-01 : f32
    %138 = vector.broadcast %cst_70 : f32 to vector<8x128xf32>
    %139 = arith.mulf %138, %137 : vector<8x128xf32>
    %cst_71 = arith.constant 5.000000e-01 : f32
    %140 = vector.broadcast %cst_71 : f32 to vector<8x128xf32>
    %141 = arith.addf %139, %140 : vector<8x128xf32>
    %142 = vector.extract_strided_slice %133 {offsets = [0, 128], sizes = [8, 128], strides = [1, 1]} : vector<8x512xf32> to vector<8x128xf32>
    %cst_72 = arith.constant 5.000000e-01 : f32
    %143 = vector.broadcast %cst_72 : f32 to vector<8x128xf32>
    %144 = arith.mulf %143, %142 : vector<8x128xf32>
    %145 = math.tanh %144 : vector<8x128xf32>
    %cst_73 = arith.constant 5.000000e-01 : f32
    %146 = vector.broadcast %cst_73 : f32 to vector<8x128xf32>
    %147 = arith.mulf %146, %145 : vector<8x128xf32>
    %cst_74 = arith.constant 5.000000e-01 : f32
    %148 = vector.broadcast %cst_74 : f32 to vector<8x128xf32>
    %149 = arith.addf %147, %148 : vector<8x128xf32>
    %150 = vector.extract_strided_slice %133 {offsets = [0, 256], sizes = [8, 128], strides = [1, 1]} : vector<8x512xf32> to vector<8x128xf32>
    %151 = math.tanh %150 : vector<8x128xf32>
    %152 = vector.extract_strided_slice %133 {offsets = [0, 384], sizes = [8, 128], strides = [1, 1]} : vector<8x512xf32> to vector<8x128xf32>
    %cst_75 = arith.constant 5.000000e-01 : f32
    %153 = vector.broadcast %cst_75 : f32 to vector<8x128xf32>
    %154 = arith.mulf %153, %152 : vector<8x128xf32>
    %155 = math.tanh %154 : vector<8x128xf32>
    %cst_76 = arith.constant 5.000000e-01 : f32
    %156 = vector.broadcast %cst_76 : f32 to vector<8x128xf32>
    %157 = arith.mulf %156, %155 : vector<8x128xf32>
    %cst_77 = arith.constant 5.000000e-01 : f32
    %158 = vector.broadcast %cst_77 : f32 to vector<8x128xf32>
    %159 = arith.addf %157, %158 : vector<8x128xf32>
    %160 = arith.mulf %149, %79 : vector<8x128xf32>
    %161 = arith.mulf %141, %151 : vector<8x128xf32>
    %162 = arith.addf %160, %161 : vector<8x128xf32>
    %163 = math.tanh %162 : vector<8x128xf32>
    %164 = arith.mulf %159, %163 : vector<8x128xf32>
    %c0_78 = arith.constant 0 : index
    %c0_79 = arith.constant 0 : index
    %165 = vector.load %arg7[%c0_78, %c0_79] : memref<128x1xf32, #tpu.memory_space<vmem>>, vector<128x1xf32>
    %cst_80 = arith.constant dense<0.000000e+00> : vector<8x1xf32>
    %166 = tpu.matmul %164, %165, %cst_80 {dimension_numbers = #tpu.dot_dimension_numbers<[1], [0], [0], [1], [0, 0, 1, 1], [], []>} : vector<8x128xf32>, vector<128x1xf32>, vector<8x1xf32> -> vector<8x1xf32>
    %c0_81 = arith.constant 0 : index
    %c0_82 = arith.constant 0 : index
    %167 = vector.load %arg8[%c0_81, %c0_82] : memref<1x1xf32, #tpu.memory_space<vmem>>, vector<1x1xf32>
    %168 = vector.broadcast %167 : vector<1x1xf32> to vector<8x1xf32>
    %169 = arith.addf %166, %168 : vector<8x1xf32>
    %c1_83 = arith.constant 1 : index
    %c0_84 = arith.constant 0 : index
    %c0_85 = arith.constant 0 : index
    %170 = vector.load %arg9[%c1_83, %c0_84, %c0_85] : memref<8x8x1xf32, #tpu.memory_space<vmem>>, vector<1x8x1xf32>
    %171 = vector.shape_cast %170 : vector<1x8x1xf32> to vector<8x1xf32>
    %172 = vector.shape_cast %169 : vector<8x1xf32> to vector<1x8x1xf32>
    tpu.vector_store %arg9[%c1_83, %c0_84, %c0_85], %172 {strides = array<i32>} : memref<8x8x1xf32, #tpu.memory_space<vmem>>, vector<1x8x1xf32>,
    %c2 = arith.constant 2 : index
    %c0_86 = arith.constant 0 : index
    %c0_87 = arith.constant 0 : index
    %173 = vector.load %arg2[%c2, %c0_86, %c0_87] : memref<8x8x512xf32, #tpu.memory_space<vmem>>, vector<1x8x512xf32>
    %174 = vector.shape_cast %173 : vector<1x8x512xf32> to vector<8x512xf32>
    %c0_88 = arith.constant 0 : index
    %c0_89 = arith.constant 0 : index
    %175 = vector.load %arg3[%c0_88, %c0_89] : memref<128x512xf32, #tpu.memory_space<vmem>>, vector<128x512xf32>
    %cst_90 = arith.constant dense<0.000000e+00> : vector<8x512xf32>
    %176 = tpu.matmul %125, %175, %cst_90 {dimension_numbers = #tpu.dot_dimension_numbers<[1], [0], [0], [1], [0, 0, 1, 1], [], []>} : vector<8x128xf32>, vector<128x512xf32>, vector<8x512xf32> -> vector<8x512xf32>
    %177 = arith.addf %174, %176 : vector<8x512xf32>
    %178 = vector.extract_strided_slice %177 {offsets = [0, 0], sizes = [8, 128], strides = [1, 1]} : vector<8x512xf32> to vector<8x128xf32>
    %cst_91 = arith.constant 5.000000e-01 : f32
    %179 = vector.broadcast %cst_91 : f32 to vector<8x128xf32>
    %180 = arith.mulf %179, %178 : vector<8x128xf32>
    %181 = math.tanh %180 : vector<8x128xf32>
    %cst_92 = arith.constant 5.000000e-01 : f32
    %182 = vector.broadcast %cst_92 : f32 to vector<8x128xf32>
    %183 = arith.mulf %182, %181 : vector<8x128xf32>
    %cst_93 = arith.constant 5.000000e-01 : f32
    %184 = vector.broadcast %cst_93 : f32 to vector<8x128xf32>
    %185 = arith.addf %183, %184 : vector<8x128xf32>
    %186 = vector.extract_strided_slice %177 {offsets = [0, 128], sizes = [8, 128], strides = [1, 1]} : vector<8x512xf32> to vector<8x128xf32>
    %cst_94 = arith.constant 5.000000e-01 : f32
    %187 = vector.broadcast %cst_94 : f32 to vector<8x128xf32>
    %188 = arith.mulf %187, %186 : vector<8x128xf32>
    %189 = math.tanh %188 : vector<8x128xf32>
    %cst_95 = arith.constant 5.000000e-01 : f32
    %190 = vector.broadcast %cst_95 : f32 to vector<8x128xf32>
    %191 = arith.mulf %190, %189 : vector<8x128xf32>
    %cst_96 = arith.constant 5.000000e-01 : f32
    %192 = vector.broadcast %cst_96 : f32 to vector<8x128xf32>
    %193 = arith.addf %191, %192 : vector<8x128xf32>
    %194 = vector.extract_strided_slice %177 {offsets = [0, 256], sizes = [8, 128], strides = [1, 1]} : vector<8x512xf32> to vector<8x128xf32>
    %195 = math.tanh %194 : vector<8x128xf32>
    %196 = vector.extract_strided_slice %177 {offsets = [0, 384], sizes = [8, 128], strides = [1, 1]} : vector<8x512xf32> to vector<8x128xf32>
    %cst_97 = arith.constant 5.000000e-01 : f32
    %197 = vector.broadcast %cst_97 : f32 to vector<8x128xf32>
    %198 = arith.mulf %197, %196 : vector<8x128xf32>
    %199 = math.tanh %198 : vector<8x128xf32>
    %cst_98 = arith.constant 5.000000e-01 : f32
    %200 = vector.broadcast %cst_98 : f32 to vector<8x128xf32>
    %201 = arith.mulf %200, %199 : vector<8x128xf32>
    %cst_99 = arith.constant 5.000000e-01 : f32
    %202 = vector.broadcast %cst_99 : f32 to vector<8x128xf32>
    %203 = arith.addf %201, %202 : vector<8x128xf32>
    %204 = arith.mulf %193, %123 : vector<8x128xf32>
    %205 = arith.mulf %185, %195 : vector<8x128xf32>
    %206 = arith.addf %204, %205 : vector<8x128xf32>
    %207 = math.tanh %206 : vector<8x128xf32>
    %208 = arith.mulf %203, %207 : vector<8x128xf32>
    %c0_100 = arith.constant 0 : index
    %c0_101 = arith.constant 0 : index
    %209 = vector.load %arg4[%c0_100, %c0_101] : memref<128x512xf32, #tpu.memory_space<vmem>>, vector<128x512xf32>
    %cst_102 = arith.constant dense<0.000000e+00> : vector<8x512xf32>
    %210 = tpu.matmul %208, %209, %cst_102 {dimension_numbers = #tpu.dot_dimension_numbers<[1], [0], [0], [1], [0, 0, 1, 1], [], []>} : vector<8x128xf32>, vector<128x512xf32>, vector<8x512xf32> -> vector<8x512xf32>
    %c0_103 = arith.constant 0 : index
    %c0_104 = arith.constant 0 : index
    %211 = vector.load %arg5[%c0_103, %c0_104] : memref<128x512xf32, #tpu.memory_space<vmem>>, vector<128x512xf32>
    %cst_105 = arith.constant dense<0.000000e+00> : vector<8x512xf32>
    %212 = tpu.matmul %164, %211, %cst_105 {dimension_numbers = #tpu.dot_dimension_numbers<[1], [0], [0], [1], [0, 0, 1, 1], [], []>} : vector<8x128xf32>, vector<128x512xf32>, vector<8x512xf32> -> vector<8x512xf32>
    %213 = arith.addf %210, %212 : vector<8x512xf32>
    %c0_106 = arith.constant 0 : index
    %c0_107 = arith.constant 0 : index
    %214 = vector.load %arg6[%c0_106, %c0_107] : memref<1x512xf32, #tpu.memory_space<vmem>>, vector<1x512xf32>
    %215 = vector.broadcast %214 : vector<1x512xf32> to vector<8x512xf32>
    %216 = arith.addf %213, %215 : vector<8x512xf32>
    %217 = vector.extract_strided_slice %216 {offsets = [0, 0], sizes = [8, 128], strides = [1, 1]} : vector<8x512xf32> to vector<8x128xf32>
    %cst_108 = arith.constant 5.000000e-01 : f32
    %218 = vector.broadcast %cst_108 : f32 to vector<8x128xf32>
    %219 = arith.mulf %218, %217 : vector<8x128xf32>
    %220 = math.tanh %219 : vector<8x128xf32>
    %cst_109 = arith.constant 5.000000e-01 : f32
    %221 = vector.broadcast %cst_109 : f32 to vector<8x128xf32>
    %222 = arith.mulf %221, %220 : vector<8x128xf32>
    %cst_110 = arith.constant 5.000000e-01 : f32
    %223 = vector.broadcast %cst_110 : f32 to vector<8x128xf32>
    %224 = arith.addf %222, %223 : vector<8x128xf32>
    %225 = vector.extract_strided_slice %216 {offsets = [0, 128], sizes = [8, 128], strides = [1, 1]} : vector<8x512xf32> to vector<8x128xf32>
    %cst_111 = arith.constant 5.000000e-01 : f32
    %226 = vector.broadcast %cst_111 : f32 to vector<8x128xf32>
    %227 = arith.mulf %226, %225 : vector<8x128xf32>
    %228 = math.tanh %227 : vector<8x128xf32>
    %cst_112 = arith.constant 5.000000e-01 : f32
    %229 = vector.broadcast %cst_112 : f32 to vector<8x128xf32>
    %230 = arith.mulf %229, %228 : vector<8x128xf32>
    %cst_113 = arith.constant 5.000000e-01 : f32
    %231 = vector.broadcast %cst_113 : f32 to vector<8x128xf32>
    %232 = arith.addf %230, %231 : vector<8x128xf32>
    %233 = vector.extract_strided_slice %216 {offsets = [0, 256], sizes = [8, 128], strides = [1, 1]} : vector<8x512xf32> to vector<8x128xf32>
    %234 = math.tanh %233 : vector<8x128xf32>
    %235 = vector.extract_strided_slice %216 {offsets = [0, 384], sizes = [8, 128], strides = [1, 1]} : vector<8x512xf32> to vector<8x128xf32>
    %cst_114 = arith.constant 5.000000e-01 : f32
    %236 = vector.broadcast %cst_114 : f32 to vector<8x128xf32>
    %237 = arith.mulf %236, %235 : vector<8x128xf32>
    %238 = math.tanh %237 : vector<8x128xf32>
    %cst_115 = arith.constant 5.000000e-01 : f32
    %239 = vector.broadcast %cst_115 : f32 to vector<8x128xf32>
    %240 = arith.mulf %239, %238 : vector<8x128xf32>
    %cst_116 = arith.constant 5.000000e-01 : f32
    %241 = vector.broadcast %cst_116 : f32 to vector<8x128xf32>
    %242 = arith.addf %240, %241 : vector<8x128xf32>
    %243 = arith.mulf %232, %162 : vector<8x128xf32>
    %244 = arith.mulf %224, %234 : vector<8x128xf32>
    %245 = arith.addf %243, %244 : vector<8x128xf32>
    %246 = math.tanh %245 : vector<8x128xf32>
    %247 = arith.mulf %242, %246 : vector<8x128xf32>
    %c0_117 = arith.constant 0 : index
    %c0_118 = arith.constant 0 : index
    %248 = vector.load %arg7[%c0_117, %c0_118] : memref<128x1xf32, #tpu.memory_space<vmem>>, vector<128x1xf32>
    %cst_119 = arith.constant dense<0.000000e+00> : vector<8x1xf32>
    %249 = tpu.matmul %247, %248, %cst_119 {dimension_numbers = #tpu.dot_dimension_numbers<[1], [0], [0], [1], [0, 0, 1, 1], [], []>} : vector<8x128xf32>, vector<128x1xf32>, vector<8x1xf32> -> vector<8x1xf32>
    %c0_120 = arith.constant 0 : index
    %c0_121 = arith.constant 0 : index
    %250 = vector.load %arg8[%c0_120, %c0_121] : memref<1x1xf32, #tpu.memory_space<vmem>>, vector<1x1xf32>
    %251 = vector.broadcast %250 : vector<1x1xf32> to vector<8x1xf32>
    %252 = arith.addf %249, %251 : vector<8x1xf32>
    %c2_122 = arith.constant 2 : index
    %c0_123 = arith.constant 0 : index
    %c0_124 = arith.constant 0 : index
    %253 = vector.load %arg9[%c2_122, %c0_123, %c0_124] : memref<8x8x1xf32, #tpu.memory_space<vmem>>, vector<1x8x1xf32>
    %254 = vector.shape_cast %253 : vector<1x8x1xf32> to vector<8x1xf32>
    %255 = vector.shape_cast %252 : vector<8x1xf32> to vector<1x8x1xf32>
    tpu.vector_store %arg9[%c2_122, %c0_123, %c0_124], %255 {strides = array<i32>} : memref<8x8x1xf32, #tpu.memory_space<vmem>>, vector<1x8x1xf32>,
    %c3 = arith.constant 3 : index
    %c0_125 = arith.constant 0 : index
    %c0_126 = arith.constant 0 : index
    %256 = vector.load %arg2[%c3, %c0_125, %c0_126] : memref<8x8x512xf32, #tpu.memory_space<vmem>>, vector<1x8x512xf32>
    %257 = vector.shape_cast %256 : vector<1x8x512xf32> to vector<8x512xf32>
    %c0_127 = arith.constant 0 : index
    %c0_128 = arith.constant 0 : index
    %258 = vector.load %arg3[%c0_127, %c0_128] : memref<128x512xf32, #tpu.memory_space<vmem>>, vector<128x512xf32>
    %cst_129 = arith.constant dense<0.000000e+00> : vector<8x512xf32>
    %259 = tpu.matmul %208, %258, %cst_129 {dimension_numbers = #tpu.dot_dimension_numbers<[1], [0], [0], [1], [0, 0, 1, 1], [], []>} : vector<8x128xf32>, vector<128x512xf32>, vector<8x512xf32> -> vector<8x512xf32>
    %260 = arith.addf %257, %259 : vector<8x512xf32>
    %261 = vector.extract_strided_slice %260 {offsets = [0, 0], sizes = [8, 128], strides = [1, 1]} : vector<8x512xf32> to vector<8x128xf32>
    %cst_130 = arith.constant 5.000000e-01 : f32
    %262 = vector.broadcast %cst_130 : f32 to vector<8x128xf32>
    %263 = arith.mulf %262, %261 : vector<8x128xf32>
    %264 = math.tanh %263 : vector<8x128xf32>
    %cst_131 = arith.constant 5.000000e-01 : f32
    %265 = vector.broadcast %cst_131 : f32 to vector<8x128xf32>
    %266 = arith.mulf %265, %264 : vector<8x128xf32>
    %cst_132 = arith.constant 5.000000e-01 : f32
    %267 = vector.broadcast %cst_132 : f32 to vector<8x128xf32>
    %268 = arith.addf %266, %267 : vector<8x128xf32>
    %269 = vector.extract_strided_slice %260 {offsets = [0, 128], sizes = [8, 128], strides = [1, 1]} : vector<8x512xf32> to vector<8x128xf32>
    %cst_133 = arith.constant 5.000000e-01 : f32
    %270 = vector.broadcast %cst_133 : f32 to vector<8x128xf32>
    %271 = arith.mulf %270, %269 : vector<8x128xf32>
    %272 = math.tanh %271 : vector<8x128xf32>
    %cst_134 = arith.constant 5.000000e-01 : f32
    %273 = vector.broadcast %cst_134 : f32 to vector<8x128xf32>
    %274 = arith.mulf %273, %272 : vector<8x128xf32>
    %cst_135 = arith.constant 5.000000e-01 : f32
    %275 = vector.broadcast %cst_135 : f32 to vector<8x128xf32>
    %276 = arith.addf %274, %275 : vector<8x128xf32>
    %277 = vector.extract_strided_slice %260 {offsets = [0, 256], sizes = [8, 128], strides = [1, 1]} : vector<8x512xf32> to vector<8x128xf32>
    %278 = math.tanh %277 : vector<8x128xf32>
    %279 = vector.extract_strided_slice %260 {offsets = [0, 384], sizes = [8, 128], strides = [1, 1]} : vector<8x512xf32> to vector<8x128xf32>
    %cst_136 = arith.constant 5.000000e-01 : f32
    %280 = vector.broadcast %cst_136 : f32 to vector<8x128xf32>
    %281 = arith.mulf %280, %279 : vector<8x128xf32>
    %282 = math.tanh %281 : vector<8x128xf32>
    %cst_137 = arith.constant 5.000000e-01 : f32
    %283 = vector.broadcast %cst_137 : f32 to vector<8x128xf32>
    %284 = arith.mulf %283, %282 : vector<8x128xf32>
    %cst_138 = arith.constant 5.000000e-01 : f32
    %285 = vector.broadcast %cst_138 : f32 to vector<8x128xf32>
    %286 = arith.addf %284, %285 : vector<8x128xf32>
    %287 = arith.mulf %276, %206 : vector<8x128xf32>
    %288 = arith.mulf %268, %278 : vector<8x128xf32>
    %289 = arith.addf %287, %288 : vector<8x128xf32>
    %290 = math.tanh %289 : vector<8x128xf32>
    %291 = arith.mulf %286, %290 : vector<8x128xf32>
    %c0_139 = arith.constant 0 : index
    %c0_140 = arith.constant 0 : index
    %292 = vector.load %arg4[%c0_139, %c0_140] : memref<128x512xf32, #tpu.memory_space<vmem>>, vector<128x512xf32>
    %cst_141 = arith.constant dense<0.000000e+00> : vector<8x512xf32>
    %293 = tpu.matmul %291, %292, %cst_141 {dimension_numbers = #tpu.dot_dimension_numbers<[1], [0], [0], [1], [0, 0, 1, 1], [], []>} : vector<8x128xf32>, vector<128x512xf32>, vector<8x512xf32> -> vector<8x512xf32>
    %c0_142 = arith.constant 0 : index
    %c0_143 = arith.constant 0 : index
    %294 = vector.load %arg5[%c0_142, %c0_143] : memref<128x512xf32, #tpu.memory_space<vmem>>, vector<128x512xf32>
    %cst_144 = arith.constant dense<0.000000e+00> : vector<8x512xf32>
    %295 = tpu.matmul %247, %294, %cst_144 {dimension_numbers = #tpu.dot_dimension_numbers<[1], [0], [0], [1], [0, 0, 1, 1], [], []>} : vector<8x128xf32>, vector<128x512xf32>, vector<8x512xf32> -> vector<8x512xf32>
    %296 = arith.addf %293, %295 : vector<8x512xf32>
    %c0_145 = arith.constant 0 : index
    %c0_146 = arith.constant 0 : index
    %297 = vector.load %arg6[%c0_145, %c0_146] : memref<1x512xf32, #tpu.memory_space<vmem>>, vector<1x512xf32>
    %298 = vector.broadcast %297 : vector<1x512xf32> to vector<8x512xf32>
    %299 = arith.addf %296, %298 : vector<8x512xf32>
    %300 = vector.extract_strided_slice %299 {offsets = [0, 0], sizes = [8, 128], strides = [1, 1]} : vector<8x512xf32> to vector<8x128xf32>
    %cst_147 = arith.constant 5.000000e-01 : f32
    %301 = vector.broadcast %cst_147 : f32 to vector<8x128xf32>
    %302 = arith.mulf %301, %300 : vector<8x128xf32>
    %303 = math.tanh %302 : vector<8x128xf32>
    %cst_148 = arith.constant 5.000000e-01 : f32
    %304 = vector.broadcast %cst_148 : f32 to vector<8x128xf32>
    %305 = arith.mulf %304, %303 : vector<8x128xf32>
    %cst_149 = arith.constant 5.000000e-01 : f32
    %306 = vector.broadcast %cst_149 : f32 to vector<8x128xf32>
    %307 = arith.addf %305, %306 : vector<8x128xf32>
    %308 = vector.extract_strided_slice %299 {offsets = [0, 128], sizes = [8, 128], strides = [1, 1]} : vector<8x512xf32> to vector<8x128xf32>
    %cst_150 = arith.constant 5.000000e-01 : f32
    %309 = vector.broadcast %cst_150 : f32 to vector<8x128xf32>
    %310 = arith.mulf %309, %308 : vector<8x128xf32>
    %311 = math.tanh %310 : vector<8x128xf32>
    %cst_151 = arith.constant 5.000000e-01 : f32
    %312 = vector.broadcast %cst_151 : f32 to vector<8x128xf32>
    %313 = arith.mulf %312, %311 : vector<8x128xf32>
    %cst_152 = arith.constant 5.000000e-01 : f32
    %314 = vector.broadcast %cst_152 : f32 to vector<8x128xf32>
    %315 = arith.addf %313, %314 : vector<8x128xf32>
    %316 = vector.extract_strided_slice %299 {offsets = [0, 256], sizes = [8, 128], strides = [1, 1]} : vector<8x512xf32> to vector<8x128xf32>
    %317 = math.tanh %316 : vector<8x128xf32>
    %318 = vector.extract_strided_slice %299 {offsets = [0, 384], sizes = [8, 128], strides = [1, 1]} : vector<8x512xf32> to vector<8x128xf32>
    %cst_153 = arith.constant 5.000000e-01 : f32
    %319 = vector.broadcast %cst_153 : f32 to vector<8x128xf32>
    %320 = arith.mulf %319, %318 : vector<8x128xf32>
    %321 = math.tanh %320 : vector<8x128xf32>
    %cst_154 = arith.constant 5.000000e-01 : f32
    %322 = vector.broadcast %cst_154 : f32 to vector<8x128xf32>
    %323 = arith.mulf %322, %321 : vector<8x128xf32>
    %cst_155 = arith.constant 5.000000e-01 : f32
    %324 = vector.broadcast %cst_155 : f32 to vector<8x128xf32>
    %325 = arith.addf %323, %324 : vector<8x128xf32>
    %326 = arith.mulf %315, %245 : vector<8x128xf32>
    %327 = arith.mulf %307, %317 : vector<8x128xf32>
    %328 = arith.addf %326, %327 : vector<8x128xf32>
    %329 = math.tanh %328 : vector<8x128xf32>
    %330 = arith.mulf %325, %329 : vector<8x128xf32>
    %c0_156 = arith.constant 0 : index
    %c0_157 = arith.constant 0 : index
    %331 = vector.load %arg7[%c0_156, %c0_157] : memref<128x1xf32, #tpu.memory_space<vmem>>, vector<128x1xf32>
    %cst_158 = arith.constant dense<0.000000e+00> : vector<8x1xf32>
    %332 = tpu.matmul %330, %331, %cst_158 {dimension_numbers = #tpu.dot_dimension_numbers<[1], [0], [0], [1], [0, 0, 1, 1], [], []>} : vector<8x128xf32>, vector<128x1xf32>, vector<8x1xf32> -> vector<8x1xf32>
    %c0_159 = arith.constant 0 : index
    %c0_160 = arith.constant 0 : index
    %333 = vector.load %arg8[%c0_159, %c0_160] : memref<1x1xf32, #tpu.memory_space<vmem>>, vector<1x1xf32>
    %334 = vector.broadcast %333 : vector<1x1xf32> to vector<8x1xf32>
    %335 = arith.addf %332, %334 : vector<8x1xf32>
    %c3_161 = arith.constant 3 : index
    %c0_162 = arith.constant 0 : index
    %c0_163 = arith.constant 0 : index
    %336 = vector.load %arg9[%c3_161, %c0_162, %c0_163] : memref<8x8x1xf32, #tpu.memory_space<vmem>>, vector<1x8x1xf32>
    %337 = vector.shape_cast %336 : vector<1x8x1xf32> to vector<8x1xf32>
    %338 = vector.shape_cast %335 : vector<8x1xf32> to vector<1x8x1xf32>
    tpu.vector_store %arg9[%c3_161, %c0_162, %c0_163], %338 {strides = array<i32>} : memref<8x8x1xf32, #tpu.memory_space<vmem>>, vector<1x8x1xf32>,
    %c4 = arith.constant 4 : index
    %c0_164 = arith.constant 0 : index
    %c0_165 = arith.constant 0 : index
    %339 = vector.load %arg2[%c4, %c0_164, %c0_165] : memref<8x8x512xf32, #tpu.memory_space<vmem>>, vector<1x8x512xf32>
    %340 = vector.shape_cast %339 : vector<1x8x512xf32> to vector<8x512xf32>
    %c0_166 = arith.constant 0 : index
    %c0_167 = arith.constant 0 : index
    %341 = vector.load %arg3[%c0_166, %c0_167] : memref<128x512xf32, #tpu.memory_space<vmem>>, vector<128x512xf32>
    %cst_168 = arith.constant dense<0.000000e+00> : vector<8x512xf32>
    %342 = tpu.matmul %291, %341, %cst_168 {dimension_numbers = #tpu.dot_dimension_numbers<[1], [0], [0], [1], [0, 0, 1, 1], [], []>} : vector<8x128xf32>, vector<128x512xf32>, vector<8x512xf32> -> vector<8x512xf32>
    %343 = arith.addf %340, %342 : vector<8x512xf32>
    %344 = vector.extract_strided_slice %343 {offsets = [0, 0], sizes = [8, 128], strides = [1, 1]} : vector<8x512xf32> to vector<8x128xf32>
    %cst_169 = arith.constant 5.000000e-01 : f32
    %345 = vector.broadcast %cst_169 : f32 to vector<8x128xf32>
    %346 = arith.mulf %345, %344 : vector<8x128xf32>
    %347 = math.tanh %346 : vector<8x128xf32>
    %cst_170 = arith.constant 5.000000e-01 : f32
    %348 = vector.broadcast %cst_170 : f32 to vector<8x128xf32>
    %349 = arith.mulf %348, %347 : vector<8x128xf32>
    %cst_171 = arith.constant 5.000000e-01 : f32
    %350 = vector.broadcast %cst_171 : f32 to vector<8x128xf32>
    %351 = arith.addf %349, %350 : vector<8x128xf32>
    %352 = vector.extract_strided_slice %343 {offsets = [0, 128], sizes = [8, 128], strides = [1, 1]} : vector<8x512xf32> to vector<8x128xf32>
    %cst_172 = arith.constant 5.000000e-01 : f32
    %353 = vector.broadcast %cst_172 : f32 to vector<8x128xf32>
    %354 = arith.mulf %353, %352 : vector<8x128xf32>
    %355 = math.tanh %354 : vector<8x128xf32>
    %cst_173 = arith.constant 5.000000e-01 : f32
    %356 = vector.broadcast %cst_173 : f32 to vector<8x128xf32>
    %357 = arith.mulf %356, %355 : vector<8x128xf32>
    %cst_174 = arith.constant 5.000000e-01 : f32
    %358 = vector.broadcast %cst_174 : f32 to vector<8x128xf32>
    %359 = arith.addf %357, %358 : vector<8x128xf32>
    %360 = vector.extract_strided_slice %343 {offsets = [0, 256], sizes = [8, 128], strides = [1, 1]} : vector<8x512xf32> to vector<8x128xf32>
    %361 = math.tanh %360 : vector<8x128xf32>
    %362 = vector.extract_strided_slice %343 {offsets = [0, 384], sizes = [8, 128], strides = [1, 1]} : vector<8x512xf32> to vector<8x128xf32>
    %cst_175 = arith.constant 5.000000e-01 : f32
    %363 = vector.broadcast %cst_175 : f32 to vector<8x128xf32>
    %364 = arith.mulf %363, %362 : vector<8x128xf32>
    %365 = math.tanh %364 : vector<8x128xf32>
    %cst_176 = arith.constant 5.000000e-01 : f32
    %366 = vector.broadcast %cst_176 : f32 to vector<8x128xf32>
    %367 = arith.mulf %366, %365 : vector<8x128xf32>
    %cst_177 = arith.constant 5.000000e-01 : f32
    %368 = vector.broadcast %cst_177 : f32 to vector<8x128xf32>
    %369 = arith.addf %367, %368 : vector<8x128xf32>
    %370 = arith.mulf %359, %289 : vector<8x128xf32>
    %371 = arith.mulf %351, %361 : vector<8x128xf32>
    %372 = arith.addf %370, %371 : vector<8x128xf32>
    %373 = math.tanh %372 : vector<8x128xf32>
    %374 = arith.mulf %369, %373 : vector<8x128xf32>
    %c0_178 = arith.constant 0 : index
    %c0_179 = arith.constant 0 : index
    %375 = vector.load %arg4[%c0_178, %c0_179] : memref<128x512xf32, #tpu.memory_space<vmem>>, vector<128x512xf32>
    %cst_180 = arith.constant dense<0.000000e+00> : vector<8x512xf32>
    %376 = tpu.matmul %374, %375, %cst_180 {dimension_numbers = #tpu.dot_dimension_numbers<[1], [0], [0], [1], [0, 0, 1, 1], [], []>} : vector<8x128xf32>, vector<128x512xf32>, vector<8x512xf32> -> vector<8x512xf32>
    %c0_181 = arith.constant 0 : index
    %c0_182 = arith.constant 0 : index
    %377 = vector.load %arg5[%c0_181, %c0_182] : memref<128x512xf32, #tpu.memory_space<vmem>>, vector<128x512xf32>
    %cst_183 = arith.constant dense<0.000000e+00> : vector<8x512xf32>
    %378 = tpu.matmul %330, %377, %cst_183 {dimension_numbers = #tpu.dot_dimension_numbers<[1], [0], [0], [1], [0, 0, 1, 1], [], []>} : vector<8x128xf32>, vector<128x512xf32>, vector<8x512xf32> -> vector<8x512xf32>
    %379 = arith.addf %376, %378 : vector<8x512xf32>
    %c0_184 = arith.constant 0 : index
    %c0_185 = arith.constant 0 : index
    %380 = vector.load %arg6[%c0_184, %c0_185] : memref<1x512xf32, #tpu.memory_space<vmem>>, vector<1x512xf32>
    %381 = vector.broadcast %380 : vector<1x512xf32> to vector<8x512xf32>
    %382 = arith.addf %379, %381 : vector<8x512xf32>
    %383 = vector.extract_strided_slice %382 {offsets = [0, 0], sizes = [8, 128], strides = [1, 1]} : vector<8x512xf32> to vector<8x128xf32>
    %cst_186 = arith.constant 5.000000e-01 : f32
    %384 = vector.broadcast %cst_186 : f32 to vector<8x128xf32>
    %385 = arith.mulf %384, %383 : vector<8x128xf32>
    %386 = math.tanh %385 : vector<8x128xf32>
    %cst_187 = arith.constant 5.000000e-01 : f32
    %387 = vector.broadcast %cst_187 : f32 to vector<8x128xf32>
    %388 = arith.mulf %387, %386 : vector<8x128xf32>
    %cst_188 = arith.constant 5.000000e-01 : f32
    %389 = vector.broadcast %cst_188 : f32 to vector<8x128xf32>
    %390 = arith.addf %388, %389 : vector<8x128xf32>
    %391 = vector.extract_strided_slice %382 {offsets = [0, 128], sizes = [8, 128], strides = [1, 1]} : vector<8x512xf32> to vector<8x128xf32>
    %cst_189 = arith.constant 5.000000e-01 : f32
    %392 = vector.broadcast %cst_189 : f32 to vector<8x128xf32>
    %393 = arith.mulf %392, %391 : vector<8x128xf32>
    %394 = math.tanh %393 : vector<8x128xf32>
    %cst_190 = arith.constant 5.000000e-01 : f32
    %395 = vector.broadcast %cst_190 : f32 to vector<8x128xf32>
    %396 = arith.mulf %395, %394 : vector<8x128xf32>
    %cst_191 = arith.constant 5.000000e-01 : f32
    %397 = vector.broadcast %cst_191 : f32 to vector<8x128xf32>
    %398 = arith.addf %396, %397 : vector<8x128xf32>
    %399 = vector.extract_strided_slice %382 {offsets = [0, 256], sizes = [8, 128], strides = [1, 1]} : vector<8x512xf32> to vector<8x128xf32>
    %400 = math.tanh %399 : vector<8x128xf32>
    %401 = vector.extract_strided_slice %382 {offsets = [0, 384], sizes = [8, 128], strides = [1, 1]} : vector<8x512xf32> to vector<8x128xf32>
    %cst_192 = arith.constant 5.000000e-01 : f32
    %402 = vector.broadcast %cst_192 : f32 to vector<8x128xf32>
    %403 = arith.mulf %402, %401 : vector<8x128xf32>
    %404 = math.tanh %403 : vector<8x128xf32>
    %cst_193 = arith.constant 5.000000e-01 : f32
    %405 = vector.broadcast %cst_193 : f32 to vector<8x128xf32>
    %406 = arith.mulf %405, %404 : vector<8x128xf32>
    %cst_194 = arith.constant 5.000000e-01 : f32
    %407 = vector.broadcast %cst_194 : f32 to vector<8x128xf32>
    %408 = arith.addf %406, %407 : vector<8x128xf32>
    %409 = arith.mulf %398, %328 : vector<8x128xf32>
    %410 = arith.mulf %390, %400 : vector<8x128xf32>
    %411 = arith.addf %409, %410 : vector<8x128xf32>
    %412 = math.tanh %411 : vector<8x128xf32>
    %413 = arith.mulf %408, %412 : vector<8x128xf32>
    %c0_195 = arith.constant 0 : index
    %c0_196 = arith.constant 0 : index
    %414 = vector.load %arg7[%c0_195, %c0_196] : memref<128x1xf32, #tpu.memory_space<vmem>>, vector<128x1xf32>
    %cst_197 = arith.constant dense<0.000000e+00> : vector<8x1xf32>
    %415 = tpu.matmul %413, %414, %cst_197 {dimension_numbers = #tpu.dot_dimension_numbers<[1], [0], [0], [1], [0, 0, 1, 1], [], []>} : vector<8x128xf32>, vector<128x1xf32>, vector<8x1xf32> -> vector<8x1xf32>
    %c0_198 = arith.constant 0 : index
    %c0_199 = arith.constant 0 : index
    %416 = vector.load %arg8[%c0_198, %c0_199] : memref<1x1xf32, #tpu.memory_space<vmem>>, vector<1x1xf32>
    %417 = vector.broadcast %416 : vector<1x1xf32> to vector<8x1xf32>
    %418 = arith.addf %415, %417 : vector<8x1xf32>
    %c4_200 = arith.constant 4 : index
    %c0_201 = arith.constant 0 : index
    %c0_202 = arith.constant 0 : index
    %419 = vector.load %arg9[%c4_200, %c0_201, %c0_202] : memref<8x8x1xf32, #tpu.memory_space<vmem>>, vector<1x8x1xf32>
    %420 = vector.shape_cast %419 : vector<1x8x1xf32> to vector<8x1xf32>
    %421 = vector.shape_cast %418 : vector<8x1xf32> to vector<1x8x1xf32>
    tpu.vector_store %arg9[%c4_200, %c0_201, %c0_202], %421 {strides = array<i32>} : memref<8x8x1xf32, #tpu.memory_space<vmem>>, vector<1x8x1xf32>,
    %c5 = arith.constant 5 : index
    %c0_203 = arith.constant 0 : index
    %c0_204 = arith.constant 0 : index
    %422 = vector.load %arg2[%c5, %c0_203, %c0_204] : memref<8x8x512xf32, #tpu.memory_space<vmem>>, vector<1x8x512xf32>
    %423 = vector.shape_cast %422 : vector<1x8x512xf32> to vector<8x512xf32>
    %c0_205 = arith.constant 0 : index
    %c0_206 = arith.constant 0 : index
    %424 = vector.load %arg3[%c0_205, %c0_206] : memref<128x512xf32, #tpu.memory_space<vmem>>, vector<128x512xf32>
    %cst_207 = arith.constant dense<0.000000e+00> : vector<8x512xf32>
    %425 = tpu.matmul %374, %424, %cst_207 {dimension_numbers = #tpu.dot_dimension_numbers<[1], [0], [0], [1], [0, 0, 1, 1], [], []>} : vector<8x128xf32>, vector<128x512xf32>, vector<8x512xf32> -> vector<8x512xf32>
    %426 = arith.addf %423, %425 : vector<8x512xf32>
    %427 = vector.extract_strided_slice %426 {offsets = [0, 0], sizes = [8, 128], strides = [1, 1]} : vector<8x512xf32> to vector<8x128xf32>
    %cst_208 = arith.constant 5.000000e-01 : f32
    %428 = vector.broadcast %cst_208 : f32 to vector<8x128xf32>
    %429 = arith.mulf %428, %427 : vector<8x128xf32>
    %430 = math.tanh %429 : vector<8x128xf32>
    %cst_209 = arith.constant 5.000000e-01 : f32
    %431 = vector.broadcast %cst_209 : f32 to vector<8x128xf32>
    %432 = arith.mulf %431, %430 : vector<8x128xf32>
    %cst_210 = arith.constant 5.000000e-01 : f32
    %433 = vector.broadcast %cst_210 : f32 to vector<8x128xf32>
    %434 = arith.addf %432, %433 : vector<8x128xf32>
    %435 = vector.extract_strided_slice %426 {offsets = [0, 128], sizes = [8, 128], strides = [1, 1]} : vector<8x512xf32> to vector<8x128xf32>
    %cst_211 = arith.constant 5.000000e-01 : f32
    %436 = vector.broadcast %cst_211 : f32 to vector<8x128xf32>
    %437 = arith.mulf %436, %435 : vector<8x128xf32>
    %438 = math.tanh %437 : vector<8x128xf32>
    %cst_212 = arith.constant 5.000000e-01 : f32
    %439 = vector.broadcast %cst_212 : f32 to vector<8x128xf32>
    %440 = arith.mulf %439, %438 : vector<8x128xf32>
    %cst_213 = arith.constant 5.000000e-01 : f32
    %441 = vector.broadcast %cst_213 : f32 to vector<8x128xf32>
    %442 = arith.addf %440, %441 : vector<8x128xf32>
    %443 = vector.extract_strided_slice %426 {offsets = [0, 256], sizes = [8, 128], strides = [1, 1]} : vector<8x512xf32> to vector<8x128xf32>
    %444 = math.tanh %443 : vector<8x128xf32>
    %445 = vector.extract_strided_slice %426 {offsets = [0, 384], sizes = [8, 128], strides = [1, 1]} : vector<8x512xf32> to vector<8x128xf32>
    %cst_214 = arith.constant 5.000000e-01 : f32
    %446 = vector.broadcast %cst_214 : f32 to vector<8x128xf32>
    %447 = arith.mulf %446, %445 : vector<8x128xf32>
    %448 = math.tanh %447 : vector<8x128xf32>
    %cst_215 = arith.constant 5.000000e-01 : f32
    %449 = vector.broadcast %cst_215 : f32 to vector<8x128xf32>
    %450 = arith.mulf %449, %448 : vector<8x128xf32>
    %cst_216 = arith.constant 5.000000e-01 : f32
    %451 = vector.broadcast %cst_216 : f32 to vector<8x128xf32>
    %452 = arith.addf %450, %451 : vector<8x128xf32>
    %453 = arith.mulf %442, %372 : vector<8x128xf32>
    %454 = arith.mulf %434, %444 : vector<8x128xf32>
    %455 = arith.addf %453, %454 : vector<8x128xf32>
    %456 = math.tanh %455 : vector<8x128xf32>
    %457 = arith.mulf %452, %456 : vector<8x128xf32>
    %c0_217 = arith.constant 0 : index
    %c0_218 = arith.constant 0 : index
    %458 = vector.load %arg4[%c0_217, %c0_218] : memref<128x512xf32, #tpu.memory_space<vmem>>, vector<128x512xf32>
    %cst_219 = arith.constant dense<0.000000e+00> : vector<8x512xf32>
    %459 = tpu.matmul %457, %458, %cst_219 {dimension_numbers = #tpu.dot_dimension_numbers<[1], [0], [0], [1], [0, 0, 1, 1], [], []>} : vector<8x128xf32>, vector<128x512xf32>, vector<8x512xf32> -> vector<8x512xf32>
    %c0_220 = arith.constant 0 : index
    %c0_221 = arith.constant 0 : index
    %460 = vector.load %arg5[%c0_220, %c0_221] : memref<128x512xf32, #tpu.memory_space<vmem>>, vector<128x512xf32>
    %cst_222 = arith.constant dense<0.000000e+00> : vector<8x512xf32>
    %461 = tpu.matmul %413, %460, %cst_222 {dimension_numbers = #tpu.dot_dimension_numbers<[1], [0], [0], [1], [0, 0, 1, 1], [], []>} : vector<8x128xf32>, vector<128x512xf32>, vector<8x512xf32> -> vector<8x512xf32>
    %462 = arith.addf %459, %461 : vector<8x512xf32>
    %c0_223 = arith.constant 0 : index
    %c0_224 = arith.constant 0 : index
    %463 = vector.load %arg6[%c0_223, %c0_224] : memref<1x512xf32, #tpu.memory_space<vmem>>, vector<1x512xf32>
    %464 = vector.broadcast %463 : vector<1x512xf32> to vector<8x512xf32>
    %465 = arith.addf %462, %464 : vector<8x512xf32>
    %466 = vector.extract_strided_slice %465 {offsets = [0, 0], sizes = [8, 128], strides = [1, 1]} : vector<8x512xf32> to vector<8x128xf32>
    %cst_225 = arith.constant 5.000000e-01 : f32
    %467 = vector.broadcast %cst_225 : f32 to vector<8x128xf32>
    %468 = arith.mulf %467, %466 : vector<8x128xf32>
    %469 = math.tanh %468 : vector<8x128xf32>
    %cst_226 = arith.constant 5.000000e-01 : f32
    %470 = vector.broadcast %cst_226 : f32 to vector<8x128xf32>
    %471 = arith.mulf %470, %469 : vector<8x128xf32>
    %cst_227 = arith.constant 5.000000e-01 : f32
    %472 = vector.broadcast %cst_227 : f32 to vector<8x128xf32>
    %473 = arith.addf %471, %472 : vector<8x128xf32>
    %474 = vector.extract_strided_slice %465 {offsets = [0, 128], sizes = [8, 128], strides = [1, 1]} : vector<8x512xf32> to vector<8x128xf32>
    %cst_228 = arith.constant 5.000000e-01 : f32
    %475 = vector.broadcast %cst_228 : f32 to vector<8x128xf32>
    %476 = arith.mulf %475, %474 : vector<8x128xf32>
    %477 = math.tanh %476 : vector<8x128xf32>
    %cst_229 = arith.constant 5.000000e-01 : f32
    %478 = vector.broadcast %cst_229 : f32 to vector<8x128xf32>
    %479 = arith.mulf %478, %477 : vector<8x128xf32>
    %cst_230 = arith.constant 5.000000e-01 : f32
    %480 = vector.broadcast %cst_230 : f32 to vector<8x128xf32>
    %481 = arith.addf %479, %480 : vector<8x128xf32>
    %482 = vector.extract_strided_slice %465 {offsets = [0, 256], sizes = [8, 128], strides = [1, 1]} : vector<8x512xf32> to vector<8x128xf32>
    %483 = math.tanh %482 : vector<8x128xf32>
    %484 = vector.extract_strided_slice %465 {offsets = [0, 384], sizes = [8, 128], strides = [1, 1]} : vector<8x512xf32> to vector<8x128xf32>
    %cst_231 = arith.constant 5.000000e-01 : f32
    %485 = vector.broadcast %cst_231 : f32 to vector<8x128xf32>
    %486 = arith.mulf %485, %484 : vector<8x128xf32>
    %487 = math.tanh %486 : vector<8x128xf32>
    %cst_232 = arith.constant 5.000000e-01 : f32
    %488 = vector.broadcast %cst_232 : f32 to vector<8x128xf32>
    %489 = arith.mulf %488, %487 : vector<8x128xf32>
    %cst_233 = arith.constant 5.000000e-01 : f32
    %490 = vector.broadcast %cst_233 : f32 to vector<8x128xf32>
    %491 = arith.addf %489, %490 : vector<8x128xf32>
    %492 = arith.mulf %481, %411 : vector<8x128xf32>
    %493 = arith.mulf %473, %483 : vector<8x128xf32>
    %494 = arith.addf %492, %493 : vector<8x128xf32>
    %495 = math.tanh %494 : vector<8x128xf32>
    %496 = arith.mulf %491, %495 : vector<8x128xf32>
    %c0_234 = arith.constant 0 : index
    %c0_235 = arith.constant 0 : index
    %497 = vector.load %arg7[%c0_234, %c0_235] : memref<128x1xf32, #tpu.memory_space<vmem>>, vector<128x1xf32>
    %cst_236 = arith.constant dense<0.000000e+00> : vector<8x1xf32>
    %498 = tpu.matmul %496, %497, %cst_236 {dimension_numbers = #tpu.dot_dimension_numbers<[1], [0], [0], [1], [0, 0, 1, 1], [], []>} : vector<8x128xf32>, vector<128x1xf32>, vector<8x1xf32> -> vector<8x1xf32>
    %c0_237 = arith.constant 0 : index
    %c0_238 = arith.constant 0 : index
    %499 = vector.load %arg8[%c0_237, %c0_238] : memref<1x1xf32, #tpu.memory_space<vmem>>, vector<1x1xf32>
    %500 = vector.broadcast %499 : vector<1x1xf32> to vector<8x1xf32>
    %501 = arith.addf %498, %500 : vector<8x1xf32>
    %c5_239 = arith.constant 5 : index
    %c0_240 = arith.constant 0 : index
    %c0_241 = arith.constant 0 : index
    %502 = vector.load %arg9[%c5_239, %c0_240, %c0_241] : memref<8x8x1xf32, #tpu.memory_space<vmem>>, vector<1x8x1xf32>
    %503 = vector.shape_cast %502 : vector<1x8x1xf32> to vector<8x1xf32>
    %504 = vector.shape_cast %501 : vector<8x1xf32> to vector<1x8x1xf32>
    tpu.vector_store %arg9[%c5_239, %c0_240, %c0_241], %504 {strides = array<i32>} : memref<8x8x1xf32, #tpu.memory_space<vmem>>, vector<1x8x1xf32>,
    %c6 = arith.constant 6 : index
    %c0_242 = arith.constant 0 : index
    %c0_243 = arith.constant 0 : index
    %505 = vector.load %arg2[%c6, %c0_242, %c0_243] : memref<8x8x512xf32, #tpu.memory_space<vmem>>, vector<1x8x512xf32>
    %506 = vector.shape_cast %505 : vector<1x8x512xf32> to vector<8x512xf32>
    %c0_244 = arith.constant 0 : index
    %c0_245 = arith.constant 0 : index
    %507 = vector.load %arg3[%c0_244, %c0_245] : memref<128x512xf32, #tpu.memory_space<vmem>>, vector<128x512xf32>
    %cst_246 = arith.constant dense<0.000000e+00> : vector<8x512xf32>
    %508 = tpu.matmul %457, %507, %cst_246 {dimension_numbers = #tpu.dot_dimension_numbers<[1], [0], [0], [1], [0, 0, 1, 1], [], []>} : vector<8x128xf32>, vector<128x512xf32>, vector<8x512xf32> -> vector<8x512xf32>
    %509 = arith.addf %506, %508 : vector<8x512xf32>
    %510 = vector.extract_strided_slice %509 {offsets = [0, 0], sizes = [8, 128], strides = [1, 1]} : vector<8x512xf32> to vector<8x128xf32>
    %cst_247 = arith.constant 5.000000e-01 : f32
    %511 = vector.broadcast %cst_247 : f32 to vector<8x128xf32>
    %512 = arith.mulf %511, %510 : vector<8x128xf32>
    %513 = math.tanh %512 : vector<8x128xf32>
    %cst_248 = arith.constant 5.000000e-01 : f32
    %514 = vector.broadcast %cst_248 : f32 to vector<8x128xf32>
    %515 = arith.mulf %514, %513 : vector<8x128xf32>
    %cst_249 = arith.constant 5.000000e-01 : f32
    %516 = vector.broadcast %cst_249 : f32 to vector<8x128xf32>
    %517 = arith.addf %515, %516 : vector<8x128xf32>
    %518 = vector.extract_strided_slice %509 {offsets = [0, 128], sizes = [8, 128], strides = [1, 1]} : vector<8x512xf32> to vector<8x128xf32>
    %cst_250 = arith.constant 5.000000e-01 : f32
    %519 = vector.broadcast %cst_250 : f32 to vector<8x128xf32>
    %520 = arith.mulf %519, %518 : vector<8x128xf32>
    %521 = math.tanh %520 : vector<8x128xf32>
    %cst_251 = arith.constant 5.000000e-01 : f32
    %522 = vector.broadcast %cst_251 : f32 to vector<8x128xf32>
    %523 = arith.mulf %522, %521 : vector<8x128xf32>
    %cst_252 = arith.constant 5.000000e-01 : f32
    %524 = vector.broadcast %cst_252 : f32 to vector<8x128xf32>
    %525 = arith.addf %523, %524 : vector<8x128xf32>
    %526 = vector.extract_strided_slice %509 {offsets = [0, 256], sizes = [8, 128], strides = [1, 1]} : vector<8x512xf32> to vector<8x128xf32>
    %527 = math.tanh %526 : vector<8x128xf32>
    %528 = vector.extract_strided_slice %509 {offsets = [0, 384], sizes = [8, 128], strides = [1, 1]} : vector<8x512xf32> to vector<8x128xf32>
    %cst_253 = arith.constant 5.000000e-01 : f32
    %529 = vector.broadcast %cst_253 : f32 to vector<8x128xf32>
    %530 = arith.mulf %529, %528 : vector<8x128xf32>
    %531 = math.tanh %530 : vector<8x128xf32>
    %cst_254 = arith.constant 5.000000e-01 : f32
    %532 = vector.broadcast %cst_254 : f32 to vector<8x128xf32>
    %533 = arith.mulf %532, %531 : vector<8x128xf32>
    %cst_255 = arith.constant 5.000000e-01 : f32
    %534 = vector.broadcast %cst_255 : f32 to vector<8x128xf32>
    %535 = arith.addf %533, %534 : vector<8x128xf32>
    %536 = arith.mulf %525, %455 : vector<8x128xf32>
    %537 = arith.mulf %517, %527 : vector<8x128xf32>
    %538 = arith.addf %536, %537 : vector<8x128xf32>
    %539 = math.tanh %538 : vector<8x128xf32>
    %540 = arith.mulf %535, %539 : vector<8x128xf32>
    %c0_256 = arith.constant 0 : index
    %c0_257 = arith.constant 0 : index
    %541 = vector.load %arg4[%c0_256, %c0_257] : memref<128x512xf32, #tpu.memory_space<vmem>>, vector<128x512xf32>
    %cst_258 = arith.constant dense<0.000000e+00> : vector<8x512xf32>
    %542 = tpu.matmul %540, %541, %cst_258 {dimension_numbers = #tpu.dot_dimension_numbers<[1], [0], [0], [1], [0, 0, 1, 1], [], []>} : vector<8x128xf32>, vector<128x512xf32>, vector<8x512xf32> -> vector<8x512xf32>
    %c0_259 = arith.constant 0 : index
    %c0_260 = arith.constant 0 : index
    %543 = vector.load %arg5[%c0_259, %c0_260] : memref<128x512xf32, #tpu.memory_space<vmem>>, vector<128x512xf32>
    %cst_261 = arith.constant dense<0.000000e+00> : vector<8x512xf32>
    %544 = tpu.matmul %496, %543, %cst_261 {dimension_numbers = #tpu.dot_dimension_numbers<[1], [0], [0], [1], [0, 0, 1, 1], [], []>} : vector<8x128xf32>, vector<128x512xf32>, vector<8x512xf32> -> vector<8x512xf32>
    %545 = arith.addf %542, %544 : vector<8x512xf32>
    %c0_262 = arith.constant 0 : index
    %c0_263 = arith.constant 0 : index
    %546 = vector.load %arg6[%c0_262, %c0_263] : memref<1x512xf32, #tpu.memory_space<vmem>>, vector<1x512xf32>
    %547 = vector.broadcast %546 : vector<1x512xf32> to vector<8x512xf32>
    %548 = arith.addf %545, %547 : vector<8x512xf32>
    %549 = vector.extract_strided_slice %548 {offsets = [0, 0], sizes = [8, 128], strides = [1, 1]} : vector<8x512xf32> to vector<8x128xf32>
    %cst_264 = arith.constant 5.000000e-01 : f32
    %550 = vector.broadcast %cst_264 : f32 to vector<8x128xf32>
    %551 = arith.mulf %550, %549 : vector<8x128xf32>
    %552 = math.tanh %551 : vector<8x128xf32>
    %cst_265 = arith.constant 5.000000e-01 : f32
    %553 = vector.broadcast %cst_265 : f32 to vector<8x128xf32>
    %554 = arith.mulf %553, %552 : vector<8x128xf32>
    %cst_266 = arith.constant 5.000000e-01 : f32
    %555 = vector.broadcast %cst_266 : f32 to vector<8x128xf32>
    %556 = arith.addf %554, %555 : vector<8x128xf32>
    %557 = vector.extract_strided_slice %548 {offsets = [0, 128], sizes = [8, 128], strides = [1, 1]} : vector<8x512xf32> to vector<8x128xf32>
    %cst_267 = arith.constant 5.000000e-01 : f32
    %558 = vector.broadcast %cst_267 : f32 to vector<8x128xf32>
    %559 = arith.mulf %558, %557 : vector<8x128xf32>
    %560 = math.tanh %559 : vector<8x128xf32>
    %cst_268 = arith.constant 5.000000e-01 : f32
    %561 = vector.broadcast %cst_268 : f32 to vector<8x128xf32>
    %562 = arith.mulf %561, %560 : vector<8x128xf32>
    %cst_269 = arith.constant 5.000000e-01 : f32
    %563 = vector.broadcast %cst_269 : f32 to vector<8x128xf32>
    %564 = arith.addf %562, %563 : vector<8x128xf32>
    %565 = vector.extract_strided_slice %548 {offsets = [0, 256], sizes = [8, 128], strides = [1, 1]} : vector<8x512xf32> to vector<8x128xf32>
    %566 = math.tanh %565 : vector<8x128xf32>
    %567 = vector.extract_strided_slice %548 {offsets = [0, 384], sizes = [8, 128], strides = [1, 1]} : vector<8x512xf32> to vector<8x128xf32>
    %cst_270 = arith.constant 5.000000e-01 : f32
    %568 = vector.broadcast %cst_270 : f32 to vector<8x128xf32>
    %569 = arith.mulf %568, %567 : vector<8x128xf32>
    %570 = math.tanh %569 : vector<8x128xf32>
    %cst_271 = arith.constant 5.000000e-01 : f32
    %571 = vector.broadcast %cst_271 : f32 to vector<8x128xf32>
    %572 = arith.mulf %571, %570 : vector<8x128xf32>
    %cst_272 = arith.constant 5.000000e-01 : f32
    %573 = vector.broadcast %cst_272 : f32 to vector<8x128xf32>
    %574 = arith.addf %572, %573 : vector<8x128xf32>
    %575 = arith.mulf %564, %494 : vector<8x128xf32>
    %576 = arith.mulf %556, %566 : vector<8x128xf32>
    %577 = arith.addf %575, %576 : vector<8x128xf32>
    %578 = math.tanh %577 : vector<8x128xf32>
    %579 = arith.mulf %574, %578 : vector<8x128xf32>
    %c0_273 = arith.constant 0 : index
    %c0_274 = arith.constant 0 : index
    %580 = vector.load %arg7[%c0_273, %c0_274] : memref<128x1xf32, #tpu.memory_space<vmem>>, vector<128x1xf32>
    %cst_275 = arith.constant dense<0.000000e+00> : vector<8x1xf32>
    %581 = tpu.matmul %579, %580, %cst_275 {dimension_numbers = #tpu.dot_dimension_numbers<[1], [0], [0], [1], [0, 0, 1, 1], [], []>} : vector<8x128xf32>, vector<128x1xf32>, vector<8x1xf32> -> vector<8x1xf32>
    %c0_276 = arith.constant 0 : index
    %c0_277 = arith.constant 0 : index
    %582 = vector.load %arg8[%c0_276, %c0_277] : memref<1x1xf32, #tpu.memory_space<vmem>>, vector<1x1xf32>
    %583 = vector.broadcast %582 : vector<1x1xf32> to vector<8x1xf32>
    %584 = arith.addf %581, %583 : vector<8x1xf32>
    %c6_278 = arith.constant 6 : index
    %c0_279 = arith.constant 0 : index
    %c0_280 = arith.constant 0 : index
    %585 = vector.load %arg9[%c6_278, %c0_279, %c0_280] : memref<8x8x1xf32, #tpu.memory_space<vmem>>, vector<1x8x1xf32>
    %586 = vector.shape_cast %585 : vector<1x8x1xf32> to vector<8x1xf32>
    %587 = vector.shape_cast %584 : vector<8x1xf32> to vector<1x8x1xf32>
    tpu.vector_store %arg9[%c6_278, %c0_279, %c0_280], %587 {strides = array<i32>} : memref<8x8x1xf32, #tpu.memory_space<vmem>>, vector<1x8x1xf32>,
    %c7 = arith.constant 7 : index
    %c0_281 = arith.constant 0 : index
    %c0_282 = arith.constant 0 : index
    %588 = vector.load %arg2[%c7, %c0_281, %c0_282] : memref<8x8x512xf32, #tpu.memory_space<vmem>>, vector<1x8x512xf32>
    %589 = vector.shape_cast %588 : vector<1x8x512xf32> to vector<8x512xf32>
    %c0_283 = arith.constant 0 : index
    %c0_284 = arith.constant 0 : index
    %590 = vector.load %arg3[%c0_283, %c0_284] : memref<128x512xf32, #tpu.memory_space<vmem>>, vector<128x512xf32>
    %cst_285 = arith.constant dense<0.000000e+00> : vector<8x512xf32>
    %591 = tpu.matmul %540, %590, %cst_285 {dimension_numbers = #tpu.dot_dimension_numbers<[1], [0], [0], [1], [0, 0, 1, 1], [], []>} : vector<8x128xf32>, vector<128x512xf32>, vector<8x512xf32> -> vector<8x512xf32>
    %592 = arith.addf %589, %591 : vector<8x512xf32>
    %593 = vector.extract_strided_slice %592 {offsets = [0, 0], sizes = [8, 128], strides = [1, 1]} : vector<8x512xf32> to vector<8x128xf32>
    %cst_286 = arith.constant 5.000000e-01 : f32
    %594 = vector.broadcast %cst_286 : f32 to vector<8x128xf32>
    %595 = arith.mulf %594, %593 : vector<8x128xf32>
    %596 = math.tanh %595 : vector<8x128xf32>
    %cst_287 = arith.constant 5.000000e-01 : f32
    %597 = vector.broadcast %cst_287 : f32 to vector<8x128xf32>
    %598 = arith.mulf %597, %596 : vector<8x128xf32>
    %cst_288 = arith.constant 5.000000e-01 : f32
    %599 = vector.broadcast %cst_288 : f32 to vector<8x128xf32>
    %600 = arith.addf %598, %599 : vector<8x128xf32>
    %601 = vector.extract_strided_slice %592 {offsets = [0, 128], sizes = [8, 128], strides = [1, 1]} : vector<8x512xf32> to vector<8x128xf32>
    %cst_289 = arith.constant 5.000000e-01 : f32
    %602 = vector.broadcast %cst_289 : f32 to vector<8x128xf32>
    %603 = arith.mulf %602, %601 : vector<8x128xf32>
    %604 = math.tanh %603 : vector<8x128xf32>
    %cst_290 = arith.constant 5.000000e-01 : f32
    %605 = vector.broadcast %cst_290 : f32 to vector<8x128xf32>
    %606 = arith.mulf %605, %604 : vector<8x128xf32>
    %cst_291 = arith.constant 5.000000e-01 : f32
    %607 = vector.broadcast %cst_291 : f32 to vector<8x128xf32>
    %608 = arith.addf %606, %607 : vector<8x128xf32>
    %609 = vector.extract_strided_slice %592 {offsets = [0, 256], sizes = [8, 128], strides = [1, 1]} : vector<8x512xf32> to vector<8x128xf32>
    %610 = math.tanh %609 : vector<8x128xf32>
    %611 = vector.extract_strided_slice %592 {offsets = [0, 384], sizes = [8, 128], strides = [1, 1]} : vector<8x512xf32> to vector<8x128xf32>
    %cst_292 = arith.constant 5.000000e-01 : f32
    %612 = vector.broadcast %cst_292 : f32 to vector<8x128xf32>
    %613 = arith.mulf %612, %611 : vector<8x128xf32>
    %614 = math.tanh %613 : vector<8x128xf32>
    %cst_293 = arith.constant 5.000000e-01 : f32
    %615 = vector.broadcast %cst_293 : f32 to vector<8x128xf32>
    %616 = arith.mulf %615, %614 : vector<8x128xf32>
    %cst_294 = arith.constant 5.000000e-01 : f32
    %617 = vector.broadcast %cst_294 : f32 to vector<8x128xf32>
    %618 = arith.addf %616, %617 : vector<8x128xf32>
    %619 = arith.mulf %608, %538 : vector<8x128xf32>
    %620 = arith.mulf %600, %610 : vector<8x128xf32>
    %621 = arith.addf %619, %620 : vector<8x128xf32>
    %622 = math.tanh %621 : vector<8x128xf32>
    %623 = arith.mulf %618, %622 : vector<8x128xf32>
    %c0_295 = arith.constant 0 : index
    %c0_296 = arith.constant 0 : index
    %624 = vector.load %arg4[%c0_295, %c0_296] : memref<128x512xf32, #tpu.memory_space<vmem>>, vector<128x512xf32>
    %cst_297 = arith.constant dense<0.000000e+00> : vector<8x512xf32>
    %625 = tpu.matmul %623, %624, %cst_297 {dimension_numbers = #tpu.dot_dimension_numbers<[1], [0], [0], [1], [0, 0, 1, 1], [], []>} : vector<8x128xf32>, vector<128x512xf32>, vector<8x512xf32> -> vector<8x512xf32>
    %c0_298 = arith.constant 0 : index
    %c0_299 = arith.constant 0 : index
    %626 = vector.load %arg5[%c0_298, %c0_299] : memref<128x512xf32, #tpu.memory_space<vmem>>, vector<128x512xf32>
    %cst_300 = arith.constant dense<0.000000e+00> : vector<8x512xf32>
    %627 = tpu.matmul %579, %626, %cst_300 {dimension_numbers = #tpu.dot_dimension_numbers<[1], [0], [0], [1], [0, 0, 1, 1], [], []>} : vector<8x128xf32>, vector<128x512xf32>, vector<8x512xf32> -> vector<8x512xf32>
    %628 = arith.addf %625, %627 : vector<8x512xf32>
    %c0_301 = arith.constant 0 : index
    %c0_302 = arith.constant 0 : index
    %629 = vector.load %arg6[%c0_301, %c0_302] : memref<1x512xf32, #tpu.memory_space<vmem>>, vector<1x512xf32>
    %630 = vector.broadcast %629 : vector<1x512xf32> to vector<8x512xf32>
    %631 = arith.addf %628, %630 : vector<8x512xf32>
    %632 = vector.extract_strided_slice %631 {offsets = [0, 0], sizes = [8, 128], strides = [1, 1]} : vector<8x512xf32> to vector<8x128xf32>
    %cst_303 = arith.constant 5.000000e-01 : f32
    %633 = vector.broadcast %cst_303 : f32 to vector<8x128xf32>
    %634 = arith.mulf %633, %632 : vector<8x128xf32>
    %635 = math.tanh %634 : vector<8x128xf32>
    %cst_304 = arith.constant 5.000000e-01 : f32
    %636 = vector.broadcast %cst_304 : f32 to vector<8x128xf32>
    %637 = arith.mulf %636, %635 : vector<8x128xf32>
    %cst_305 = arith.constant 5.000000e-01 : f32
    %638 = vector.broadcast %cst_305 : f32 to vector<8x128xf32>
    %639 = arith.addf %637, %638 : vector<8x128xf32>
    %640 = vector.extract_strided_slice %631 {offsets = [0, 128], sizes = [8, 128], strides = [1, 1]} : vector<8x512xf32> to vector<8x128xf32>
    %cst_306 = arith.constant 5.000000e-01 : f32
    %641 = vector.broadcast %cst_306 : f32 to vector<8x128xf32>
    %642 = arith.mulf %641, %640 : vector<8x128xf32>
    %643 = math.tanh %642 : vector<8x128xf32>
    %cst_307 = arith.constant 5.000000e-01 : f32
    %644 = vector.broadcast %cst_307 : f32 to vector<8x128xf32>
    %645 = arith.mulf %644, %643 : vector<8x128xf32>
    %cst_308 = arith.constant 5.000000e-01 : f32
    %646 = vector.broadcast %cst_308 : f32 to vector<8x128xf32>
    %647 = arith.addf %645, %646 : vector<8x128xf32>
    %648 = vector.extract_strided_slice %631 {offsets = [0, 256], sizes = [8, 128], strides = [1, 1]} : vector<8x512xf32> to vector<8x128xf32>
    %649 = math.tanh %648 : vector<8x128xf32>
    %650 = vector.extract_strided_slice %631 {offsets = [0, 384], sizes = [8, 128], strides = [1, 1]} : vector<8x512xf32> to vector<8x128xf32>
    %cst_309 = arith.constant 5.000000e-01 : f32
    %651 = vector.broadcast %cst_309 : f32 to vector<8x128xf32>
    %652 = arith.mulf %651, %650 : vector<8x128xf32>
    %653 = math.tanh %652 : vector<8x128xf32>
    %cst_310 = arith.constant 5.000000e-01 : f32
    %654 = vector.broadcast %cst_310 : f32 to vector<8x128xf32>
    %655 = arith.mulf %654, %653 : vector<8x128xf32>
    %cst_311 = arith.constant 5.000000e-01 : f32
    %656 = vector.broadcast %cst_311 : f32 to vector<8x128xf32>
    %657 = arith.addf %655, %656 : vector<8x128xf32>
    %658 = arith.mulf %647, %577 : vector<8x128xf32>
    %659 = arith.mulf %639, %649 : vector<8x128xf32>
    %660 = arith.addf %658, %659 : vector<8x128xf32>
    %661 = math.tanh %660 : vector<8x128xf32>
    %662 = arith.mulf %657, %661 : vector<8x128xf32>
    %c0_312 = arith.constant 0 : index
    %c0_313 = arith.constant 0 : index
    %663 = vector.load %arg7[%c0_312, %c0_313] : memref<128x1xf32, #tpu.memory_space<vmem>>, vector<128x1xf32>
    %cst_314 = arith.constant dense<0.000000e+00> : vector<8x1xf32>
    %664 = tpu.matmul %662, %663, %cst_314 {dimension_numbers = #tpu.dot_dimension_numbers<[1], [0], [0], [1], [0, 0, 1, 1], [], []>} : vector<8x128xf32>, vector<128x1xf32>, vector<8x1xf32> -> vector<8x1xf32>
    %c0_315 = arith.constant 0 : index
    %c0_316 = arith.constant 0 : index
    %665 = vector.load %arg8[%c0_315, %c0_316] : memref<1x1xf32, #tpu.memory_space<vmem>>, vector<1x1xf32>
    %666 = vector.broadcast %665 : vector<1x1xf32> to vector<8x1xf32>
    %667 = arith.addf %664, %666 : vector<8x1xf32>
    %c7_317 = arith.constant 7 : index
    %c0_318 = arith.constant 0 : index
    %c0_319 = arith.constant 0 : index
    %668 = vector.load %arg9[%c7_317, %c0_318, %c0_319] : memref<8x8x1xf32, #tpu.memory_space<vmem>>, vector<1x8x1xf32>
    %669 = vector.shape_cast %668 : vector<1x8x1xf32> to vector<8x1xf32>
    %670 = vector.shape_cast %667 : vector<8x1xf32> to vector<1x8x1xf32>
    tpu.vector_store %arg9[%c7_317, %c0_318, %c0_319], %670 {strides = array<i32>} : memref<8x8x1xf32, #tpu.memory_space<vmem>>, vector<1x8x1xf32>,
    %c0_320 = arith.constant 0 : index
    %c0_321 = arith.constant 0 : index
    %671 = vector.load %arg10[%c0_320, %c0_321] : memref<8x128xf32, #tpu.memory_space<vmem>>, vector<8x128xf32>
    tpu.vector_store %arg10[%c0_320, %c0_321], %623 {strides = array<i32>} : memref<8x128xf32, #tpu.memory_space<vmem>>, vector<8x128xf32>,
    %c0_322 = arith.constant 0 : index
    %c0_323 = arith.constant 0 : index
    %672 = vector.load %arg11[%c0_322, %c0_323] : memref<8x128xf32, #tpu.memory_space<vmem>>, vector<8x128xf32>
    tpu.vector_store %arg11[%c0_322, %c0_323], %621 {strides = array<i32>} : memref<8x128xf32, #tpu.memory_space<vmem>>, vector<8x128xf32>,
    %c0_324 = arith.constant 0 : index
    %c0_325 = arith.constant 0 : index
    %673 = vector.load %arg12[%c0_324, %c0_325] : memref<8x128xf32, #tpu.memory_space<vmem>>, vector<8x128xf32>
    tpu.vector_store %arg12[%c0_324, %c0_325], %662 {strides = array<i32>} : memref<8x128xf32, #tpu.memory_space<vmem>>, vector<8x128xf32>,
    %c0_326 = arith.constant 0 : index
    %c0_327 = arith.constant 0 : index
    %674 = vector.load %arg13[%c0_326, %c0_327] : memref<8x128xf32, #tpu.memory_space<vmem>>, vector<8x128xf32>
    tpu.vector_store %arg13[%c0_326, %c0_327], %660 {strides = array<i32>} : memref<8x128xf32, #tpu.memory_space<vmem>>, vector<8x128xf32>,
    return
  }
  func.func @transform_0(%arg0: i32, %arg1: i32) -> (i32, i32, i32) {
    %c0_i32 = arith.constant 0 : i32
    %c0_i32_0 = arith.constant 0 : i32
    return %arg1, %arg0, %c0_i32 : i32, i32, i32
  }
  func.func @transform_1(%arg0: i32, %arg1: i32) -> (i32, i32) {
    %c0_i32 = arith.constant 0 : i32
    %c0_i32_0 = arith.constant 0 : i32
    %c0_i32_1 = arith.constant 0 : i32
    return %c0_i32, %c0_i32_0 : i32, i32
  }
  func.func @transform_2(%arg0: i32, %arg1: i32) -> (i32, i32) {
    %c0_i32 = arith.constant 0 : i32
    %c0_i32_0 = arith.constant 0 : i32
    %c0_i32_1 = arith.constant 0 : i32
    return %c0_i32, %c0_i32_0 : i32, i32
  }
  func.func @transform_3(%arg0: i32, %arg1: i32) -> (i32, i32) {
    %c0_i32 = arith.constant 0 : i32
    %c0_i32_0 = arith.constant 0 : i32
    %c0_i32_1 = arith.constant 0 : i32
    return %c0_i32, %c0_i32_0 : i32, i32
  }
  func.func @transform_4(%arg0: i32, %arg1: i32) -> (i32, i32) {
    %c0_i32 = arith.constant 0 : i32
    %c0_i32_0 = arith.constant 0 : i32
    %c0_i32_1 = arith.constant 0 : i32
    return %c0_i32, %c0_i32_0 : i32, i32
  }
  func.func @transform_5(%arg0: i32, %arg1: i32) -> (i32, i32) {
    %c0_i32 = arith.constant 0 : i32
    %c0_i32_0 = arith.constant 0 : i32
    %c0_i32_1 = arith.constant 0 : i32
    return %c0_i32, %c0_i32_0 : i32, i32
  }
  func.func @transform_6(%arg0: i32, %arg1: i32) -> (i32, i32) {
    %c0_i32 = arith.constant 0 : i32
    %c0_i32_0 = arith.constant 0 : i32
    %c0_i32_1 = arith.constant 0 : i32
    return %c0_i32, %c0_i32_0 : i32, i32
  }
  func.func @transform_7(%arg0: i32, %arg1: i32) -> (i32, i32, i32) {
    %c0_i32 = arith.constant 0 : i32
    %c0_i32_0 = arith.constant 0 : i32
    return %arg1, %arg0, %c0_i32 : i32, i32, i32
  }
}

</mosaic_0001>

<llo_original>
// kernel: lstm_model_forward.2
$region0: #{lstm_model_forward.2}
  #allocation0 [shape = 'u32[]', space=smem, size = 0x4, offset = 0x4, fixed_abs, tag = 'smem constant byte address 0x4 - core index']
  #allocation1 [shape = 'u32[144,128]{1,0:T(1,128)}', space=vmem, size = 0x12000, scoped, tag = 'internal scratch']
  %s0 = inlined_call_operand.vmem [shape: f32[64,4], index: 0, kind: input, shape index: {}]
  %s1 = inlined_call_operand.vmem [shape: f32[4,512], index: 1, kind: input, shape index: {}]
  %s2 = inlined_call_operand.hbm [shape: f32[1,512], index: 2, kind: input, shape index: {}]
  %s3 = inlined_call_operand.vmem [shape: f32[64,512], index: 3, kind: output, shape index: {}]
  %s4 = sld [smem:[#allocation0]]
  $region26: #{lstm_model_forward.2} parent=0
    _
  %s6 = ssub.s32 1, %s4
  %s7 = scalar_select 0, %s6, %s4
  $region1: #{lstm_model_forward.2} parent=0
    #allocation2 [shape = 'u8[2048]{0}', space=vmem, size = 0x800, scoped, tag = 'input window, operand 2, single buffered']
    #allocation3 [shape = 's32[1]{0}', space=sflag, size = 0x4, scoped, tag = 'scoped memory for lstm_model_forward.2']
    %8 = vsyncpa [#allocation3], 0
    // Predicated region
    $region2: #{lstm_model_forward.2} parent=1 // pred_check
      _
    $region3: #{lstm_model_forward.2} parent=1 // pred_check_branch
      %10 = sbr.rel (0) target = $region5
    $region4: #{lstm_model_forward.2} parent=1 // pred_region
      _
    $region5: #{lstm_model_forward.2} parent=1 // pred_fallthru
      _
    // Predicated region
    $region6: #{lstm_model_forward.2} parent=1 // pred_check
      _
    $region7: #{lstm_model_forward.2} parent=1 // pred_check_branch
      %12 = sbr.rel (0) target = $region9
    $region8: #{lstm_model_forward.2} parent=1 // pred_region
      _
    $region9: #{lstm_model_forward.2} parent=1 // pred_fallthru
      _
    // Predicated region
    $region10: #{lstm_model_forward.2} parent=1 // pred_check
      _
    $region11: #{lstm_model_forward.2} parent=1 // pred_check_branch
      %14 = sbr.rel (0) target = $region13
    $region12: #{lstm_model_forward.2} parent=1 // pred_region
      %s16 = ssub.s32 64, 64
      %17 = vsyncadd [#allocation3], %s16
      %s19 = sshll.u32 [#allocation2], 4
      %s20 = int_to_ptr.vmem [resolvable:$true] %s19
      %22 = dma.hbm_to_vmem [thread:$0]  %s2, 64, %s20, [#allocation3]
    $region13: #{lstm_model_forward.2} parent=1 // pred_fallthru
      _
    // Predicated region
    $region14: #{lstm_model_forward.2} parent=1 // pred_check
      _
    $region15: #{lstm_model_forward.2} parent=1 // pred_check_branch
      %24 = sbr.rel (0) target = $region17
    $region16: #{lstm_model_forward.2} parent=1 // pred_region
      %25 = dma.done [#allocation3], 64
    $region17: #{lstm_model_forward.2} parent=1 // pred_fallthru
      _
    %v26 = vld [vmem:[%s0] sm:$0xff]
    %v27 = vld [vmem:[%s0 + $0x8] sm:$0xff]
    %v28 = vld [vmem:[%s0 + $0x10] sm:$0xff]
    %v29 = vld [vmem:[%s0 + $0x18] sm:$0xff]
    %v30 = vld [vmem:[%s0 + $0x20] sm:$0xff]
    %v31 = vld [vmem:[%s0 + $0x28] sm:$0xff]
    %v32 = vld [vmem:[%s0 + $0x30] sm:$0xff]
    %v33 = vld [vmem:[%s0 + $0x38] sm:$0xff]
    %v34 = vld [vmem:[%s1] sm:$0xff]
    %v35 = vld [vmem:[%s1 + $0x8] sm:$0xff]
    %v36 = vld [vmem:[#allocation2] sm:$0xf]
    %v38 = vlaneseq
    %v39 = vshrl.u32 %v38, 7
    %v40 = vsub.s32 0, %v39
    %v41 = vrot.slane %v36, %v40
    %v42 = vlaneseq
    %v43 = vshrl.u32 %v42, 7
    %v44 = vsub.s32 1, %v43
    %v45 = vrot.slane %v36, %v44
    %v46 = vlaneseq
    %v47 = vshrl.u32 %v46, 7
    %v48 = vsub.s32 2, %v47
    %v49 = vrot.slane %v36, %v48
    %v50 = vlaneseq
    %v51 = vshrl.u32 %v50, 7
    %v52 = vsub.s32 3, %v51
    %v53 = vrot.slane %v36, %v52
    %v60 = vcombine.high %v34, %v34
    %v61 = vcombine.high %v35, %v35
    %vm62 = vcmask 31744
    %v64 = vsel %vm62, %v26, 0
    %v67 = vsel %vm62, %v27, 0
    %v70 = vsel %vm62, %v28, 0
    %v73 = vsel %vm62, %v29, 0
    %v76 = vsel %vm62, %v30, 0
    %v79 = vsel %vm62, %v31, 0
    %v82 = vsel %vm62, %v32, 0
    %v85 = vsel %vm62, %v33, 0
    %vm87 = vcmask 1043456
    %v88 = vsel %vm87, %v34, 0
    %v90 = vsel %vm87, %v60, 0
    %v92 = vsel %vm87, %v35, 0
    %v94 = vsel %vm87, %v61, 0
    %96 = vmatprep.subr.mxu0 %v90
    %97 = vmatpush1.msra.mxu0 %v88
    %98 = vmatprep.subr.mxu0 0.0
    %99 = vmatpush1.msra.mxu0 0.0
    %100 = vmatprep.subr.mxu0 0.0
    %101 = vmatpush1.msra.mxu0 0.0
    %102 = vmatprep.subr.mxu0 0.0
    %103 = vmatpush1.msra.mxu0 0.0
    %104 = vmatprep.subr.mxu0 0.0
    %105 = vmatpush1.msra.mxu0 0.0
    %106 = vmatprep.subr.mxu0 0.0
    %107 = vmatpush1.msra.mxu0 0.0
    %108 = vmatprep.subr.mxu0 0.0
    %109 = vmatpush1.msra.mxu0 0.0
    %110 = vmatprep.subr.mxu0 0.0
    %111 = vmatpush1.msra.mxu0 0.0
    %112 = vmatprep.subr.mxu0 0.0
    %113 = vmatpush1.msra.mxu0 0.0
    %114 = vmatprep.subr.mxu0 0.0
    %115 = vmatpush1.msra.mxu0 0.0
    %116 = vmatprep.subr.mxu0 0.0
    %117 = vmatpush1.msra.mxu0 0.0
    %118 = vmatprep.subr.mxu0 0.0
    %119 = vmatpush1.msra.mxu0 0.0
    %120 = vmatprep.subr.mxu0 0.0
    %121 = vmatpush1.msra.mxu0 0.0
    %122 = vmatprep.subr.mxu0 0.0
    %123 = vmatpush1.msra.mxu0 0.0
    %124 = vmatprep.subr.mxu0 0.0
    %125 = vmatpush1.msra.mxu0 0.0
    %126 = vmatprep.subr.mxu0 0.0
    %127 = vmatpush1.msra.mxu0 0.0
    %128 = vmatprep.subr.mxu0 0.0
    %129 = vmatpush1.msra.mxu0 0.0
    %130 = vmatprep.subr.mxu0 0.0
    %131 = vmatpush1.msra.mxu0 0.0
    %132 = vmatprep.subr.mxu0 0.0
    %133 = vmatpush1.msra.mxu0 0.0
    %134 = vmatprep.subr.mxu0 0.0
    %135 = vmatpush1.msra.mxu0 0.0
    %136 = vmatprep.subr.mxu0 0.0
    %137 = vmatpush1.msra.mxu0 0.0
    %138 = vmatprep.subr.mxu0 0.0
    %139 = vmatpush1.msra.mxu0 0.0
    %140 = vmatprep.subr.mxu0 0.0
    %141 = vmatpush1.msra.mxu0 0.0
    %142 = vmatprep.subr.mxu0 0.0
    %143 = vmatpush1.msra.mxu0 0.0
    %144 = vmatprep.subr.mxu0 0.0
    %145 = vmatpush1.msra.mxu0 0.0
    %146 = vmatprep.subr.mxu0 0.0
    %147 = vmatpush1.msra.mxu0 0.0
    %148 = vmatprep.subr.mxu0 0.0
    %149 = vmatpush1.msra.mxu0 0.0
    %150 = vmatprep.subr.mxu0 0.0
    %151 = vmatpush1.msra.mxu0 0.0
    %152 = vmatprep.subr.mxu0 0.0
    %153 = vmatpush1.msra.mxu0 0.0
    %154 = vmatprep.subr.mxu0 0.0
    %155 = vmatpush1.msra.mxu0 0.0
    %156 = vmatprep.subr.mxu0 0.0
    %157 = vmatpush1.msra.mxu0 0.0
    %158 = vmatprep.subr.mxu0 0.0
    %159 = vmatpush1.msra.mxu0 0.0
    %160 = vmatprep.mubr.f32.mxu0 0.0
    %161 = vmatmul.mubr.f32.gmra.mrb[0].mxu0 %v64
    %v162 = vpop.f32.mrb[0].mxu0
    %v163 = vadd.f32 %v41, %v162
    %v164 = vpop.f32.mrb[0].mxu0
    %v165 = vadd.f32 %v45, %v164
    %166 = vmatprep.mubr.f32.mxu0 0.0
    %167 = vmatmul.mubr.f32.gmra.mrb[0].mxu0 %v67
    %v168 = vpop.f32.mrb[0].mxu0
    %v169 = vadd.f32 %v41, %v168
    %v170 = vpop.f32.mrb[0].mxu0
    %v171 = vadd.f32 %v45, %v170
    %172 = vmatprep.mubr.f32.mxu0 0.0
    %173 = vmatmul.mubr.f32.gmra.mrb[0].mxu0 %v70
    %v174 = vpop.f32.mrb[0].mxu0
    %v175 = vadd.f32 %v41, %v174
    %v176 = vpop.f32.mrb[0].mxu0
    %v177 = vadd.f32 %v45, %v176
    %178 = vmatprep.mubr.f32.mxu0 0.0
    %179 = vmatmul.mubr.f32.gmra.mrb[0].mxu0 %v73
    %v180 = vpop.f32.mrb[0].mxu0
    %v181 = vadd.f32 %v41, %v180
    %v182 = vpop.f32.mrb[0].mxu0
    %v183 = vadd.f32 %v45, %v182
    %184 = vmatprep.mubr.f32.mxu0 0.0
    %185 = vmatmul.mubr.f32.gmra.mrb[0].mxu0 %v76
    %v186 = vpop.f32.mrb[0].mxu0
    %v187 = vadd.f32 %v41, %v186
    %v188 = vpop.f32.mrb[0].mxu0
    %v189 = vadd.f32 %v45, %v188
    %190 = vmatprep.mubr.f32.mxu0 0.0
    %191 = vmatmul.mubr.f32.gmra.mrb[0].mxu0 %v79
    %v192 = vpop.f32.mrb[0].mxu0
    %v193 = vadd.f32 %v41, %v192
    %v194 = vpop.f32.mrb[0].mxu0
    %v195 = vadd.f32 %v45, %v194
    %196 = vmatprep.mubr.f32.mxu0 0.0
    %197 = vmatmul.mubr.f32.gmra.mrb[0].mxu0 %v82
    %v198 = vpop.f32.mrb[0].mxu0
    %v199 = vadd.f32 %v41, %v198
    %v200 = vpop.f32.mrb[0].mxu0
    %v201 = vadd.f32 %v45, %v200
    %202 = vmatprep.mubr.f32.mxu0 0.0
    %203 = vmatmul.mubr.f32.gmra.mrb[0].mxu0 %v85
    %v204 = vpop.f32.mrb[0].mxu0
    %v205 = vadd.f32 %v41, %v204
    %v206 = vpop.f32.mrb[0].mxu0
    %v207 = vadd.f32 %v45, %v206
    %208 = vdwg.mxu0
    %209 = vmatprep.subr.mxu0 %v94
    %210 = vmatpush1.msra.mxu0 %v92
    %211 = vmatprep.subr.mxu0 0.0
    %212 = vmatpush1.msra.mxu0 0.0
    %213 = vmatprep.subr.mxu0 0.0
    %214 = vmatpush1.msra.mxu0 0.0
    %215 = vmatprep.subr.mxu0 0.0
    %216 = vmatpush1.msra.mxu0 0.0
    %217 = vmatprep.subr.mxu0 0.0
    %218 = vmatpush1.msra.mxu0 0.0
    %219 = vmatprep.subr.mxu0 0.0
    %220 = vmatpush1.msra.mxu0 0.0
    %221 = vmatprep.subr.mxu0 0.0
    %222 = vmatpush1.msra.mxu0 0.0
    %223 = vmatprep.subr.mxu0 0.0
    %224 = vmatpush1.msra.mxu0 0.0
    %225 = vmatprep.subr.mxu0 0.0
    %226 = vmatpush1.msra.mxu0 0.0
    %227 = vmatprep.subr.mxu0 0.0
    %228 = vmatpush1.msra.mxu0 0.0
    %229 = vmatprep.subr.mxu0 0.0
    %230 = vmatpush1.msra.mxu0 0.0
    %231 = vmatprep.subr.mxu0 0.0
    %232 = vmatpush1.msra.mxu0 0.0
    %233 = vmatprep.subr.mxu0 0.0
    %234 = vmatpush1.msra.mxu0 0.0
    %235 = vmatprep.subr.mxu0 0.0
    %236 = vmatpush1.msra.mxu0 0.0
    %237 = vmatprep.subr.mxu0 0.0
    %238 = vmatpush1.msra.mxu0 0.0
    %239 = vmatprep.subr.mxu0 0.0
    %240 = vmatpush1.msra.mxu0 0.0
    %241 = vmatprep.subr.mxu0 0.0
    %242 = vmatpush1.msra.mxu0 0.0
    %243 = vmatprep.subr.mxu0 0.0
    %244 = vmatpush1.msra.mxu0 0.0
    %245 = vmatprep.subr.mxu0 0.0
    %246 = vmatpush1.msra.mxu0 0.0
    %247 = vmatprep.subr.mxu0 0.0
    %248 = vmatpush1.msra.mxu0 0.0
    %249 = vmatprep.subr.mxu0 0.0
    %250 = vmatpush1.msra.mxu0 0.0
    %251 = vmatprep.subr.mxu0 0.0
    %252 = vmatpush1.msra.mxu0 0.0
    %253 = vmatprep.subr.mxu0 0.0
    %254 = vmatpush1.msra.mxu0 0.0
    %255 = vmatprep.subr.mxu0 0.0
    %256 = vmatpush1.msra.mxu0 0.0
    %257 = vmatprep.subr.mxu0 0.0
    %258 = vmatpush1.msra.mxu0 0.0
    %259 = vmatprep.subr.mxu0 0.0
    %260 = vmatpush1.msra.mxu0 0.0
    %261 = vmatprep.subr.mxu0 0.0
    %262 = vmatpush1.msra.mxu0 0.0
    %263 = vmatprep.subr.mxu0 0.0
    %264 = vmatpush1.msra.mxu0 0.0
    %265 = vmatprep.subr.mxu0 0.0
    %266 = vmatpush1.msra.mxu0 0.0
    %267 = vmatprep.subr.mxu0 0.0
    %268 = vmatpush1.msra.mxu0 0.0
    %269 = vmatprep.subr.mxu0 0.0
    %270 = vmatpush1.msra.mxu0 0.0
    %271 = vmatprep.subr.mxu0 0.0
    %272 = vmatpush1.msra.mxu0 0.0
    %273 = vmatprep.mubr.f32.mxu0 0.0
    %274 = vmatmul.mubr.f32.gmra.mrb[0].mxu0 %v64
    %v275 = vpop.f32.mrb[0].mxu0
    %v276 = vadd.f32 %v49, %v275
    %v277 = vpop.f32.mrb[0].mxu0
    %v278 = vadd.f32 %v53, %v277
    %279 = vmatprep.mubr.f32.mxu0 0.0
    %280 = vmatmul.mubr.f32.gmra.mrb[0].mxu0 %v67
    %v281 = vpop.f32.mrb[0].mxu0
    %v282 = vadd.f32 %v49, %v281
    %v283 = vpop.f32.mrb[0].mxu0
    %v284 = vadd.f32 %v53, %v283
    %285 = vmatprep.mubr.f32.mxu0 0.0
    %286 = vmatmul.mubr.f32.gmra.mrb[0].mxu0 %v70
    %v287 = vpop.f32.mrb[0].mxu0
    %v288 = vadd.f32 %v49, %v287
    %v289 = vpop.f32.mrb[0].mxu0
    %v290 = vadd.f32 %v53, %v289
    %291 = vmatprep.mubr.f32.mxu0 0.0
    %292 = vmatmul.mubr.f32.gmra.mrb[0].mxu0 %v73
    %v293 = vpop.f32.mrb[0].mxu0
    %v294 = vadd.f32 %v49, %v293
    %v295 = vpop.f32.mrb[0].mxu0
    %v296 = vadd.f32 %v53, %v295
    %297 = vmatprep.mubr.f32.mxu0 0.0
    %298 = vmatmul.mubr.f32.gmra.mrb[0].mxu0 %v76
    %v299 = vpop.f32.mrb[0].mxu0
    %v300 = vadd.f32 %v49, %v299
    %v301 = vpop.f32.mrb[0].mxu0
    %v302 = vadd.f32 %v53, %v301
    %303 = vmatprep.mubr.f32.mxu0 0.0
    %304 = vmatmul.mubr.f32.gmra.mrb[0].mxu0 %v79
    %v305 = vpop.f32.mrb[0].mxu0
    %v306 = vadd.f32 %v49, %v305
    %v307 = vpop.f32.mrb[0].mxu0
    %v308 = vadd.f32 %v53, %v307
    %309 = vmatprep.mubr.f32.mxu0 0.0
    %310 = vmatmul.mubr.f32.gmra.mrb[0].mxu0 %v82
    %v311 = vpop.f32.mrb[0].mxu0
    %v312 = vadd.f32 %v49, %v311
    %v313 = vpop.f32.mrb[0].mxu0
    %v314 = vadd.f32 %v53, %v313
    %315 = vmatprep.mubr.f32.mxu0 0.0
    %316 = vmatmul.mubr.f32.gmra.mrb[0].mxu0 %v85
    %v317 = vpop.f32.mrb[0].mxu0
    %v318 = vadd.f32 %v49, %v317
    %v319 = vpop.f32.mrb[0].mxu0
    %v320 = vadd.f32 %v53, %v319
    %321 = vdwg.mxu0
    %322 = vst [vmem:[%s3] sm:$0xff] %v163
    %323 = vst [vmem:[%s3 + $0x8] sm:$0xff] %v165
    %324 = vst [vmem:[%s3 + $0x10] sm:$0xff] %v276
    %325 = vst [vmem:[%s3 + $0x18] sm:$0xff] %v278
    %326 = vst [vmem:[%s3 + $0x20] sm:$0xff] %v169
    %327 = vst [vmem:[%s3 + $0x28] sm:$0xff] %v171
    %328 = vst [vmem:[%s3 + $0x30] sm:$0xff] %v282
    %329 = vst [vmem:[%s3 + $0x38] sm:$0xff] %v284
    %330 = vst [vmem:[%s3 + $0x40] sm:$0xff] %v175
    %331 = vst [vmem:[%s3 + $0x48] sm:$0xff] %v177
    %332 = vst [vmem:[%s3 + $0x50] sm:$0xff] %v288
    %333 = vst [vmem:[%s3 + $0x58] sm:$0xff] %v290
    %334 = vst [vmem:[%s3 + $0x60] sm:$0xff] %v181
    %335 = vst [vmem:[%s3 + $0x68] sm:$0xff] %v183
    %336 = vst [vmem:[%s3 + $0x70] sm:$0xff] %v294
    %337 = vst [vmem:[%s3 + $0x78] sm:$0xff] %v296
    %338 = vst [vmem:[%s3 + $0x80] sm:$0xff] %v187
    %339 = vst [vmem:[%s3 + $0x88] sm:$0xff] %v189
    %340 = vst [vmem:[%s3 + $0x90] sm:$0xff] %v300
    %341 = vst [vmem:[%s3 + $0x98] sm:$0xff] %v302
    %342 = vst [vmem:[%s3 + $0xa0] sm:$0xff] %v193
    %343 = vst [vmem:[%s3 + $0xa8] sm:$0xff] %v195
    %344 = vst [vmem:[%s3 + $0xb0] sm:$0xff] %v306
    %345 = vst [vmem:[%s3 + $0xb8] sm:$0xff] %v308
    %346 = vst [vmem:[%s3 + $0xc0] sm:$0xff] %v199
    %347 = vst [vmem:[%s3 + $0xc8] sm:$0xff] %v201
    %348 = vst [vmem:[%s3 + $0xd0] sm:$0xff] %v312
    %349 = vst [vmem:[%s3 + $0xd8] sm:$0xff] %v314
    %350 = vst [vmem:[%s3 + $0xe0] sm:$0xff] %v205
    %351 = vst [vmem:[%s3 + $0xe8] sm:$0xff] %v207
    %352 = vst [vmem:[%s3 + $0xf0] sm:$0xff] %v318
    %353 = vst [vmem:[%s3 + $0xf8] sm:$0xff] %v320
    // Predicated region
    $region18: #{lstm_model_forward.2} parent=1 // pred_check
      _
    $region19: #{lstm_model_forward.2} parent=1 // pred_check_branch
      %355 = sbr.rel (0) target = $region21
    $region20: #{lstm_model_forward.2} parent=1 // pred_region
      _
    $region21: #{lstm_model_forward.2} parent=1 // pred_fallthru
      _
    // Predicated region
    $region22: #{lstm_model_forward.2} parent=1 // pred_check
      _
    $region23: #{lstm_model_forward.2} parent=1 // pred_check_branch
      %357 = sbr.rel (0) target = $region25
    $region24: #{lstm_model_forward.2} parent=1 // pred_region
      _
    $region25: #{lstm_model_forward.2} parent=1 // pred_fallthru
      _
    %358 = vsyncpa [#allocation3], 1

// kernel: lstm_model_forward.3
$region0: #{lstm_model_forward.3}
  #allocation0 [shape = 'u32[]', space=smem, size = 0x4, offset = 0x4, fixed_abs, tag = 'smem constant byte address 0x4 - core index']
  #allocation1 [shape = 'u32[144,128]{1,0:T(1,128)}', space=vmem, size = 0x12000, scoped, tag = 'internal scratch']
  #allocation2 [shape = 'f32[8,128]{1,0:T(8,128)}', space=vmem, size = 0x1000, scoped, tag = 'scratch operand']
  #allocation3 [shape = 'f32[8,128]{1,0:T(8,128)}', space=vmem, size = 0x1000, scoped, tag = 'scratch operand']
  #allocation4 [shape = 'f32[8,128]{1,0:T(8,128)}', space=vmem, size = 0x1000, scoped, tag = 'scratch operand']
  #allocation5 [shape = 'f32[8,128]{1,0:T(8,128)}', space=vmem, size = 0x1000, scoped, tag = 'scratch operand']
  #allocation6 [shape = 'f32[1,1]{1,0:T(1,128)S(1)}', space=vmem, size = 0x200, scoped, tag = 'scoped memory for lstm_model_forward.3']
  %s0 = inlined_call_operand.vmem [shape: f32[8,8,512], index: 0, kind: input, shape index: {}]
  %s1 = inlined_call_operand.vmem [shape: f32[128,512], index: 1, kind: input, shape index: {}]
  %s2 = inlined_call_operand.hbm [shape: f32[128,512], index: 2, kind: input, shape index: {}]
  %s3 = inlined_call_operand.hbm [shape: f32[128,512], index: 3, kind: input, shape index: {}]
  %s4 = inlined_call_operand.vmem [shape: f32[1,512], index: 4, kind: input, shape index: {}]
  %s5 = inlined_call_operand.vmem [shape: f32[128,1], index: 5, kind: input, shape index: {}]
  %s6 = inlined_call_operand.<no memory space> [shape: f32[1,1], index: 6, kind: input, shape index: {}]
  %s7 = inlined_call_operand.vmem [shape: f32[8,8,1], index: 7, kind: output, shape index: {}]
  %s8 = sld [smem:[#allocation0]]
  $region50: #{lstm_model_forward.3} parent=0
    _
  %s10 = ssub.s32 1, %s8
  %s11 = scalar_select 0, %s10, %s8
  %v12 = vstv %s6
  %13 = vst [vmem:[#allocation6] sm:$0x1] %v12
  $region1: #{lstm_model_forward.3} parent=0
    #allocation7 [shape = 'u8[262144]{0}', space=vmem, size = 0x40000, scoped, tag = 'input window, operand 2, single buffered']
    #allocation8 [shape = 's32[1]{0}', space=sflag, size = 0x4, scoped, tag = 'scoped memory for lstm_model_forward.3']
    #allocation9 [shape = 'u8[262144]{0}', space=vmem, size = 0x40000, scoped, tag = 'input window, operand 3, single buffered']
    #allocation10 [shape = 's32[1]{0}', space=sflag, size = 0x4, scoped, tag = 'scoped memory for lstm_model_forward.3']
    %14 = vsyncpa [#allocation8], 0
    %15 = vsyncpa [#allocation10], 0
    // Predicated region
    $region2: #{lstm_model_forward.3} parent=1 // pred_check
      _
    $region3: #{lstm_model_forward.3} parent=1 // pred_check_branch
      %17 = sbr.rel (0) target = $region5
    $region4: #{lstm_model_forward.3} parent=1 // pred_region
      _
    $region5: #{lstm_model_forward.3} parent=1 // pred_fallthru
      _
    // Predicated region
    $region6: #{lstm_model_forward.3} parent=1 // pred_check
      _
    $region7: #{lstm_model_forward.3} parent=1 // pred_check_branch
      %19 = sbr.rel (0) target = $region9
    $region8: #{lstm_model_forward.3} parent=1 // pred_region
      _
    $region9: #{lstm_model_forward.3} parent=1 // pred_fallthru
      _
    // Predicated region
    $region10: #{lstm_model_forward.3} parent=1 // pred_check
      _
    $region11: #{lstm_model_forward.3} parent=1 // pred_check_branch
      %21 = sbr.rel (0) target = $region13
    $region12: #{lstm_model_forward.3} parent=1 // pred_region
      %s23 = ssub.s32 8192, 8192
      %24 = vsyncadd [#allocation8], %s23
      %s25 = sshll.u32 [#allocation7], 4
      %s26 = int_to_ptr.vmem [resolvable:$true] %s25
      %31 = dma.hbm_to_vmem [thread:$0]  %s2, 8192, %s26, [#allocation8], 512, 512, 32
    $region13: #{lstm_model_forward.3} parent=1 // pred_fallthru
      _
    // Predicated region
    $region14: #{lstm_model_forward.3} parent=1 // pred_check
      _
    $region15: #{lstm_model_forward.3} parent=1 // pred_check_branch
      %33 = sbr.rel (0) target = $region17
    $region16: #{lstm_model_forward.3} parent=1 // pred_region
      %s35 = ssub.s32 8192, 8192
      %36 = vsyncadd [#allocation10], %s35
      %s37 = sshll.u32 [#allocation9], 4
      %s38 = int_to_ptr.vmem [resolvable:$true] %s37
      %43 = dma.hbm_to_vmem [thread:$0]  %s3, 8192, %s38, [#allocation10], 512, 512, 32
    $region17: #{lstm_model_forward.3} parent=1 // pred_fallthru
      _
    // Predicated region
    $region18: #{lstm_model_forward.3} parent=1 // pred_check
      _
    $region19: #{lstm_model_forward.3} parent=1 // pred_check_branch
      %45 = sbr.rel (0) target = $region21
    $region20: #{lstm_model_forward.3} parent=1 // pred_region
      _
    $region21: #{lstm_model_forward.3} parent=1 // pred_fallthru
      _
    // Predicated region
    $region22: #{lstm_model_forward.3} parent=1 // pred_check
      _
    $region23: #{lstm_model_forward.3} parent=1 // pred_check_branch
      %47 = sbr.rel (0) target = $region25
    $region24: #{lstm_model_forward.3} parent=1 // pred_region
      _
    $region25: #{lstm_model_forward.3} parent=1 // pred_fallthru
      _
    // Predicated region
    $region26: #{lstm_model_forward.3} parent=1 // pred_check
      _
    $region27: #{lstm_model_forward.3} parent=1 // pred_check_branch
      %49 = sbr.rel (0) target = $region29
    $region28: #{lstm_model_forward.3} parent=1 // pred_region
      _
    $region29: #{lstm_model_forward.3} parent=1 // pred_fallthru
      _
    // Predicated region
    $region30: #{lstm_model_forward.3} parent=1 // pred_check
      _
    $region31: #{lstm_model_forward.3} parent=1 // pred_check_branch
      %51 = sbr.rel (0) target = $region33
    $region32: #{lstm_model_forward.3} parent=1 // pred_region
      %52 = dma.done [#allocation8], 8192
    $region33: #{lstm_model_forward.3} parent=1 // pred_fallthru
      _
    // Predicated region
    $region34: #{lstm_model_forward.3} parent=1 // pred_check
      _
    $region35: #{lstm_model_forward.3} parent=1 // pred_check_branch
      %54 = sbr.rel (0) target = $region37
    $region36: #{lstm_model_forward.3} parent=1 // pred_region
      %55 = dma.done [#allocation10], 8192
    $region37: #{lstm_model_forward.3} parent=1 // pred_fallthru
      _
    %p56 = scmp.eq.s32.totalorder 0, 0
    // Predicated region
    $region38: #{lstm_model_forward.3} parent=1 // pred_check
      %p57 = pneg %p56
    $region39: #{lstm_model_forward.3} parent=1 // pred_check_branch
      %59 = sbr.rel (%p57) target = $region41
    $region40: #{lstm_model_forward.3} parent=1 // pred_region
      %60 = vst [vmem:[#allocation2] sm:$0xff] 0.0
      %61 = vst [vmem:[#allocation3] sm:$0xff] 0.0
      %62 = vst [vmem:[#allocation4] sm:$0xff] 0.0
      %63 = vst [vmem:[#allocation5] sm:$0xff] 0.0
    $region41: #{lstm_model_forward.3} parent=1 // pred_fallthru
      _
    %v64 = vld [vmem:[#allocation2] sm:$0xff]
    %v65 = vld [vmem:[#allocation4] sm:$0xff]
    %v66 = vld [vmem:[#allocation3] sm:$0xff]
    %v67 = vld [vmem:[#allocation5] sm:$0xff]
    %v68 = vld [vmem:[%s0] sm:$0xff]
    %v69 = vld [vmem:[%s0 + $0x8] sm:$0xff]
    %v70 = vld [vmem:[%s0 + $0x10] sm:$0xff]
    %v71 = vld [vmem:[%s0 + $0x18] sm:$0xff]
    %v72 = vld [vmem:[%s1] sm:$0xff]
    %v73 = vld [vmem:[%s1 + $0x8] sm:$0xff]
    %v74 = vld [vmem:[%s1 + $0x10] sm:$0xff]
    %v75 = vld [vmem:[%s1 + $0x18] sm:$0xff]
    %v76 = vld [vmem:[%s1 + $0x20] sm:$0xff]
    %v77 = vld [vmem:[%s1 + $0x28] sm:$0xff]
    %v78 = vld [vmem:[%s1 + $0x30] sm:$0xff]
    %v79 = vld [vmem:[%s1 + $0x38] sm:$0xff]
    %v80 = vld [vmem:[%s1 + $0x40] sm:$0xff]
    %v81 = vld [vmem:[%s1 + $0x48] sm:$0xff]
    %v82 = vld [vmem:[%s1 + $0x50] sm:$0xff]
    %v83 = vld [vmem:[%s1 + $0x58] sm:$0xff]
    %v84 = vld [vmem:[%s1 + $0x60] sm:$0xff]
    %v85 = vld [vmem:[%s1 + $0x68] sm:$0xff]
    %v86 = vld [vmem:[%s1 + $0x70] sm:$0xff]
    %v87 = vld [vmem:[%s1 + $0x78] sm:$0xff]
    %v88 = vld [vmem:[%s1 + $0x80] sm:$0xff]
    %v89 = vld [vmem:[%s1 + $0x88] sm:$0xff]
    %v90 = vld [vmem:[%s1 + $0x90] sm:$0xff]
    %v91 = vld [vmem:[%s1 + $0x98] sm:$0xff]
    %v92 = vld [vmem:[%s1 + $0xa0] sm:$0xff]
    %v93 = vld [vmem:[%s1 + $0xa8] sm:$0xff]
    %v94 = vld [vmem:[%s1 + $0xb0] sm:$0xff]
    %v95 = vld [vmem:[%s1 + $0xb8] sm:$0xff]
    %v96 = vld [vmem:[%s1 + $0xc0] sm:$0xff]
    %v97 = vld [vmem:[%s1 + $0xc8] sm:$0xff]
    %v98 = vld [vmem:[%s1 + $0xd0] sm:$0xff]
    %v99 = vld [vmem:[%s1 + $0xd8] sm:$0xff]
    %v100 = vld [vmem:[%s1 + $0xe0] sm:$0xff]
    %v101 = vld [vmem:[%s1 + $0xe8] sm:$0xff]
    %v102 = vld [vmem:[%s1 + $0xf0] sm:$0xff]
    %v103 = vld [vmem:[%s1 + $0xf8] sm:$0xff]
    %v104 = vld [vmem:[%s1 + $0x100] sm:$0xff]
    %v105 = vld [vmem:[%s1 + $0x108] sm:$0xff]
    %v106 = vld [vmem:[%s1 + $0x110] sm:$0xff]
    %v107 = vld [vmem:[%s1 + $0x118] sm:$0xff]
    %v108 = vld [vmem:[%s1 + $0x120] sm:$0xff]
    %v109 = vld [vmem:[%s1 + $0x128] sm:$0xff]
    %v110 = vld [vmem:[%s1 + $0x130] sm:$0xff]
    %v111 = vld [vmem:[%s1 + $0x138] sm:$0xff]
    %v112 = vld [vmem:[%s1 + $0x140] sm:$0xff]
    %v113 = vld [vmem:[%s1 + $0x148] sm:$0xff]
    %v114 = vld [vmem:[%s1 + $0x150] sm:$0xff]
    %v115 = vld [vmem:[%s1 + $0x158] sm:$0xff]
    %v116 = vld [vmem:[%s1 + $0x160] sm:$0xff]
    %v117 = vld [vmem:[%s1 + $0x168] sm:$0xff]
    %v118 = vld [vmem:[%s1 + $0x170] sm:$0xff]
    %v119 = vld [vmem:[%s1 + $0x178] sm:$0xff]
    %v120 = vld [vmem:[%s1 + $0x180] sm:$0xff]
    %v121 = vld [vmem:[%s1 + $0x188] sm:$0xff]
    %v122 = vld [vmem:[%s1 + $0x190] sm:$0xff]
    %v123 = vld [vmem:[%s1 + $0x198] sm:$0xff]
    %v124 = vld [vmem:[%s1 + $0x1a0] sm:$0xff]
    %v125 = vld [vmem:[%s1 + $0x1a8] sm:$0xff]
    %v126 = vld [vmem:[%s1 + $0x1b0] sm:$0xff]
    %v127 = vld [vmem:[%s1 + $0x1b8] sm:$0xff]
    %v128 = vld [vmem:[%s1 + $0x1c0] sm:$0xff]
    %v129 = vld [vmem:[%s1 + $0x1c8] sm:$0xff]
    %v130 = vld [vmem:[%s1 + $0x1d0] sm:$0xff]
    %v131 = vld [vmem:[%s1 + $0x1d8] sm:$0xff]
    %v132 = vld [vmem:[%s1 + $0x1e0] sm:$0xff]
    %v133 = vld [vmem:[%s1 + $0x1e8] sm:$0xff]
    %v134 = vld [vmem:[%s1 + $0x1f0] sm:$0xff]
    %v135 = vld [vmem:[%s1 + $0x1f8] sm:$0xff]
    %136 = vmatprep.subr.mxu0 %v73
    %137 = vmatpush1.msra.mxu0 %v72
    %138 = vmatprep.subr.mxu0 %v77
    %139 = vmatpush1.msra.mxu0 %v76
    %140 = vmatprep.subr.mxu0 %v81
    %141 = vmatpush1.msra.mxu0 %v80
    %142 = vmatprep.subr.mxu0 %v85
    %143 = vmatpush1.msra.mxu0 %v84
    %144 = vmatprep.subr.mxu0 %v89
    %145 = vmatpush1.msra.mxu0 %v88
    %146 = vmatprep.subr.mxu0 %v93
    %147 = vmatpush1.msra.mxu0 %v92
    %148 = vmatprep.subr.mxu0 %v97
    %149 = vmatpush1.msra.mxu0 %v96
    %150 = vmatprep.subr.mxu0 %v101
    %151 = vmatpush1.msra.mxu0 %v100
    %152 = vmatprep.subr.mxu0 %v105
    %153 = vmatpush1.msra.mxu0 %v104
    %154 = vmatprep.subr.mxu0 %v109
    %155 = vmatpush1.msra.mxu0 %v108
    %156 = vmatprep.subr.mxu0 %v113
    %157 = vmatpush1.msra.mxu0 %v112
    %158 = vmatprep.subr.mxu0 %v117
    %159 = vmatpush1.msra.mxu0 %v116
    %160 = vmatprep.subr.mxu0 %v121
    %161 = vmatpush1.msra.mxu0 %v120
    %162 = vmatprep.subr.mxu0 %v125
    %163 = vmatpush1.msra.mxu0 %v124
    %164 = vmatprep.subr.mxu0 %v129
    %165 = vmatpush1.msra.mxu0 %v128
    %166 = vmatprep.subr.mxu0 %v133
    %167 = vmatpush1.msra.mxu0 %v132
    %168 = vmatprep.subr.mxu0 0.0
    %169 = vmatpush1.msra.mxu0 0.0
    %170 = vmatprep.subr.mxu0 0.0
    %171 = vmatpush1.msra.mxu0 0.0
    %172 = vmatprep.subr.mxu0 0.0
    %173 = vmatpush1.msra.mxu0 0.0
    %174 = vmatprep.subr.mxu0 0.0
    %175 = vmatpush1.msra.mxu0 0.0
    %176 = vmatprep.subr.mxu0 0.0
    %177 = vmatpush1.msra.mxu0 0.0
    %178 = vmatprep.subr.mxu0 0.0
    %179 = vmatpush1.msra.mxu0 0.0
    %180 = vmatprep.subr.mxu0 0.0
    %181 = vmatpush1.msra.mxu0 0.0
    %182 = vmatprep.subr.mxu0 0.0
    %183 = vmatpush1.msra.mxu0 0.0
    %184 = vmatprep.subr.mxu0 0.0
    %185 = vmatpush1.msra.mxu0 0.0
    %186 = vmatprep.subr.mxu0 0.0
    %187 = vmatpush1.msra.mxu0 0.0
    %188 = vmatprep.subr.mxu0 0.0
    %189 = vmatpush1.msra.mxu0 0.0
    %190 = vmatprep.subr.mxu0 0.0
    %191 = vmatpush1.msra.mxu0 0.0
    %192 = vmatprep.subr.mxu0 0.0
    %193 = vmatpush1.msra.mxu0 0.0
    %194 = vmatprep.subr.mxu0 0.0
    %195 = vmatpush1.msra.mxu0 0.0
    %196 = vmatprep.subr.mxu0 0.0
    %197 = vmatpush1.msra.mxu0 0.0
    %198 = vmatprep.subr.mxu0 0.0
    %199 = vmatpush1.msra.mxu0 0.0
    %200 = vmatprep.mubr.f32.mxu0 0.0
    %201 = vmatmul.mubr.f32.gmra.mrb[0].mxu0 %v64
    %v202 = vpop.f32.mrb[0].mxu0
    %v203 = vadd.f32 0.0, %v202
    %v204 = vpop.f32.mrb[0].mxu0
    %v205 = vadd.f32 0.0, %v204
    %206 = vdwg.mxu0
    %207 = vmatprep.subr.mxu0 %v75
    %208 = vmatpush1.msra.mxu0 %v74
    %209 = vmatprep.subr.mxu0 %v79
    %210 = vmatpush1.msra.mxu0 %v78
    %211 = vmatprep.subr.mxu0 %v83
    %212 = vmatpush1.msra.mxu0 %v82
    %213 = vmatprep.subr.mxu0 %v87
    %214 = vmatpush1.msra.mxu0 %v86
    %215 = vmatprep.subr.mxu0 %v91
    %216 = vmatpush1.msra.mxu0 %v90
    %217 = vmatprep.subr.mxu0 %v95
    %218 = vmatpush1.msra.mxu0 %v94
    %219 = vmatprep.subr.mxu0 %v99
    %220 = vmatpush1.msra.mxu0 %v98
    %221 = vmatprep.subr.mxu0 %v103
    %222 = vmatpush1.msra.mxu0 %v102
    %223 = vmatprep.subr.mxu0 %v107
    %224 = vmatpush1.msra.mxu0 %v106
    %225 = vmatprep.subr.mxu0 %v111
    %226 = vmatpush1.msra.mxu0 %v110
    %227 = vmatprep.subr.mxu0 %v115
    %228 = vmatpush1.msra.mxu0 %v114
    %229 = vmatprep.subr.mxu0 %v119
    %230 = vmatpush1.msra.mxu0 %v118
    %231 = vmatprep.subr.mxu0 %v123
    %232 = vmatpush1.msra.mxu0 %v122
    %233 = vmatprep.subr.mxu0 %v127
    %234 = vmatpush1.msra.mxu0 %v126
    %235 = vmatprep.subr.mxu0 %v131
    %236 = vmatpush1.msra.mxu0 %v130
    %237 = vmatprep.subr.mxu0 %v135
    %238 = vmatpush1.msra.mxu0 %v134
    %239 = vmatprep.subr.mxu0 0.0
    %240 = vmatpush1.msra.mxu0 0.0
    %241 = vmatprep.subr.mxu0 0.0
    %242 = vmatpush1.msra.mxu0 0.0
    %243 = vmatprep.subr.mxu0 0.0
    %244 = vmatpush1.msra.mxu0 0.0
    %245 = vmatprep.subr.mxu0 0.0
    %246 = vmatpush1.msra.mxu0 0.0
    %247 = vmatprep.subr.mxu0 0.0
    %248 = vmatpush1.msra.mxu0 0.0
    %249 = vmatprep.subr.mxu0 0.0
    %250 = vmatpush1.msra.mxu0 0.0
    %251 = vmatprep.subr.mxu0 0.0
    %252 = vmatpush1.msra.mxu0 0.0
    %253 = vmatprep.subr.mxu0 0.0
    %254 = vmatpush1.msra.mxu0 0.0
    %255 = vmatprep.subr.mxu0 0.0
    %256 = vmatpush1.msra.mxu0 0.0
    %257 = vmatprep.subr.mxu0 0.0
    %258 = vmatpush1.msra.mxu0 0.0
    %259 = vmatprep.subr.mxu0 0.0
    %260 = vmatpush1.msra.mxu0 0.0
    %261 = vmatprep.subr.mxu0 0.0
    %262 = vmatpush1.msra.mxu0 0.0
    %263 = vmatprep.subr.mxu0 0.0
    %264 = vmatpush1.msra.mxu0 0.0
    %265 = vmatprep.subr.mxu0 0.0
    %266 = vmatpush1.msra.mxu0 0.0
    %267 = vmatprep.subr.mxu0 0.0
    %268 = vmatpush1.msra.mxu0 0.0
    %269 = vmatprep.subr.mxu0 0.0
    %270 = vmatpush1.msra.mxu0 0.0
    %271 = vmatprep.mubr.f32.mxu0 0.0
    %272 = vmatmul.mubr.f32.gmra.mrb[0].mxu0 %v64
    %v273 = vpop.f32.mrb[0].mxu0
    %v274 = vadd.f32 0.0, %v273
    %v275 = vpop.f32.mrb[0].mxu0
    %v276 = vadd.f32 0.0, %v275
    %277 = vdwg.mxu0
    %v278 = vadd.f32 %v68, %v203
    %v279 = vadd.f32 %v69, %v205
    %v280 = vadd.f32 %v70, %v274
    %v281 = vadd.f32 %v71, %v276
    %v282 = vmul.f32 %v278, 0.5
    %v283 = vtanh.pop %v282
    %v284 = vmul.f32 %v283, 0.5
    %v285 = vadd.f32 %v284, 0.5
    %v286 = vmul.f32 %v279, 0.5
    %v287 = vtanh.pop %v286
    %v288 = vmul.f32 %v287, 0.5
    %v289 = vadd.f32 %v288, 0.5
    %v290 = vtanh.pop %v280
    %v291 = vmul.f32 %v281, 0.5
    %v292 = vtanh.pop %v291
    %v293 = vmul.f32 %v292, 0.5
    %v294 = vadd.f32 %v293, 0.5
    %v295 = vmul.f32 %v289, %v66
    %v296 = vmul.f32 %v285, %v290
    %v297 = vadd.f32 %v295, %v296
    %v298 = vtanh.pop %v297
    %v299 = vmul.f32 %v294, %v298
    %v300 = vld [vmem:[#allocation7] sm:$0xff]
    %v301 = vld [vmem:[#allocation7 + $0x8] sm:$0xff]
    %v302 = vld [vmem:[#allocation7 + $0x10] sm:$0xff]
    %v303 = vld [vmem:[#allocation7 + $0x18] sm:$0xff]
    %v304 = vld [vmem:[#allocation7 + $0x20] sm:$0xff]
    %v305 = vld [vmem:[#allocation7 + $0x28] sm:$0xff]
    %v306 = vld [vmem:[#allocation7 + $0x30] sm:$0xff]
    %v307 = vld [vmem:[#allocation7 + $0x38] sm:$0xff]
    %v308 = vld [vmem:[#allocation7 + $0x40] sm:$0xff]
    %v309 = vld [vmem:[#allocation7 + $0x48] sm:$0xff]
    %v310 = vld [vmem:[#allocation7 + $0x50] sm:$0xff]
    %v311 = vld [vmem:[#allocation7 + $0x58] sm:$0xff]
    %v312 = vld [vmem:[#allocation7 + $0x60] sm:$0xff]
    %v313 = vld [vmem:[#allocation7 + $0x68] sm:$0xff]
    %v314 = vld [vmem:[#allocation7 + $0x70] sm:$0xff]
    %v315 = vld [vmem:[#allocation7 + $0x78] sm:$0xff]
    %v316 = vld [vmem:[#allocation7 + $0x80] sm:$0xff]
    %v317 = vld [vmem:[#allocation7 + $0x88] sm:$0xff]
    %v318 = vld [vmem:[#allocation7 + $0x90] sm:$0xff]
    %v319 = vld [vmem:[#allocation7 + $0x98] sm:$0xff]
    %v320 = vld [vmem:[#allocation7 + $0xa0] sm:$0xff]
    %v321 = vld [vmem:[#allocation7 + $0xa8] sm:$0xff]
    %v322 = vld [vmem:[#allocation7 + $0xb0] sm:$0xff]
    %v323 = vld [vmem:[#allocation7 + $0xb8] sm:$0xff]
    %v324 = vld [vmem:[#allocation7 + $0xc0] sm:$0xff]
    %v325 = vld [vmem:[#allocation7 + $0xc8] sm:$0xff]
    %v326 = vld [vmem:[#allocation7 + $0xd0] sm:$0xff]
    %v327 = vld [vmem:[#allocation7 + $0xd8] sm:$0xff]
    %v328 = vld [vmem:[#allocation7 + $0xe0] sm:$0xff]
    %v329 = vld [vmem:[#allocation7 + $0xe8] sm:$0xff]
    %v330 = vld [vmem:[#allocation7 + $0xf0] sm:$0xff]
    %v331 = vld [vmem:[#allocation7 + $0xf8] sm:$0xff]
    %v332 = vld [vmem:[#allocation7 + $0x100] sm:$0xff]
    %v333 = vld [vmem:[#allocation7 + $0x108] sm:$0xff]
    %v334 = vld [vmem:[#allocation7 + $0x110] sm:$0xff]
    %v335 = vld [vmem:[#allocation7 + $0x118] sm:$0xff]
    %v336 = vld [vmem:[#allocation7 + $0x120] sm:$0xff]
    %v337 = vld [vmem:[#allocation7 + $0x128] sm:$0xff]
    %v338 = vld [vmem:[#allocation7 + $0x130] sm:$0xff]
    %v339 = vld [vmem:[#allocation7 + $0x138] sm:$0xff]
    %v340 = vld [vmem:[#allocation7 + $0x140] sm:$0xff]
    %v341 = vld [vmem:[#allocation7 + $0x148] sm:$0xff]
    %v342 = vld [vmem:[#allocation7 + $0x150] sm:$0xff]
    %v343 = vld [vmem:[#allocation7 + $0x158] sm:$0xff]
    %v344 = vld [vmem:[#allocation7 + $0x160] sm:$0xff]
    %v345 = vld [vmem:[#allocation7 + $0x168] sm:$0xff]
    %v346 = vld [vmem:[#allocation7 + $0x170] sm:$0xff]
    %v347 = vld [vmem:[#allocation7 + $0x178] sm:$0xff]
    %v348 = vld [vmem:[#allocation7 + $0x180] sm:$0xff]
    %v349 = vld [vmem:[#allocation7 + $0x188] sm:$0xff]
    %v350 = vld [vmem:[#allocation7 + $0x190] sm:$0xff]
    %v351 = vld [vmem:[#allocation7 + $0x198] sm:$0xff]
    %v352 = vld [vmem:[#allocation7 + $0x1a0] sm:$0xff]
    %v353 = vld [vmem:[#allocation7 + $0x1a8] sm:$0xff]
    %v354 = vld [vmem:[#allocation7 + $0x1b0] sm:$0xff]
    %v355 = vld [vmem:[#allocation7 + $0x1b8] sm:$0xff]
    %v356 = vld [vmem:[#allocation7 + $0x1c0] sm:$0xff]
    %v357 = vld [vmem:[#allocation7 + $0x1c8] sm:$0xff]
    %v358 = vld [vmem:[#allocation7 + $0x1d0] sm:$0xff]
    %v359 = vld [vmem:[#allocation7 + $0x1d8] sm:$0xff]
    %v360 = vld [vmem:[#allocation7 + $0x1e0] sm:$0xff]
    %v361 = vld [vmem:[#allocation7 + $0x1e8] sm:$0xff]
    %v362 = vld [vmem:[#allocation7 + $0x1f0] sm:$0xff]
    %v363 = vld [vmem:[#allocation7 + $0x1f8] sm:$0xff]
    %v364 = vld [vmem:[#allocation9] sm:$0xff]
    %v365 = vld [vmem:[#allocation9 + $0x8] sm:$0xff]
    %v366 = vld [vmem:[#allocation9 + $0x10] sm:$0xff]
    %v367 = vld [vmem:[#allocation9 + $0x18] sm:$0xff]
    %v368 = vld [vmem:[#allocation9 + $0x20] sm:$0xff]
    %v369 = vld [vmem:[#allocation9 + $0x28] sm:$0xff]
    %v370 = vld [vmem:[#allocation9 + $0x30] sm:$0xff]
    %v371 = vld [vmem:[#allocation9 + $0x38] sm:$0xff]
    %v372 = vld [vmem:[#allocation9 + $0x40] sm:$0xff]
    %v373 = vld [vmem:[#allocation9 + $0x48] sm:$0xff]
    %v374 = vld [vmem:[#allocation9 + $0x50] sm:$0xff]
    %v375 = vld [vmem:[#allocation9 + $0x58] sm:$0xff]
    %v376 = vld [vmem:[#allocation9 + $0x60] sm:$0xff]
    %v377 = vld [vmem:[#allocation9 + $0x68] sm:$0xff]
    %v378 = vld [vmem:[#allocation9 + $0x70] sm:$0xff]
    %v379 = vld [vmem:[#allocation9 + $0x78] sm:$0xff]
    %v380 = vld [vmem:[#allocation9 + $0x80] sm:$0xff]
    %v381 = vld [vmem:[#allocation9 + $0x88] sm:$0xff]
    %v382 = vld [vmem:[#allocation9 + $0x90] sm:$0xff]
    %v383 = vld [vmem:[#allocation9 + $0x98] sm:$0xff]
    %v384 = vld [vmem:[#allocation9 + $0xa0] sm:$0xff]
    %v385 = vld [vmem:[#allocation9 + $0xa8] sm:$0xff]
    %v386 = vld [vmem:[#allocation9 + $0xb0] sm:$0xff]
    %v387 = vld [vmem:[#allocation9 + $0xb8] sm:$0xff]
    %v388 = vld [vmem:[#allocation9 + $0xc0] sm:$0xff]
    %v389 = vld [vmem:[#allocation9 + $0xc8] sm:$0xff]
    %v390 = vld [vmem:[#allocation9 + $0xd0] sm:$0xff]
    %v391 = vld [vmem:[#allocation9 + $0xd8] sm:$0xff]
    %v392 = vld [vmem:[#allocation9 + $0xe0] sm:$0xff]
    %v393 = vld [vmem:[#allocation9 + $0xe8] sm:$0xff]
    %v394 = vld [vmem:[#allocation9 + $0xf0] sm:$0xff]
    %v395 = vld [vmem:[#allocation9 + $0xf8] sm:$0xff]
    %v396 = vld [vmem:[#allocation9 + $0x100] sm:$0xff]
    %v397 = vld [vmem:[#allocation9 + $0x108] sm:$0xff]
    %v398 = vld [vmem:[#allocation9 + $0x110] sm:$0xff]
    %v399 = vld [vmem:[#allocation9 + $0x118] sm:$0xff]
    %v400 = vld [vmem:[#allocation9 + $0x120] sm:$0xff]
    %v401 = vld [vmem:[#allocation9 + $0x128] sm:$0xff]
    %v402 = vld [vmem:[#allocation9 + $0x130] sm:$0xff]
    %v403 = vld [vmem:[#allocation9 + $0x138] sm:$0xff]
    %v404 = vld [vmem:[#allocation9 + $0x140] sm:$0xff]
    %v405 = vld [vmem:[#allocation9 + $0x148] sm:$0xff]
    %v406 = vld [vmem:[#allocation9 + $0x150] sm:$0xff]
    %v407 = vld [vmem:[#allocation9 + $0x158] sm:$0xff]
    %v408 = vld [vmem:[#allocation9 + $0x160] sm:$0xff]
    %v409 = vld [vmem:[#allocation9 + $0x168] sm:$0xff]
    %v410 = vld [vmem:[#allocation9 + $0x170] sm:$0xff]
    %v411 = vld [vmem:[#allocation9 + $0x178] sm:$0xff]
    %v412 = vld [vmem:[#allocation9 + $0x180] sm:$0xff]
    %v413 = vld [vmem:[#allocation9 + $0x188] sm:$0xff]
    %v414 = vld [vmem:[#allocation9 + $0x190] sm:$0xff]
    %v415 = vld [vmem:[#allocation9 + $0x198] sm:$0xff]
    %v416 = vld [vmem:[#allocation9 + $0x1a0] sm:$0xff]
    %v417 = vld [vmem:[#allocation9 + $0x1a8] sm:$0xff]
    %v418 = vld [vmem:[#allocation9 + $0x1b0] sm:$0xff]
    %v419 = vld [vmem:[#allocation9 + $0x1b8] sm:$0xff]
    %v420 = vld [vmem:[#allocation9 + $0x1c0] sm:$0xff]
    %v421 = vld [vmem:[#allocation9 + $0x1c8] sm:$0xff]
    %v422 = vld [vmem:[#allocation9 + $0x1d0] sm:$0xff]
    %v423 = vld [vmem:[#allocation9 + $0x1d8] sm:$0xff]
    %v424 = vld [vmem:[#allocation9 + $0x1e0] sm:$0xff]
    %v425 = vld [vmem:[#allocation9 + $0x1e8] sm:$0xff]
    %v426 = vld [vmem:[#allocation9 + $0x1f0] sm:$0xff]
    %v427 = vld [vmem:[#allocation9 + $0x1f8] sm:$0xff]
    %428 = vmatprep.subr.mxu0 %v365
    %429 = vmatpush1.msra.mxu0 %v364
    %430 = vmatprep.subr.mxu0 %v369
    %431 = vmatpush1.msra.mxu0 %v368
    %432 = vmatprep.subr.mxu0 %v373
    %433 = vmatpush1.msra.mxu0 %v372
    %434 = vmatprep.subr.mxu0 %v377
    %435 = vmatpush1.msra.mxu0 %v376
    %436 = vmatprep.subr.mxu0 %v381
    %437 = vmatpush1.msra.mxu0 %v380
    %438 = vmatprep.subr.mxu0 %v385
    %439 = vmatpush1.msra.mxu0 %v384
    %440 = vmatprep.subr.mxu0 %v389
    %441 = vmatpush1.msra.mxu0 %v388
    %442 = vmatprep.subr.mxu0 %v393
    %443 = vmatpush1.msra.mxu0 %v392
    %444 = vmatprep.subr.mxu0 %v397
    %445 = vmatpush1.msra.mxu0 %v396
    %446 = vmatprep.subr.mxu0 %v401
    %447 = vmatpush1.msra.mxu0 %v400
    %448 = vmatprep.subr.mxu0 %v405
    %449 = vmatpush1.msra.mxu0 %v404
    %450 = vmatprep.subr.mxu0 %v409
    %451 = vmatpush1.msra.mxu0 %v408
    %452 = vmatprep.subr.mxu0 %v413
    %453 = vmatpush1.msra.mxu0 %v412
    %454 = vmatprep.subr.mxu0 %v417
    %455 = vmatpush1.msra.mxu0 %v416
    %456 = vmatprep.subr.mxu0 %v421
    %457 = vmatpush1.msra.mxu0 %v420
    %458 = vmatprep.subr.mxu0 %v425
    %459 = vmatpush1.msra.mxu0 %v424
    %460 = vmatprep.subr.mxu0 0.0
    %461 = vmatpush1.msra.mxu0 0.0
    %462 = vmatprep.subr.mxu0 0.0
    %463 = vmatpush1.msra.mxu0 0.0
    %464 = vmatprep.subr.mxu0 0.0
    %465 = vmatpush1.msra.mxu0 0.0
    %466 = vmatprep.subr.mxu0 0.0
    %467 = vmatpush1.msra.mxu0 0.0
    %468 = vmatprep.subr.mxu0 0.0
    %469 = vmatpush1.msra.mxu0 0.0
    %470 = vmatprep.subr.mxu0 0.0
    %471 = vmatpush1.msra.mxu0 0.0
    %472 = vmatprep.subr.mxu0 0.0
    %473 = vmatpush1.msra.mxu0 0.0
    %474 = vmatprep.subr.mxu0 0.0
    %475 = vmatpush1.msra.mxu0 0.0
    %476 = vmatprep.subr.mxu0 0.0
    %477 = vmatpush1.msra.mxu0 0.0
    %478 = vmatprep.subr.mxu0 0.0
    %479 = vmatpush1.msra.mxu0 0.0
    %480 = vmatprep.subr.mxu0 0.0
    %481 = vmatpush1.msra.mxu0 0.0
    %482 = vmatprep.subr.mxu0 0.0
    %483 = vmatpush1.msra.mxu0 0.0
    %484 = vmatprep.subr.mxu0 0.0
    %485 = vmatpush1.msra.mxu0 0.0
    %486 = vmatprep.subr.mxu0 0.0
    %487 = vmatpush1.msra.mxu0 0.0
    %488 = vmatprep.subr.mxu0 0.0
    %489 = vmatpush1.msra.mxu0 0.0
    %490 = vmatprep.subr.mxu0 0.0
    %491 = vmatpush1.msra.mxu0 0.0
    %492 = vmatprep.mubr.f32.mxu0 0.0
    %493 = vmatmul.mubr.f32.gmra.mrb[0].mxu0 %v65
    %v494 = vpop.f32.mrb[0].mxu0
    %v495 = vadd.f32 0.0, %v494
    %v496 = vpop.f32.mrb[0].mxu0
    %v497 = vadd.f32 0.0, %v496
    %498 = vdwg.mxu0
    %499 = vmatprep.subr.mxu0 %v367
    %500 = vmatpush1.msra.mxu0 %v366
    %501 = vmatprep.subr.mxu0 %v371
    %502 = vmatpush1.msra.mxu0 %v370
    %503 = vmatprep.subr.mxu0 %v375
    %504 = vmatpush1.msra.mxu0 %v374
    %505 = vmatprep.subr.mxu0 %v379
    %506 = vmatpush1.msra.mxu0 %v378
    %507 = vmatprep.subr.mxu0 %v383
    %508 = vmatpush1.msra.mxu0 %v382
    %509 = vmatprep.subr.mxu0 %v387
    %510 = vmatpush1.msra.mxu0 %v386
    %511 = vmatprep.subr.mxu0 %v391
    %512 = vmatpush1.msra.mxu0 %v390
    %513 = vmatprep.subr.mxu0 %v395
    %514 = vmatpush1.msra.mxu0 %v394
    %515 = vmatprep.subr.mxu0 %v399
    %516 = vmatpush1.msra.mxu0 %v398
    %517 = vmatprep.subr.mxu0 %v403
    %518 = vmatpush1.msra.mxu0 %v402
    %519 = vmatprep.subr.mxu0 %v407
    %520 = vmatpush1.msra.mxu0 %v406
    %521 = vmatprep.subr.mxu0 %v411
    %522 = vmatpush1.msra.mxu0 %v410
    %523 = vmatprep.subr.mxu0 %v415
    %524 = vmatpush1.msra.mxu0 %v414
    %525 = vmatprep.subr.mxu0 %v419
    %526 = vmatpush1.msra.mxu0 %v418
    %527 = vmatprep.subr.mxu0 %v423
    %528 = vmatpush1.msra.mxu0 %v422
    %529 = vmatprep.subr.mxu0 %v427
    %530 = vmatpush1.msra.mxu0 %v426
    %531 = vmatprep.subr.mxu0 0.0
    %532 = vmatpush1.msra.mxu0 0.0
    %533 = vmatprep.subr.mxu0 0.0
    %534 = vmatpush1.msra.mxu0 0.0
    %535 = vmatprep.subr.mxu0 0.0
    %536 = vmatpush1.msra.mxu0 0.0
    %537 = vmatprep.subr.mxu0 0.0
    %538 = vmatpush1.msra.mxu0 0.0
    %539 = vmatprep.subr.mxu0 0.0
    %540 = vmatpush1.msra.mxu0 0.0
    %541 = vmatprep.subr.mxu0 0.0
    %542 = vmatpush1.msra.mxu0 0.0
    %543 = vmatprep.subr.mxu0 0.0
    %544 = vmatpush1.msra.mxu0 0.0
    %545 = vmatprep.subr.mxu0 0.0
    %546 = vmatpush1.msra.mxu0 0.0
    %547 = vmatprep.subr.mxu0 0.0
    %548 = vmatpush1.msra.mxu0 0.0
    %549 = vmatprep.subr.mxu0 0.0
    %550 = vmatpush1.msra.mxu0 0.0
    %551 = vmatprep.subr.mxu0 0.0
    %552 = vmatpush1.msra.mxu0 0.0
    %553 = vmatprep.subr.mxu0 0.0
    %554 = vmatpush1.msra.mxu0 0.0
    %555 = vmatprep.subr.mxu0 0.0
    %556 = vmatpush1.msra.mxu0 0.0
    %557 = vmatprep.subr.mxu0 0.0
    %558 = vmatpush1.msra.mxu0 0.0
    %559 = vmatprep.subr.mxu0 0.0
    %560 = vmatpush1.msra.mxu0 0.0
    %561 = vmatprep.subr.mxu0 0.0
    %562 = vmatpush1.msra.mxu0 0.0
    %563 = vmatprep.mubr.f32.mxu0 0.0
    %564 = vmatmul.mubr.f32.gmra.mrb[0].mxu0 %v65
    %v565 = vpop.f32.mrb[0].mxu0
    %v566 = vadd.f32 0.0, %v565
    %v567 = vpop.f32.mrb[0].mxu0
    %v568 = vadd.f32 0.0, %v567
    %569 = vdwg.mxu0
    %570 = vmatprep.subr.mxu0 %v301
    %571 = vmatpush1.msra.mxu0 %v300
    %572 = vmatprep.subr.mxu0 %v305
    %573 = vmatpush1.msra.mxu0 %v304
    %574 = vmatprep.subr.mxu0 %v309
    %575 = vmatpush1.msra.mxu0 %v308
    %576 = vmatprep.subr.mxu0 %v313
    %577 = vmatpush1.msra.mxu0 %v312
    %578 = vmatprep.subr.mxu0 %v317
    %579 = vmatpush1.msra.mxu0 %v316
    %580 = vmatprep.subr.mxu0 %v321
    %581 = vmatpush1.msra.mxu0 %v320
    %582 = vmatprep.subr.mxu0 %v325
    %583 = vmatpush1.msra.mxu0 %v324
    %584 = vmatprep.subr.mxu0 %v329
    %585 = vmatpush1.msra.mxu0 %v328
    %586 = vmatprep.subr.mxu0 %v333
    %587 = vmatpush1.msra.mxu0 %v332
    %588 = vmatprep.subr.mxu0 %v337
    %589 = vmatpush1.msra.mxu0 %v336
    %590 = vmatprep.subr.mxu0 %v341
    %591 = vmatpush1.msra.mxu0 %v340
    %592 = vmatprep.subr.mxu0 %v345
    %593 = vmatpush1.msra.mxu0 %v344
    %594 = vmatprep.subr.mxu0 %v349
    %595 = vmatpush1.msra.mxu0 %v348
    %596 = vmatprep.subr.mxu0 %v353
    %597 = vmatpush1.msra.mxu0 %v352
    %598 = vmatprep.subr.mxu0 %v357
    %599 = vmatpush1.msra.mxu0 %v356
    %600 = vmatprep.subr.mxu0 %v361
    %601 = vmatpush1.msra.mxu0 %v360
    %602 = vmatprep.subr.mxu0 0.0
    %603 = vmatpush1.msra.mxu0 0.0
    %604 = vmatprep.subr.mxu0 0.0
    %605 = vmatpush1.msra.mxu0 0.0
    %606 = vmatprep.subr.mxu0 0.0
    %607 = vmatpush1.msra.mxu0 0.0
    %608 = vmatprep.subr.mxu0 0.0
    %609 = vmatpush1.msra.mxu0 0.0
    %610 = vmatprep.subr.mxu0 0.0
    %611 = vmatpush1.msra.mxu0 0.0
    %612 = vmatprep.subr.mxu0 0.0
    %613 = vmatpush1.msra.mxu0 0.0
    %614 = vmatprep.subr.mxu0 0.0
    %615 = vmatpush1.msra.mxu0 0.0
    %616 = vmatprep.subr.mxu0 0.0
    %617 = vmatpush1.msra.mxu0 0.0
    %618 = vmatprep.subr.mxu0 0.0
    %619 = vmatpush1.msra.mxu0 0.0
    %620 = vmatprep.subr.mxu0 0.0
    %621 = vmatpush1.msra.mxu0 0.0
    %622 = vmatprep.subr.mxu0 0.0
    %623 = vmatpush1.msra.mxu0 0.0
    %624 = vmatprep.subr.mxu0 0.0
    %625 = vmatpush1.msra.mxu0 0.0
    %626 = vmatprep.subr.mxu0 0.0
    %627 = vmatpush1.msra.mxu0 0.0
    %628 = vmatprep.subr.mxu0 0.0
    %629 = vmatpush1.msra.mxu0 0.0
    %630 = vmatprep.subr.mxu0 0.0
    %631 = vmatpush1.msra.mxu0 0.0
    %632 = vmatprep.subr.mxu0 0.0
    %633 = vmatpush1.msra.mxu0 0.0
    %634 = vmatprep.mubr.f32.mxu0 0.0
    %635 = vmatmul.mubr.f32.gmra.mrb[0].mxu0 %v299
    %v636 = vpop.f32.mrb[0].mxu0
    %v637 = vadd.f32 %v495, %v636
    %v638 = vpop.f32.mrb[0].mxu0
    %v639 = vadd.f32 %v497, %v638
    %640 = vdwg.mxu0
    %641 = vmatprep.subr.mxu0 %v303
    %642 = vmatpush1.msra.mxu0 %v302
    %643 = vmatprep.subr.mxu0 %v307
    %644 = vmatpush1.msra.mxu0 %v306
    %645 = vmatprep.subr.mxu0 %v311
    %646 = vmatpush1.msra.mxu0 %v310
    %647 = vmatprep.subr.mxu0 %v315
    %648 = vmatpush1.msra.mxu0 %v314
    %649 = vmatprep.subr.mxu0 %v319
    %650 = vmatpush1.msra.mxu0 %v318
    %651 = vmatprep.subr.mxu0 %v323
    %652 = vmatpush1.msra.mxu0 %v322
    %653 = vmatprep.subr.mxu0 %v327
    %654 = vmatpush1.msra.mxu0 %v326
    %655 = vmatprep.subr.mxu0 %v331
    %656 = vmatpush1.msra.mxu0 %v330
    %657 = vmatprep.subr.mxu0 %v335
    %658 = vmatpush1.msra.mxu0 %v334
    %659 = vmatprep.subr.mxu0 %v339
    %660 = vmatpush1.msra.mxu0 %v338
    %661 = vmatprep.subr.mxu0 %v343
    %662 = vmatpush1.msra.mxu0 %v342
    %663 = vmatprep.subr.mxu0 %v347
    %664 = vmatpush1.msra.mxu0 %v346
    %665 = vmatprep.subr.mxu0 %v351
    %666 = vmatpush1.msra.mxu0 %v350
    %667 = vmatprep.subr.mxu0 %v355
    %668 = vmatpush1.msra.mxu0 %v354
    %669 = vmatprep.subr.mxu0 %v359
    %670 = vmatpush1.msra.mxu0 %v358
    %671 = vmatprep.subr.mxu0 %v363
    %672 = vmatpush1.msra.mxu0 %v362
    %673 = vmatprep.subr.mxu0 0.0
    %674 = vmatpush1.msra.mxu0 0.0
    %675 = vmatprep.subr.mxu0 0.0
    %676 = vmatpush1.msra.mxu0 0.0
    %677 = vmatprep.subr.mxu0 0.0
    %678 = vmatpush1.msra.mxu0 0.0
    %679 = vmatprep.subr.mxu0 0.0
    %680 = vmatpush1.msra.mxu0 0.0
    %681 = vmatprep.subr.mxu0 0.0
    %682 = vmatpush1.msra.mxu0 0.0
    %683 = vmatprep.subr.mxu0 0.0
    %684 = vmatpush1.msra.mxu0 0.0
    %685 = vmatprep.subr.mxu0 0.0
    %686 = vmatpush1.msra.mxu0 0.0
    %687 = vmatprep.subr.mxu0 0.0
    %688 = vmatpush1.msra.mxu0 0.0
    %689 = vmatprep.subr.mxu0 0.0
    %690 = vmatpush1.msra.mxu0 0.0
    %691 = vmatprep.subr.mxu0 0.0
    %692 = vmatpush1.msra.mxu0 0.0
    %693 = vmatprep.subr.mxu0 0.0
    %694 = vmatpush1.msra.mxu0 0.0
    %695 = vmatprep.subr.mxu0 0.0
    %696 = vmatpush1.msra.mxu0 0.0
    %697 = vmatprep.subr.mxu0 0.0
    %698 = vmatpush1.msra.mxu0 0.0
    %699 = vmatprep.subr.mxu0 0.0
    %700 = vmatpush1.msra.mxu0 0.0
    %701 = vmatprep.subr.mxu0 0.0
    %702 = vmatpush1.msra.mxu0 0.0
    %703 = vmatprep.subr.mxu0 0.0
    %704 = vmatpush1.msra.mxu0 0.0
    %705 = vmatprep.mubr.f32.mxu0 0.0
    %706 = vmatmul.mubr.f32.gmra.mrb[0].mxu0 %v299
    %v707 = vpop.f32.mrb[0].mxu0
    %v708 = vadd.f32 %v566, %v707
    %v709 = vpop.f32.mrb[0].mxu0
    %v710 = vadd.f32 %v568, %v709
    %711 = vdwg.mxu0
    %v712 = vld [vmem:[%s4] sm:$0xf]
    %v714 = vlaneseq
    %v715 = vshrl.u32 %v714, 7
    %v716 = vsub.s32 0, %v715
    %v717 = vrot.slane %v712, %v716
    %v718 = vlaneseq
    %v719 = vshrl.u32 %v718, 7
    %v720 = vsub.s32 1, %v719
    %v721 = vrot.slane %v712, %v720
    %v722 = vlaneseq
    %v723 = vshrl.u32 %v722, 7
    %v724 = vsub.s32 2, %v723
    %v725 = vrot.slane %v712, %v724
    %v726 = vlaneseq
    %v727 = vshrl.u32 %v726, 7
    %v728 = vsub.s32 3, %v727
    %v729 = vrot.slane %v712, %v728
    %v734 = vadd.f32 %v637, %v717
    %v735 = vadd.f32 %v639, %v721
    %v736 = vadd.f32 %v708, %v725
    %v737 = vadd.f32 %v710, %v729
    %v738 = vmul.f32 %v734, 0.5
    %v739 = vtanh.pop %v738
    %v740 = vmul.f32 %v739, 0.5
    %v741 = vadd.f32 %v740, 0.5
    %v742 = vmul.f32 %v735, 0.5
    %v743 = vtanh.pop %v742
    %v744 = vmul.f32 %v743, 0.5
    %v745 = vadd.f32 %v744, 0.5
    %v746 = vtanh.pop %v736
    %v747 = vmul.f32 %v737, 0.5
    %v748 = vtanh.pop %v747
    %v749 = vmul.f32 %v748, 0.5
    %v750 = vadd.f32 %v749, 0.5
    %v751 = vmul.f32 %v745, %v67
    %v752 = vmul.f32 %v741, %v746
    %v753 = vadd.f32 %v751, %v752
    %v754 = vtanh.pop %v753
    %v755 = vmul.f32 %v750, %v754
    %v756 = vld [vmem:[%s5] sm:$0xff]
    %v757 = vld [vmem:[%s5 + $0x8] sm:$0xff]
    %v758 = vld [vmem:[%s5 + $0x10] sm:$0xff]
    %v759 = vld [vmem:[%s5 + $0x18] sm:$0xff]
    %v760 = vld [vmem:[%s5 + $0x20] sm:$0xff]
    %v761 = vld [vmem:[%s5 + $0x28] sm:$0xff]
    %v762 = vld [vmem:[%s5 + $0x30] sm:$0xff]
    %v763 = vld [vmem:[%s5 + $0x38] sm:$0xff]
    %v764 = vld [vmem:[%s5 + $0x40] sm:$0xff]
    %v765 = vld [vmem:[%s5 + $0x48] sm:$0xff]
    %v766 = vld [vmem:[%s5 + $0x50] sm:$0xff]
    %v767 = vld [vmem:[%s5 + $0x58] sm:$0xff]
    %v768 = vld [vmem:[%s5 + $0x60] sm:$0xff]
    %v769 = vld [vmem:[%s5 + $0x68] sm:$0xff]
    %v770 = vld [vmem:[%s5 + $0x70] sm:$0xff]
    %v771 = vld [vmem:[%s5 + $0x78] sm:$0xff]
    %v772 = vld [vmem:[#allocation6] sm:$0x1]
    %v774 = vlaneseq
    %v775 = vshrl.u32 %v774, 7
    %v776 = vsub.s32 0, %v775
    %v777 = vrot.slane %v772, %v776
    %779 = vmatprep.subr.mxu0 0.0
    %780 = vmatpush1.msra.mxu0 %v756
    %781 = vmatprep.subr.mxu0 0.0
    %782 = vmatpush1.msra.mxu0 %v757
    %783 = vmatprep.subr.mxu0 0.0
    %784 = vmatpush1.msra.mxu0 %v758
    %785 = vmatprep.subr.mxu0 0.0
    %786 = vmatpush1.msra.mxu0 %v759
    %787 = vmatprep.subr.mxu0 0.0
    %788 = vmatpush1.msra.mxu0 %v760
    %789 = vmatprep.subr.mxu0 0.0
    %790 = vmatpush1.msra.mxu0 %v761
    %791 = vmatprep.subr.mxu0 0.0
    %792 = vmatpush1.msra.mxu0 %v762
    %793 = vmatprep.subr.mxu0 0.0
    %794 = vmatpush1.msra.mxu0 %v763
    %795 = vmatprep.subr.mxu0 0.0
    %796 = vmatpush1.msra.mxu0 %v764
    %797 = vmatprep.subr.mxu0 0.0
    %798 = vmatpush1.msra.mxu0 %v765
    %799 = vmatprep.subr.mxu0 0.0
    %800 = vmatpush1.msra.mxu0 %v766
    %801 = vmatprep.subr.mxu0 0.0
    %802 = vmatpush1.msra.mxu0 %v767
    %803 = vmatprep.subr.mxu0 0.0
    %804 = vmatpush1.msra.mxu0 %v768
    %805 = vmatprep.subr.mxu0 0.0
    %806 = vmatpush1.msra.mxu0 %v769
    %807 = vmatprep.subr.mxu0 0.0
    %808 = vmatpush1.msra.mxu0 %v770
    %809 = vmatprep.subr.mxu0 0.0
    %810 = vmatpush1.msra.mxu0 %v771
    %811 = vmatprep.subr.mxu0 0.0
    %812 = vmatpush1.msra.mxu0 0.0
    %813 = vmatprep.subr.mxu0 0.0
    %814 = vmatpush1.msra.mxu0 0.0
    %815 = vmatprep.subr.mxu0 0.0
    %816 = vmatpush1.msra.mxu0 0.0
    %817 = vmatprep.subr.mxu0 0.0
    %818 = vmatpush1.msra.mxu0 0.0
    %819 = vmatprep.subr.mxu0 0.0
    %820 = vmatpush1.msra.mxu0 0.0
    %821 = vmatprep.subr.mxu0 0.0
    %822 = vmatpush1.msra.mxu0 0.0
    %823 = vmatprep.subr.mxu0 0.0
    %824 = vmatpush1.msra.mxu0 0.0
    %825 = vmatprep.subr.mxu0 0.0
    %826 = vmatpush1.msra.mxu0 0.0
    %827 = vmatprep.subr.mxu0 0.0
    %828 = vmatpush1.msra.mxu0 0.0
    %829 = vmatprep.subr.mxu0 0.0
    %830 = vmatpush1.msra.mxu0 0.0
    %831 = vmatprep.subr.mxu0 0.0
    %832 = vmatpush1.msra.mxu0 0.0
    %833 = vmatprep.subr.mxu0 0.0
    %834 = vmatpush1.msra.mxu0 0.0
    %835 = vmatprep.subr.mxu0 0.0
    %836 = vmatpush1.msra.mxu0 0.0
    %837 = vmatprep.subr.mxu0 0.0
    %838 = vmatpush1.msra.mxu0 0.0
    %839 = vmatprep.subr.mxu0 0.0
    %840 = vmatpush1.msra.mxu0 0.0
    %841 = vmatprep.subr.mxu0 0.0
    %842 = vmatpush1.msra.mxu0 0.0
    %843 = vmatprep.mubr.f32.mxu0 0.0
    %844 = vmatmul.mubr.f32.gmra.mrb[0].mxu0 %v755
    %v845 = vpop.f32.mrb[0].mxu0
    %v846 = vadd.f32 %v777, %v845
    %v847 = vpop.f32.mrb[0].mxu0
    %848 = vdwg.mxu0
    %vm849 = vcmask 7168
    %850 = vst.msk [vmem:[%s7] sm:$0xff] %vm849, %v846
    %s851 = scalar_lea.vmem %s0, 32
    %v852 = vld [vmem:[%s851] sm:$0xff]
    %v853 = vld [vmem:[%s851 + $0x8] sm:$0xff]
    %v854 = vld [vmem:[%s851 + $0x10] sm:$0xff]
    %v855 = vld [vmem:[%s851 + $0x18] sm:$0xff]
    %v856 = vld [vmem:[%s1] sm:$0xff]
    %v857 = vld [vmem:[%s1 + $0x8] sm:$0xff]
    %v858 = vld [vmem:[%s1 + $0x10] sm:$0xff]
    %v859 = vld [vmem:[%s1 + $0x18] sm:$0xff]
    %v860 = vld [vmem:[%s1 + $0x20] sm:$0xff]
    %v861 = vld [vmem:[%s1 + $0x28] sm:$0xff]
    %v862 = vld [vmem:[%s1 + $0x30] sm:$0xff]
    %v863 = vld [vmem:[%s1 + $0x38] sm:$0xff]
    %v864 = vld [vmem:[%s1 + $0x40] sm:$0xff]
    %v865 = vld [vmem:[%s1 + $0x48] sm:$0xff]
    %v866 = vld [vmem:[%s1 + $0x50] sm:$0xff]
    %v867 = vld [vmem:[%s1 + $0x58] sm:$0xff]
    %v868 = vld [vmem:[%s1 + $0x60] sm:$0xff]
    %v869 = vld [vmem:[%s1 + $0x68] sm:$0xff]
    %v870 = vld [vmem:[%s1 + $0x70] sm:$0xff]
    %v871 = vld [vmem:[%s1 + $0x78] sm:$0xff]
    %v872 = vld [vmem:[%s1 + $0x80] sm:$0xff]
    %v873 = vld [vmem:[%s1 + $0x88] sm:$0xff]
    %v874 = vld [vmem:[%s1 + $0x90] sm:$0xff]
    %v875 = vld [vmem:[%s1 + $0x98] sm:$0xff]
    %v876 = vld [vmem:[%s1 + $0xa0] sm:$0xff]
    %v877 = vld [vmem:[%s1 + $0xa8] sm:$0xff]
    %v878 = vld [vmem:[%s1 + $0xb0] sm:$0xff]
    %v879 = vld [vmem:[%s1 + $0xb8] sm:$0xff]
    %v880 = vld [vmem:[%s1 + $0xc0] sm:$0xff]
    %v881 = vld [vmem:[%s1 + $0xc8] sm:$0xff]
    %v882 = vld [vmem:[%s1 + $0xd0] sm:$0xff]
    %v883 = vld [vmem:[%s1 + $0xd8] sm:$0xff]
    %v884 = vld [vmem:[%s1 + $0xe0] sm:$0xff]
    %v885 = vld [vmem:[%s1 + $0xe8] sm:$0xff]
    %v886 = vld [vmem:[%s1 + $0xf0] sm:$0xff]
    %v887 = vld [vmem:[%s1 + $0xf8] sm:$0xff]
    %v888 = vld [vmem:[%s1 + $0x100] sm:$0xff]
    %v889 = vld [vmem:[%s1 + $0x108] sm:$0xff]
    %v890 = vld [vmem:[%s1 + $0x110] sm:$0xff]
    %v891 = vld [vmem:[%s1 + $0x118] sm:$0xff]
    %v892 = vld [vmem:[%s1 + $0x120] sm:$0xff]
    %v893 = vld [vmem:[%s1 + $0x128] sm:$0xff]
    %v894 = vld [vmem:[%s1 + $0x130] sm:$0xff]
    %v895 = vld [vmem:[%s1 + $0x138] sm:$0xff]
    %v896 = vld [vmem:[%s1 + $0x140] sm:$0xff]
    %v897 = vld [vmem:[%s1 + $0x148] sm:$0xff]
    %v898 = vld [vmem:[%s1 + $0x150] sm:$0xff]
    %v899 = vld [vmem:[%s1 + $0x158] sm:$0xff]
    %v900 = vld [vmem:[%s1 + $0x160] sm:$0xff]
    %v901 = vld [vmem:[%s1 + $0x168] sm:$0xff]
    %v902 = vld [vmem:[%s1 + $0x170] sm:$0xff]
    %v903 = vld [vmem:[%s1 + $0x178] sm:$0xff]
    %v904 = vld [vmem:[%s1 + $0x180] sm:$0xff]
    %v905 = vld [vmem:[%s1 + $0x188] sm:$0xff]
    %v906 = vld [vmem:[%s1 + $0x190] sm:$0xff]
    %v907 = vld [vmem:[%s1 + $0x198] sm:$0xff]
    %v908 = vld [vmem:[%s1 + $0x1a0] sm:$0xff]
    %v909 = vld [vmem:[%s1 + $0x1a8] sm:$0xff]
    %v910 = vld [vmem:[%s1 + $0x1b0] sm:$0xff]
    %v911 = vld [vmem:[%s1 + $0x1b8] sm:$0xff]
    %v912 = vld [vmem:[%s1 + $0x1c0] sm:$0xff]
    %v913 = vld [vmem:[%s1 + $0x1c8] sm:$0xff]
    %v914 = vld [vmem:[%s1 + $0x1d0] sm:$0xff]
    %v915 = vld [vmem:[%s1 + $0x1d8] sm:$0xff]
    %v916 = vld [vmem:[%s1 + $0x1e0] sm:$0xff]
    %v917 = vld [vmem:[%s1 + $0x1e8] sm:$0xff]
    %v918 = vld [vmem:[%s1 + $0x1f0] sm:$0xff]
    %v919 = vld [vmem:[%s1 + $0x1f8] sm:$0xff]
    %920 = vmatprep.subr.mxu0 %v857
    %921 = vmatpush1.msra.mxu0 %v856
    %922 = vmatprep.subr.mxu0 %v861
    %923 = vmatpush1.msra.mxu0 %v860
    %924 = vmatprep.subr.mxu0 %v865
    %925 = vmatpush1.msra.mxu0 %v864
    %926 = vmatprep.subr.mxu0 %v869
    %927 = vmatpush1.msra.mxu0 %v868
    %928 = vmatprep.subr.mxu0 %v873
    %929 = vmatpush1.msra.mxu0 %v872
    %930 = vmatprep.subr.mxu0 %v877
    %931 = vmatpush1.msra.mxu0 %v876
    %932 = vmatprep.subr.mxu0 %v881
    %933 = vmatpush1.msra.mxu0 %v880
    %934 = vmatprep.subr.mxu0 %v885
    %935 = vmatpush1.msra.mxu0 %v884
    %936 = vmatprep.subr.mxu0 %v889
    %937 = vmatpush1.msra.mxu0 %v888
    %938 = vmatprep.subr.mxu0 %v893
    %939 = vmatpush1.msra.mxu0 %v892
    %940 = vmatprep.subr.mxu0 %v897
    %941 = vmatpush1.msra.mxu0 %v896
    %942 = vmatprep.subr.mxu0 %v901
    %943 = vmatpush1.msra.mxu0 %v900
    %944 = vmatprep.subr.mxu0 %v905
    %945 = vmatpush1.msra.mxu0 %v904
    %946 = vmatprep.subr.mxu0 %v909
    %947 = vmatpush1.msra.mxu0 %v908
    %948 = vmatprep.subr.mxu0 %v913
    %949 = vmatpush1.msra.mxu0 %v912
    %950 = vmatprep.subr.mxu0 %v917
    %951 = vmatpush1.msra.mxu0 %v916
    %952 = vmatprep.subr.mxu0 0.0
    %953 = vmatpush1.msra.mxu0 0.0
    %954 = vmatprep.subr.mxu0 0.0
    %955 = vmatpush1.msra.mxu0 0.0
    %956 = vmatprep.subr.mxu0 0.0
    %957 = vmatpush1.msra.mxu0 0.0
    %958 = vmatprep.subr.mxu0 0.0
    %959 = vmatpush1.msra.mxu0 0.0
    %960 = vmatprep.subr.mxu0 0.0
    %961 = vmatpush1.msra.mxu0 0.0
    %962 = vmatprep.subr.mxu0 0.0
    %963 = vmatpush1.msra.mxu0 0.0
    %964 = vmatprep.subr.mxu0 0.0
    %965 = vmatpush1.msra.mxu0 0.0
    %966 = vmatprep.subr.mxu0 0.0
    %967 = vmatpush1.msra.mxu0 0.0
    %968 = vmatprep.subr.mxu0 0.0
    %969 = vmatpush1.msra.mxu0 0.0
    %970 = vmatprep.subr.mxu0 0.0
    %971 = vmatpush1.msra.mxu0 0.0
    %972 = vmatprep.subr.mxu0 0.0
    %973 = vmatpush1.msra.mxu0 0.0
    %974 = vmatprep.subr.mxu0 0.0
    %975 = vmatpush1.msra.mxu0 0.0
    %976 = vmatprep.subr.mxu0 0.0
    %977 = vmatpush1.msra.mxu0 0.0
    %978 = vmatprep.subr.mxu0 0.0
    %979 = vmatpush1.msra.mxu0 0.0
    %980 = vmatprep.subr.mxu0 0.0
    %981 = vmatpush1.msra.mxu0 0.0
    %982 = vmatprep.subr.mxu0 0.0
    %983 = vmatpush1.msra.mxu0 0.0
    %984 = vmatprep.mubr.f32.mxu0 0.0
    %985 = vmatmul.mubr.f32.gmra.mrb[0].mxu0 %v299
    %v986 = vpop.f32.mrb[0].mxu0
    %v987 = vadd.f32 0.0, %v986
    %v988 = vpop.f32.mrb[0].mxu0
    %v989 = vadd.f32 0.0, %v988
    %990 = vdwg.mxu0
    %991 = vmatprep.subr.mxu0 %v859
    %992 = vmatpush1.msra.mxu0 %v858
    %993 = vmatprep.subr.mxu0 %v863
    %994 = vmatpush1.msra.mxu0 %v862
    %995 = vmatprep.subr.mxu0 %v867
    %996 = vmatpush1.msra.mxu0 %v866
    %997 = vmatprep.subr.mxu0 %v871
    %998 = vmatpush1.msra.mxu0 %v870
    %999 = vmatprep.subr.mxu0 %v875
    %1000 = vmatpush1.msra.mxu0 %v874
    %1001 = vmatprep.subr.mxu0 %v879
    %1002 = vmatpush1.msra.mxu0 %v878
    %1003 = vmatprep.subr.mxu0 %v883
    %1004 = vmatpush1.msra.mxu0 %v882
    %1005 = vmatprep.subr.mxu0 %v887
    %1006 = vmatpush1.msra.mxu0 %v886
    %1007 = vmatprep.subr.mxu0 %v891
    %1008 = vmatpush1.msra.mxu0 %v890
    %1009 = vmatprep.subr.mxu0 %v895
    %1010 = vmatpush1.msra.mxu0 %v894
    %1011 = vmatprep.subr.mxu0 %v899
    %1012 = vmatpush1.msra.mxu0 %v898
    %1013 = vmatprep.subr.mxu0 %v903
    %1014 = vmatpush1.msra.mxu0 %v902
    %1015 = vmatprep.subr.mxu0 %v907
    %1016 = vmatpush1.msra.mxu0 %v906
    %1017 = vmatprep.subr.mxu0 %v911
    %1018 = vmatpush1.msra.mxu0 %v910
    %1019 = vmatprep.subr.mxu0 %v915
    %1020 = vmatpush1.msra.mxu0 %v914
    %1021 = vmatprep.subr.mxu0 %v919
    %1022 = vmatpush1.msra.mxu0 %v918
    %1023 = vmatprep.subr.mxu0 0.0
    %1024 = vmatpush1.msra.mxu0 0.0
    %1025 = vmatprep.subr.mxu0 0.0
    %1026 = vmatpush1.msra.mxu0 0.0
    %1027 = vmatprep.subr.mxu0 0.0
    %1028 = vmatpush1.msra.mxu0 0.0
    %1029 = vmatprep.subr.mxu0 0.0
    %1030 = vmatpush1.msra.mxu0 0.0
    %1031 = vmatprep.subr.mxu0 0.0
    %1032 = vmatpush1.msra.mxu0 0.0
    %1033 = vmatprep.subr.mxu0 0.0
    %1034 = vmatpush1.msra.mxu0 0.0
    %1035 = vmatprep.subr.mxu0 0.0
    %1036 = vmatpush1.msra.mxu0 0.0
    %1037 = vmatprep.subr.mxu0 0.0
    %1038 = vmatpush1.msra.mxu0 0.0
    %1039 = vmatprep.subr.mxu0 0.0
    %1040 = vmatpush1.msra.mxu0 0.0
    %1041 = vmatprep.subr.mxu0 0.0
    %1042 = vmatpush1.msra.mxu0 0.0
    %1043 = vmatprep.subr.mxu0 0.0
    %1044 = vmatpush1.msra.mxu0 0.0
    %1045 = vmatprep.subr.mxu0 0.0
    %1046 = vmatpush1.msra.mxu0 0.0
    %1047 = vmatprep.subr.mxu0 0.0
    %1048 = vmatpush1.msra.mxu0 0.0
    %1049 = vmatprep.subr.mxu0 0.0
    %1050 = vmatpush1.msra.mxu0 0.0
    %1051 = vmatprep.subr.mxu0 0.0
    %1052 = vmatpush1.msra.mxu0 0.0
    %1053 = vmatprep.subr.mxu0 0.0
    %1054 = vmatpush1.msra.mxu0 0.0
    %1055 = vmatprep.mubr.f32.mxu0 0.0
    %1056 = vmatmul.mubr.f32.gmra.mrb[0].mxu0 %v299
    %v1057 = vpop.f32.mrb[0].mxu0
    %v1058 = vadd.f32 0.0, %v1057
    %v1059 = vpop.f32.mrb[0].mxu0
    %v1060 = vadd.f32 0.0, %v1059
    %1061 = vdwg.mxu0
    %v1062 = vadd.f32 %v852, %v987
    %v1063 = vadd.f32 %v853, %v989
    %v1064 = vadd.f32 %v854, %v1058
    %v1065 = vadd.f32 %v855, %v1060
    %v1066 = vmul.f32 %v1062, 0.5
    %v1067 = vtanh.pop %v1066
    %v1068 = vmul.f32 %v1067, 0.5
    %v1069 = vadd.f32 %v1068, 0.5
    %v1070 = vmul.f32 %v1063, 0.5
    %v1071 = vtanh.pop %v1070
    %v1072 = vmul.f32 %v1071, 0.5
    %v1073 = vadd.f32 %v1072, 0.5
    %v1074 = vtanh.pop %v1064
    %v1075 = vmul.f32 %v1065, 0.5
    %v1076 = vtanh.pop %v1075
    %v1077 = vmul.f32 %v1076, 0.5
    %v1078 = vadd.f32 %v1077, 0.5
    %v1079 = vmul.f32 %v1073, %v297
    %v1080 = vmul.f32 %v1069, %v1074
    %v1081 = vadd.f32 %v1079, %v1080
    %v1082 = vtanh.pop %v1081
    %v1083 = vmul.f32 %v1078, %v1082
    %v1084 = vld [vmem:[#allocation7] sm:$0xff]
    %v1085 = vld [vmem:[#allocation7 + $0x8] sm:$0xff]
    %v1086 = vld [vmem:[#allocation7 + $0x10] sm:$0xff]
    %v1087 = vld [vmem:[#allocation7 + $0x18] sm:$0xff]
    %v1088 = vld [vmem:[#allocation7 + $0x20] sm:$0xff]
    %v1089 = vld [vmem:[#allocation7 + $0x28] sm:$0xff]
    %v1090 = vld [vmem:[#allocation7 + $0x30] sm:$0xff]
    %v1091 = vld [vmem:[#allocation7 + $0x38] sm:$0xff]
    %v1092 = vld [vmem:[#allocation7 + $0x40] sm:$0xff]
    %v1093 = vld [vmem:[#allocation7 + $0x48] sm:$0xff]
    %v1094 = vld [vmem:[#allocation7 + $0x50] sm:$0xff]
    %v1095 = vld [vmem:[#allocation7 + $0x58] sm:$0xff]
    %v1096 = vld [vmem:[#allocation7 + $0x60] sm:$0xff]
    %v1097 = vld [vmem:[#allocation7 + $0x68] sm:$0xff]
    %v1098 = vld [vmem:[#allocation7 + $0x70] sm:$0xff]
    %v1099 = vld [vmem:[#allocation7 + $0x78] sm:$0xff]
    %v1100 = vld [vmem:[#allocation7 + $0x80] sm:$0xff]
    %v1101 = vld [vmem:[#allocation7 + $0x88] sm:$0xff]
    %v1102 = vld [vmem:[#allocation7 + $0x90] sm:$0xff]
    %v1103 = vld [vmem:[#allocation7 + $0x98] sm:$0xff]
    %v1104 = vld [vmem:[#allocation7 + $0xa0] sm:$0xff]
    %v1105 = vld [vmem:[#allocation7 + $0xa8] sm:$0xff]
    %v1106 = vld [vmem:[#allocation7 + $0xb0] sm:$0xff]
    %v1107 = vld [vmem:[#allocation7 + $0xb8] sm:$0xff]
    %v1108 = vld [vmem:[#allocation7 + $0xc0] sm:$0xff]
    %v1109 = vld [vmem:[#allocation7 + $0xc8] sm:$0xff]
    %v1110 = vld [vmem:[#allocation7 + $0xd0] sm:$0xff]
    %v1111 = vld [vmem:[#allocation7 + $0xd8] sm:$0xff]
    %v1112 = vld [vmem:[#allocation7 + $0xe0] sm:$0xff]
    %v1113 = vld [vmem:[#allocation7 + $0xe8] sm:$0xff]
    %v1114 = vld [vmem:[#allocation7 + $0xf0] sm:$0xff]
    %v1115 = vld [vmem:[#allocation7 + $0xf8] sm:$0xff]
    %v1116 = vld [vmem:[#allocation7 + $0x100] sm:$0xff]
    %v1117 = vld [vmem:[#allocation7 + $0x108] sm:$0xff]
    %v1118 = vld [vmem:[#allocation7 + $0x110] sm:$0xff]
    %v1119 = vld [vmem:[#allocation7 + $0x118] sm:$0xff]
    %v1120 = vld [vmem:[#allocation7 + $0x120] sm:$0xff]
    %v1121 = vld [vmem:[#allocation7 + $0x128] sm:$0xff]
    %v1122 = vld [vmem:[#allocation7 + $0x130] sm:$0xff]
    %v1123 = vld [vmem:[#allocation7 + $0x138] sm:$0xff]
    %v1124 = vld [vmem:[#allocation7 + $0x140] sm:$0xff]
    %v1125 = vld [vmem:[#allocation7 + $0x148] sm:$0xff]
    %v1126 = vld [vmem:[#allocation7 + $0x150] sm:$0xff]
    %v1127 = vld [vmem:[#allocation7 + $0x158] sm:$0xff]
    %v1128 = vld [vmem:[#allocation7 + $0x160] sm:$0xff]
    %v1129 = vld [vmem:[#allocation7 + $0x168] sm:$0xff]
    %v1130 = vld [vmem:[#allocation7 + $0x170] sm:$0xff]
    %v1131 = vld [vmem:[#allocation7 + $0x178] sm:$0xff]
    %v1132 = vld [vmem:[#allocation7 + $0x180] sm:$0xff]
    %v1133 = vld [vmem:[#allocation7 + $0x188] sm:$0xff]
    %v1134 = vld [vmem:[#allocation7 + $0x190] sm:$0xff]
    %v1135 = vld [vmem:[#allocation7 + $0x198] sm:$0xff]
    %v1136 = vld [vmem:[#allocation7 + $0x1a0] sm:$0xff]
    %v1137 = vld [vmem:[#allocation7 + $0x1a8] sm:$0xff]
    %v1138 = vld [vmem:[#allocation7 + $0x1b0] sm:$0xff]
    %v1139 = vld [vmem:[#allocation7 + $0x1b8] sm:$0xff]
    %v1140 = vld [vmem:[#allocation7 + $0x1c0] sm:$0xff]
    %v1141 = vld [vmem:[#allocation7 + $0x1c8] sm:$0xff]
    %v1142 = vld [vmem:[#allocation7 + $0x1d0] sm:$0xff]
    %v1143 = vld [vmem:[#allocation7 + $0x1d8] sm:$0xff]
    %v1144 = vld [vmem:[#allocation7 + $0x1e0] sm:$0xff]
    %v1145 = vld [vmem:[#allocation7 + $0x1e8] sm:$0xff]
    %v1146 = vld [vmem:[#allocation7 + $0x1f0] sm:$0xff]
    %v1147 = vld [vmem:[#allocation7 + $0x1f8] sm:$0xff]
    %v1148 = vld [vmem:[#allocation9] sm:$0xff]
    %v1149 = vld [vmem:[#allocation9 + $0x8] sm:$0xff]
    %v1150 = vld [vmem:[#allocation9 + $0x10] sm:$0xff]
    %v1151 = vld [vmem:[#allocation9 + $0x18] sm:$0xff]
    %v1152 = vld [vmem:[#allocation9 + $0x20] sm:$0xff]
    %v1153 = vld [vmem:[#allocation9 + $0x28] sm:$0xff]
    %v1154 = vld [vmem:[#allocation9 + $0x30] sm:$0xff]
    %v1155 = vld [vmem:[#allocation9 + $0x38] sm:$0xff]
    %v1156 = vld [vmem:[#allocation9 + $0x40] sm:$0xff]
    %v1157 = vld [vmem:[#allocation9 + $0x48] sm:$0xff]
    %v1158 = vld [vmem:[#allocation9 + $0x50] sm:$0xff]
    %v1159 = vld [vmem:[#allocation9 + $0x58] sm:$0xff]
    %v1160 = vld [vmem:[#allocation9 + $0x60] sm:$0xff]
    %v1161 = vld [vmem:[#allocation9 + $0x68] sm:$0xff]
    %v1162 = vld [vmem:[#allocation9 + $0x70] sm:$0xff]
    %v1163 = vld [vmem:[#allocation9 + $0x78] sm:$0xff]
    %v1164 = vld [vmem:[#allocation9 + $0x80] sm:$0xff]
    %v1165 = vld [vmem:[#allocation9 + $0x88] sm:$0xff]
    %v1166 = vld [vmem:[#allocation9 + $0x90] sm:$0xff]
    %v1167 = vld [vmem:[#allocation9 + $0x98] sm:$0xff]
    %v1168 = vld [vmem:[#allocation9 + $0xa0] sm:$0xff]
    %v1169 = vld [vmem:[#allocation9 + $0xa8] sm:$0xff]
    %v1170 = vld [vmem:[#allocation9 + $0xb0] sm:$0xff]
    %v1171 = vld [vmem:[#allocation9 + $0xb8] sm:$0xff]
    %v1172 = vld [vmem:[#allocation9 + $0xc0] sm:$0xff]
    %v1173 = vld [vmem:[#allocation9 + $0xc8] sm:$0xff]
    %v1174 = vld [vmem:[#allocation9 + $0xd0] sm:$0xff]
    %v1175 = vld [vmem:[#allocation9 + $0xd8] sm:$0xff]
    %v1176 = vld [vmem:[#allocation9 + $0xe0] sm:$0xff]
    %v1177 = vld [vmem:[#allocation9 + $0xe8] sm:$0xff]
    %v1178 = vld [vmem:[#allocation9 + $0xf0] sm:$0xff]
    %v1179 = vld [vmem:[#allocation9 + $0xf8] sm:$0xff]
    %v1180 = vld [vmem:[#allocation9 + $0x100] sm:$0xff]
    %v1181 = vld [vmem:[#allocation9 + $0x108] sm:$0xff]
    %v1182 = vld [vmem:[#allocation9 + $0x110] sm:$0xff]
    %v1183 = vld [vmem:[#allocation9 + $0x118] sm:$0xff]
    %v1184 = vld [vmem:[#allocation9 + $0x120] sm:$0xff]
    %v1185 = vld [vmem:[#allocation9 + $0x128] sm:$0xff]
    %v1186 = vld [vmem:[#allocation9 + $0x130] sm:$0xff]
    %v1187 = vld [vmem:[#allocation9 + $0x138] sm:$0xff]
    %v1188 = vld [vmem:[#allocation9 + $0x140] sm:$0xff]
    %v1189 = vld [vmem:[#allocation9 + $0x148] sm:$0xff]
    %v1190 = vld [vmem:[#allocation9 + $0x150] sm:$0xff]
    %v1191 = vld [vmem:[#allocation9 + $0x158] sm:$0xff]
    %v1192 = vld [vmem:[#allocation9 + $0x160] sm:$0xff]
    %v1193 = vld [vmem:[#allocation9 + $0x168] sm:$0xff]
    %v1194 = vld [vmem:[#allocation9 + $0x170] sm:$0xff]
    %v1195 = vld [vmem:[#allocation9 + $0x178] sm:$0xff]
    %v1196 = vld [vmem:[#allocation9 + $0x180] sm:$0xff]
    %v1197 = vld [vmem:[#allocation9 + $0x188] sm:$0xff]
    %v1198 = vld [vmem:[#allocation9 + $0x190] sm:$0xff]
    %v1199 = vld [vmem:[#allocation9 + $0x198] sm:$0xff]
    %v1200 = vld [vmem:[#allocation9 + $0x1a0] sm:$0xff]
    %v1201 = vld [vmem:[#allocation9 + $0x1a8] sm:$0xff]
    %v1202 = vld [vmem:[#allocation9 + $0x1b0] sm:$0xff]
    %v1203 = vld [vmem:[#allocation9 + $0x1b8] sm:$0xff]
    %v1204 = vld [vmem:[#allocation9 + $0x1c0] sm:$0xff]
    %v1205 = vld [vmem:[#allocation9 + $0x1c8] sm:$0xff]
    %v1206 = vld [vmem:[#allocation9 + $0x1d0] sm:$0xff]
    %v1207 = vld [vmem:[#allocation9 + $0x1d8] sm:$0xff]
    %v1208 = vld [vmem:[#allocation9 + $0x1e0] sm:$0xff]
    %v1209 = vld [vmem:[#allocation9 + $0x1e8] sm:$0xff]
    %v1210 = vld [vmem:[#allocation9 + $0x1f0] sm:$0xff]
    %v1211 = vld [vmem:[#allocation9 + $0x1f8] sm:$0xff]
    %1212 = vmatprep.subr.mxu0 %v1149
    %1213 = vmatpush1.msra.mxu0 %v1148
    %1214 = vmatprep.subr.mxu0 %v1153
    %1215 = vmatpush1.msra.mxu0 %v1152
    %1216 = vmatprep.subr.mxu0 %v1157
    %1217 = vmatpush1.msra.mxu0 %v1156
    %1218 = vmatprep.subr.mxu0 %v1161
    %1219 = vmatpush1.msra.mxu0 %v1160
    %1220 = vmatprep.subr.mxu0 %v1165
    %1221 = vmatpush1.msra.mxu0 %v1164
    %1222 = vmatprep.subr.mxu0 %v1169
    %1223 = vmatpush1.msra.mxu0 %v1168
    %1224 = vmatprep.subr.mxu0 %v1173
    %1225 = vmatpush1.msra.mxu0 %v1172
    %1226 = vmatprep.subr.mxu0 %v1177
    %1227 = vmatpush1.msra.mxu0 %v1176
    %1228 = vmatprep.subr.mxu0 %v1181
    %1229 = vmatpush1.msra.mxu0 %v1180
    %1230 = vmatprep.subr.mxu0 %v1185
    %1231 = vmatpush1.msra.mxu0 %v1184
    %1232 = vmatprep.subr.mxu0 %v1189
    %1233 = vmatpush1.msra.mxu0 %v1188
    %1234 = vmatprep.subr.mxu0 %v1193
    %1235 = vmatpush1.msra.mxu0 %v1192
    %1236 = vmatprep.subr.mxu0 %v1197
    %1237 = vmatpush1.msra.mxu0 %v1196
    %1238 = vmatprep.subr.mxu0 %v1201
    %1239 = vmatpush1.msra.mxu0 %v1200
    %1240 = vmatprep.subr.mxu0 %v1205
    %1241 = vmatpush1.msra.mxu0 %v1204
    %1242 = vmatprep.subr.mxu0 %v1209
    %1243 = vmatpush1.msra.mxu0 %v1208
    %1244 = vmatprep.subr.mxu0 0.0
    %1245 = vmatpush1.msra.mxu0 0.0
    %1246 = vmatprep.subr.mxu0 0.0
    %1247 = vmatpush1.msra.mxu0 0.0
    %1248 = vmatprep.subr.mxu0 0.0
    %1249 = vmatpush1.msra.mxu0 0.0
    %1250 = vmatprep.subr.mxu0 0.0
    %1251 = vmatpush1.msra.mxu0 0.0
    %1252 = vmatprep.subr.mxu0 0.0
    %1253 = vmatpush1.msra.mxu0 0.0
    %1254 = vmatprep.subr.mxu0 0.0
    %1255 = vmatpush1.msra.mxu0 0.0
    %1256 = vmatprep.subr.mxu0 0.0
    %1257 = vmatpush1.msra.mxu0 0.0
    %1258 = vmatprep.subr.mxu0 0.0
    %1259 = vmatpush1.msra.mxu0 0.0
    %1260 = vmatprep.subr.mxu0 0.0
    %1261 = vmatpush1.msra.mxu0 0.0
    %1262 = vmatprep.subr.mxu0 0.0
    %1263 = vmatpush1.msra.mxu0 0.0
    %1264 = vmatprep.subr.mxu0 0.0
    %1265 = vmatpush1.msra.mxu0 0.0
    %1266 = vmatprep.subr.mxu0 0.0
    %1267 = vmatpush1.msra.mxu0 0.0
    %1268 = vmatprep.subr.mxu0 0.0
    %1269 = vmatpush1.msra.mxu0 0.0
    %1270 = vmatprep.subr.mxu0 0.0
    %1271 = vmatpush1.msra.mxu0 0.0
    %1272 = vmatprep.subr.mxu0 0.0
    %1273 = vmatpush1.msra.mxu0 0.0
    %1274 = vmatprep.subr.mxu0 0.0
    %1275 = vmatpush1.msra.mxu0 0.0
    %1276 = vmatprep.mubr.f32.mxu0 0.0
    %1277 = vmatmul.mubr.f32.gmra.mrb[0].mxu0 %v755
    %v1278 = vpop.f32.mrb[0].mxu0
    %v1279 = vadd.f32 0.0, %v1278
    %v1280 = vpop.f32.mrb[0].mxu0
    %v1281 = vadd.f32 0.0, %v1280
    %1282 = vdwg.mxu0
    %1283 = vmatprep.subr.mxu0 %v1151
    %1284 = vmatpush1.msra.mxu0 %v1150
    %1285 = vmatprep.subr.mxu0 %v1155
    %1286 = vmatpush1.msra.mxu0 %v1154
    %1287 = vmatprep.subr.mxu0 %v1159
    %1288 = vmatpush1.msra.mxu0 %v1158
    %1289 = vmatprep.subr.mxu0 %v1163
    %1290 = vmatpush1.msra.mxu0 %v1162
    %1291 = vmatprep.subr.mxu0 %v1167
    %1292 = vmatpush1.msra.mxu0 %v1166
    %1293 = vmatprep.subr.mxu0 %v1171
    %1294 = vmatpush1.msra.mxu0 %v1170
    %1295 = vmatprep.subr.mxu0 %v1175
    %1296 = vmatpush1.msra.mxu0 %v1174
    %1297 = vmatprep.subr.mxu0 %v1179
    %1298 = vmatpush1.msra.mxu0 %v1178
    %1299 = vmatprep.subr.mxu0 %v1183
    %1300 = vmatpush1.msra.mxu0 %v1182
    %1301 = vmatprep.subr.mxu0 %v1187
    %1302 = vmatpush1.msra.mxu0 %v1186
    %1303 = vmatprep.subr.mxu0 %v1191
    %1304 = vmatpush1.msra.mxu0 %v1190
    %1305 = vmatprep.subr.mxu0 %v1195
    %1306 = vmatpush1.msra.mxu0 %v1194
    %1307 = vmatprep.subr.mxu0 %v1199
    %1308 = vmatpush1.msra.mxu0 %v1198
    %1309 = vmatprep.subr.mxu0 %v1203
    %1310 = vmatpush1.msra.mxu0 %v1202
    %1311 = vmatprep.subr.mxu0 %v1207
    %1312 = vmatpush1.msra.mxu0 %v1206
    %1313 = vmatprep.subr.mxu0 %v1211
    %1314 = vmatpush1.msra.mxu0 %v1210
    %1315 = vmatprep.subr.mxu0 0.0
    %1316 = vmatpush1.msra.mxu0 0.0
    %1317 = vmatprep.subr.mxu0 0.0
    %1318 = vmatpush1.msra.mxu0 0.0
    %1319 = vmatprep.subr.mxu0 0.0
    %1320 = vmatpush1.msra.mxu0 0.0
    %1321 = vmatprep.subr.mxu0 0.0
    %1322 = vmatpush1.msra.mxu0 0.0
    %1323 = vmatprep.subr.mxu0 0.0
    %1324 = vmatpush1.msra.mxu0 0.0
    %1325 = vmatprep.subr.mxu0 0.0
    %1326 = vmatpush1.msra.mxu0 0.0
    %1327 = vmatprep.subr.mxu0 0.0
    %1328 = vmatpush1.msra.mxu0 0.0
    %1329 = vmatprep.subr.mxu0 0.0
    %1330 = vmatpush1.msra.mxu0 0.0
    %1331 = vmatprep.subr.mxu0 0.0
    %1332 = vmatpush1.msra.mxu0 0.0
    %1333 = vmatprep.subr.mxu0 0.0
    %1334 = vmatpush1.msra.mxu0 0.0
    %1335 = vmatprep.subr.mxu0 0.0
    %1336 = vmatpush1.msra.mxu0 0.0
    %1337 = vmatprep.subr.mxu0 0.0
    %1338 = vmatpush1.msra.mxu0 0.0
    %1339 = vmatprep.subr.mxu0 0.0
    %1340 = vmatpush1.msra.mxu0 0.0
    %1341 = vmatprep.subr.mxu0 0.0
    %1342 = vmatpush1.msra.mxu0 0.0
    %1343 = vmatprep.subr.mxu0 0.0
    %1344 = vmatpush1.msra.mxu0 0.0
    %1345 = vmatprep.subr.mxu0 0.0
    %1346 = vmatpush1.msra.mxu0 0.0
    %1347 = vmatprep.mubr.f32.mxu0 0.0
    %1348 = vmatmul.mubr.f32.gmra.mrb[0].mxu0 %v755
    %v1349 = vpop.f32.mrb[0].mxu0
    %v1350 = vadd.f32 0.0, %v1349
    %v1351 = vpop.f32.mrb[0].mxu0
    %v1352 = vadd.f32 0.0, %v1351
    %1353 = vdwg.mxu0
    %1354 = vmatprep.subr.mxu0 %v1085
    %1355 = vmatpush1.msra.mxu0 %v1084
    %1356 = vmatprep.subr.mxu0 %v1089
    %1357 = vmatpush1.msra.mxu0 %v1088
    %1358 = vmatprep.subr.mxu0 %v1093
    %1359 = vmatpush1.msra.mxu0 %v1092
    %1360 = vmatprep.subr.mxu0 %v1097
    %1361 = vmatpush1.msra.mxu0 %v1096
    %1362 = vmatprep.subr.mxu0 %v1101
    %1363 = vmatpush1.msra.mxu0 %v1100
    %1364 = vmatprep.subr.mxu0 %v1105
    %1365 = vmatpush1.msra.mxu0 %v1104
    %1366 = vmatprep.subr.mxu0 %v1109
    %1367 = vmatpush1.msra.mxu0 %v1108
    %1368 = vmatprep.subr.mxu0 %v1113
    %1369 = vmatpush1.msra.mxu0 %v1112
    %1370 = vmatprep.subr.mxu0 %v1117
    %1371 = vmatpush1.msra.mxu0 %v1116
    %1372 = vmatprep.subr.mxu0 %v1121
    %1373 = vmatpush1.msra.mxu0 %v1120
    %1374 = vmatprep.subr.mxu0 %v1125
    %1375 = vmatpush1.msra.mxu0 %v1124
    %1376 = vmatprep.subr.mxu0 %v1129
    %1377 = vmatpush1.msra.mxu0 %v1128
    %1378 = vmatprep.subr.mxu0 %v1133
    %1379 = vmatpush1.msra.mxu0 %v1132
    %1380 = vmatprep.subr.mxu0 %v1137
    %1381 = vmatpush1.msra.mxu0 %v1136
    %1382 = vmatprep.subr.mxu0 %v1141
    %1383 = vmatpush1.msra.mxu0 %v1140
    %1384 = vmatprep.subr.mxu0 %v1145
    %1385 = vmatpush1.msra.mxu0 %v1144
    %1386 = vmatprep.subr.mxu0 0.0
    %1387 = vmatpush1.msra.mxu0 0.0
    %1388 = vmatprep.subr.mxu0 0.0
    %1389 = vmatpush1.msra.mxu0 0.0
    %1390 = vmatprep.subr.mxu0 0.0
    %1391 = vmatpush1.msra.mxu0 0.0
    %1392 = vmatprep.subr.mxu0 0.0
    %1393 = vmatpush1.msra.mxu0 0.0
    %1394 = vmatprep.subr.mxu0 0.0
    %1395 = vmatpush1.msra.mxu0 0.0
    %1396 = vmatprep.subr.mxu0 0.0
    %1397 = vmatpush1.msra.mxu0 0.0
    %1398 = vmatprep.subr.mxu0 0.0
    %1399 = vmatpush1.msra.mxu0 0.0
    %1400 = vmatprep.subr.mxu0 0.0
    %1401 = vmatpush1.msra.mxu0 0.0
    %1402 = vmatprep.subr.mxu0 0.0
    %1403 = vmatpush1.msra.mxu0 0.0
    %1404 = vmatprep.subr.mxu0 0.0
    %1405 = vmatpush1.msra.mxu0 0.0
    %1406 = vmatprep.subr.mxu0 0.0
    %1407 = vmatpush1.msra.mxu0 0.0
    %1408 = vmatprep.subr.mxu0 0.0
    %1409 = vmatpush1.msra.mxu0 0.0
    %1410 = vmatprep.subr.mxu0 0.0
    %1411 = vmatpush1.msra.mxu0 0.0
    %1412 = vmatprep.subr.mxu0 0.0
    %1413 = vmatpush1.msra.mxu0 0.0
    %1414 = vmatprep.subr.mxu0 0.0
    %1415 = vmatpush1.msra.mxu0 0.0
    %1416 = vmatprep.subr.mxu0 0.0
    %1417 = vmatpush1.msra.mxu0 0.0
    %1418 = vmatprep.mubr.f32.mxu0 0.0
    %1419 = vmatmul.mubr.f32.gmra.mrb[0].mxu0 %v1083
    %v1420 = vpop.f32.mrb[0].mxu0
    %v1421 = vadd.f32 %v1279, %v1420
    %v1422 = vpop.f32.mrb[0].mxu0
    %v1423 = vadd.f32 %v1281, %v1422
    %1424 = vdwg.mxu0
    %1425 = vmatprep.subr.mxu0 %v1087
    %1426 = vmatpush1.msra.mxu0 %v1086
    %1427 = vmatprep.subr.mxu0 %v1091
    %1428 = vmatpush1.msra.mxu0 %v1090
    %1429 = vmatprep.subr.mxu0 %v1095
    %1430 = vmatpush1.msra.mxu0 %v1094
    %1431 = vmatprep.subr.mxu0 %v1099
    %1432 = vmatpush1.msra.mxu0 %v1098
    %1433 = vmatprep.subr.mxu0 %v1103
    %1434 = vmatpush1.msra.mxu0 %v1102
    %1435 = vmatprep.subr.mxu0 %v1107
    %1436 = vmatpush1.msra.mxu0 %v1106
    %1437 = vmatprep.subr.mxu0 %v1111
    %1438 = vmatpush1.msra.mxu0 %v1110
    %1439 = vmatprep.subr.mxu0 %v1115
    %1440 = vmatpush1.msra.mxu0 %v1114
    %1441 = vmatprep.subr.mxu0 %v1119
    %1442 = vmatpush1.msra.mxu0 %v1118
    %1443 = vmatprep.subr.mxu0 %v1123
    %1444 = vmatpush1.msra.mxu0 %v1122
    %1445 = vmatprep.subr.mxu0 %v1127
    %1446 = vmatpush1.msra.mxu0 %v1126
    %1447 = vmatprep.subr.mxu0 %v1131
    %1448 = vmatpush1.msra.mxu0 %v1130
    %1449 = vmatprep.subr.mxu0 %v1135
    %1450 = vmatpush1.msra.mxu0 %v1134
    %1451 = vmatprep.subr.mxu0 %v1139
    %1452 = vmatpush1.msra.mxu0 %v1138
    %1453 = vmatprep.subr.mxu0 %v1143
    %1454 = vmatpush1.msra.mxu0 %v1142
    %1455 = vmatprep.subr.mxu0 %v1147
    %1456 = vmatpush1.msra.mxu0 %v1146
    %1457 = vmatprep.subr.mxu0 0.0
    %1458 = vmatpush1.msra.mxu0 0.0
    %1459 = vmatprep.subr.mxu0 0.0
    %1460 = vmatpush1.msra.mxu0 0.0
    %1461 = vmatprep.subr.mxu0 0.0
    %1462 = vmatpush1.msra.mxu0 0.0
    %1463 = vmatprep.subr.mxu0 0.0
    %1464 = vmatpush1.msra.mxu0 0.0
    %1465 = vmatprep.subr.mxu0 0.0
    %1466 = vmatpush1.msra.mxu0 0.0
    %1467 = vmatprep.subr.mxu0 0.0
    %1468 = vmatpush1.msra.mxu0 0.0
    %1469 = vmatprep.subr.mxu0 0.0
    %1470 = vmatpush1.msra.mxu0 0.0
    %1471 = vmatprep.subr.mxu0 0.0
    %1472 = vmatpush1.msra.mxu0 0.0
    %1473 = vmatprep.subr.mxu0 0.0
    %1474 = vmatpush1.msra.mxu0 0.0
    %1475 = vmatprep.subr.mxu0 0.0
    %1476 = vmatpush1.msra.mxu0 0.0
    %1477 = vmatprep.subr.mxu0 0.0
    %1478 = vmatpush1.msra.mxu0 0.0
    %1479 = vmatprep.subr.mxu0 0.0
    %1480 = vmatpush1.msra.mxu0 0.0
    %1481 = vmatprep.subr.mxu0 0.0
    %1482 = vmatpush1.msra.mxu0 0.0
    %1483 = vmatprep.subr.mxu0 0.0
    %1484 = vmatpush1.msra.mxu0 0.0
    %1485 = vmatprep.subr.mxu0 0.0
    %1486 = vmatpush1.msra.mxu0 0.0
    %1487 = vmatprep.subr.mxu0 0.0
    %1488 = vmatpush1.msra.mxu0 0.0
    %1489 = vmatprep.mubr.f32.mxu0 0.0
    %1490 = vmatmul.mubr.f32.gmra.mrb[0].mxu0 %v1083
    %v1491 = vpop.f32.mrb[0].mxu0
    %v1492 = vadd.f32 %v1350, %v1491
    %v1493 = vpop.f32.mrb[0].mxu0
    %v1494 = vadd.f32 %v1352, %v1493
    %1495 = vdwg.mxu0
    %v1496 = vld [vmem:[%s4] sm:$0xf]
    %v1498 = vlaneseq
    %v1499 = vshrl.u32 %v1498, 7
    %v1500 = vsub.s32 0, %v1499
    %v1501 = vrot.slane %v1496, %v1500
    %v1502 = vlaneseq
    %v1503 = vshrl.u32 %v1502, 7
    %v1504 = vsub.s32 1, %v1503
    %v1505 = vrot.slane %v1496, %v1504
    %v1506 = vlaneseq
    %v1507 = vshrl.u32 %v1506, 7
    %v1508 = vsub.s32 2, %v1507
    %v1509 = vrot.slane %v1496, %v1508
    %v1510 = vlaneseq
    %v1511 = vshrl.u32 %v1510, 7
    %v1512 = vsub.s32 3, %v1511
    %v1513 = vrot.slane %v1496, %v1512
    %v1518 = vadd.f32 %v1421, %v1501
    %v1519 = vadd.f32 %v1423, %v1505
    %v1520 = vadd.f32 %v1492, %v1509
    %v1521 = vadd.f32 %v1494, %v1513
    %v1522 = vmul.f32 %v1518, 0.5
    %v1523 = vtanh.pop %v1522
    %v1524 = vmul.f32 %v1523, 0.5
    %v1525 = vadd.f32 %v1524, 0.5
    %v1526 = vmul.f32 %v1519, 0.5
    %v1527 = vtanh.pop %v1526
    %v1528 = vmul.f32 %v1527, 0.5
    %v1529 = vadd.f32 %v1528, 0.5
    %v1530 = vtanh.pop %v1520
    %v1531 = vmul.f32 %v1521, 0.5
    %v1532 = vtanh.pop %v1531
    %v1533 = vmul.f32 %v1532, 0.5
    %v1534 = vadd.f32 %v1533, 0.5
    %v1535 = vmul.f32 %v1529, %v753
    %v1536 = vmul.f32 %v1525, %v1530
    %v1537 = vadd.f32 %v1535, %v1536
    %v1538 = vtanh.pop %v1537
    %v1539 = vmul.f32 %v1534, %v1538
    %v1540 = vld [vmem:[%s5] sm:$0xff]
    %v1541 = vld [vmem:[%s5 + $0x8] sm:$0xff]
    %v1542 = vld [vmem:[%s5 + $0x10] sm:$0xff]
    %v1543 = vld [vmem:[%s5 + $0x18] sm:$0xff]
    %v1544 = vld [vmem:[%s5 + $0x20] sm:$0xff]
    %v1545 = vld [vmem:[%s5 + $0x28] sm:$0xff]
    %v1546 = vld [vmem:[%s5 + $0x30] sm:$0xff]
    %v1547 = vld [vmem:[%s5 + $0x38] sm:$0xff]
    %v1548 = vld [vmem:[%s5 + $0x40] sm:$0xff]
    %v1549 = vld [vmem:[%s5 + $0x48] sm:$0xff]
    %v1550 = vld [vmem:[%s5 + $0x50] sm:$0xff]
    %v1551 = vld [vmem:[%s5 + $0x58] sm:$0xff]
    %v1552 = vld [vmem:[%s5 + $0x60] sm:$0xff]
    %v1553 = vld [vmem:[%s5 + $0x68] sm:$0xff]
    %v1554 = vld [vmem:[%s5 + $0x70] sm:$0xff]
    %v1555 = vld [vmem:[%s5 + $0x78] sm:$0xff]
    %v1556 = vld [vmem:[#allocation6] sm:$0x1]
    %v1558 = vlaneseq
    %v1559 = vshrl.u32 %v1558, 7
    %v1560 = vsub.s32 0, %v1559
    %v1561 = vrot.slane %v1556, %v1560
    %1563 = vmatprep.subr.mxu0 0.0
    %1564 = vmatpush1.msra.mxu0 %v1540
    %1565 = vmatprep.subr.mxu0 0.0
    %1566 = vmatpush1.msra.mxu0 %v1541
    %1567 = vmatprep.subr.mxu0 0.0
    %1568 = vmatpush1.msra.mxu0 %v1542
    %1569 = vmatprep.subr.mxu0 0.0
    %1570 = vmatpush1.msra.mxu0 %v1543
    %1571 = vmatprep.subr.mxu0 0.0
    %1572 = vmatpush1.msra.mxu0 %v1544
    %1573 = vmatprep.subr.mxu0 0.0
    %1574 = vmatpush1.msra.mxu0 %v1545
    %1575 = vmatprep.subr.mxu0 0.0
    %1576 = vmatpush1.msra.mxu0 %v1546
    %1577 = vmatprep.subr.mxu0 0.0
    %1578 = vmatpush1.msra.mxu0 %v1547
    %1579 = vmatprep.subr.mxu0 0.0
    %1580 = vmatpush1.msra.mxu0 %v1548
    %1581 = vmatprep.subr.mxu0 0.0
    %1582 = vmatpush1.msra.mxu0 %v1549
    %1583 = vmatprep.subr.mxu0 0.0
    %1584 = vmatpush1.msra.mxu0 %v1550
    %1585 = vmatprep.subr.mxu0 0.0
    %1586 = vmatpush1.msra.mxu0 %v1551
    %1587 = vmatprep.subr.mxu0 0.0
    %1588 = vmatpush1.msra.mxu0 %v1552
    %1589 = vmatprep.subr.mxu0 0.0
    %1590 = vmatpush1.msra.mxu0 %v1553
    %1591 = vmatprep.subr.mxu0 0.0
    %1592 = vmatpush1.msra.mxu0 %v1554
    %1593 = vmatprep.subr.mxu0 0.0
    %1594 = vmatpush1.msra.mxu0 %v1555
    %1595 = vmatprep.subr.mxu0 0.0
    %1596 = vmatpush1.msra.mxu0 0.0
    %1597 = vmatprep.subr.mxu0 0.0
    %1598 = vmatpush1.msra.mxu0 0.0
    %1599 = vmatprep.subr.mxu0 0.0
    %1600 = vmatpush1.msra.mxu0 0.0
    %1601 = vmatprep.subr.mxu0 0.0
    %1602 = vmatpush1.msra.mxu0 0.0
    %1603 = vmatprep.subr.mxu0 0.0
    %1604 = vmatpush1.msra.mxu0 0.0
    %1605 = vmatprep.subr.mxu0 0.0
    %1606 = vmatpush1.msra.mxu0 0.0
    %1607 = vmatprep.subr.mxu0 0.0
    %1608 = vmatpush1.msra.mxu0 0.0
    %1609 = vmatprep.subr.mxu0 0.0
    %1610 = vmatpush1.msra.mxu0 0.0
    %1611 = vmatprep.subr.mxu0 0.0
    %1612 = vmatpush1.msra.mxu0 0.0
    %1613 = vmatprep.subr.mxu0 0.0
    %1614 = vmatpush1.msra.mxu0 0.0
    %1615 = vmatprep.subr.mxu0 0.0
    %1616 = vmatpush1.msra.mxu0 0.0
    %1617 = vmatprep.subr.mxu0 0.0
    %1618 = vmatpush1.msra.mxu0 0.0
    %1619 = vmatprep.subr.mxu0 0.0
    %1620 = vmatpush1.msra.mxu0 0.0
    %1621 = vmatprep.subr.mxu0 0.0
    %1622 = vmatpush1.msra.mxu0 0.0
    %1623 = vmatprep.subr.mxu0 0.0
    %1624 = vmatpush1.msra.mxu0 0.0
    %1625 = vmatprep.subr.mxu0 0.0
    %1626 = vmatpush1.msra.mxu0 0.0
    %1627 = vmatprep.mubr.f32.mxu0 0.0
    %1628 = vmatmul.mubr.f32.gmra.mrb[0].mxu0 %v1539
    %v1629 = vpop.f32.mrb[0].mxu0
    %v1630 = vadd.f32 %v1561, %v1629
    %v1631 = vpop.f32.mrb[0].mxu0
    %1632 = vdwg.mxu0
    %s1633 = scalar_lea.vmem %s7, 8
    %1634 = vst.msk [vmem:[%s1633] sm:$0xff] %vm849, %v1630
    %s1635 = scalar_lea.vmem %s0, 64
    %v1636 = vld [vmem:[%s1635] sm:$0xff]
    %v1637 = vld [vmem:[%s1635 + $0x8] sm:$0xff]
    %v1638 = vld [vmem:[%s1635 + $0x10] sm:$0xff]
    %v1639 = vld [vmem:[%s1635 + $0x18] sm:$0xff]
    %v1640 = vld [vmem:[%s1] sm:$0xff]
    %v1641 = vld [vmem:[%s1 + $0x8] sm:$0xff]
    %v1642 = vld [vmem:[%s1 + $0x10] sm:$0xff]
    %v1643 = vld [vmem:[%s1 + $0x18] sm:$0xff]
    %v1644 = vld [vmem:[%s1 + $0x20] sm:$0xff]
    %v1645 = vld [vmem:[%s1 + $0x28] sm:$0xff]
    %v1646 = vld [vmem:[%s1 + $0x30] sm:$0xff]
    %v1647 = vld [vmem:[%s1 + $0x38] sm:$0xff]
    %v1648 = vld [vmem:[%s1 + $0x40] sm:$0xff]
    %v1649 = vld [vmem:[%s1 + $0x48] sm:$0xff]
    %v1650 = vld [vmem:[%s1 + $0x50] sm:$0xff]
    %v1651 = vld [vmem:[%s1 + $0x58] sm:$0xff]
    %v1652 = vld [vmem:[%s1 + $0x60] sm:$0xff]
    %v1653 = vld [vmem:[%s1 + $0x68] sm:$0xff]
    %v1654 = vld [vmem:[%s1 + $0x70] sm:$0xff]
    %v1655 = vld [vmem:[%s1 + $0x78] sm:$0xff]
    %v1656 = vld [vmem:[%s1 + $0x80] sm:$0xff]
    %v1657 = vld [vmem:[%s1 + $0x88] sm:$0xff]
    %v1658 = vld [vmem:[%s1 + $0x90] sm:$0xff]
    %v1659 = vld [vmem:[%s1 + $0x98] sm:$0xff]
    %v1660 = vld [vmem:[%s1 + $0xa0] sm:$0xff]
    %v1661 = vld [vmem:[%s1 + $0xa8] sm:$0xff]
    %v1662 = vld [vmem:[%s1 + $0xb0] sm:$0xff]
    %v1663 = vld [vmem:[%s1 + $0xb8] sm:$0xff]
    %v1664 = vld [vmem:[%s1 + $0xc0] sm:$0xff]
    %v1665 = vld [vmem:[%s1 + $0xc8] sm:$0xff]
    %v1666 = vld [vmem:[%s1 + $0xd0] sm:$0xff]
    %v1667 = vld [vmem:[%s1 + $0xd8] sm:$0xff]
    %v1668 = vld [vmem:[%s1 + $0xe0] sm:$0xff]
    %v1669 = vld [vmem:[%s1 + $0xe8] sm:$0xff]
    %v1670 = vld [vmem:[%s1 + $0xf0] sm:$0xff]
    %v1671 = vld [vmem:[%s1 + $0xf8] sm:$0xff]
    %v1672 = vld [vmem:[%s1 + $0x100] sm:$0xff]
    %v1673 = vld [vmem:[%s1 + $0x108] sm:$0xff]
    %v1674 = vld [vmem:[%s1 + $0x110] sm:$0xff]
    %v1675 = vld [vmem:[%s1 + $0x118] sm:$0xff]
    %v1676 = vld [vmem:[%s1 + $0x120] sm:$0xff]
    %v1677 = vld [vmem:[%s1 + $0x128] sm:$0xff]
    %v1678 = vld [vmem:[%s1 + $0x130] sm:$0xff]
    %v1679 = vld [vmem:[%s1 + $0x138] sm:$0xff]
    %v1680 = vld [vmem:[%s1 + $0x140] sm:$0xff]
    %v1681 = vld [vmem:[%s1 + $0x148] sm:$0xff]
    %v1682 = vld [vmem:[%s1 + $0x150] sm:$0xff]
    %v1683 = vld [vmem:[%s1 + $0x158] sm:$0xff]
    %v1684 = vld [vmem:[%s1 + $0x160] sm:$0xff]
    %v1685 = vld [vmem:[%s1 + $0x168] sm:$0xff]
    %v1686 = vld [vmem:[%s1 + $0x170] sm:$0xff]
    %v1687 = vld [vmem:[%s1 + $0x178] sm:$0xff]
    %v1688 = vld [vmem:[%s1 + $0x180] sm:$0xff]
    %v1689 = vld [vmem:[%s1 + $0x188] sm:$0xff]
    %v1690 = vld [vmem:[%s1 + $0x190] sm:$0xff]
    %v1691 = vld [vmem:[%s1 + $0x198] sm:$0xff]
    %v1692 = vld [vmem:[%s1 + $0x1a0] sm:$0xff]
    %v1693 = vld [vmem:[%s1 + $0x1a8] sm:$0xff]
    %v1694 = vld [vmem:[%s1 + $0x1b0] sm:$0xff]
    %v1695 = vld [vmem:[%s1 + $0x1b8] sm:$0xff]
    %v1696 = vld [vmem:[%s1 + $0x1c0] sm:$0xff]
    %v1697 = vld [vmem:[%s1 + $0x1c8] sm:$0xff]
    %v1698 = vld [vmem:[%s1 + $0x1d0] sm:$0xff]
    %v1699 = vld [vmem:[%s1 + $0x1d8] sm:$0xff]
    %v1700 = vld [vmem:[%s1 + $0x1e0] sm:$0xff]
    %v1701 = vld [vmem:[%s1 + $0x1e8] sm:$0xff]
    %v1702 = vld [vmem:[%s1 + $0x1f0] sm:$0xff]
    %v1703 = vld [vmem:[%s1 + $0x1f8] sm:$0xff]
    %1704 = vmatprep.subr.mxu0 %v1641
    %1705 = vmatpush1.msra.mxu0 %v1640
    %1706 = vmatprep.subr.mxu0 %v1645
    %1707 = vmatpush1.msra.mxu0 %v1644
    %1708 = vmatprep.subr.mxu0 %v1649
    %1709 = vmatpush1.msra.mxu0 %v1648
    %1710 = vmatprep.subr.mxu0 %v1653
    %1711 = vmatpush1.msra.mxu0 %v1652
    %1712 = vmatprep.subr.mxu0 %v1657
    %1713 = vmatpush1.msra.mxu0 %v1656
    %1714 = vmatprep.subr.mxu0 %v1661
    %1715 = vmatpush1.msra.mxu0 %v1660
    %1716 = vmatprep.subr.mxu0 %v1665
    %1717 = vmatpush1.msra.mxu0 %v1664
    %1718 = vmatprep.subr.mxu0 %v1669
    %1719 = vmatpush1.msra.mxu0 %v1668
    %1720 = vmatprep.subr.mxu0 %v1673
    %1721 = vmatpush1.msra.mxu0 %v1672
    %1722 = vmatprep.subr.mxu0 %v1677
    %1723 = vmatpush1.msra.mxu0 %v1676
    %1724 = vmatprep.subr.mxu0 %v1681
    %1725 = vmatpush1.msra.mxu0 %v1680
    %1726 = vmatprep.subr.mxu0 %v1685
    %1727 = vmatpush1.msra.mxu0 %v1684
    %1728 = vmatprep.subr.mxu0 %v1689
    %1729 = vmatpush1.msra.mxu0 %v1688
    %1730 = vmatprep.subr.mxu0 %v1693
    %1731 = vmatpush1.msra.mxu0 %v1692
    %1732 = vmatprep.subr.mxu0 %v1697
    %1733 = vmatpush1.msra.mxu0 %v1696
    %1734 = vmatprep.subr.mxu0 %v1701
    %1735 = vmatpush1.msra.mxu0 %v1700
    %1736 = vmatprep.subr.mxu0 0.0
    %1737 = vmatpush1.msra.mxu0 0.0
    %1738 = vmatprep.subr.mxu0 0.0
    %1739 = vmatpush1.msra.mxu0 0.0
    %1740 = vmatprep.subr.mxu0 0.0
    %1741 = vmatpush1.msra.mxu0 0.0
    %1742 = vmatprep.subr.mxu0 0.0
    %1743 = vmatpush1.msra.mxu0 0.0
    %1744 = vmatprep.subr.mxu0 0.0
    %1745 = vmatpush1.msra.mxu0 0.0
    %1746 = vmatprep.subr.mxu0 0.0
    %1747 = vmatpush1.msra.mxu0 0.0
    %1748 = vmatprep.subr.mxu0 0.0
    %1749 = vmatpush1.msra.mxu0 0.0
    %1750 = vmatprep.subr.mxu0 0.0
    %1751 = vmatpush1.msra.mxu0 0.0
    %1752 = vmatprep.subr.mxu0 0.0
    %1753 = vmatpush1.msra.mxu0 0.0
    %1754 = vmatprep.subr.mxu0 0.0
    %1755 = vmatpush1.msra.mxu0 0.0
    %1756 = vmatprep.subr.mxu0 0.0
    %1757 = vmatpush1.msra.mxu0 0.0
    %1758 = vmatprep.subr.mxu0 0.0
    %1759 = vmatpush1.msra.mxu0 0.0
    %1760 = vmatprep.subr.mxu0 0.0
    %1761 = vmatpush1.msra.mxu0 0.0
    %1762 = vmatprep.subr.mxu0 0.0
    %1763 = vmatpush1.msra.mxu0 0.0
    %1764 = vmatprep.subr.mxu0 0.0
    %1765 = vmatpush1.msra.mxu0 0.0
    %1766 = vmatprep.subr.mxu0 0.0
    %1767 = vmatpush1.msra.mxu0 0.0
    %1768 = vmatprep.mubr.f32.mxu0 0.0
    %1769 = vmatmul.mubr.f32.gmra.mrb[0].mxu0 %v1083
    %v1770 = vpop.f32.mrb[0].mxu0
    %v1771 = vadd.f32 0.0, %v1770
    %v1772 = vpop.f32.mrb[0].mxu0
    %v1773 = vadd.f32 0.0, %v1772
    %1774 = vdwg.mxu0
    %1775 = vmatprep.subr.mxu0 %v1643
    %1776 = vmatpush1.msra.mxu0 %v1642
    %1777 = vmatprep.subr.mxu0 %v1647
    %1778 = vmatpush1.msra.mxu0 %v1646
    %1779 = vmatprep.subr.mxu0 %v1651
    %1780 = vmatpush1.msra.mxu0 %v1650
    %1781 = vmatprep.subr.mxu0 %v1655
    %1782 = vmatpush1.msra.mxu0 %v1654
    %1783 = vmatprep.subr.mxu0 %v1659
    %1784 = vmatpush1.msra.mxu0 %v1658
    %1785 = vmatprep.subr.mxu0 %v1663
    %1786 = vmatpush1.msra.mxu0 %v1662
    %1787 = vmatprep.subr.mxu0 %v1667
    %1788 = vmatpush1.msra.mxu0 %v1666
    %1789 = vmatprep.subr.mxu0 %v1671
    %1790 = vmatpush1.msra.mxu0 %v1670
    %1791 = vmatprep.subr.mxu0 %v1675
    %1792 = vmatpush1.msra.mxu0 %v1674
    %1793 = vmatprep.subr.mxu0 %v1679
    %1794 = vmatpush1.msra.mxu0 %v1678
    %1795 = vmatprep.subr.mxu0 %v1683
    %1796 = vmatpush1.msra.mxu0 %v1682
    %1797 = vmatprep.subr.mxu0 %v1687
    %1798 = vmatpush1.msra.mxu0 %v1686
    %1799 = vmatprep.subr.mxu0 %v1691
    %1800 = vmatpush1.msra.mxu0 %v1690
    %1801 = vmatprep.subr.mxu0 %v1695
    %1802 = vmatpush1.msra.mxu0 %v1694
    %1803 = vmatprep.subr.mxu0 %v1699
    %1804 = vmatpush1.msra.mxu0 %v1698
    %1805 = vmatprep.subr.mxu0 %v1703
    %1806 = vmatpush1.msra.mxu0 %v1702
    %1807 = vmatprep.subr.mxu0 0.0
    %1808 = vmatpush1.msra.mxu0 0.0
    %1809 = vmatprep.subr.mxu0 0.0
    %1810 = vmatpush1.msra.mxu0 0.0
    %1811 = vmatprep.subr.mxu0 0.0
    %1812 = vmatpush1.msra.mxu0 0.0
    %1813 = vmatprep.subr.mxu0 0.0
    %1814 = vmatpush1.msra.mxu0 0.0
    %1815 = vmatprep.subr.mxu0 0.0
    %1816 = vmatpush1.msra.mxu0 0.0
    %1817 = vmatprep.subr.mxu0 0.0
    %1818 = vmatpush1.msra.mxu0 0.0
    %1819 = vmatprep.subr.mxu0 0.0
    %1820 = vmatpush1.msra.mxu0 0.0
    %1821 = vmatprep.subr.mxu0 0.0
    %1822 = vmatpush1.msra.mxu0 0.0
    %1823 = vmatprep.subr.mxu0 0.0
    %1824 = vmatpush1.msra.mxu0 0.0
    %1825 = vmatprep.subr.mxu0 0.0
    %1826 = vmatpush1.msra.mxu0 0.0
    %1827 = vmatprep.subr.mxu0 0.0
    %1828 = vmatpush1.msra.mxu0 0.0
    %1829 = vmatprep.subr.mxu0 0.0
    %1830 = vmatpush1.msra.mxu0 0.0
    %1831 = vmatprep.subr.mxu0 0.0
    %1832 = vmatpush1.msra.mxu0 0.0
    %1833 = vmatprep.subr.mxu0 0.0
    %1834 = vmatpush1.msra.mxu0 0.0
    %1835 = vmatprep.subr.mxu0 0.0
    %1836 = vmatpush1.msra.mxu0 0.0
    %1837 = vmatprep.subr.mxu0 0.0
    %1838 = vmatpush1.msra.mxu0 0.0
    %1839 = vmatprep.mubr.f32.mxu0 0.0
    %1840 = vmatmul.mubr.f32.gmra.mrb[0].mxu0 %v1083
    %v1841 = vpop.f32.mrb[0].mxu0
    %v1842 = vadd.f32 0.0, %v1841
    %v1843 = vpop.f32.mrb[0].mxu0
    %v1844 = vadd.f32 0.0, %v1843
    %1845 = vdwg.mxu0
    %v1846 = vadd.f32 %v1636, %v1771
    %v1847 = vadd.f32 %v1637, %v1773
    %v1848 = vadd.f32 %v1638, %v1842
    %v1849 = vadd.f32 %v1639, %v1844
    %v1850 = vmul.f32 %v1846, 0.5
    %v1851 = vtanh.pop %v1850
    %v1852 = vmul.f32 %v1851, 0.5
    %v1853 = vadd.f32 %v1852, 0.5
    %v1854 = vmul.f32 %v1847, 0.5
    %v1855 = vtanh.pop %v1854
    %v1856 = vmul.f32 %v1855, 0.5
    %v1857 = vadd.f32 %v1856, 0.5
    %v1858 = vtanh.pop %v1848
    %v1859 = vmul.f32 %v1849, 0.5
    %v1860 = vtanh.pop %v1859
    %v1861 = vmul.f32 %v1860, 0.5
    %v1862 = vadd.f32 %v1861, 0.5
    %v1863 = vmul.f32 %v1857, %v1081
    %v1864 = vmul.f32 %v1853, %v1858
    %v1865 = vadd.f32 %v1863, %v1864
    %v1866 = vtanh.pop %v1865
    %v1867 = vmul.f32 %v1862, %v1866
    %v1868 = vld [vmem:[#allocation7] sm:$0xff]
    %v1869 = vld [vmem:[#allocation7 + $0x8] sm:$0xff]
    %v1870 = vld [vmem:[#allocation7 + $0x10] sm:$0xff]
    %v1871 = vld [vmem:[#allocation7 + $0x18] sm:$0xff]
    %v1872 = vld [vmem:[#allocation7 + $0x20] sm:$0xff]
    %v1873 = vld [vmem:[#allocation7 + $0x28] sm:$0xff]
    %v1874 = vld [vmem:[#allocation7 + $0x30] sm:$0xff]
    %v1875 = vld [vmem:[#allocation7 + $0x38] sm:$0xff]
    %v1876 = vld [vmem:[#allocation7 + $0x40] sm:$0xff]
    %v1877 = vld [vmem:[#allocation7 + $0x48] sm:$0xff]
    %v1878 = vld [vmem:[#allocation7 + $0x50] sm:$0xff]
    %v1879 = vld [vmem:[#allocation7 + $0x58] sm:$0xff]
    %v1880 = vld [vmem:[#allocation7 + $0x60] sm:$0xff]
    %v1881 = vld [vmem:[#allocation7 + $0x68] sm:$0xff]
    %v1882 = vld [vmem:[#allocation7 + $0x70] sm:$0xff]
    %v1883 = vld [vmem:[#allocation7 + $0x78] sm:$0xff]
    %v1884 = vld [vmem:[#allocation7 + $0x80] sm:$0xff]
    %v1885 = vld [vmem:[#allocation7 + $0x88] sm:$0xff]
    %v1886 = vld [vmem:[#allocation7 + $0x90] sm:$0xff]
    %v1887 = vld [vmem:[#allocation7 + $0x98] sm:$0xff]
    %v1888 = vld [vmem:[#allocation7 + $0xa0] sm:$0xff]
    %v1889 = vld [vmem:[#allocation7 + $0xa8] sm:$0xff]
    %v1890 = vld [vmem:[#allocation7 + $0xb0] sm:$0xff]
    %v1891 = vld [vmem:[#allocation7 + $0xb8] sm:$0xff]
    %v1892 = vld [vmem:[#allocation7 + $0xc0] sm:$0xff]
    %v1893 = vld [vmem:[#allocation7 + $0xc8] sm:$0xff]
    %v1894 = vld [vmem:[#allocation7 + $0xd0] sm:$0xff]
    %v1895 = vld [vmem:[#allocation7 + $0xd8] sm:$0xff]
    %v1896 = vld [vmem:[#allocation7 + $0xe0] sm:$0xff]
    %v1897 = vld [vmem:[#allocation7 + $0xe8] sm:$0xff]
    %v1898 = vld [vmem:[#allocation7 + $0xf0] sm:$0xff]
    %v1899 = vld [vmem:[#allocation7 + $0xf8] sm:$0xff]
    %v1900 = vld [vmem:[#allocation7 + $0x100] sm:$0xff]
    %v1901 = vld [vmem:[#allocation7 + $0x108] sm:$0xff]
    %v1902 = vld [vmem:[#allocation7 + $0x110] sm:$0xff]
    %v1903 = vld [vmem:[#allocation7 + $0x118] sm:$0xff]
    %v1904 = vld [vmem:[#allocation7 + $0x120] sm:$0xff]
    %v1905 = vld [vmem:[#allocation7 + $0x128] sm:$0xff]
    %v1906 = vld [vmem:[#allocation7 + $0x130] sm:$0xff]
    %v1907 = vld [vmem:[#allocation7 + $0x138] sm:$0xff]
    %v1908 = vld [vmem:[#allocation7 + $0x140] sm:$0xff]
    %v1909 = vld [vmem:[#allocation7 + $0x148] sm:$0xff]
    %v1910 = vld [vmem:[#allocation7 + $0x150] sm:$0xff]
    %v1911 = vld [vmem:[#allocation7 + $0x158] sm:$0xff]
    %v1912 = vld [vmem:[#allocation7 + $0x160] sm:$0xff]
    %v1913 = vld [vmem:[#allocation7 + $0x168] sm:$0xff]
    %v1914 = vld [vmem:[#allocation7 + $0x170] sm:$0xff]
    %v1915 = vld [vmem:[#allocation7 + $0x178] sm:$0xff]
    %v1916 = vld [vmem:[#allocation7 + $0x180] sm:$0xff]
    %v1917 = vld [vmem:[#allocation7 + $0x188] sm:$0xff]
    %v1918 = vld [vmem:[#allocation7 + $0x190] sm:$0xff]
    %v1919 = vld [vmem:[#allocation7 + $0x198] sm:$0xff]
    %v1920 = vld [vmem:[#allocation7 + $0x1a0] sm:$0xff]
    %v1921 = vld [vmem:[#allocation7 + $0x1a8] sm:$0xff]
    %v1922 = vld [vmem:[#allocation7 + $0x1b0] sm:$0xff]
    %v1923 = vld [vmem:[#allocation7 + $0x1b8] sm:$0xff]
    %v1924 = vld [vmem:[#allocation7 + $0x1c0] sm:$0xff]
    %v1925 = vld [vmem:[#allocation7 + $0x1c8] sm:$0xff]
    %v1926 = vld [vmem:[#allocation7 + $0x1d0] sm:$0xff]
    %v1927 = vld [vmem:[#allocation7 + $0x1d8] sm:$0xff]
    %v1928 = vld [vmem:[#allocation7 + $0x1e0] sm:$0xff]
    %v1929 = vld [vmem:[#allocation7 + $0x1e8] sm:$0xff]
    %v1930 = vld [vmem:[#allocation7 + $0x1f0] sm:$0xff]
    %v1931 = vld [vmem:[#allocation7 + $0x1f8] sm:$0xff]
    %v1932 = vld [vmem:[#allocation9] sm:$0xff]
    %v1933 = vld [vmem:[#allocation9 + $0x8] sm:$0xff]
    %v1934 = vld [vmem:[#allocation9 + $0x10] sm:$0xff]
    %v1935 = vld [vmem:[#allocation9 + $0x18] sm:$0xff]
    %v1936 = vld [vmem:[#allocation9 + $0x20] sm:$0xff]
    %v1937 = vld [vmem:[#allocation9 + $0x28] sm:$0xff]
    %v1938 = vld [vmem:[#allocation9 + $0x30] sm:$0xff]
    %v1939 = vld [vmem:[#allocation9 + $0x38] sm:$0xff]
    %v1940 = vld [vmem:[#allocation9 + $0x40] sm:$0xff]
    %v1941 = vld [vmem:[#allocation9 + $0x48] sm:$0xff]
    %v1942 = vld [vmem:[#allocation9 + $0x50] sm:$0xff]
    %v1943 = vld [vmem:[#allocation9 + $0x58] sm:$0xff]
    %v1944 = vld [vmem:[#allocation9 + $0x60] sm:$0xff]
    %v1945 = vld [vmem:[#allocation9 + $0x68] sm:$0xff]
    %v1946 = vld [vmem:[#allocation9 + $0x70] sm:$0xff]
    %v1947 = vld [vmem:[#allocation9 + $0x78] sm:$0xff]
    %v1948 = vld [vmem:[#allocation9 + $0x80] sm:$0xff]
    %v1949 = vld [vmem:[#allocation9 + $0x88] sm:$0xff]
    %v1950 = vld [vmem:[#allocation9 + $0x90] sm:$0xff]
    %v1951 = vld [vmem:[#allocation9 + $0x98] sm:$0xff]
    %v1952 = vld [vmem:[#allocation9 + $0xa0] sm:$0xff]
    %v1953 = vld [vmem:[#allocation9 + $0xa8] sm:$0xff]
    %v1954 = vld [vmem:[#allocation9 + $0xb0] sm:$0xff]
    %v1955 = vld [vmem:[#allocation9 + $0xb8] sm:$0xff]
    %v1956 = vld [vmem:[#allocation9 + $0xc0] sm:$0xff]
    %v1957 = vld [vmem:[#allocation9 + $0xc8] sm:$0xff]
    %v1958 = vld [vmem:[#allocation9 + $0xd0] sm:$0xff]
    %v1959 = vld [vmem:[#allocation9 + $0xd8] sm:$0xff]
    %v1960 = vld [vmem:[#allocation9 + $0xe0] sm:$0xff]
    %v1961 = vld [vmem:[#allocation9 + $0xe8] sm:$0xff]
    %v1962 = vld [vmem:[#allocation9 + $0xf0] sm:$0xff]
    %v1963 = vld [vmem:[#allocation9 + $0xf8] sm:$0xff]
    %v1964 = vld [vmem:[#allocation9 + $0x100] sm:$0xff]
    %v1965 = vld [vmem:[#allocation9 + $0x108] sm:$0xff]
    %v1966 = vld [vmem:[#allocation9 + $0x110] sm:$0xff]
    %v1967 = vld [vmem:[#allocation9 + $0x118] sm:$0xff]
    %v1968 = vld [vmem:[#allocation9 + $0x120] sm:$0xff]
    %v1969 = vld [vmem:[#allocation9 + $0x128] sm:$0xff]
    %v1970 = vld [vmem:[#allocation9 + $0x130] sm:$0xff]
    %v1971 = vld [vmem:[#allocation9 + $0x138] sm:$0xff]
    %v1972 = vld [vmem:[#allocation9 + $0x140] sm:$0xff]
    %v1973 = vld [vmem:[#allocation9 + $0x148] sm:$0xff]
    %v1974 = vld [vmem:[#allocation9 + $0x150] sm:$0xff]
    %v1975 = vld [vmem:[#allocation9 + $0x158] sm:$0xff]
    %v1976 = vld [vmem:[#allocation9 + $0x160] sm:$0xff]
    %v1977 = vld [vmem:[#allocation9 + $0x168] sm:$0xff]
    %v1978 = vld [vmem:[#allocation9 + $0x170] sm:$0xff]
    %v1979 = vld [vmem:[#allocation9 + $0x178] sm:$0xff]
    %v1980 = vld [vmem:[#allocation9 + $0x180] sm:$0xff]
    %v1981 = vld [vmem:[#allocation9 + $0x188] sm:$0xff]
    %v1982 = vld [vmem:[#allocation9 + $0x190] sm:$0xff]
    %v1983 = vld [vmem:[#allocation9 + $0x198] sm:$0xff]
    %v1984 = vld [vmem:[#allocation9 + $0x1a0] sm:$0xff]
    %v1985 = vld [vmem:[#allocation9 + $0x1a8] sm:$0xff]
    %v1986 = vld [vmem:[#allocation9 + $0x1b0] sm:$0xff]
    %v1987 = vld [vmem:[#allocation9 + $0x1b8] sm:$0xff]
    %v1988 = vld [vmem:[#allocation9 + $0x1c0] sm:$0xff]
    %v1989 = vld [vmem:[#allocation9 + $0x1c8] sm:$0xff]
    %v1990 = vld [vmem:[#allocation9 + $0x1d0] sm:$0xff]
    %v1991 = vld [vmem:[#allocation9 + $0x1d8] sm:$0xff]
    %v1992 = vld [vmem:[#allocation9 + $0x1e0] sm:$0xff]
    %v1993 = vld [vmem:[#allocation9 + $0x1e8] sm:$0xff]
    %v1994 = vld [vmem:[#allocation9 + $0x1f0] sm:$0xff]
    %v1995 = vld [vmem:[#allocation9 + $0x1f8] sm:$0xff]
    %1996 = vmatprep.subr.mxu0 %v1933
    %1997 = vmatpush1.msra.mxu0 %v1932
    %1998 = vmatprep.subr.mxu0 %v1937
    %1999 = vmatpush1.msra.mxu0 %v1936
    %2000 = vmatprep.subr.mxu0 %v1941
    %2001 = vmatpush1.msra.mxu0 %v1940
    %2002 = vmatprep.subr.mxu0 %v1945
    %2003 = vmatpush1.msra.mxu0 %v1944
    %2004 = vmatprep.subr.mxu0 %v1949
    %2005 = vmatpush1.msra.mxu0 %v1948
    %2006 = vmatprep.subr.mxu0 %v1953
    %2007 = vmatpush1.msra.mxu0 %v1952
    %2008 = vmatprep.subr.mxu0 %v1957
    %2009 = vmatpush1.msra.mxu0 %v1956
    %2010 = vmatprep.subr.mxu0 %v1961
    %2011 = vmatpush1.msra.mxu0 %v1960
    %2012 = vmatprep.subr.mxu0 %v1965
    %2013 = vmatpush1.msra.mxu0 %v1964
    %2014 = vmatprep.subr.mxu0 %v1969
    %2015 = vmatpush1.msra.mxu0 %v1968
    %2016 = vmatprep.subr.mxu0 %v1973
    %2017 = vmatpush1.msra.mxu0 %v1972
    %2018 = vmatprep.subr.mxu0 %v1977
    %2019 = vmatpush1.msra.mxu0 %v1976
    %2020 = vmatprep.subr.mxu0 %v1981
    %2021 = vmatpush1.msra.mxu0 %v1980
    %2022 = vmatprep.subr.mxu0 %v1985
    %2023 = vmatpush1.msra.mxu0 %v1984
    %2024 = vmatprep.subr.mxu0 %v1989
    %2025 = vmatpush1.msra.mxu0 %v1988
    %2026 = vmatprep.subr.mxu0 %v1993
    %2027 = vmatpush1.msra.mxu0 %v1992
    %2028 = vmatprep.subr.mxu0 0.0
    %2029 = vmatpush1.msra.mxu0 0.0
    %2030 = vmatprep.subr.mxu0 0.0
    %2031 = vmatpush1.msra.mxu0 0.0
    %2032 = vmatprep.subr.mxu0 0.0
    %2033 = vmatpush1.msra.mxu0 0.0
    %2034 = vmatprep.subr.mxu0 0.0
    %2035 = vmatpush1.msra.mxu0 0.0
    %2036 = vmatprep.subr.mxu0 0.0
    %2037 = vmatpush1.msra.mxu0 0.0
    %2038 = vmatprep.subr.mxu0 0.0
    %2039 = vmatpush1.msra.mxu0 0.0
    %2040 = vmatprep.subr.mxu0 0.0
    %2041 = vmatpush1.msra.mxu0 0.0
    %2042 = vmatprep.subr.mxu0 0.0
    %2043 = vmatpush1.msra.mxu0 0.0
    %2044 = vmatprep.subr.mxu0 0.0
    %2045 = vmatpush1.msra.mxu0 0.0
    %2046 = vmatprep.subr.mxu0 0.0
    %2047 = vmatpush1.msra.mxu0 0.0
    %2048 = vmatprep.subr.mxu0 0.0
    %2049 = vmatpush1.msra.mxu0 0.0
    %2050 = vmatprep.subr.mxu0 0.0
    %2051 = vmatpush1.msra.mxu0 0.0
    %2052 = vmatprep.subr.mxu0 0.0
    %2053 = vmatpush1.msra.mxu0 0.0
    %2054 = vmatprep.subr.mxu0 0.0
    %2055 = vmatpush1.msra.mxu0 0.0
    %2056 = vmatprep.subr.mxu0 0.0
    %2057 = vmatpush1.msra.mxu0 0.0
    %2058 = vmatprep.subr.mxu0 0.0
    %2059 = vmatpush1.msra.mxu0 0.0
    %2060 = vmatprep.mubr.f32.mxu0 0.0
    %2061 = vmatmul.mubr.f32.gmra.mrb[0].mxu0 %v1539
    %v2062 = vpop.f32.mrb[0].mxu0
    %v2063 = vadd.f32 0.0, %v2062
    %v2064 = vpop.f32.mrb[0].mxu0
    %v2065 = vadd.f32 0.0, %v2064
    %2066 = vdwg.mxu0
    %2067 = vmatprep.subr.mxu0 %v1935
    %2068 = vmatpush1.msra.mxu0 %v1934
    %2069 = vmatprep.subr.mxu0 %v1939
    %2070 = vmatpush1.msra.mxu0 %v1938
    %2071 = vmatprep.subr.mxu0 %v1943
    %2072 = vmatpush1.msra.mxu0 %v1942
    %2073 = vmatprep.subr.mxu0 %v1947
    %2074 = vmatpush1.msra.mxu0 %v1946
    %2075 = vmatprep.subr.mxu0 %v1951
    %2076 = vmatpush1.msra.mxu0 %v1950
    %2077 = vmatprep.subr.mxu0 %v1955
    %2078 = vmatpush1.msra.mxu0 %v1954
    %2079 = vmatprep.subr.mxu0 %v1959
    %2080 = vmatpush1.msra.mxu0 %v1958
    %2081 = vmatprep.subr.mxu0 %v1963
    %2082 = vmatpush1.msra.mxu0 %v1962
    %2083 = vmatprep.subr.mxu0 %v1967
    %2084 = vmatpush1.msra.mxu0 %v1966
    %2085 = vmatprep.subr.mxu0 %v1971
    %2086 = vmatpush1.msra.mxu0 %v1970
    %2087 = vmatprep.subr.mxu0 %v1975
    %2088 = vmatpush1.msra.mxu0 %v1974
    %2089 = vmatprep.subr.mxu0 %v1979
    %2090 = vmatpush1.msra.mxu0 %v1978
    %2091 = vmatprep.subr.mxu0 %v1983
    %2092 = vmatpush1.msra.mxu0 %v1982
    %2093 = vmatprep.subr.mxu0 %v1987
    %2094 = vmatpush1.msra.mxu0 %v1986
    %2095 = vmatprep.subr.mxu0 %v1991
    %2096 = vmatpush1.msra.mxu0 %v1990
    %2097 = vmatprep.subr.mxu0 %v1995
    %2098 = vmatpush1.msra.mxu0 %v1994
    %2099 = vmatprep.subr.mxu0 0.0
    %2100 = vmatpush1.msra.mxu0 0.0
    %2101 = vmatprep.subr.mxu0 0.0
    %2102 = vmatpush1.msra.mxu0 0.0
    %2103 = vmatprep.subr.mxu0 0.0
    %2104 = vmatpush1.msra.mxu0 0.0
    %2105 = vmatprep.subr.mxu0 0.0
    %2106 = vmatpush1.msra.mxu0 0.0
    %2107 = vmatprep.subr.mxu0 0.0
    %2108 = vmatpush1.msra.mxu0 0.0
    %2109 = vmatprep.subr.mxu0 0.0
    %2110 = vmatpush1.msra.mxu0 0.0
    %2111 = vmatprep.subr.mxu0 0.0
    %2112 = vmatpush1.msra.mxu0 0.0
    %2113 = vmatprep.subr.mxu0 0.0
    %2114 = vmatpush1.msra.mxu0 0.0
    %2115 = vmatprep.subr.mxu0 0.0
    %2116 = vmatpush1.msra.mxu0 0.0
    %2117 = vmatprep.subr.mxu0 0.0
    %2118 = vmatpush1.msra.mxu0 0.0
    %2119 = vmatprep.subr.mxu0 0.0
    %2120 = vmatpush1.msra.mxu0 0.0
    %2121 = vmatprep.subr.mxu0 0.0
    %2122 = vmatpush1.msra.mxu0 0.0
    %2123 = vmatprep.subr.mxu0 0.0
    %2124 = vmatpush1.msra.mxu0 0.0
    %2125 = vmatprep.subr.mxu0 0.0
    %2126 = vmatpush1.msra.mxu0 0.0
    %2127 = vmatprep.subr.mxu0 0.0
    %2128 = vmatpush1.msra.mxu0 0.0
    %2129 = vmatprep.subr.mxu0 0.0
    %2130 = vmatpush1.msra.mxu0 0.0
    %2131 = vmatprep.mubr.f32.mxu0 0.0
    %2132 = vmatmul.mubr.f32.gmra.mrb[0].mxu0 %v1539
    %v2133 = vpop.f32.mrb[0].mxu0
    %v2134 = vadd.f32 0.0, %v2133
    %v2135 = vpop.f32.mrb[0].mxu0
    %v2136 = vadd.f32 0.0, %v2135
    %2137 = vdwg.mxu0
    %2138 = vmatprep.subr.mxu0 %v1869
    %2139 = vmatpush1.msra.mxu0 %v1868
    %2140 = vmatprep.subr.mxu0 %v1873
    %2141 = vmatpush1.msra.mxu0 %v1872
    %2142 = vmatprep.subr.mxu0 %v1877
    %2143 = vmatpush1.msra.mxu0 %v1876
    %2144 = vmatprep.subr.mxu0 %v1881
    %2145 = vmatpush1.msra.mxu0 %v1880
    %2146 = vmatprep.subr.mxu0 %v1885
    %2147 = vmatpush1.msra.mxu0 %v1884
    %2148 = vmatprep.subr.mxu0 %v1889
    %2149 = vmatpush1.msra.mxu0 %v1888
    %2150 = vmatprep.subr.mxu0 %v1893
    %2151 = vmatpush1.msra.mxu0 %v1892
    %2152 = vmatprep.subr.mxu0 %v1897
    %2153 = vmatpush1.msra.mxu0 %v1896
    %2154 = vmatprep.subr.mxu0 %v1901
    %2155 = vmatpush1.msra.mxu0 %v1900
    %2156 = vmatprep.subr.mxu0 %v1905
    %2157 = vmatpush1.msra.mxu0 %v1904
    %2158 = vmatprep.subr.mxu0 %v1909
    %2159 = vmatpush1.msra.mxu0 %v1908
    %2160 = vmatprep.subr.mxu0 %v1913
    %2161 = vmatpush1.msra.mxu0 %v1912
    %2162 = vmatprep.subr.mxu0 %v1917
    %2163 = vmatpush1.msra.mxu0 %v1916
    %2164 = vmatprep.subr.mxu0 %v1921
    %2165 = vmatpush1.msra.mxu0 %v1920
    %2166 = vmatprep.subr.mxu0 %v1925
    %2167 = vmatpush1.msra.mxu0 %v1924
    %2168 = vmatprep.subr.mxu0 %v1929
    %2169 = vmatpush1.msra.mxu0 %v1928
    %2170 = vmatprep.subr.mxu0 0.0
    %2171 = vmatpush1.msra.mxu0 0.0
    %2172 = vmatprep.subr.mxu0 0.0
    %2173 = vmatpush1.msra.mxu0 0.0
    %2174 = vmatprep.subr.mxu0 0.0
    %2175 = vmatpush1.msra.mxu0 0.0
    %2176 = vmatprep.subr.mxu0 0.0
    %2177 = vmatpush1.msra.mxu0 0.0
    %2178 = vmatprep.subr.mxu0 0.0
    %2179 = vmatpush1.msra.mxu0 0.0
    %2180 = vmatprep.subr.mxu0 0.0
    %2181 = vmatpush1.msra.mxu0 0.0
    %2182 = vmatprep.subr.mxu0 0.0
    %2183 = vmatpush1.msra.mxu0 0.0
    %2184 = vmatprep.subr.mxu0 0.0
    %2185 = vmatpush1.msra.mxu0 0.0
    %2186 = vmatprep.subr.mxu0 0.0
    %2187 = vmatpush1.msra.mxu0 0.0
    %2188 = vmatprep.subr.mxu0 0.0
    %2189 = vmatpush1.msra.mxu0 0.0
    %2190 = vmatprep.subr.mxu0 0.0
    %2191 = vmatpush1.msra.mxu0 0.0
    %2192 = vmatprep.subr.mxu0 0.0
    %2193 = vmatpush1.msra.mxu0 0.0
    %2194 = vmatprep.subr.mxu0 0.0
    %2195 = vmatpush1.msra.mxu0 0.0
    %2196 = vmatprep.subr.mxu0 0.0
    %2197 = vmatpush1.msra.mxu0 0.0
    %2198 = vmatprep.subr.mxu0 0.0
    %2199 = vmatpush1.msra.mxu0 0.0
    %2200 = vmatprep.subr.mxu0 0.0
    %2201 = vmatpush1.msra.mxu0 0.0
    %2202 = vmatprep.mubr.f32.mxu0 0.0
    %2203 = vmatmul.mubr.f32.gmra.mrb[0].mxu0 %v1867
    %v2204 = vpop.f32.mrb[0].mxu0
    %v2205 = vadd.f32 %v2063, %v2204
    %v2206 = vpop.f32.mrb[0].mxu0
    %v2207 = vadd.f32 %v2065, %v2206
    %2208 = vdwg.mxu0
    %2209 = vmatprep.subr.mxu0 %v1871
    %2210 = vmatpush1.msra.mxu0 %v1870
    %2211 = vmatprep.subr.mxu0 %v1875
    %2212 = vmatpush1.msra.mxu0 %v1874
    %2213 = vmatprep.subr.mxu0 %v1879
    %2214 = vmatpush1.msra.mxu0 %v1878
    %2215 = vmatprep.subr.mxu0 %v1883
    %2216 = vmatpush1.msra.mxu0 %v1882
    %2217 = vmatprep.subr.mxu0 %v1887
    %2218 = vmatpush1.msra.mxu0 %v1886
    %2219 = vmatprep.subr.mxu0 %v1891
    %2220 = vmatpush1.msra.mxu0 %v1890
    %2221 = vmatprep.subr.mxu0 %v1895
    %2222 = vmatpush1.msra.mxu0 %v1894
    %2223 = vmatprep.subr.mxu0 %v1899
    %2224 = vmatpush1.msra.mxu0 %v1898
    %2225 = vmatprep.subr.mxu0 %v1903
    %2226 = vmatpush1.msra.mxu0 %v1902
    %2227 = vmatprep.subr.mxu0 %v1907
    %2228 = vmatpush1.msra.mxu0 %v1906
    %2229 = vmatprep.subr.mxu0 %v1911
    %2230 = vmatpush1.msra.mxu0 %v1910
    %2231 = vmatprep.subr.mxu0 %v1915
    %2232 = vmatpush1.msra.mxu0 %v1914
    %2233 = vmatprep.subr.mxu0 %v1919
    %2234 = vmatpush1.msra.mxu0 %v1918
    %2235 = vmatprep.subr.mxu0 %v1923
    %2236 = vmatpush1.msra.mxu0 %v1922
    %2237 = vmatprep.subr.mxu0 %v1927
    %2238 = vmatpush1.msra.mxu0 %v1926
    %2239 = vmatprep.subr.mxu0 %v1931
    %2240 = vmatpush1.msra.mxu0 %v1930
    %2241 = vmatprep.subr.mxu0 0.0
    %2242 = vmatpush1.msra.mxu0 0.0
    %2243 = vmatprep.subr.mxu0 0.0
    %2244 = vmatpush1.msra.mxu0 0.0
    %2245 = vmatprep.subr.mxu0 0.0
    %2246 = vmatpush1.msra.mxu0 0.0
    %2247 = vmatprep.subr.mxu0 0.0
    %2248 = vmatpush1.msra.mxu0 0.0
    %2249 = vmatprep.subr.mxu0 0.0
    %2250 = vmatpush1.msra.mxu0 0.0
    %2251 = vmatprep.subr.mxu0 0.0
    %2252 = vmatpush1.msra.mxu0 0.0
    %2253 = vmatprep.subr.mxu0 0.0
    %2254 = vmatpush1.msra.mxu0 0.0
    %2255 = vmatprep.subr.mxu0 0.0
    %2256 = vmatpush1.msra.mxu0 0.0
    %2257 = vmatprep.subr.mxu0 0.0
    %2258 = vmatpush1.msra.mxu0 0.0
    %2259 = vmatprep.subr.mxu0 0.0
    %2260 = vmatpush1.msra.mxu0 0.0
    %2261 = vmatprep.subr.mxu0 0.0
    %2262 = vmatpush1.msra.mxu0 0.0
    %2263 = vmatprep.subr.mxu0 0.0
    %2264 = vmatpush1.msra.mxu0 0.0
    %2265 = vmatprep.subr.mxu0 0.0
    %2266 = vmatpush1.msra.mxu0 0.0
    %2267 = vmatprep.subr.mxu0 0.0
    %2268 = vmatpush1.msra.mxu0 0.0
    %2269 = vmatprep.subr.mxu0 0.0
    %2270 = vmatpush1.msra.mxu0 0.0
    %2271 = vmatprep.subr.mxu0 0.0
    %2272 = vmatpush1.msra.mxu0 0.0
    %2273 = vmatprep.mubr.f32.mxu0 0.0
    %2274 = vmatmul.mubr.f32.gmra.mrb[0].mxu0 %v1867
    %v2275 = vpop.f32.mrb[0].mxu0
    %v2276 = vadd.f32 %v2134, %v2275
    %v2277 = vpop.f32.mrb[0].mxu0
    %v2278 = vadd.f32 %v2136, %v2277
    %2279 = vdwg.mxu0
    %v2280 = vld [vmem:[%s4] sm:$0xf]
    %v2282 = vlaneseq
    %v2283 = vshrl.u32 %v2282, 7
    %v2284 = vsub.s32 0, %v2283
    %v2285 = vrot.slane %v2280, %v2284
    %v2286 = vlaneseq
    %v2287 = vshrl.u32 %v2286, 7
    %v2288 = vsub.s32 1, %v2287
    %v2289 = vrot.slane %v2280, %v2288
    %v2290 = vlaneseq
    %v2291 = vshrl.u32 %v2290, 7
    %v2292 = vsub.s32 2, %v2291
    %v2293 = vrot.slane %v2280, %v2292
    %v2294 = vlaneseq
    %v2295 = vshrl.u32 %v2294, 7
    %v2296 = vsub.s32 3, %v2295
    %v2297 = vrot.slane %v2280, %v2296
    %v2302 = vadd.f32 %v2205, %v2285
    %v2303 = vadd.f32 %v2207, %v2289
    %v2304 = vadd.f32 %v2276, %v2293
    %v2305 = vadd.f32 %v2278, %v2297
    %v2306 = vmul.f32 %v2302, 0.5
    %v2307 = vtanh.pop %v2306
    %v2308 = vmul.f32 %v2307, 0.5
    %v2309 = vadd.f32 %v2308, 0.5
    %v2310 = vmul.f32 %v2303, 0.5
    %v2311 = vtanh.pop %v2310
    %v2312 = vmul.f32 %v2311, 0.5
    %v2313 = vadd.f32 %v2312, 0.5
    %v2314 = vtanh.pop %v2304
    %v2315 = vmul.f32 %v2305, 0.5
    %v2316 = vtanh.pop %v2315
    %v2317 = vmul.f32 %v2316, 0.5
    %v2318 = vadd.f32 %v2317, 0.5
    %v2319 = vmul.f32 %v2313, %v1537
    %v2320 = vmul.f32 %v2309, %v2314
    %v2321 = vadd.f32 %v2319, %v2320
    %v2322 = vtanh.pop %v2321
    %v2323 = vmul.f32 %v2318, %v2322
    %v2324 = vld [vmem:[%s5] sm:$0xff]
    %v2325 = vld [vmem:[%s5 + $0x8] sm:$0xff]
    %v2326 = vld [vmem:[%s5 + $0x10] sm:$0xff]
    %v2327 = vld [vmem:[%s5 + $0x18] sm:$0xff]
    %v2328 = vld [vmem:[%s5 + $0x20] sm:$0xff]
    %v2329 = vld [vmem:[%s5 + $0x28] sm:$0xff]
    %v2330 = vld [vmem:[%s5 + $0x30] sm:$0xff]
    %v2331 = vld [vmem:[%s5 + $0x38] sm:$0xff]
    %v2332 = vld [vmem:[%s5 + $0x40] sm:$0xff]
    %v2333 = vld [vmem:[%s5 + $0x48] sm:$0xff]
    %v2334 = vld [vmem:[%s5 + $0x50] sm:$0xff]
    %v2335 = vld [vmem:[%s5 + $0x58] sm:$0xff]
    %v2336 = vld [vmem:[%s5 + $0x60] sm:$0xff]
    %v2337 = vld [vmem:[%s5 + $0x68] sm:$0xff]
    %v2338 = vld [vmem:[%s5 + $0x70] sm:$0xff]
    %v2339 = vld [vmem:[%s5 + $0x78] sm:$0xff]
    %v2340 = vld [vmem:[#allocation6] sm:$0x1]
    %v2342 = vlaneseq
    %v2343 = vshrl.u32 %v2342, 7
    %v2344 = vsub.s32 0, %v2343
    %v2345 = vrot.slane %v2340, %v2344
    %2347 = vmatprep.subr.mxu0 0.0
    %2348 = vmatpush1.msra.mxu0 %v2324
    %2349 = vmatprep.subr.mxu0 0.0
    %2350 = vmatpush1.msra.mxu0 %v2325
    %2351 = vmatprep.subr.mxu0 0.0
    %2352 = vmatpush1.msra.mxu0 %v2326
    %2353 = vmatprep.subr.mxu0 0.0
    %2354 = vmatpush1.msra.mxu0 %v2327
    %2355 = vmatprep.subr.mxu0 0.0
    %2356 = vmatpush1.msra.mxu0 %v2328
    %2357 = vmatprep.subr.mxu0 0.0
    %2358 = vmatpush1.msra.mxu0 %v2329
    %2359 = vmatprep.subr.mxu0 0.0
    %2360 = vmatpush1.msra.mxu0 %v2330
    %2361 = vmatprep.subr.mxu0 0.0
    %2362 = vmatpush1.msra.mxu0 %v2331
    %2363 = vmatprep.subr.mxu0 0.0
    %2364 = vmatpush1.msra.mxu0 %v2332
    %2365 = vmatprep.subr.mxu0 0.0
    %2366 = vmatpush1.msra.mxu0 %v2333
    %2367 = vmatprep.subr.mxu0 0.0
    %2368 = vmatpush1.msra.mxu0 %v2334
    %2369 = vmatprep.subr.mxu0 0.0
    %2370 = vmatpush1.msra.mxu0 %v2335
    %2371 = vmatprep.subr.mxu0 0.0
    %2372 = vmatpush1.msra.mxu0 %v2336
    %2373 = vmatprep.subr.mxu0 0.0
    %2374 = vmatpush1.msra.mxu0 %v2337
    %2375 = vmatprep.subr.mxu0 0.0
    %2376 = vmatpush1.msra.mxu0 %v2338
    %2377 = vmatprep.subr.mxu0 0.0
    %2378 = vmatpush1.msra.mxu0 %v2339
    %2379 = vmatprep.subr.mxu0 0.0
    %2380 = vmatpush1.msra.mxu0 0.0
    %2381 = vmatprep.subr.mxu0 0.0
    %2382 = vmatpush1.msra.mxu0 0.0
    %2383 = vmatprep.subr.mxu0 0.0
    %2384 = vmatpush1.msra.mxu0 0.0
    %2385 = vmatprep.subr.mxu0 0.0
    %2386 = vmatpush1.msra.mxu0 0.0
    %2387 = vmatprep.subr.mxu0 0.0
    %2388 = vmatpush1.msra.mxu0 0.0
    %2389 = vmatprep.subr.mxu0 0.0
    %2390 = vmatpush1.msra.mxu0 0.0
    %2391 = vmatprep.subr.mxu0 0.0
    %2392 = vmatpush1.msra.mxu0 0.0
    %2393 = vmatprep.subr.mxu0 0.0
    %2394 = vmatpush1.msra.mxu0 0.0
    %2395 = vmatprep.subr.mxu0 0.0
    %2396 = vmatpush1.msra.mxu0 0.0
    %2397 = vmatprep.subr.mxu0 0.0
    %2398 = vmatpush1.msra.mxu0 0.0
    %2399 = vmatprep.subr.mxu0 0.0
    %2400 = vmatpush1.msra.mxu0 0.0
    %2401 = vmatprep.subr.mxu0 0.0
    %2402 = vmatpush1.msra.mxu0 0.0
    %2403 = vmatprep.subr.mxu0 0.0
    %2404 = vmatpush1.msra.mxu0 0.0
    %2405 = vmatprep.subr.mxu0 0.0
    %2406 = vmatpush1.msra.mxu0 0.0
    %2407 = vmatprep.subr.mxu0 0.0
    %2408 = vmatpush1.msra.mxu0 0.0
    %2409 = vmatprep.subr.mxu0 0.0
    %2410 = vmatpush1.msra.mxu0 0.0
    %2411 = vmatprep.mubr.f32.mxu0 0.0
    %2412 = vmatmul.mubr.f32.gmra.mrb[0].mxu0 %v2323
    %v2413 = vpop.f32.mrb[0].mxu0
    %v2414 = vadd.f32 %v2345, %v2413
    %v2415 = vpop.f32.mrb[0].mxu0
    %2416 = vdwg.mxu0
    %s2417 = scalar_lea.vmem %s7, 16
    %2418 = vst.msk [vmem:[%s2417] sm:$0xff] %vm849, %v2414
    %s2419 = scalar_lea.vmem %s0, 96
    %v2420 = vld [vmem:[%s2419] sm:$0xff]
    %v2421 = vld [vmem:[%s2419 + $0x8] sm:$0xff]
    %v2422 = vld [vmem:[%s2419 + $0x10] sm:$0xff]
    %v2423 = vld [vmem:[%s2419 + $0x18] sm:$0xff]
    %v2424 = vld [vmem:[%s1] sm:$0xff]
    %v2425 = vld [vmem:[%s1 + $0x8] sm:$0xff]
    %v2426 = vld [vmem:[%s1 + $0x10] sm:$0xff]
    %v2427 = vld [vmem:[%s1 + $0x18] sm:$0xff]
    %v2428 = vld [vmem:[%s1 + $0x20] sm:$0xff]
    %v2429 = vld [vmem:[%s1 + $0x28] sm:$0xff]
    %v2430 = vld [vmem:[%s1 + $0x30] sm:$0xff]
    %v2431 = vld [vmem:[%s1 + $0x38] sm:$0xff]
    %v2432 = vld [vmem:[%s1 + $0x40] sm:$0xff]
    %v2433 = vld [vmem:[%s1 + $0x48] sm:$0xff]
    %v2434 = vld [vmem:[%s1 + $0x50] sm:$0xff]
    %v2435 = vld [vmem:[%s1 + $0x58] sm:$0xff]
    %v2436 = vld [vmem:[%s1 + $0x60] sm:$0xff]
    %v2437 = vld [vmem:[%s1 + $0x68] sm:$0xff]
    %v2438 = vld [vmem:[%s1 + $0x70] sm:$0xff]
    %v2439 = vld [vmem:[%s1 + $0x78] sm:$0xff]
    %v2440 = vld [vmem:[%s1 + $0x80] sm:$0xff]
    %v2441 = vld [vmem:[%s1 + $0x88] sm:$0xff]
    %v2442 = vld [vmem:[%s1 + $0x90] sm:$0xff]
    %v2443 = vld [vmem:[%s1 + $0x98] sm:$0xff]
    %v2444 = vld [vmem:[%s1 + $0xa0] sm:$0xff]
    %v2445 = vld [vmem:[%s1 + $0xa8] sm:$0xff]
    %v2446 = vld [vmem:[%s1 + $0xb0] sm:$0xff]
    %v2447 = vld [vmem:[%s1 + $0xb8] sm:$0xff]
    %v2448 = vld [vmem:[%s1 + $0xc0] sm:$0xff]
    %v2449 = vld [vmem:[%s1 + $0xc8] sm:$0xff]
    %v2450 = vld [vmem:[%s1 + $0xd0] sm:$0xff]
    %v2451 = vld [vmem:[%s1 + $0xd8] sm:$0xff]
    %v2452 = vld [vmem:[%s1 + $0xe0] sm:$0xff]
    %v2453 = vld [vmem:[%s1 + $0xe8] sm:$0xff]
    %v2454 = vld [vmem:[%s1 + $0xf0] sm:$0xff]
    %v2455 = vld [vmem:[%s1 + $0xf8] sm:$0xff]
    %v2456 = vld [vmem:[%s1 + $0x100] sm:$0xff]
    %v2457 = vld [vmem:[%s1 + $0x108] sm:$0xff]
    %v2458 = vld [vmem:[%s1 + $0x110] sm:$0xff]
    %v2459 = vld [vmem:[%s1 + $0x118] sm:$0xff]
    %v2460 = vld [vmem:[%s1 + $0x120] sm:$0xff]
    %v2461 = vld [vmem:[%s1 + $0x128] sm:$0xff]
    %v2462 = vld [vmem:[%s1 + $0x130] sm:$0xff]
    %v2463 = vld [vmem:[%s1 + $0x138] sm:$0xff]
    %v2464 = vld [vmem:[%s1 + $0x140] sm:$0xff]
    %v2465 = vld [vmem:[%s1 + $0x148] sm:$0xff]
    %v2466 = vld [vmem:[%s1 + $0x150] sm:$0xff]
    %v2467 = vld [vmem:[%s1 + $0x158] sm:$0xff]
    %v2468 = vld [vmem:[%s1 + $0x160] sm:$0xff]
    %v2469 = vld [vmem:[%s1 + $0x168] sm:$0xff]
    %v2470 = vld [vmem:[%s1 + $0x170] sm:$0xff]
    %v2471 = vld [vmem:[%s1 + $0x178] sm:$0xff]
    %v2472 = vld [vmem:[%s1 + $0x180] sm:$0xff]
    %v2473 = vld [vmem:[%s1 + $0x188] sm:$0xff]
    %v2474 = vld [vmem:[%s1 + $0x190] sm:$0xff]
    %v2475 = vld [vmem:[%s1 + $0x198] sm:$0xff]
    %v2476 = vld [vmem:[%s1 + $0x1a0] sm:$0xff]
    %v2477 = vld [vmem:[%s1 + $0x1a8] sm:$0xff]
    %v2478 = vld [vmem:[%s1 + $0x1b0] sm:$0xff]
    %v2479 = vld [vmem:[%s1 + $0x1b8] sm:$0xff]
    %v2480 = vld [vmem:[%s1 + $0x1c0] sm:$0xff]
    %v2481 = vld [vmem:[%s1 + $0x1c8] sm:$0xff]
    %v2482 = vld [vmem:[%s1 + $0x1d0] sm:$0xff]
    %v2483 = vld [vmem:[%s1 + $0x1d8] sm:$0xff]
    %v2484 = vld [vmem:[%s1 + $0x1e0] sm:$0xff]
    %v2485 = vld [vmem:[%s1 + $0x1e8] sm:$0xff]
    %v2486 = vld [vmem:[%s1 + $0x1f0] sm:$0xff]
    %v2487 = vld [vmem:[%s1 + $0x1f8] sm:$0xff]
    %2488 = vmatprep.subr.mxu0 %v2425
    %2489 = vmatpush1.msra.mxu0 %v2424
    %2490 = vmatprep.subr.mxu0 %v2429
    %2491 = vmatpush1.msra.mxu0 %v2428
    %2492 = vmatprep.subr.mxu0 %v2433
    %2493 = vmatpush1.msra.mxu0 %v2432
    %2494 = vmatprep.subr.mxu0 %v2437
    %2495 = vmatpush1.msra.mxu0 %v2436
    %2496 = vmatprep.subr.mxu0 %v2441
    %2497 = vmatpush1.msra.mxu0 %v2440
    %2498 = vmatprep.subr.mxu0 %v2445
    %2499 = vmatpush1.msra.mxu0 %v2444
    %2500 = vmatprep.subr.mxu0 %v2449
    %2501 = vmatpush1.msra.mxu0 %v2448
    %2502 = vmatprep.subr.mxu0 %v2453
    %2503 = vmatpush1.msra.mxu0 %v2452
    %2504 = vmatprep.subr.mxu0 %v2457
    %2505 = vmatpush1.msra.mxu0 %v2456
    %2506 = vmatprep.subr.mxu0 %v2461
    %2507 = vmatpush1.msra.mxu0 %v2460
    %2508 = vmatprep.subr.mxu0 %v2465
    %2509 = vmatpush1.msra.mxu0 %v2464
    %2510 = vmatprep.subr.mxu0 %v2469
    %2511 = vmatpush1.msra.mxu0 %v2468
    %2512 = vmatprep.subr.mxu0 %v2473
    %2513 = vmatpush1.msra.mxu0 %v2472
    %2514 = vmatprep.subr.mxu0 %v2477
    %2515 = vmatpush1.msra.mxu0 %v2476
    %2516 = vmatprep.subr.mxu0 %v2481
    %2517 = vmatpush1.msra.mxu0 %v2480
    %2518 = vmatprep.subr.mxu0 %v2485
    %2519 = vmatpush1.msra.mxu0 %v2484
    %2520 = vmatprep.subr.mxu0 0.0
    %2521 = vmatpush1.msra.mxu0 0.0
    %2522 = vmatprep.subr.mxu0 0.0
    %2523 = vmatpush1.msra.mxu0 0.0
    %2524 = vmatprep.subr.mxu0 0.0
    %2525 = vmatpush1.msra.mxu0 0.0
    %2526 = vmatprep.subr.mxu0 0.0
    %2527 = vmatpush1.msra.mxu0 0.0
    %2528 = vmatprep.subr.mxu0 0.0
    %2529 = vmatpush1.msra.mxu0 0.0
    %2530 = vmatprep.subr.mxu0 0.0
    %2531 = vmatpush1.msra.mxu0 0.0
    %2532 = vmatprep.subr.mxu0 0.0
    %2533 = vmatpush1.msra.mxu0 0.0
    %2534 = vmatprep.subr.mxu0 0.0
    %2535 = vmatpush1.msra.mxu0 0.0
    %2536 = vmatprep.subr.mxu0 0.0
    %2537 = vmatpush1.msra.mxu0 0.0
    %2538 = vmatprep.subr.mxu0 0.0
    %2539 = vmatpush1.msra.mxu0 0.0
    %2540 = vmatprep.subr.mxu0 0.0
    %2541 = vmatpush1.msra.mxu0 0.0
    %2542 = vmatprep.subr.mxu0 0.0
    %2543 = vmatpush1.msra.mxu0 0.0
    %2544 = vmatprep.subr.mxu0 0.0
    %2545 = vmatpush1.msra.mxu0 0.0
    %2546 = vmatprep.subr.mxu0 0.0
    %2547 = vmatpush1.msra.mxu0 0.0
    %2548 = vmatprep.subr.mxu0 0.0
    %2549 = vmatpush1.msra.mxu0 0.0
    %2550 = vmatprep.subr.mxu0 0.0
    %2551 = vmatpush1.msra.mxu0 0.0
    %2552 = vmatprep.mubr.f32.mxu0 0.0
    %2553 = vmatmul.mubr.f32.gmra.mrb[0].mxu0 %v1867
    %v2554 = vpop.f32.mrb[0].mxu0
    %v2555 = vadd.f32 0.0, %v2554
    %v2556 = vpop.f32.mrb[0].mxu0
    %v2557 = vadd.f32 0.0, %v2556
    %2558 = vdwg.mxu0
    %2559 = vmatprep.subr.mxu0 %v2427
    %2560 = vmatpush1.msra.mxu0 %v2426
    %2561 = vmatprep.subr.mxu0 %v2431
    %2562 = vmatpush1.msra.mxu0 %v2430
    %2563 = vmatprep.subr.mxu0 %v2435
    %2564 = vmatpush1.msra.mxu0 %v2434
    %2565 = vmatprep.subr.mxu0 %v2439
    %2566 = vmatpush1.msra.mxu0 %v2438
    %2567 = vmatprep.subr.mxu0 %v2443
    %2568 = vmatpush1.msra.mxu0 %v2442
    %2569 = vmatprep.subr.mxu0 %v2447
    %2570 = vmatpush1.msra.mxu0 %v2446
    %2571 = vmatprep.subr.mxu0 %v2451
    %2572 = vmatpush1.msra.mxu0 %v2450
    %2573 = vmatprep.subr.mxu0 %v2455
    %2574 = vmatpush1.msra.mxu0 %v2454
    %2575 = vmatprep.subr.mxu0 %v2459
    %2576 = vmatpush1.msra.mxu0 %v2458
    %2577 = vmatprep.subr.mxu0 %v2463
    %2578 = vmatpush1.msra.mxu0 %v2462
    %2579 = vmatprep.subr.mxu0 %v2467
    %2580 = vmatpush1.msra.mxu0 %v2466
    %2581 = vmatprep.subr.mxu0 %v2471
    %2582 = vmatpush1.msra.mxu0 %v2470
    %2583 = vmatprep.subr.mxu0 %v2475
    %2584 = vmatpush1.msra.mxu0 %v2474
    %2585 = vmatprep.subr.mxu0 %v2479
    %2586 = vmatpush1.msra.mxu0 %v2478
    %2587 = vmatprep.subr.mxu0 %v2483
    %2588 = vmatpush1.msra.mxu0 %v2482
    %2589 = vmatprep.subr.mxu0 %v2487
    %2590 = vmatpush1.msra.mxu0 %v2486
    %2591 = vmatprep.subr.mxu0 0.0
    %2592 = vmatpush1.msra.mxu0 0.0
    %2593 = vmatprep.subr.mxu0 0.0
    %2594 = vmatpush1.msra.mxu0 0.0
    %2595 = vmatprep.subr.mxu0 0.0
    %2596 = vmatpush1.msra.mxu0 0.0
    %2597 = vmatprep.subr.mxu0 0.0
    %2598 = vmatpush1.msra.mxu0 0.0
    %2599 = vmatprep.subr.mxu0 0.0
    %2600 = vmatpush1.msra.mxu0 0.0
    %2601 = vmatprep.subr.mxu0 0.0
    %2602 = vmatpush1.msra.mxu0 0.0
    %2603 = vmatprep.subr.mxu0 0.0
    %2604 = vmatpush1.msra.mxu0 0.0
    %2605 = vmatprep.subr.mxu0 0.0
    %2606 = vmatpush1.msra.mxu0 0.0
    %2607 = vmatprep.subr.mxu0 0.0
    %2608 = vmatpush1.msra.mxu0 0.0
    %2609 = vmatprep.subr.mxu0 0.0
    %2610 = vmatpush1.msra.mxu0 0.0
    %2611 = vmatprep.subr.mxu0 0.0
    %2612 = vmatpush1.msra.mxu0 0.0
    %2613 = vmatprep.subr.mxu0 0.0
    %2614 = vmatpush1.msra.mxu0 0.0
    %2615 = vmatprep.subr.mxu0 0.0
    %2616 = vmatpush1.msra.mxu0 0.0
    %2617 = vmatprep.subr.mxu0 0.0
    %2618 = vmatpush1.msra.mxu0 0.0
    %2619 = vmatprep.subr.mxu0 0.0
    %2620 = vmatpush1.msra.mxu0 0.0
    %2621 = vmatprep.subr.mxu0 0.0
    %2622 = vmatpush1.msra.mxu0 0.0
    %2623 = vmatprep.mubr.f32.mxu0 0.0
    %2624 = vmatmul.mubr.f32.gmra.mrb[0].mxu0 %v1867
    %v2625 = vpop.f32.mrb[0].mxu0
    %v2626 = vadd.f32 0.0, %v2625
    %v2627 = vpop.f32.mrb[0].mxu0
    %v2628 = vadd.f32 0.0, %v2627
    %2629 = vdwg.mxu0
    %v2630 = vadd.f32 %v2420, %v2555
    %v2631 = vadd.f32 %v2421, %v2557
    %v2632 = vadd.f32 %v2422, %v2626
    %v2633 = vadd.f32 %v2423, %v2628
    %v2634 = vmul.f32 %v2630, 0.5
    %v2635 = vtanh.pop %v2634
    %v2636 = vmul.f32 %v2635, 0.5
    %v2637 = vadd.f32 %v2636, 0.5
    %v2638 = vmul.f32 %v2631, 0.5
    %v2639 = vtanh.pop %v2638
    %v2640 = vmul.f32 %v2639, 0.5
    %v2641 = vadd.f32 %v2640, 0.5
    %v2642 = vtanh.pop %v2632
    %v2643 = vmul.f32 %v2633, 0.5
    %v2644 = vtanh.pop %v2643
    %v2645 = vmul.f32 %v2644, 0.5
    %v2646 = vadd.f32 %v2645, 0.5
    %v2647 = vmul.f32 %v2641, %v1865
    %v2648 = vmul.f32 %v2637, %v2642
    %v2649 = vadd.f32 %v2647, %v2648
    %v2650 = vtanh.pop %v2649
    %v2651 = vmul.f32 %v2646, %v2650
    %v2652 = vld [vmem:[#allocation7] sm:$0xff]
    %v2653 = vld [vmem:[#allocation7 + $0x8] sm:$0xff]
    %v2654 = vld [vmem:[#allocation7 + $0x10] sm:$0xff]
    %v2655 = vld [vmem:[#allocation7 + $0x18] sm:$0xff]
    %v2656 = vld [vmem:[#allocation7 + $0x20] sm:$0xff]
    %v2657 = vld [vmem:[#allocation7 + $0x28] sm:$0xff]
    %v2658 = vld [vmem:[#allocation7 + $0x30] sm:$0xff]
    %v2659 = vld [vmem:[#allocation7 + $0x38] sm:$0xff]
    %v2660 = vld [vmem:[#allocation7 + $0x40] sm:$0xff]
    %v2661 = vld [vmem:[#allocation7 + $0x48] sm:$0xff]
    %v2662 = vld [vmem:[#allocation7 + $0x50] sm:$0xff]
    %v2663 = vld [vmem:[#allocation7 + $0x58] sm:$0xff]
    %v2664 = vld [vmem:[#allocation7 + $0x60] sm:$0xff]
    %v2665 = vld [vmem:[#allocation7 + $0x68] sm:$0xff]
    %v2666 = vld [vmem:[#allocation7 + $0x70] sm:$0xff]
    %v2667 = vld [vmem:[#allocation7 + $0x78] sm:$0xff]
    %v2668 = vld [vmem:[#allocation7 + $0x80] sm:$0xff]
    %v2669 = vld [vmem:[#allocation7 + $0x88] sm:$0xff]
    %v2670 = vld [vmem:[#allocation7 + $0x90] sm:$0xff]
    %v2671 = vld [vmem:[#allocation7 + $0x98] sm:$0xff]
    %v2672 = vld [vmem:[#allocation7 + $0xa0] sm:$0xff]
    %v2673 = vld [vmem:[#allocation7 + $0xa8] sm:$0xff]
    %v2674 = vld [vmem:[#allocation7 + $0xb0] sm:$0xff]
    %v2675 = vld [vmem:[#allocation7 + $0xb8] sm:$0xff]
    %v2676 = vld [vmem:[#allocation7 + $0xc0] sm:$0xff]
    %v2677 = vld [vmem:[#allocation7 + $0xc8] sm:$0xff]
    %v2678 = vld [vmem:[#allocation7 + $0xd0] sm:$0xff]
    %v2679 = vld [vmem:[#allocation7 + $0xd8] sm:$0xff]
    %v2680 = vld [vmem:[#allocation7 + $0xe0] sm:$0xff]
    %v2681 = vld [vmem:[#allocation7 + $0xe8] sm:$0xff]
    %v2682 = vld [vmem:[#allocation7 + $0xf0] sm:$0xff]
    %v2683 = vld [vmem:[#allocation7 + $0xf8] sm:$0xff]
    %v2684 = vld [vmem:[#allocation7 + $0x100] sm:$0xff]
    %v2685 = vld [vmem:[#allocation7 + $0x108] sm:$0xff]
    %v2686 = vld [vmem:[#allocation7 + $0x110] sm:$0xff]
    %v2687 = vld [vmem:[#allocation7 + $0x118] sm:$0xff]
    %v2688 = vld [vmem:[#allocation7 + $0x120] sm:$0xff]
    %v2689 = vld [vmem:[#allocation7 + $0x128] sm:$0xff]
    %v2690 = vld [vmem:[#allocation7 + $0x130] sm:$0xff]
    %v2691 = vld [vmem:[#allocation7 + $0x138] sm:$0xff]
    %v2692 = vld [vmem:[#allocation7 + $0x140] sm:$0xff]
    %v2693 = vld [vmem:[#allocation7 + $0x148] sm:$0xff]
    %v2694 = vld [vmem:[#allocation7 + $0x150] sm:$0xff]
    %v2695 = vld [vmem:[#allocation7 + $0x158] sm:$0xff]
    %v2696 = vld [vmem:[#allocation7 + $0x160] sm:$0xff]
    %v2697 = vld [vmem:[#allocation7 + $0x168] sm:$0xff]
    %v2698 = vld [vmem:[#allocation7 + $0x170] sm:$0xff]
    %v2699 = vld [vmem:[#allocation7 + $0x178] sm:$0xff]
    %v2700 = vld [vmem:[#allocation7 + $0x180] sm:$0xff]
    %v2701 = vld [vmem:[#allocation7 + $0x188] sm:$0xff]
    %v2702 = vld [vmem:[#allocation7 + $0x190] sm:$0xff]
    %v2703 = vld [vmem:[#allocation7 + $0x198] sm:$0xff]
    %v2704 = vld [vmem:[#allocation7 + $0x1a0] sm:$0xff]
    %v2705 = vld [vmem:[#allocation7 + $0x1a8] sm:$0xff]
    %v2706 = vld [vmem:[#allocation7 + $0x1b0] sm:$0xff]
    %v2707 = vld [vmem:[#allocation7 + $0x1b8] sm:$0xff]
    %v2708 = vld [vmem:[#allocation7 + $0x1c0] sm:$0xff]
    %v2709 = vld [vmem:[#allocation7 + $0x1c8] sm:$0xff]
    %v2710 = vld [vmem:[#allocation7 + $0x1d0] sm:$0xff]
    %v2711 = vld [vmem:[#allocation7 + $0x1d8] sm:$0xff]
    %v2712 = vld [vmem:[#allocation7 + $0x1e0] sm:$0xff]
    %v2713 = vld [vmem:[#allocation7 + $0x1e8] sm:$0xff]
    %v2714 = vld [vmem:[#allocation7 + $0x1f0] sm:$0xff]
    %v2715 = vld [vmem:[#allocation7 + $0x1f8] sm:$0xff]
    %v2716 = vld [vmem:[#allocation9] sm:$0xff]
    %v2717 = vld [vmem:[#allocation9 + $0x8] sm:$0xff]
    %v2718 = vld [vmem:[#allocation9 + $0x10] sm:$0xff]
    %v2719 = vld [vmem:[#allocation9 + $0x18] sm:$0xff]
    %v2720 = vld [vmem:[#allocation9 + $0x20] sm:$0xff]
    %v2721 = vld [vmem:[#allocation9 + $0x28] sm:$0xff]
    %v2722 = vld [vmem:[#allocation9 + $0x30] sm:$0xff]
    %v2723 = vld [vmem:[#allocation9 + $0x38] sm:$0xff]
    %v2724 = vld [vmem:[#allocation9 + $0x40] sm:$0xff]
    %v2725 = vld [vmem:[#allocation9 + $0x48] sm:$0xff]
    %v2726 = vld [vmem:[#allocation9 + $0x50] sm:$0xff]
    %v2727 = vld [vmem:[#allocation9 + $0x58] sm:$0xff]
    %v2728 = vld [vmem:[#allocation9 + $0x60] sm:$0xff]
    %v2729 = vld [vmem:[#allocation9 + $0x68] sm:$0xff]
    %v2730 = vld [vmem:[#allocation9 + $0x70] sm:$0xff]
    %v2731 = vld [vmem:[#allocation9 + $0x78] sm:$0xff]
    %v2732 = vld [vmem:[#allocation9 + $0x80] sm:$0xff]
    %v2733 = vld [vmem:[#allocation9 + $0x88] sm:$0xff]
    %v2734 = vld [vmem:[#allocation9 + $0x90] sm:$0xff]
    %v2735 = vld [vmem:[#allocation9 + $0x98] sm:$0xff]
    %v2736 = vld [vmem:[#allocation9 + $0xa0] sm:$0xff]
    %v2737 = vld [vmem:[#allocation9 + $0xa8] sm:$0xff]
    %v2738 = vld [vmem:[#allocation9 + $0xb0] sm:$0xff]
    %v2739 = vld [vmem:[#allocation9 + $0xb8] sm:$0xff]
    %v2740 = vld [vmem:[#allocation9 + $0xc0] sm:$0xff]
    %v2741 = vld [vmem:[#allocation9 + $0xc8] sm:$0xff]
    %v2742 = vld [vmem:[#allocation9 + $0xd0] sm:$0xff]
    %v2743 = vld [vmem:[#allocation9 + $0xd8] sm:$0xff]
    %v2744 = vld [vmem:[#allocation9 + $0xe0] sm:$0xff]
    %v2745 = vld [vmem:[#allocation9 + $0xe8] sm:$0xff]
    %v2746 = vld [vmem:[#allocation9 + $0xf0] sm:$0xff]
    %v2747 = vld [vmem:[#allocation9 + $0xf8] sm:$0xff]
    %v2748 = vld [vmem:[#allocation9 + $0x100] sm:$0xff]
    %v2749 = vld [vmem:[#allocation9 + $0x108] sm:$0xff]
    %v2750 = vld [vmem:[#allocation9 + $0x110] sm:$0xff]
    %v2751 = vld [vmem:[#allocation9 + $0x118] sm:$0xff]
    %v2752 = vld [vmem:[#allocation9 + $0x120] sm:$0xff]
    %v2753 = vld [vmem:[#allocation9 + $0x128] sm:$0xff]
    %v2754 = vld [vmem:[#allocation9 + $0x130] sm:$0xff]
    %v2755 = vld [vmem:[#allocation9 + $0x138] sm:$0xff]
    %v2756 = vld [vmem:[#allocation9 + $0x140] sm:$0xff]
    %v2757 = vld [vmem:[#allocation9 + $0x148] sm:$0xff]
    %v2758 = vld [vmem:[#allocation9 + $0x150] sm:$0xff]
    %v2759 = vld [vmem:[#allocation9 + $0x158] sm:$0xff]
    %v2760 = vld [vmem:[#allocation9 + $0x160] sm:$0xff]
    %v2761 = vld [vmem:[#allocation9 + $0x168] sm:$0xff]
    %v2762 = vld [vmem:[#allocation9 + $0x170] sm:$0xff]
    %v2763 = vld [vmem:[#allocation9 + $0x178] sm:$0xff]
    %v2764 = vld [vmem:[#allocation9 + $0x180] sm:$0xff]
    %v2765 = vld [vmem:[#allocation9 + $0x188] sm:$0xff]
    %v2766 = vld [vmem:[#allocation9 + $0x190] sm:$0xff]
    %v2767 = vld [vmem:[#allocation9 + $0x198] sm:$0xff]
    %v2768 = vld [vmem:[#allocation9 + $0x1a0] sm:$0xff]
    %v2769 = vld [vmem:[#allocation9 + $0x1a8] sm:$0xff]
    %v2770 = vld [vmem:[#allocation9 + $0x1b0] sm:$0xff]
    %v2771 = vld [vmem:[#allocation9 + $0x1b8] sm:$0xff]
    %v2772 = vld [vmem:[#allocation9 + $0x1c0] sm:$0xff]
    %v2773 = vld [vmem:[#allocation9 + $0x1c8] sm:$0xff]
    %v2774 = vld [vmem:[#allocation9 + $0x1d0] sm:$0xff]
    %v2775 = vld [vmem:[#allocation9 + $0x1d8] sm:$0xff]
    %v2776 = vld [vmem:[#allocation9 + $0x1e0] sm:$0xff]
    %v2777 = vld [vmem:[#allocation9 + $0x1e8] sm:$0xff]
    %v2778 = vld [vmem:[#allocation9 + $0x1f0] sm:$0xff]
    %v2779 = vld [vmem:[#allocation9 + $0x1f8] sm:$0xff]
    %2780 = vmatprep.subr.mxu0 %v2717
    %2781 = vmatpush1.msra.mxu0 %v2716
    %2782 = vmatprep.subr.mxu0 %v2721
    %2783 = vmatpush1.msra.mxu0 %v2720
    %2784 = vmatprep.subr.mxu0 %v2725
    %2785 = vmatpush1.msra.mxu0 %v2724
    %2786 = vmatprep.subr.mxu0 %v2729
    %2787 = vmatpush1.msra.mxu0 %v2728
    %2788 = vmatprep.subr.mxu0 %v2733
    %2789 = vmatpush1.msra.mxu0 %v2732
    %2790 = vmatprep.subr.mxu0 %v2737
    %2791 = vmatpush1.msra.mxu0 %v2736
    %2792 = vmatprep.subr.mxu0 %v2741
    %2793 = vmatpush1.msra.mxu0 %v2740
    %2794 = vmatprep.subr.mxu0 %v2745
    %2795 = vmatpush1.msra.mxu0 %v2744
    %2796 = vmatprep.subr.mxu0 %v2749
    %2797 = vmatpush1.msra.mxu0 %v2748
    %2798 = vmatprep.subr.mxu0 %v2753
    %2799 = vmatpush1.msra.mxu0 %v2752
    %2800 = vmatprep.subr.mxu0 %v2757
    %2801 = vmatpush1.msra.mxu0 %v2756
    %2802 = vmatprep.subr.mxu0 %v2761
    %2803 = vmatpush1.msra.mxu0 %v2760
    %2804 = vmatprep.subr.mxu0 %v2765
    %2805 = vmatpush1.msra.mxu0 %v2764
    %2806 = vmatprep.subr.mxu0 %v2769
    %2807 = vmatpush1.msra.mxu0 %v2768
    %2808 = vmatprep.subr.mxu0 %v2773
    %2809 = vmatpush1.msra.mxu0 %v2772
    %2810 = vmatprep.subr.mxu0 %v2777
    %2811 = vmatpush1.msra.mxu0 %v2776
    %2812 = vmatprep.subr.mxu0 0.0
    %2813 = vmatpush1.msra.mxu0 0.0
    %2814 = vmatprep.subr.mxu0 0.0
    %2815 = vmatpush1.msra.mxu0 0.0
    %2816 = vmatprep.subr.mxu0 0.0
    %2817 = vmatpush1.msra.mxu0 0.0
    %2818 = vmatprep.subr.mxu0 0.0
    %2819 = vmatpush1.msra.mxu0 0.0
    %2820 = vmatprep.subr.mxu0 0.0
    %2821 = vmatpush1.msra.mxu0 0.0
    %2822 = vmatprep.subr.mxu0 0.0
    %2823 = vmatpush1.msra.mxu0 0.0
    %2824 = vmatprep.subr.mxu0 0.0
    %2825 = vmatpush1.msra.mxu0 0.0
    %2826 = vmatprep.subr.mxu0 0.0
    %2827 = vmatpush1.msra.mxu0 0.0
    %2828 = vmatprep.subr.mxu0 0.0
    %2829 = vmatpush1.msra.mxu0 0.0
    %2830 = vmatprep.subr.mxu0 0.0
    %2831 = vmatpush1.msra.mxu0 0.0
    %2832 = vmatprep.subr.mxu0 0.0
    %2833 = vmatpush1.msra.mxu0 0.0
    %2834 = vmatprep.subr.mxu0 0.0
    %2835 = vmatpush1.msra.mxu0 0.0
    %2836 = vmatprep.subr.mxu0 0.0
    %2837 = vmatpush1.msra.mxu0 0.0
    %2838 = vmatprep.subr.mxu0 0.0
    %2839 = vmatpush1.msra.mxu0 0.0
    %2840 = vmatprep.subr.mxu0 0.0
    %2841 = vmatpush1.msra.mxu0 0.0
    %2842 = vmatprep.subr.mxu0 0.0
    %2843 = vmatpush1.msra.mxu0 0.0
    %2844 = vmatprep.mubr.f32.mxu0 0.0
    %2845 = vmatmul.mubr.f32.gmra.mrb[0].mxu0 %v2323
    %v2846 = vpop.f32.mrb[0].mxu0
    %v2847 = vadd.f32 0.0, %v2846
    %v2848 = vpop.f32.mrb[0].mxu0
    %v2849 = vadd.f32 0.0, %v2848
    %2850 = vdwg.mxu0
    %2851 = vmatprep.subr.mxu0 %v2719
    %2852 = vmatpush1.msra.mxu0 %v2718
    %2853 = vmatprep.subr.mxu0 %v2723
    %2854 = vmatpush1.msra.mxu0 %v2722
    %2855 = vmatprep.subr.mxu0 %v2727
    %2856 = vmatpush1.msra.mxu0 %v2726
    %2857 = vmatprep.subr.mxu0 %v2731
    %2858 = vmatpush1.msra.mxu0 %v2730
    %2859 = vmatprep.subr.mxu0 %v2735
    %2860 = vmatpush1.msra.mxu0 %v2734
    %2861 = vmatprep.subr.mxu0 %v2739
    %2862 = vmatpush1.msra.mxu0 %v2738
    %2863 = vmatprep.subr.mxu0 %v2743
    %2864 = vmatpush1.msra.mxu0 %v2742
    %2865 = vmatprep.subr.mxu0 %v2747
    %2866 = vmatpush1.msra.mxu0 %v2746
    %2867 = vmatprep.subr.mxu0 %v2751
    %2868 = vmatpush1.msra.mxu0 %v2750
    %2869 = vmatprep.subr.mxu0 %v2755
    %2870 = vmatpush1.msra.mxu0 %v2754
    %2871 = vmatprep.subr.mxu0 %v2759
    %2872 = vmatpush1.msra.mxu0 %v2758
    %2873 = vmatprep.subr.mxu0 %v2763
    %2874 = vmatpush1.msra.mxu0 %v2762
    %2875 = vmatprep.subr.mxu0 %v2767
    %2876 = vmatpush1.msra.mxu0 %v2766
    %2877 = vmatprep.subr.mxu0 %v2771
    %2878 = vmatpush1.msra.mxu0 %v2770
    %2879 = vmatprep.subr.mxu0 %v2775
    %2880 = vmatpush1.msra.mxu0 %v2774
    %2881 = vmatprep.subr.mxu0 %v2779
    %2882 = vmatpush1.msra.mxu0 %v2778
    %2883 = vmatprep.subr.mxu0 0.0
    %2884 = vmatpush1.msra.mxu0 0.0
    %2885 = vmatprep.subr.mxu0 0.0
    %2886 = vmatpush1.msra.mxu0 0.0
    %2887 = vmatprep.subr.mxu0 0.0
    %2888 = vmatpush1.msra.mxu0 0.0
    %2889 = vmatprep.subr.mxu0 0.0
    %2890 = vmatpush1.msra.mxu0 0.0
    %2891 = vmatprep.subr.mxu0 0.0
    %2892 = vmatpush1.msra.mxu0 0.0
    %2893 = vmatprep.subr.mxu0 0.0
    %2894 = vmatpush1.msra.mxu0 0.0
    %2895 = vmatprep.subr.mxu0 0.0
    %2896 = vmatpush1.msra.mxu0 0.0
    %2897 = vmatprep.subr.mxu0 0.0
    %2898 = vmatpush1.msra.mxu0 0.0
    %2899 = vmatprep.subr.mxu0 0.0
    %2900 = vmatpush1.msra.mxu0 0.0
    %2901 = vmatprep.subr.mxu0 0.0
    %2902 = vmatpush1.msra.mxu0 0.0
    %2903 = vmatprep.subr.mxu0 0.0
    %2904 = vmatpush1.msra.mxu0 0.0
    %2905 = vmatprep.subr.mxu0 0.0
    %2906 = vmatpush1.msra.mxu0 0.0
    %2907 = vmatprep.subr.mxu0 0.0
    %2908 = vmatpush1.msra.mxu0 0.0
    %2909 = vmatprep.subr.mxu0 0.0
    %2910 = vmatpush1.msra.mxu0 0.0
    %2911 = vmatprep.subr.mxu0 0.0
    %2912 = vmatpush1.msra.mxu0 0.0
    %2913 = vmatprep.subr.mxu0 0.0
    %2914 = vmatpush1.msra.mxu0 0.0
    %2915 = vmatprep.mubr.f32.mxu0 0.0
    %2916 = vmatmul.mubr.f32.gmra.mrb[0].mxu0 %v2323
    %v2917 = vpop.f32.mrb[0].mxu0
    %v2918 = vadd.f32 0.0, %v2917
    %v2919 = vpop.f32.mrb[0].mxu0
    %v2920 = vadd.f32 0.0, %v2919
    %2921 = vdwg.mxu0
    %2922 = vmatprep.subr.mxu0 %v2653
    %2923 = vmatpush1.msra.mxu0 %v2652
    %2924 = vmatprep.subr.mxu0 %v2657
    %2925 = vmatpush1.msra.mxu0 %v2656
    %2926 = vmatprep.subr.mxu0 %v2661
    %2927 = vmatpush1.msra.mxu0 %v2660
    %2928 = vmatprep.subr.mxu0 %v2665
    %2929 = vmatpush1.msra.mxu0 %v2664
    %2930 = vmatprep.subr.mxu0 %v2669
    %2931 = vmatpush1.msra.mxu0 %v2668
    %2932 = vmatprep.subr.mxu0 %v2673
    %2933 = vmatpush1.msra.mxu0 %v2672
    %2934 = vmatprep.subr.mxu0 %v2677
    %2935 = vmatpush1.msra.mxu0 %v2676
    %2936 = vmatprep.subr.mxu0 %v2681
    %2937 = vmatpush1.msra.mxu0 %v2680
    %2938 = vmatprep.subr.mxu0 %v2685
    %2939 = vmatpush1.msra.mxu0 %v2684
    %2940 = vmatprep.subr.mxu0 %v2689
    %2941 = vmatpush1.msra.mxu0 %v2688
    %2942 = vmatprep.subr.mxu0 %v2693
    %2943 = vmatpush1.msra.mxu0 %v2692
    %2944 = vmatprep.subr.mxu0 %v2697
    %2945 = vmatpush1.msra.mxu0 %v2696
    %2946 = vmatprep.subr.mxu0 %v2701
    %2947 = vmatpush1.msra.mxu0 %v2700
    %2948 = vmatprep.subr.mxu0 %v2705
    %2949 = vmatpush1.msra.mxu0 %v2704
    %2950 = vmatprep.subr.mxu0 %v2709
    %2951 = vmatpush1.msra.mxu0 %v2708
    %2952 = vmatprep.subr.mxu0 %v2713
    %2953 = vmatpush1.msra.mxu0 %v2712
    %2954 = vmatprep.subr.mxu0 0.0
    %2955 = vmatpush1.msra.mxu0 0.0
    %2956 = vmatprep.subr.mxu0 0.0
    %2957 = vmatpush1.msra.mxu0 0.0
    %2958 = vmatprep.subr.mxu0 0.0
    %2959 = vmatpush1.msra.mxu0 0.0
    %2960 = vmatprep.subr.mxu0 0.0
    %2961 = vmatpush1.msra.mxu0 0.0
    %2962 = vmatprep.subr.mxu0 0.0
    %2963 = vmatpush1.msra.mxu0 0.0
    %2964 = vmatprep.subr.mxu0 0.0
    %2965 = vmatpush1.msra.mxu0 0.0
    %2966 = vmatprep.subr.mxu0 0.0
    %2967 = vmatpush1.msra.mxu0 0.0
    %2968 = vmatprep.subr.mxu0 0.0
    %2969 = vmatpush1.msra.mxu0 0.0
    %2970 = vmatprep.subr.mxu0 0.0
    %2971 = vmatpush1.msra.mxu0 0.0
    %2972 = vmatprep.subr.mxu0 0.0
    %2973 = vmatpush1.msra.mxu0 0.0
    %2974 = vmatprep.subr.mxu0 0.0
    %2975 = vmatpush1.msra.mxu0 0.0
    %2976 = vmatprep.subr.mxu0 0.0
    %2977 = vmatpush1.msra.mxu0 0.0
    %2978 = vmatprep.subr.mxu0 0.0
    %2979 = vmatpush1.msra.mxu0 0.0
    %2980 = vmatprep.subr.mxu0 0.0
    %2981 = vmatpush1.msra.mxu0 0.0
    %2982 = vmatprep.subr.mxu0 0.0
    %2983 = vmatpush1.msra.mxu0 0.0
    %2984 = vmatprep.subr.mxu0 0.0
    %2985 = vmatpush1.msra.mxu0 0.0
    %2986 = vmatprep.mubr.f32.mxu0 0.0
    %2987 = vmatmul.mubr.f32.gmra.mrb[0].mxu0 %v2651
    %v2988 = vpop.f32.mrb[0].mxu0
    %v2989 = vadd.f32 %v2847, %v2988
    %v2990 = vpop.f32.mrb[0].mxu0
    %v2991 = vadd.f32 %v2849, %v2990
    %2992 = vdwg.mxu0
    %2993 = vmatprep.subr.mxu0 %v2655
    %2994 = vmatpush1.msra.mxu0 %v2654
    %2995 = vmatprep.subr.mxu0 %v2659
    %2996 = vmatpush1.msra.mxu0 %v2658
    %2997 = vmatprep.subr.mxu0 %v2663
    %2998 = vmatpush1.msra.mxu0 %v2662
    %2999 = vmatprep.subr.mxu0 %v2667
    %3000 = vmatpush1.msra.mxu0 %v2666
    %3001 = vmatprep.subr.mxu0 %v2671
    %3002 = vmatpush1.msra.mxu0 %v2670
    %3003 = vmatprep.subr.mxu0 %v2675
    %3004 = vmatpush1.msra.mxu0 %v2674
    %3005 = vmatprep.subr.mxu0 %v2679
    %3006 = vmatpush1.msra.mxu0 %v2678
    %3007 = vmatprep.subr.mxu0 %v2683
    %3008 = vmatpush1.msra.mxu0 %v2682
    %3009 = vmatprep.subr.mxu0 %v2687
    %3010 = vmatpush1.msra.mxu0 %v2686
    %3011 = vmatprep.subr.mxu0 %v2691
    %3012 = vmatpush1.msra.mxu0 %v2690
    %3013 = vmatprep.subr.mxu0 %v2695
    %3014 = vmatpush1.msra.mxu0 %v2694
    %3015 = vmatprep.subr.mxu0 %v2699
    %3016 = vmatpush1.msra.mxu0 %v2698
    %3017 = vmatprep.subr.mxu0 %v2703
    %3018 = vmatpush1.msra.mxu0 %v2702
    %3019 = vmatprep.subr.mxu0 %v2707
    %3020 = vmatpush1.msra.mxu0 %v2706
    %3021 = vmatprep.subr.mxu0 %v2711
    %3022 = vmatpush1.msra.mxu0 %v2710
    %3023 = vmatprep.subr.mxu0 %v2715
    %3024 = vmatpush1.msra.mxu0 %v2714
    %3025 = vmatprep.subr.mxu0 0.0
    %3026 = vmatpush1.msra.mxu0 0.0
    %3027 = vmatprep.subr.mxu0 0.0
    %3028 = vmatpush1.msra.mxu0 0.0
    %3029 = vmatprep.subr.mxu0 0.0
    %3030 = vmatpush1.msra.mxu0 0.0
    %3031 = vmatprep.subr.mxu0 0.0
    %3032 = vmatpush1.msra.mxu0 0.0
    %3033 = vmatprep.subr.mxu0 0.0
    %3034 = vmatpush1.msra.mxu0 0.0
    %3035 = vmatprep.subr.mxu0 0.0
    %3036 = vmatpush1.msra.mxu0 0.0
    %3037 = vmatprep.subr.mxu0 0.0
    %3038 = vmatpush1.msra.mxu0 0.0
    %3039 = vmatprep.subr.mxu0 0.0
    %3040 = vmatpush1.msra.mxu0 0.0
    %3041 = vmatprep.subr.mxu0 0.0
    %3042 = vmatpush1.msra.mxu0 0.0
    %3043 = vmatprep.subr.mxu0 0.0
    %3044 = vmatpush1.msra.mxu0 0.0
    %3045 = vmatprep.subr.mxu0 0.0
    %3046 = vmatpush1.msra.mxu0 0.0
    %3047 = vmatprep.subr.mxu0 0.0
    %3048 = vmatpush1.msra.mxu0 0.0
    %3049 = vmatprep.subr.mxu0 0.0
    %3050 = vmatpush1.msra.mxu0 0.0
    %3051 = vmatprep.subr.mxu0 0.0
    %3052 = vmatpush1.msra.mxu0 0.0
    %3053 = vmatprep.subr.mxu0 0.0
    %3054 = vmatpush1.msra.mxu0 0.0
    %3055 = vmatprep.subr.mxu0 0.0
    %3056 = vmatpush1.msra.mxu0 0.0
    %3057 = vmatprep.mubr.f32.mxu0 0.0
    %3058 = vmatmul.mubr.f32.gmra.mrb[0].mxu0 %v2651
    %v3059 = vpop.f32.mrb[0].mxu0
    %v3060 = vadd.f32 %v2918, %v3059
    %v3061 = vpop.f32.mrb[0].mxu0
    %v3062 = vadd.f32 %v2920, %v3061
    %3063 = vdwg.mxu0
    %v3064 = vld [vmem:[%s4] sm:$0xf]
    %v3066 = vlaneseq
    %v3067 = vshrl.u32 %v3066, 7
    %v3068 = vsub.s32 0, %v3067
    %v3069 = vrot.slane %v3064, %v3068
    %v3070 = vlaneseq
    %v3071 = vshrl.u32 %v3070, 7
    %v3072 = vsub.s32 1, %v3071
    %v3073 = vrot.slane %v3064, %v3072
    %v3074 = vlaneseq
    %v3075 = vshrl.u32 %v3074, 7
    %v3076 = vsub.s32 2, %v3075
    %v3077 = vrot.slane %v3064, %v3076
    %v3078 = vlaneseq
    %v3079 = vshrl.u32 %v3078, 7
    %v3080 = vsub.s32 3, %v3079
    %v3081 = vrot.slane %v3064, %v3080
    %v3086 = vadd.f32 %v2989, %v3069
    %v3087 = vadd.f32 %v2991, %v3073
    %v3088 = vadd.f32 %v3060, %v3077
    %v3089 = vadd.f32 %v3062, %v3081
    %v3090 = vmul.f32 %v3086, 0.5
    %v3091 = vtanh.pop %v3090
    %v3092 = vmul.f32 %v3091, 0.5
    %v3093 = vadd.f32 %v3092, 0.5
    %v3094 = vmul.f32 %v3087, 0.5
    %v3095 = vtanh.pop %v3094
    %v3096 = vmul.f32 %v3095, 0.5
    %v3097 = vadd.f32 %v3096, 0.5
    %v3098 = vtanh.pop %v3088
    %v3099 = vmul.f32 %v3089, 0.5
    %v3100 = vtanh.pop %v3099
    %v3101 = vmul.f32 %v3100, 0.5
    %v3102 = vadd.f32 %v3101, 0.5
    %v3103 = vmul.f32 %v3097, %v2321
    %v3104 = vmul.f32 %v3093, %v3098
    %v3105 = vadd.f32 %v3103, %v3104
    %v3106 = vtanh.pop %v3105
    %v3107 = vmul.f32 %v3102, %v3106
    %v3108 = vld [vmem:[%s5] sm:$0xff]
    %v3109 = vld [vmem:[%s5 + $0x8] sm:$0xff]
    %v3110 = vld [vmem:[%s5 + $0x10] sm:$0xff]
    %v3111 = vld [vmem:[%s5 + $0x18] sm:$0xff]
    %v3112 = vld [vmem:[%s5 + $0x20] sm:$0xff]
    %v3113 = vld [vmem:[%s5 + $0x28] sm:$0xff]
    %v3114 = vld [vmem:[%s5 + $0x30] sm:$0xff]
    %v3115 = vld [vmem:[%s5 + $0x38] sm:$0xff]
    %v3116 = vld [vmem:[%s5 + $0x40] sm:$0xff]
    %v3117 = vld [vmem:[%s5 + $0x48] sm:$0xff]
    %v3118 = vld [vmem:[%s5 + $0x50] sm:$0xff]
    %v3119 = vld [vmem:[%s5 + $0x58] sm:$0xff]
    %v3120 = vld [vmem:[%s5 + $0x60] sm:$0xff]
    %v3121 = vld [vmem:[%s5 + $0x68] sm:$0xff]
    %v3122 = vld [vmem:[%s5 + $0x70] sm:$0xff]
    %v3123 = vld [vmem:[%s5 + $0x78] sm:$0xff]
    %v3124 = vld [vmem:[#allocation6] sm:$0x1]
    %v3126 = vlaneseq
    %v3127 = vshrl.u32 %v3126, 7
    %v3128 = vsub.s32 0, %v3127
    %v3129 = vrot.slane %v3124, %v3128
    %3131 = vmatprep.subr.mxu0 0.0
    %3132 = vmatpush1.msra.mxu0 %v3108
    %3133 = vmatprep.subr.mxu0 0.0
    %3134 = vmatpush1.msra.mxu0 %v3109
    %3135 = vmatprep.subr.mxu0 0.0
    %3136 = vmatpush1.msra.mxu0 %v3110
    %3137 = vmatprep.subr.mxu0 0.0
    %3138 = vmatpush1.msra.mxu0 %v3111
    %3139 = vmatprep.subr.mxu0 0.0
    %3140 = vmatpush1.msra.mxu0 %v3112
    %3141 = vmatprep.subr.mxu0 0.0
    %3142 = vmatpush1.msra.mxu0 %v3113
    %3143 = vmatprep.subr.mxu0 0.0
    %3144 = vmatpush1.msra.mxu0 %v3114
    %3145 = vmatprep.subr.mxu0 0.0
    %3146 = vmatpush1.msra.mxu0 %v3115
    %3147 = vmatprep.subr.mxu0 0.0
    %3148 = vmatpush1.msra.mxu0 %v3116
    %3149 = vmatprep.subr.mxu0 0.0
    %3150 = vmatpush1.msra.mxu0 %v3117
    %3151 = vmatprep.subr.mxu0 0.0
    %3152 = vmatpush1.msra.mxu0 %v3118
    %3153 = vmatprep.subr.mxu0 0.0
    %3154 = vmatpush1.msra.mxu0 %v3119
    %3155 = vmatprep.subr.mxu0 0.0
    %3156 = vmatpush1.msra.mxu0 %v3120
    %3157 = vmatprep.subr.mxu0 0.0
    %3158 = vmatpush1.msra.mxu0 %v3121
    %3159 = vmatprep.subr.mxu0 0.0
    %3160 = vmatpush1.msra.mxu0 %v3122
    %3161 = vmatprep.subr.mxu0 0.0
    %3162 = vmatpush1.msra.mxu0 %v3123
    %3163 = vmatprep.subr.mxu0 0.0
    %3164 = vmatpush1.msra.mxu0 0.0
    %3165 = vmatprep.subr.mxu0 0.0
    %3166 = vmatpush1.msra.mxu0 0.0
    %3167 = vmatprep.subr.mxu0 0.0
    %3168 = vmatpush1.msra.mxu0 0.0
    %3169 = vmatprep.subr.mxu0 0.0
    %3170 = vmatpush1.msra.mxu0 0.0
    %3171 = vmatprep.subr.mxu0 0.0
    %3172 = vmatpush1.msra.mxu0 0.0
    %3173 = vmatprep.subr.mxu0 0.0
    %3174 = vmatpush1.msra.mxu0 0.0
    %3175 = vmatprep.subr.mxu0 0.0
    %3176 = vmatpush1.msra.mxu0 0.0
    %3177 = vmatprep.subr.mxu0 0.0
    %3178 = vmatpush1.msra.mxu0 0.0
    %3179 = vmatprep.subr.mxu0 0.0
    %3180 = vmatpush1.msra.mxu0 0.0
    %3181 = vmatprep.subr.mxu0 0.0
    %3182 = vmatpush1.msra.mxu0 0.0
    %3183 = vmatprep.subr.mxu0 0.0
    %3184 = vmatpush1.msra.mxu0 0.0
    %3185 = vmatprep.subr.mxu0 0.0
    %3186 = vmatpush1.msra.mxu0 0.0
    %3187 = vmatprep.subr.mxu0 0.0
    %3188 = vmatpush1.msra.mxu0 0.0
    %3189 = vmatprep.subr.mxu0 0.0
    %3190 = vmatpush1.msra.mxu0 0.0
    %3191 = vmatprep.subr.mxu0 0.0
    %3192 = vmatpush1.msra.mxu0 0.0
    %3193 = vmatprep.subr.mxu0 0.0
    %3194 = vmatpush1.msra.mxu0 0.0
    %3195 = vmatprep.mubr.f32.mxu0 0.0
    %3196 = vmatmul.mubr.f32.gmra.mrb[0].mxu0 %v3107
    %v3197 = vpop.f32.mrb[0].mxu0
    %v3198 = vadd.f32 %v3129, %v3197
    %v3199 = vpop.f32.mrb[0].mxu0
    %3200 = vdwg.mxu0
    %s3201 = scalar_lea.vmem %s7, 24
    %3202 = vst.msk [vmem:[%s3201] sm:$0xff] %vm849, %v3198
    %s3203 = scalar_lea.vmem %s0, 128
    %v3204 = vld [vmem:[%s3203] sm:$0xff]
    %v3205 = vld [vmem:[%s3203 + $0x8] sm:$0xff]
    %v3206 = vld [vmem:[%s3203 + $0x10] sm:$0xff]
    %v3207 = vld [vmem:[%s3203 + $0x18] sm:$0xff]
    %v3208 = vld [vmem:[%s1] sm:$0xff]
    %v3209 = vld [vmem:[%s1 + $0x8] sm:$0xff]
    %v3210 = vld [vmem:[%s1 + $0x10] sm:$0xff]
    %v3211 = vld [vmem:[%s1 + $0x18] sm:$0xff]
    %v3212 = vld [vmem:[%s1 + $0x20] sm:$0xff]
    %v3213 = vld [vmem:[%s1 + $0x28] sm:$0xff]
    %v3214 = vld [vmem:[%s1 + $0x30] sm:$0xff]
    %v3215 = vld [vmem:[%s1 + $0x38] sm:$0xff]
    %v3216 = vld [vmem:[%s1 + $0x40] sm:$0xff]
    %v3217 = vld [vmem:[%s1 + $0x48] sm:$0xff]
    %v3218 = vld [vmem:[%s1 + $0x50] sm:$0xff]
    %v3219 = vld [vmem:[%s1 + $0x58] sm:$0xff]
    %v3220 = vld [vmem:[%s1 + $0x60] sm:$0xff]
    %v3221 = vld [vmem:[%s1 + $0x68] sm:$0xff]
    %v3222 = vld [vmem:[%s1 + $0x70] sm:$0xff]
    %v3223 = vld [vmem:[%s1 + $0x78] sm:$0xff]
    %v3224 = vld [vmem:[%s1 + $0x80] sm:$0xff]
    %v3225 = vld [vmem:[%s1 + $0x88] sm:$0xff]
    %v3226 = vld [vmem:[%s1 + $0x90] sm:$0xff]
    %v3227 = vld [vmem:[%s1 + $0x98] sm:$0xff]
    %v3228 = vld [vmem:[%s1 + $0xa0] sm:$0xff]
    %v3229 = vld [vmem:[%s1 + $0xa8] sm:$0xff]
    %v3230 = vld [vmem:[%s1 + $0xb0] sm:$0xff]
    %v3231 = vld [vmem:[%s1 + $0xb8] sm:$0xff]
    %v3232 = vld [vmem:[%s1 + $0xc0] sm:$0xff]
    %v3233 = vld [vmem:[%s1 + $0xc8] sm:$0xff]
    %v3234 = vld [vmem:[%s1 + $0xd0] sm:$0xff]
    %v3235 = vld [vmem:[%s1 + $0xd8] sm:$0xff]
    %v3236 = vld [vmem:[%s1 + $0xe0] sm:$0xff]
    %v3237 = vld [vmem:[%s1 + $0xe8] sm:$0xff]
    %v3238 = vld [vmem:[%s1 + $0xf0] sm:$0xff]
    %v3239 = vld [vmem:[%s1 + $0xf8] sm:$0xff]
    %v3240 = vld [vmem:[%s1 + $0x100] sm:$0xff]
    %v3241 = vld [vmem:[%s1 + $0x108] sm:$0xff]
    %v3242 = vld [vmem:[%s1 + $0x110] sm:$0xff]
    %v3243 = vld [vmem:[%s1 + $0x118] sm:$0xff]
    %v3244 = vld [vmem:[%s1 + $0x120] sm:$0xff]
    %v3245 = vld [vmem:[%s1 + $0x128] sm:$0xff]
    %v3246 = vld [vmem:[%s1 + $0x130] sm:$0xff]
    %v3247 = vld [vmem:[%s1 + $0x138] sm:$0xff]
    %v3248 = vld [vmem:[%s1 + $0x140] sm:$0xff]
    %v3249 = vld [vmem:[%s1 + $0x148] sm:$0xff]
    %v3250 = vld [vmem:[%s1 + $0x150] sm:$0xff]
    %v3251 = vld [vmem:[%s1 + $0x158] sm:$0xff]
    %v3252 = vld [vmem:[%s1 + $0x160] sm:$0xff]
    %v3253 = vld [vmem:[%s1 + $0x168] sm:$0xff]
    %v3254 = vld [vmem:[%s1 + $0x170] sm:$0xff]
    %v3255 = vld [vmem:[%s1 + $0x178] sm:$0xff]
    %v3256 = vld [vmem:[%s1 + $0x180] sm:$0xff]
    %v3257 = vld [vmem:[%s1 + $0x188] sm:$0xff]
    %v3258 = vld [vmem:[%s1 + $0x190] sm:$0xff]
    %v3259 = vld [vmem:[%s1 + $0x198] sm:$0xff]
    %v3260 = vld [vmem:[%s1 + $0x1a0] sm:$0xff]
    %v3261 = vld [vmem:[%s1 + $0x1a8] sm:$0xff]
    %v3262 = vld [vmem:[%s1 + $0x1b0] sm:$0xff]
    %v3263 = vld [vmem:[%s1 + $0x1b8] sm:$0xff]
    %v3264 = vld [vmem:[%s1 + $0x1c0] sm:$0xff]
    %v3265 = vld [vmem:[%s1 + $0x1c8] sm:$0xff]
    %v3266 = vld [vmem:[%s1 + $0x1d0] sm:$0xff]
    %v3267 = vld [vmem:[%s1 + $0x1d8] sm:$0xff]
    %v3268 = vld [vmem:[%s1 + $0x1e0] sm:$0xff]
    %v3269 = vld [vmem:[%s1 + $0x1e8] sm:$0xff]
    %v3270 = vld [vmem:[%s1 + $0x1f0] sm:$0xff]
    %v3271 = vld [vmem:[%s1 + $0x1f8] sm:$0xff]
    %3272 = vmatprep.subr.mxu0 %v3209
    %3273 = vmatpush1.msra.mxu0 %v3208
    %3274 = vmatprep.subr.mxu0 %v3213
    %3275 = vmatpush1.msra.mxu0 %v3212
    %3276 = vmatprep.subr.mxu0 %v3217
    %3277 = vmatpush1.msra.mxu0 %v3216
    %3278 = vmatprep.subr.mxu0 %v3221
    %3279 = vmatpush1.msra.mxu0 %v3220
    %3280 = vmatprep.subr.mxu0 %v3225
    %3281 = vmatpush1.msra.mxu0 %v3224
    %3282 = vmatprep.subr.mxu0 %v3229
    %3283 = vmatpush1.msra.mxu0 %v3228
    %3284 = vmatprep.subr.mxu0 %v3233
    %3285 = vmatpush1.msra.mxu0 %v3232
    %3286 = vmatprep.subr.mxu0 %v3237
    %3287 = vmatpush1.msra.mxu0 %v3236
    %3288 = vmatprep.subr.mxu0 %v3241
    %3289 = vmatpush1.msra.mxu0 %v3240
    %3290 = vmatprep.subr.mxu0 %v3245
    %3291 = vmatpush1.msra.mxu0 %v3244
    %3292 = vmatprep.subr.mxu0 %v3249
    %3293 = vmatpush1.msra.mxu0 %v3248
    %3294 = vmatprep.subr.mxu0 %v3253
    %3295 = vmatpush1.msra.mxu0 %v3252
    %3296 = vmatprep.subr.mxu0 %v3257
    %3297 = vmatpush1.msra.mxu0 %v3256
    %3298 = vmatprep.subr.mxu0 %v3261
    %3299 = vmatpush1.msra.mxu0 %v3260
    %3300 = vmatprep.subr.mxu0 %v3265
    %3301 = vmatpush1.msra.mxu0 %v3264
    %3302 = vmatprep.subr.mxu0 %v3269
    %3303 = vmatpush1.msra.mxu0 %v3268
    %3304 = vmatprep.subr.mxu0 0.0
    %3305 = vmatpush1.msra.mxu0 0.0
    %3306 = vmatprep.subr.mxu0 0.0
    %3307 = vmatpush1.msra.mxu0 0.0
    %3308 = vmatprep.subr.mxu0 0.0
    %3309 = vmatpush1.msra.mxu0 0.0
    %3310 = vmatprep.subr.mxu0 0.0
    %3311 = vmatpush1.msra.mxu0 0.0
    %3312 = vmatprep.subr.mxu0 0.0
    %3313 = vmatpush1.msra.mxu0 0.0
    %3314 = vmatprep.subr.mxu0 0.0
    %3315 = vmatpush1.msra.mxu0 0.0
    %3316 = vmatprep.subr.mxu0 0.0
    %3317 = vmatpush1.msra.mxu0 0.0
    %3318 = vmatprep.subr.mxu0 0.0
    %3319 = vmatpush1.msra.mxu0 0.0
    %3320 = vmatprep.subr.mxu0 0.0
    %3321 = vmatpush1.msra.mxu0 0.0
    %3322 = vmatprep.subr.mxu0 0.0
    %3323 = vmatpush1.msra.mxu0 0.0
    %3324 = vmatprep.subr.mxu0 0.0
    %3325 = vmatpush1.msra.mxu0 0.0
    %3326 = vmatprep.subr.mxu0 0.0
    %3327 = vmatpush1.msra.mxu0 0.0
    %3328 = vmatprep.subr.mxu0 0.0
    %3329 = vmatpush1.msra.mxu0 0.0
    %3330 = vmatprep.subr.mxu0 0.0
    %3331 = vmatpush1.msra.mxu0 0.0
    %3332 = vmatprep.subr.mxu0 0.0
    %3333 = vmatpush1.msra.mxu0 0.0
    %3334 = vmatprep.subr.mxu0 0.0
    %3335 = vmatpush1.msra.mxu0 0.0
    %3336 = vmatprep.mubr.f32.mxu0 0.0
    %3337 = vmatmul.mubr.f32.gmra.mrb[0].mxu0 %v2651
    %v3338 = vpop.f32.mrb[0].mxu0
    %v3339 = vadd.f32 0.0, %v3338
    %v3340 = vpop.f32.mrb[0].mxu0
    %v3341 = vadd.f32 0.0, %v3340
    %3342 = vdwg.mxu0
    %3343 = vmatprep.subr.mxu0 %v3211
    %3344 = vmatpush1.msra.mxu0 %v3210
    %3345 = vmatprep.subr.mxu0 %v3215
    %3346 = vmatpush1.msra.mxu0 %v3214
    %3347 = vmatprep.subr.mxu0 %v3219
    %3348 = vmatpush1.msra.mxu0 %v3218
    %3349 = vmatprep.subr.mxu0 %v3223
    %3350 = vmatpush1.msra.mxu0 %v3222
    %3351 = vmatprep.subr.mxu0 %v3227
    %3352 = vmatpush1.msra.mxu0 %v3226
    %3353 = vmatprep.subr.mxu0 %v3231
    %3354 = vmatpush1.msra.mxu0 %v3230
    %3355 = vmatprep.subr.mxu0 %v3235
    %3356 = vmatpush1.msra.mxu0 %v3234
    %3357 = vmatprep.subr.mxu0 %v3239
    %3358 = vmatpush1.msra.mxu0 %v3238
    %3359 = vmatprep.subr.mxu0 %v3243
    %3360 = vmatpush1.msra.mxu0 %v3242
    %3361 = vmatprep.subr.mxu0 %v3247
    %3362 = vmatpush1.msra.mxu0 %v3246
    %3363 = vmatprep.subr.mxu0 %v3251
    %3364 = vmatpush1.msra.mxu0 %v3250
    %3365 = vmatprep.subr.mxu0 %v3255
    %3366 = vmatpush1.msra.mxu0 %v3254
    %3367 = vmatprep.subr.mxu0 %v3259
    %3368 = vmatpush1.msra.mxu0 %v3258
    %3369 = vmatprep.subr.mxu0 %v3263
    %3370 = vmatpush1.msra.mxu0 %v3262
    %3371 = vmatprep.subr.mxu0 %v3267
    %3372 = vmatpush1.msra.mxu0 %v3266
    %3373 = vmatprep.subr.mxu0 %v3271
    %3374 = vmatpush1.msra.mxu0 %v3270
    %3375 = vmatprep.subr.mxu0 0.0
    %3376 = vmatpush1.msra.mxu0 0.0
    %3377 = vmatprep.subr.mxu0 0.0
    %3378 = vmatpush1.msra.mxu0 0.0
    %3379 = vmatprep.subr.mxu0 0.0
    %3380 = vmatpush1.msra.mxu0 0.0
    %3381 = vmatprep.subr.mxu0 0.0
    %3382 = vmatpush1.msra.mxu0 0.0
    %3383 = vmatprep.subr.mxu0 0.0
    %3384 = vmatpush1.msra.mxu0 0.0
    %3385 = vmatprep.subr.mxu0 0.0
    %3386 = vmatpush1.msra.mxu0 0.0
    %3387 = vmatprep.subr.mxu0 0.0
    %3388 = vmatpush1.msra.mxu0 0.0
    %3389 = vmatprep.subr.mxu0 0.0
    %3390 = vmatpush1.msra.mxu0 0.0
    %3391 = vmatprep.subr.mxu0 0.0
    %3392 = vmatpush1.msra.mxu0 0.0
    %3393 = vmatprep.subr.mxu0 0.0
    %3394 = vmatpush1.msra.mxu0 0.0
    %3395 = vmatprep.subr.mxu0 0.0
    %3396 = vmatpush1.msra.mxu0 0.0
    %3397 = vmatprep.subr.mxu0 0.0
    %3398 = vmatpush1.msra.mxu0 0.0
    %3399 = vmatprep.subr.mxu0 0.0
    %3400 = vmatpush1.msra.mxu0 0.0
    %3401 = vmatprep.subr.mxu0 0.0
    %3402 = vmatpush1.msra.mxu0 0.0
    %3403 = vmatprep.subr.mxu0 0.0
    %3404 = vmatpush1.msra.mxu0 0.0
    %3405 = vmatprep.subr.mxu0 0.0
    %3406 = vmatpush1.msra.mxu0 0.0
    %3407 = vmatprep.mubr.f32.mxu0 0.0
    %3408 = vmatmul.mubr.f32.gmra.mrb[0].mxu0 %v2651
    %v3409 = vpop.f32.mrb[0].mxu0
    %v3410 = vadd.f32 0.0, %v3409
    %v3411 = vpop.f32.mrb[0].mxu0
    %v3412 = vadd.f32 0.0, %v3411
    %3413 = vdwg.mxu0
    %v3414 = vadd.f32 %v3204, %v3339
    %v3415 = vadd.f32 %v3205, %v3341
    %v3416 = vadd.f32 %v3206, %v3410
    %v3417 = vadd.f32 %v3207, %v3412
    %v3418 = vmul.f32 %v3414, 0.5
    %v3419 = vtanh.pop %v3418
    %v3420 = vmul.f32 %v3419, 0.5
    %v3421 = vadd.f32 %v3420, 0.5
    %v3422 = vmul.f32 %v3415, 0.5
    %v3423 = vtanh.pop %v3422
    %v3424 = vmul.f32 %v3423, 0.5
    %v3425 = vadd.f32 %v3424, 0.5
    %v3426 = vtanh.pop %v3416
    %v3427 = vmul.f32 %v3417, 0.5
    %v3428 = vtanh.pop %v3427
    %v3429 = vmul.f32 %v3428, 0.5
    %v3430 = vadd.f32 %v3429, 0.5
    %v3431 = vmul.f32 %v3425, %v2649
    %v3432 = vmul.f32 %v3421, %v3426
    %v3433 = vadd.f32 %v3431, %v3432
    %v3434 = vtanh.pop %v3433
    %v3435 = vmul.f32 %v3430, %v3434
    %v3436 = vld [vmem:[#allocation7] sm:$0xff]
    %v3437 = vld [vmem:[#allocation7 + $0x8] sm:$0xff]
    %v3438 = vld [vmem:[#allocation7 + $0x10] sm:$0xff]
    %v3439 = vld [vmem:[#allocation7 + $0x18] sm:$0xff]
    %v3440 = vld [vmem:[#allocation7 + $0x20] sm:$0xff]
    %v3441 = vld [vmem:[#allocation7 + $0x28] sm:$0xff]
    %v3442 = vld [vmem:[#allocation7 + $0x30] sm:$0xff]
    %v3443 = vld [vmem:[#allocation7 + $0x38] sm:$0xff]
    %v3444 = vld [vmem:[#allocation7 + $0x40] sm:$0xff]
    %v3445 = vld [vmem:[#allocation7 + $0x48] sm:$0xff]
    %v3446 = vld [vmem:[#allocation7 + $0x50] sm:$0xff]
    %v3447 = vld [vmem:[#allocation7 + $0x58] sm:$0xff]
    %v3448 = vld [vmem:[#allocation7 + $0x60] sm:$0xff]
    %v3449 = vld [vmem:[#allocation7 + $0x68] sm:$0xff]
    %v3450 = vld [vmem:[#allocation7 + $0x70] sm:$0xff]
    %v3451 = vld [vmem:[#allocation7 + $0x78] sm:$0xff]
    %v3452 = vld [vmem:[#allocation7 + $0x80] sm:$0xff]
    %v3453 = vld [vmem:[#allocation7 + $0x88] sm:$0xff]
    %v3454 = vld [vmem:[#allocation7 + $0x90] sm:$0xff]
    %v3455 = vld [vmem:[#allocation7 + $0x98] sm:$0xff]
    %v3456 = vld [vmem:[#allocation7 + $0xa0] sm:$0xff]
    %v3457 = vld [vmem:[#allocation7 + $0xa8] sm:$0xff]
    %v3458 = vld [vmem:[#allocation7 + $0xb0] sm:$0xff]
    %v3459 = vld [vmem:[#allocation7 + $0xb8] sm:$0xff]
    %v3460 = vld [vmem:[#allocation7 + $0xc0] sm:$0xff]
    %v3461 = vld [vmem:[#allocation7 + $0xc8] sm:$0xff]
    %v3462 = vld [vmem:[#allocation7 + $0xd0] sm:$0xff]
    %v3463 = vld [vmem:[#allocation7 + $0xd8] sm:$0xff]
    %v3464 = vld [vmem:[#allocation7 + $0xe0] sm:$0xff]
    %v3465 = vld [vmem:[#allocation7 + $0xe8] sm:$0xff]
    %v3466 = vld [vmem:[#allocation7 + $0xf0] sm:$0xff]
    %v3467 = vld [vmem:[#allocation7 + $0xf8] sm:$0xff]
    %v3468 = vld [vmem:[#allocation7 + $0x100] sm:$0xff]
    %v3469 = vld [vmem:[#allocation7 + $0x108] sm:$0xff]
    %v3470 = vld [vmem:[#allocation7 + $0x110] sm:$0xff]
    %v3471 = vld [vmem:[#allocation7 + $0x118] sm:$0xff]
    %v3472 = vld [vmem:[#allocation7 + $0x120] sm:$0xff]
    %v3473 = vld [vmem:[#allocation7 + $0x128] sm:$0xff]
    %v3474 = vld [vmem:[#allocation7 + $0x130] sm:$0xff]
    %v3475 = vld [vmem:[#allocation7 + $0x138] sm:$0xff]
    %v3476 = vld [vmem:[#allocation7 + $0x140] sm:$0xff]
    %v3477 = vld [vmem:[#allocation7 + $0x148] sm:$0xff]
    %v3478 = vld [vmem:[#allocation7 + $0x150] sm:$0xff]
    %v3479 = vld [vmem:[#allocation7 + $0x158] sm:$0xff]
    %v3480 = vld [vmem:[#allocation7 + $0x160] sm:$0xff]
    %v3481 = vld [vmem:[#allocation7 + $0x168] sm:$0xff]
    %v3482 = vld [vmem:[#allocation7 + $0x170] sm:$0xff]
    %v3483 = vld [vmem:[#allocation7 + $0x178] sm:$0xff]
    %v3484 = vld [vmem:[#allocation7 + $0x180] sm:$0xff]
    %v3485 = vld [vmem:[#allocation7 + $0x188] sm:$0xff]
    %v3486 = vld [vmem:[#allocation7 + $0x190] sm:$0xff]
    %v3487 = vld [vmem:[#allocation7 + $0x198] sm:$0xff]
    %v3488 = vld [vmem:[#allocation7 + $0x1a0] sm:$0xff]
    %v3489 = vld [vmem:[#allocation7 + $0x1a8] sm:$0xff]
    %v3490 = vld [vmem:[#allocation7 + $0x1b0] sm:$0xff]
    %v3491 = vld [vmem:[#allocation7 + $0x1b8] sm:$0xff]
    %v3492 = vld [vmem:[#allocation7 + $0x1c0] sm:$0xff]
    %v3493 = vld [vmem:[#allocation7 + $0x1c8] sm:$0xff]
    %v3494 = vld [vmem:[#allocation7 + $0x1d0] sm:$0xff]
    %v3495 = vld [vmem:[#allocation7 + $0x1d8] sm:$0xff]
    %v3496 = vld [vmem:[#allocation7 + $0x1e0] sm:$0xff]
    %v3497 = vld [vmem:[#allocation7 + $0x1e8] sm:$0xff]
    %v3498 = vld [vmem:[#allocation7 + $0x1f0] sm:$0xff]
    %v3499 = vld [vmem:[#allocation7 + $0x1f8] sm:$0xff]
    %v3500 = vld [vmem:[#allocation9] sm:$0xff]
    %v3501 = vld [vmem:[#allocation9 + $0x8] sm:$0xff]
    %v3502 = vld [vmem:[#allocation9 + $0x10] sm:$0xff]
    %v3503 = vld [vmem:[#allocation9 + $0x18] sm:$0xff]
    %v3504 = vld [vmem:[#allocation9 + $0x20] sm:$0xff]
    %v3505 = vld [vmem:[#allocation9 + $0x28] sm:$0xff]
    %v3506 = vld [vmem:[#allocation9 + $0x30] sm:$0xff]
    %v3507 = vld [vmem:[#allocation9 + $0x38] sm:$0xff]
    %v3508 = vld [vmem:[#allocation9 + $0x40] sm:$0xff]
    %v3509 = vld [vmem:[#allocation9 + $0x48] sm:$0xff]
    %v3510 = vld [vmem:[#allocation9 + $0x50] sm:$0xff]
    %v3511 = vld [vmem:[#allocation9 + $0x58] sm:$0xff]
    %v3512 = vld [vmem:[#allocation9 + $0x60] sm:$0xff]
    %v3513 = vld [vmem:[#allocation9 + $0x68] sm:$0xff]
    %v3514 = vld [vmem:[#allocation9 + $0x70] sm:$0xff]
    %v3515 = vld [vmem:[#allocation9 + $0x78] sm:$0xff]
    %v3516 = vld [vmem:[#allocation9 + $0x80] sm:$0xff]
    %v3517 = vld [vmem:[#allocation9 + $0x88] sm:$0xff]
    %v3518 = vld [vmem:[#allocation9 + $0x90] sm:$0xff]
    %v3519 = vld [vmem:[#allocation9 + $0x98] sm:$0xff]
    %v3520 = vld [vmem:[#allocation9 + $0xa0] sm:$0xff]
    %v3521 = vld [vmem:[#allocation9 + $0xa8] sm:$0xff]
    %v3522 = vld [vmem:[#allocation9 + $0xb0] sm:$0xff]
    %v3523 = vld [vmem:[#allocation9 + $0xb8] sm:$0xff]
    %v3524 = vld [vmem:[#allocation9 + $0xc0] sm:$0xff]
    %v3525 = vld [vmem:[#allocation9 + $0xc8] sm:$0xff]
    %v3526 = vld [vmem:[#allocation9 + $0xd0] sm:$0xff]
    %v3527 = vld [vmem:[#allocation9 + $0xd8] sm:$0xff]
    %v3528 = vld [vmem:[#allocation9 + $0xe0] sm:$0xff]
    %v3529 = vld [vmem:[#allocation9 + $0xe8] sm:$0xff]
    %v3530 = vld [vmem:[#allocation9 + $0xf0] sm:$0xff]
    %v3531 = vld [vmem:[#allocation9 + $0xf8] sm:$0xff]
    %v3532 = vld [vmem:[#allocation9 + $0x100] sm:$0xff]
    %v3533 = vld [vmem:[#allocation9 + $0x108] sm:$0xff]
    %v3534 = vld [vmem:[#allocation9 + $0x110] sm:$0xff]
    %v3535 = vld [vmem:[#allocation9 + $0x118] sm:$0xff]
    %v3536 = vld [vmem:[#allocation9 + $0x120] sm:$0xff]
    %v3537 = vld [vmem:[#allocation9 + $0x128] sm:$0xff]
    %v3538 = vld [vmem:[#allocation9 + $0x130] sm:$0xff]
    %v3539 = vld [vmem:[#allocation9 + $0x138] sm:$0xff]
    %v3540 = vld [vmem:[#allocation9 + $0x140] sm:$0xff]
    %v3541 = vld [vmem:[#allocation9 + $0x148] sm:$0xff]
    %v3542 = vld [vmem:[#allocation9 + $0x150] sm:$0xff]
    %v3543 = vld [vmem:[#allocation9 + $0x158] sm:$0xff]
    %v3544 = vld [vmem:[#allocation9 + $0x160] sm:$0xff]
    %v3545 = vld [vmem:[#allocation9 + $0x168] sm:$0xff]
    %v3546 = vld [vmem:[#allocation9 + $0x170] sm:$0xff]
    %v3547 = vld [vmem:[#allocation9 + $0x178] sm:$0xff]
    %v3548 = vld [vmem:[#allocation9 + $0x180] sm:$0xff]
    %v3549 = vld [vmem:[#allocation9 + $0x188] sm:$0xff]
    %v3550 = vld [vmem:[#allocation9 + $0x190] sm:$0xff]
    %v3551 = vld [vmem:[#allocation9 + $0x198] sm:$0xff]
    %v3552 = vld [vmem:[#allocation9 + $0x1a0] sm:$0xff]
    %v3553 = vld [vmem:[#allocation9 + $0x1a8] sm:$0xff]
    %v3554 = vld [vmem:[#allocation9 + $0x1b0] sm:$0xff]
    %v3555 = vld [vmem:[#allocation9 + $0x1b8] sm:$0xff]
    %v3556 = vld [vmem:[#allocation9 + $0x1c0] sm:$0xff]
    %v3557 = vld [vmem:[#allocation9 + $0x1c8] sm:$0xff]
    %v3558 = vld [vmem:[#allocation9 + $0x1d0] sm:$0xff]
    %v3559 = vld [vmem:[#allocation9 + $0x1d8] sm:$0xff]
    %v3560 = vld [vmem:[#allocation9 + $0x1e0] sm:$0xff]
    %v3561 = vld [vmem:[#allocation9 + $0x1e8] sm:$0xff]
    %v3562 = vld [vmem:[#allocation9 + $0x1f0] sm:$0xff]
    %v3563 = vld [vmem:[#allocation9 + $0x1f8] sm:$0xff]
    %3564 = vmatprep.subr.mxu0 %v3501
    %3565 = vmatpush1.msra.mxu0 %v3500
    %3566 = vmatprep.subr.mxu0 %v3505
    %3567 = vmatpush1.msra.mxu0 %v3504
    %3568 = vmatprep.subr.mxu0 %v3509
    %3569 = vmatpush1.msra.mxu0 %v3508
    %3570 = vmatprep.subr.mxu0 %v3513
    %3571 = vmatpush1.msra.mxu0 %v3512
    %3572 = vmatprep.subr.mxu0 %v3517
    %3573 = vmatpush1.msra.mxu0 %v3516
    %3574 = vmatprep.subr.mxu0 %v3521
    %3575 = vmatpush1.msra.mxu0 %v3520
    %3576 = vmatprep.subr.mxu0 %v3525
    %3577 = vmatpush1.msra.mxu0 %v3524
    %3578 = vmatprep.subr.mxu0 %v3529
    %3579 = vmatpush1.msra.mxu0 %v3528
    %3580 = vmatprep.subr.mxu0 %v3533
    %3581 = vmatpush1.msra.mxu0 %v3532
    %3582 = vmatprep.subr.mxu0 %v3537
    %3583 = vmatpush1.msra.mxu0 %v3536
    %3584 = vmatprep.subr.mxu0 %v3541
    %3585 = vmatpush1.msra.mxu0 %v3540
    %3586 = vmatprep.subr.mxu0 %v3545
    %3587 = vmatpush1.msra.mxu0 %v3544
    %3588 = vmatprep.subr.mxu0 %v3549
    %3589 = vmatpush1.msra.mxu0 %v3548
    %3590 = vmatprep.subr.mxu0 %v3553
    %3591 = vmatpush1.msra.mxu0 %v3552
    %3592 = vmatprep.subr.mxu0 %v3557
    %3593 = vmatpush1.msra.mxu0 %v3556
    %3594 = vmatprep.subr.mxu0 %v3561
    %3595 = vmatpush1.msra.mxu0 %v3560
    %3596 = vmatprep.subr.mxu0 0.0
    %3597 = vmatpush1.msra.mxu0 0.0
    %3598 = vmatprep.subr.mxu0 0.0
    %3599 = vmatpush1.msra.mxu0 0.0
    %3600 = vmatprep.subr.mxu0 0.0
    %3601 = vmatpush1.msra.mxu0 0.0
    %3602 = vmatprep.subr.mxu0 0.0
    %3603 = vmatpush1.msra.mxu0 0.0
    %3604 = vmatprep.subr.mxu0 0.0
    %3605 = vmatpush1.msra.mxu0 0.0
    %3606 = vmatprep.subr.mxu0 0.0
    %3607 = vmatpush1.msra.mxu0 0.0
    %3608 = vmatprep.subr.mxu0 0.0
    %3609 = vmatpush1.msra.mxu0 0.0
    %3610 = vmatprep.subr.mxu0 0.0
    %3611 = vmatpush1.msra.mxu0 0.0
    %3612 = vmatprep.subr.mxu0 0.0
    %3613 = vmatpush1.msra.mxu0 0.0
    %3614 = vmatprep.subr.mxu0 0.0
    %3615 = vmatpush1.msra.mxu0 0.0
    %3616 = vmatprep.subr.mxu0 0.0
    %3617 = vmatpush1.msra.mxu0 0.0
    %3618 = vmatprep.subr.mxu0 0.0
    %3619 = vmatpush1.msra.mxu0 0.0
    %3620 = vmatprep.subr.mxu0 0.0
    %3621 = vmatpush1.msra.mxu0 0.0
    %3622 = vmatprep.subr.mxu0 0.0
    %3623 = vmatpush1.msra.mxu0 0.0
    %3624 = vmatprep.subr.mxu0 0.0
    %3625 = vmatpush1.msra.mxu0 0.0
    %3626 = vmatprep.subr.mxu0 0.0
    %3627 = vmatpush1.msra.mxu0 0.0
    %3628 = vmatprep.mubr.f32.mxu0 0.0
    %3629 = vmatmul.mubr.f32.gmra.mrb[0].mxu0 %v3107
    %v3630 = vpop.f32.mrb[0].mxu0
    %v3631 = vadd.f32 0.0, %v3630
    %v3632 = vpop.f32.mrb[0].mxu0
    %v3633 = vadd.f32 0.0, %v3632
    %3634 = vdwg.mxu0
    %3635 = vmatprep.subr.mxu0 %v3503
    %3636 = vmatpush1.msra.mxu0 %v3502
    %3637 = vmatprep.subr.mxu0 %v3507
    %3638 = vmatpush1.msra.mxu0 %v3506
    %3639 = vmatprep.subr.mxu0 %v3511
    %3640 = vmatpush1.msra.mxu0 %v3510
    %3641 = vmatprep.subr.mxu0 %v3515
    %3642 = vmatpush1.msra.mxu0 %v3514
    %3643 = vmatprep.subr.mxu0 %v3519
    %3644 = vmatpush1.msra.mxu0 %v3518
    %3645 = vmatprep.subr.mxu0 %v3523
    %3646 = vmatpush1.msra.mxu0 %v3522
    %3647 = vmatprep.subr.mxu0 %v3527
    %3648 = vmatpush1.msra.mxu0 %v3526
    %3649 = vmatprep.subr.mxu0 %v3531
    %3650 = vmatpush1.msra.mxu0 %v3530
    %3651 = vmatprep.subr.mxu0 %v3535
    %3652 = vmatpush1.msra.mxu0 %v3534
    %3653 = vmatprep.subr.mxu0 %v3539
    %3654 = vmatpush1.msra.mxu0 %v3538
    %3655 = vmatprep.subr.mxu0 %v3543
    %3656 = vmatpush1.msra.mxu0 %v3542
    %3657 = vmatprep.subr.mxu0 %v3547
    %3658 = vmatpush1.msra.mxu0 %v3546
    %3659 = vmatprep.subr.mxu0 %v3551
    %3660 = vmatpush1.msra.mxu0 %v3550
    %3661 = vmatprep.subr.mxu0 %v3555
    %3662 = vmatpush1.msra.mxu0 %v3554
    %3663 = vmatprep.subr.mxu0 %v3559
    %3664 = vmatpush1.msra.mxu0 %v3558
    %3665 = vmatprep.subr.mxu0 %v3563
    %3666 = vmatpush1.msra.mxu0 %v3562
    %3667 = vmatprep.subr.mxu0 0.0
    %3668 = vmatpush1.msra.mxu0 0.0
    %3669 = vmatprep.subr.mxu0 0.0
    %3670 = vmatpush1.msra.mxu0 0.0
    %3671 = vmatprep.subr.mxu0 0.0
    %3672 = vmatpush1.msra.mxu0 0.0
    %3673 = vmatprep.subr.mxu0 0.0
    %3674 = vmatpush1.msra.mxu0 0.0
    %3675 = vmatprep.subr.mxu0 0.0
    %3676 = vmatpush1.msra.mxu0 0.0
    %3677 = vmatprep.subr.mxu0 0.0
    %3678 = vmatpush1.msra.mxu0 0.0
    %3679 = vmatprep.subr.mxu0 0.0
    %3680 = vmatpush1.msra.mxu0 0.0
    %3681 = vmatprep.subr.mxu0 0.0
    %3682 = vmatpush1.msra.mxu0 0.0
    %3683 = vmatprep.subr.mxu0 0.0
    %3684 = vmatpush1.msra.mxu0 0.0
    %3685 = vmatprep.subr.mxu0 0.0
    %3686 = vmatpush1.msra.mxu0 0.0
    %3687 = vmatprep.subr.mxu0 0.0
    %3688 = vmatpush1.msra.mxu0 0.0
    %3689 = vmatprep.subr.mxu0 0.0
    %3690 = vmatpush1.msra.mxu0 0.0
    %3691 = vmatprep.subr.mxu0 0.0
    %3692 = vmatpush1.msra.mxu0 0.0
    %3693 = vmatprep.subr.mxu0 0.0
    %3694 = vmatpush1.msra.mxu0 0.0
    %3695 = vmatprep.subr.mxu0 0.0
    %3696 = vmatpush1.msra.mxu0 0.0
    %3697 = vmatprep.subr.mxu0 0.0
    %3698 = vmatpush1.msra.mxu0 0.0
    %3699 = vmatprep.mubr.f32.mxu0 0.0
    %3700 = vmatmul.mubr.f32.gmra.mrb[0].mxu0 %v3107
    %v3701 = vpop.f32.mrb[0].mxu0
    %v3702 = vadd.f32 0.0, %v3701
    %v3703 = vpop.f32.mrb[0].mxu0
    %v3704 = vadd.f32 0.0, %v3703
    %3705 = vdwg.mxu0
    %3706 = vmatprep.subr.mxu0 %v3437
    %3707 = vmatpush1.msra.mxu0 %v3436
    %3708 = vmatprep.subr.mxu0 %v3441
    %3709 = vmatpush1.msra.mxu0 %v3440
    %3710 = vmatprep.subr.mxu0 %v3445
    %3711 = vmatpush1.msra.mxu0 %v3444
    %3712 = vmatprep.subr.mxu0 %v3449
    %3713 = vmatpush1.msra.mxu0 %v3448
    %3714 = vmatprep.subr.mxu0 %v3453
    %3715 = vmatpush1.msra.mxu0 %v3452
    %3716 = vmatprep.subr.mxu0 %v3457
    %3717 = vmatpush1.msra.mxu0 %v3456
    %3718 = vmatprep.subr.mxu0 %v3461
    %3719 = vmatpush1.msra.mxu0 %v3460
    %3720 = vmatprep.subr.mxu0 %v3465
    %3721 = vmatpush1.msra.mxu0 %v3464
    %3722 = vmatprep.subr.mxu0 %v3469
    %3723 = vmatpush1.msra.mxu0 %v3468
    %3724 = vmatprep.subr.mxu0 %v3473
    %3725 = vmatpush1.msra.mxu0 %v3472
    %3726 = vmatprep.subr.mxu0 %v3477
    %3727 = vmatpush1.msra.mxu0 %v3476
    %3728 = vmatprep.subr.mxu0 %v3481
    %3729 = vmatpush1.msra.mxu0 %v3480
    %3730 = vmatprep.subr.mxu0 %v3485
    %3731 = vmatpush1.msra.mxu0 %v3484
    %3732 = vmatprep.subr.mxu0 %v3489
    %3733 = vmatpush1.msra.mxu0 %v3488
    %3734 = vmatprep.subr.mxu0 %v3493
    %3735 = vmatpush1.msra.mxu0 %v3492
    %3736 = vmatprep.subr.mxu0 %v3497
    %3737 = vmatpush1.msra.mxu0 %v3496
    %3738 = vmatprep.subr.mxu0 0.0
    %3739 = vmatpush1.msra.mxu0 0.0
    %3740 = vmatprep.subr.mxu0 0.0
    %3741 = vmatpush1.msra.mxu0 0.0
    %3742 = vmatprep.subr.mxu0 0.0
    %3743 = vmatpush1.msra.mxu0 0.0
    %3744 = vmatprep.subr.mxu0 0.0
    %3745 = vmatpush1.msra.mxu0 0.0
    %3746 = vmatprep.subr.mxu0 0.0
    %3747 = vmatpush1.msra.mxu0 0.0
    %3748 = vmatprep.subr.mxu0 0.0
    %3749 = vmatpush1.msra.mxu0 0.0
    %3750 = vmatprep.subr.mxu0 0.0
    %3751 = vmatpush1.msra.mxu0 0.0
    %3752 = vmatprep.subr.mxu0 0.0
    %3753 = vmatpush1.msra.mxu0 0.0
    %3754 = vmatprep.subr.mxu0 0.0
    %3755 = vmatpush1.msra.mxu0 0.0
    %3756 = vmatprep.subr.mxu0 0.0
    %3757 = vmatpush1.msra.mxu0 0.0
    %3758 = vmatprep.subr.mxu0 0.0
    %3759 = vmatpush1.msra.mxu0 0.0
    %3760 = vmatprep.subr.mxu0 0.0
    %3761 = vmatpush1.msra.mxu0 0.0
    %3762 = vmatprep.subr.mxu0 0.0
    %3763 = vmatpush1.msra.mxu0 0.0
    %3764 = vmatprep.subr.mxu0 0.0
    %3765 = vmatpush1.msra.mxu0 0.0
    %3766 = vmatprep.subr.mxu0 0.0
    %3767 = vmatpush1.msra.mxu0 0.0
    %3768 = vmatprep.subr.mxu0 0.0
    %3769 = vmatpush1.msra.mxu0 0.0
    %3770 = vmatprep.mubr.f32.mxu0 0.0
    %3771 = vmatmul.mubr.f32.gmra.mrb[0].mxu0 %v3435
    %v3772 = vpop.f32.mrb[0].mxu0
    %v3773 = vadd.f32 %v3631, %v3772
    %v3774 = vpop.f32.mrb[0].mxu0
    %v3775 = vadd.f32 %v3633, %v3774
    %3776 = vdwg.mxu0
    %3777 = vmatprep.subr.mxu0 %v3439
    %3778 = vmatpush1.msra.mxu0 %v3438
    %3779 = vmatprep.subr.mxu0 %v3443
    %3780 = vmatpush1.msra.mxu0 %v3442
    %3781 = vmatprep.subr.mxu0 %v3447
    %3782 = vmatpush1.msra.mxu0 %v3446
    %3783 = vmatprep.subr.mxu0 %v3451
    %3784 = vmatpush1.msra.mxu0 %v3450
    %3785 = vmatprep.subr.mxu0 %v3455
    %3786 = vmatpush1.msra.mxu0 %v3454
    %3787 = vmatprep.subr.mxu0 %v3459
    %3788 = vmatpush1.msra.mxu0 %v3458
    %3789 = vmatprep.subr.mxu0 %v3463
    %3790 = vmatpush1.msra.mxu0 %v3462
    %3791 = vmatprep.subr.mxu0 %v3467
    %3792 = vmatpush1.msra.mxu0 %v3466
    %3793 = vmatprep.subr.mxu0 %v3471
    %3794 = vmatpush1.msra.mxu0 %v3470
    %3795 = vmatprep.subr.mxu0 %v3475
    %3796 = vmatpush1.msra.mxu0 %v3474
    %3797 = vmatprep.subr.mxu0 %v3479
    %3798 = vmatpush1.msra.mxu0 %v3478
    %3799 = vmatprep.subr.mxu0 %v3483
    %3800 = vmatpush1.msra.mxu0 %v3482
    %3801 = vmatprep.subr.mxu0 %v3487
    %3802 = vmatpush1.msra.mxu0 %v3486
    %3803 = vmatprep.subr.mxu0 %v3491
    %3804 = vmatpush1.msra.mxu0 %v3490
    %3805 = vmatprep.subr.mxu0 %v3495
    %3806 = vmatpush1.msra.mxu0 %v3494
    %3807 = vmatprep.subr.mxu0 %v3499
    %3808 = vmatpush1.msra.mxu0 %v3498
    %3809 = vmatprep.subr.mxu0 0.0
    %3810 = vmatpush1.msra.mxu0 0.0
    %3811 = vmatprep.subr.mxu0 0.0
    %3812 = vmatpush1.msra.mxu0 0.0
    %3813 = vmatprep.subr.mxu0 0.0
    %3814 = vmatpush1.msra.mxu0 0.0
    %3815 = vmatprep.subr.mxu0 0.0
    %3816 = vmatpush1.msra.mxu0 0.0
    %3817 = vmatprep.subr.mxu0 0.0
    %3818 = vmatpush1.msra.mxu0 0.0
    %3819 = vmatprep.subr.mxu0 0.0
    %3820 = vmatpush1.msra.mxu0 0.0
    %3821 = vmatprep.subr.mxu0 0.0
    %3822 = vmatpush1.msra.mxu0 0.0
    %3823 = vmatprep.subr.mxu0 0.0
    %3824 = vmatpush1.msra.mxu0 0.0
    %3825 = vmatprep.subr.mxu0 0.0
    %3826 = vmatpush1.msra.mxu0 0.0
    %3827 = vmatprep.subr.mxu0 0.0
    %3828 = vmatpush1.msra.mxu0 0.0
    %3829 = vmatprep.subr.mxu0 0.0
    %3830 = vmatpush1.msra.mxu0 0.0
    %3831 = vmatprep.subr.mxu0 0.0
    %3832 = vmatpush1.msra.mxu0 0.0
    %3833 = vmatprep.subr.mxu0 0.0
    %3834 = vmatpush1.msra.mxu0 0.0
    %3835 = vmatprep.subr.mxu0 0.0
    %3836 = vmatpush1.msra.mxu0 0.0
    %3837 = vmatprep.subr.mxu0 0.0
    %3838 = vmatpush1.msra.mxu0 0.0
    %3839 = vmatprep.subr.mxu0 0.0
    %3840 = vmatpush1.msra.mxu0 0.0
    %3841 = vmatprep.mubr.f32.mxu0 0.0
    %3842 = vmatmul.mubr.f32.gmra.mrb[0].mxu0 %v3435
    %v3843 = vpop.f32.mrb[0].mxu0
    %v3844 = vadd.f32 %v3702, %v3843
    %v3845 = vpop.f32.mrb[0].mxu0
    %v3846 = vadd.f32 %v3704, %v3845
    %3847 = vdwg.mxu0
    %v3848 = vld [vmem:[%s4] sm:$0xf]
    %v3850 = vlaneseq
    %v3851 = vshrl.u32 %v3850, 7
    %v3852 = vsub.s32 0, %v3851
    %v3853 = vrot.slane %v3848, %v3852
    %v3854 = vlaneseq
    %v3855 = vshrl.u32 %v3854, 7
    %v3856 = vsub.s32 1, %v3855
    %v3857 = vrot.slane %v3848, %v3856
    %v3858 = vlaneseq
    %v3859 = vshrl.u32 %v3858, 7
    %v3860 = vsub.s32 2, %v3859
    %v3861 = vrot.slane %v3848, %v3860
    %v3862 = vlaneseq
    %v3863 = vshrl.u32 %v3862, 7
    %v3864 = vsub.s32 3, %v3863
    %v3865 = vrot.slane %v3848, %v3864
    %v3870 = vadd.f32 %v3773, %v3853
    %v3871 = vadd.f32 %v3775, %v3857
    %v3872 = vadd.f32 %v3844, %v3861
    %v3873 = vadd.f32 %v3846, %v3865
    %v3874 = vmul.f32 %v3870, 0.5
    %v3875 = vtanh.pop %v3874
    %v3876 = vmul.f32 %v3875, 0.5
    %v3877 = vadd.f32 %v3876, 0.5
    %v3878 = vmul.f32 %v3871, 0.5
    %v3879 = vtanh.pop %v3878
    %v3880 = vmul.f32 %v3879, 0.5
    %v3881 = vadd.f32 %v3880, 0.5
    %v3882 = vtanh.pop %v3872
    %v3883 = vmul.f32 %v3873, 0.5
    %v3884 = vtanh.pop %v3883
    %v3885 = vmul.f32 %v3884, 0.5
    %v3886 = vadd.f32 %v3885, 0.5
    %v3887 = vmul.f32 %v3881, %v3105
    %v3888 = vmul.f32 %v3877, %v3882
    %v3889 = vadd.f32 %v3887, %v3888
    %v3890 = vtanh.pop %v3889
    %v3891 = vmul.f32 %v3886, %v3890
    %v3892 = vld [vmem:[%s5] sm:$0xff]
    %v3893 = vld [vmem:[%s5 + $0x8] sm:$0xff]
    %v3894 = vld [vmem:[%s5 + $0x10] sm:$0xff]
    %v3895 = vld [vmem:[%s5 + $0x18] sm:$0xff]
    %v3896 = vld [vmem:[%s5 + $0x20] sm:$0xff]
    %v3897 = vld [vmem:[%s5 + $0x28] sm:$0xff]
    %v3898 = vld [vmem:[%s5 + $0x30] sm:$0xff]
    %v3899 = vld [vmem:[%s5 + $0x38] sm:$0xff]
    %v3900 = vld [vmem:[%s5 + $0x40] sm:$0xff]
    %v3901 = vld [vmem:[%s5 + $0x48] sm:$0xff]
    %v3902 = vld [vmem:[%s5 + $0x50] sm:$0xff]
    %v3903 = vld [vmem:[%s5 + $0x58] sm:$0xff]
    %v3904 = vld [vmem:[%s5 + $0x60] sm:$0xff]
    %v3905 = vld [vmem:[%s5 + $0x68] sm:$0xff]
    %v3906 = vld [vmem:[%s5 + $0x70] sm:$0xff]
    %v3907 = vld [vmem:[%s5 + $0x78] sm:$0xff]
    %v3908 = vld [vmem:[#allocation6] sm:$0x1]
    %v3910 = vlaneseq
    %v3911 = vshrl.u32 %v3910, 7
    %v3912 = vsub.s32 0, %v3911
    %v3913 = vrot.slane %v3908, %v3912
    %3915 = vmatprep.subr.mxu0 0.0
    %3916 = vmatpush1.msra.mxu0 %v3892
    %3917 = vmatprep.subr.mxu0 0.0
    %3918 = vmatpush1.msra.mxu0 %v3893
    %3919 = vmatprep.subr.mxu0 0.0
    %3920 = vmatpush1.msra.mxu0 %v3894
    %3921 = vmatprep.subr.mxu0 0.0
    %3922 = vmatpush1.msra.mxu0 %v3895
    %3923 = vmatprep.subr.mxu0 0.0
    %3924 = vmatpush1.msra.mxu0 %v3896
    %3925 = vmatprep.subr.mxu0 0.0
    %3926 = vmatpush1.msra.mxu0 %v3897
    %3927 = vmatprep.subr.mxu0 0.0
    %3928 = vmatpush1.msra.mxu0 %v3898
    %3929 = vmatprep.subr.mxu0 0.0
    %3930 = vmatpush1.msra.mxu0 %v3899
    %3931 = vmatprep.subr.mxu0 0.0
    %3932 = vmatpush1.msra.mxu0 %v3900
    %3933 = vmatprep.subr.mxu0 0.0
    %3934 = vmatpush1.msra.mxu0 %v3901
    %3935 = vmatprep.subr.mxu0 0.0
    %3936 = vmatpush1.msra.mxu0 %v3902
    %3937 = vmatprep.subr.mxu0 0.0
    %3938 = vmatpush1.msra.mxu0 %v3903
    %3939 = vmatprep.subr.mxu0 0.0
    %3940 = vmatpush1.msra.mxu0 %v3904
    %3941 = vmatprep.subr.mxu0 0.0
    %3942 = vmatpush1.msra.mxu0 %v3905
    %3943 = vmatprep.subr.mxu0 0.0
    %3944 = vmatpush1.msra.mxu0 %v3906
    %3945 = vmatprep.subr.mxu0 0.0
    %3946 = vmatpush1.msra.mxu0 %v3907
    %3947 = vmatprep.subr.mxu0 0.0
    %3948 = vmatpush1.msra.mxu0 0.0
    %3949 = vmatprep.subr.mxu0 0.0
    %3950 = vmatpush1.msra.mxu0 0.0
    %3951 = vmatprep.subr.mxu0 0.0
    %3952 = vmatpush1.msra.mxu0 0.0
    %3953 = vmatprep.subr.mxu0 0.0
    %3954 = vmatpush1.msra.mxu0 0.0
    %3955 = vmatprep.subr.mxu0 0.0
    %3956 = vmatpush1.msra.mxu0 0.0
    %3957 = vmatprep.subr.mxu0 0.0
    %3958 = vmatpush1.msra.mxu0 0.0
    %3959 = vmatprep.subr.mxu0 0.0
    %3960 = vmatpush1.msra.mxu0 0.0
    %3961 = vmatprep.subr.mxu0 0.0
    %3962 = vmatpush1.msra.mxu0 0.0
    %3963 = vmatprep.subr.mxu0 0.0
    %3964 = vmatpush1.msra.mxu0 0.0
    %3965 = vmatprep.subr.mxu0 0.0
    %3966 = vmatpush1.msra.mxu0 0.0
    %3967 = vmatprep.subr.mxu0 0.0
    %3968 = vmatpush1.msra.mxu0 0.0
    %3969 = vmatprep.subr.mxu0 0.0
    %3970 = vmatpush1.msra.mxu0 0.0
    %3971 = vmatprep.subr.mxu0 0.0
    %3972 = vmatpush1.msra.mxu0 0.0
    %3973 = vmatprep.subr.mxu0 0.0
    %3974 = vmatpush1.msra.mxu0 0.0
    %3975 = vmatprep.subr.mxu0 0.0
    %3976 = vmatpush1.msra.mxu0 0.0
    %3977 = vmatprep.subr.mxu0 0.0
    %3978 = vmatpush1.msra.mxu0 0.0
    %3979 = vmatprep.mubr.f32.mxu0 0.0
    %3980 = vmatmul.mubr.f32.gmra.mrb[0].mxu0 %v3891
    %v3981 = vpop.f32.mrb[0].mxu0
    %v3982 = vadd.f32 %v3913, %v3981
    %v3983 = vpop.f32.mrb[0].mxu0
    %3984 = vdwg.mxu0
    %s3985 = scalar_lea.vmem %s7, 32
    %3986 = vst.msk [vmem:[%s3985] sm:$0xff] %vm849, %v3982
    %s3987 = scalar_lea.vmem %s0, 160
    %v3988 = vld [vmem:[%s3987] sm:$0xff]
    %v3989 = vld [vmem:[%s3987 + $0x8] sm:$0xff]
    %v3990 = vld [vmem:[%s3987 + $0x10] sm:$0xff]
    %v3991 = vld [vmem:[%s3987 + $0x18] sm:$0xff]
    %v3992 = vld [vmem:[%s1] sm:$0xff]
    %v3993 = vld [vmem:[%s1 + $0x8] sm:$0xff]
    %v3994 = vld [vmem:[%s1 + $0x10] sm:$0xff]
    %v3995 = vld [vmem:[%s1 + $0x18] sm:$0xff]
    %v3996 = vld [vmem:[%s1 + $0x20] sm:$0xff]
    %v3997 = vld [vmem:[%s1 + $0x28] sm:$0xff]
    %v3998 = vld [vmem:[%s1 + $0x30] sm:$0xff]
    %v3999 = vld [vmem:[%s1 + $0x38] sm:$0xff]
    %v4000 = vld [vmem:[%s1 + $0x40] sm:$0xff]
    %v4001 = vld [vmem:[%s1 + $0x48] sm:$0xff]
    %v4002 = vld [vmem:[%s1 + $0x50] sm:$0xff]
    %v4003 = vld [vmem:[%s1 + $0x58] sm:$0xff]
    %v4004 = vld [vmem:[%s1 + $0x60] sm:$0xff]
    %v4005 = vld [vmem:[%s1 + $0x68] sm:$0xff]
    %v4006 = vld [vmem:[%s1 + $0x70] sm:$0xff]
    %v4007 = vld [vmem:[%s1 + $0x78] sm:$0xff]
    %v4008 = vld [vmem:[%s1 + $0x80] sm:$0xff]
    %v4009 = vld [vmem:[%s1 + $0x88] sm:$0xff]
    %v4010 = vld [vmem:[%s1 + $0x90] sm:$0xff]
    %v4011 = vld [vmem:[%s1 + $0x98] sm:$0xff]
    %v4012 = vld [vmem:[%s1 + $0xa0] sm:$0xff]
    %v4013 = vld [vmem:[%s1 + $0xa8] sm:$0xff]
    %v4014 = vld [vmem:[%s1 + $0xb0] sm:$0xff]
    %v4015 = vld [vmem:[%s1 + $0xb8] sm:$0xff]
    %v4016 = vld [vmem:[%s1 + $0xc0] sm:$0xff]
    %v4017 = vld [vmem:[%s1 + $0xc8] sm:$0xff]
    %v4018 = vld [vmem:[%s1 + $0xd0] sm:$0xff]
    %v4019 = vld [vmem:[%s1 + $0xd8] sm:$0xff]
    %v4020 = vld [vmem:[%s1 + $0xe0] sm:$0xff]
    %v4021 = vld [vmem:[%s1 + $0xe8] sm:$0xff]
    %v4022 = vld [vmem:[%s1 + $0xf0] sm:$0xff]
    %v4023 = vld [vmem:[%s1 + $0xf8] sm:$0xff]
    %v4024 = vld [vmem:[%s1 + $0x100] sm:$0xff]
    %v4025 = vld [vmem:[%s1 + $0x108] sm:$0xff]
    %v4026 = vld [vmem:[%s1 + $0x110] sm:$0xff]
    %v4027 = vld [vmem:[%s1 + $0x118] sm:$0xff]
    %v4028 = vld [vmem:[%s1 + $0x120] sm:$0xff]
    %v4029 = vld [vmem:[%s1 + $0x128] sm:$0xff]
    %v4030 = vld [vmem:[%s1 + $0x130] sm:$0xff]
    %v4031 = vld [vmem:[%s1 + $0x138] sm:$0xff]
    %v4032 = vld [vmem:[%s1 + $0x140] sm:$0xff]
    %v4033 = vld [vmem:[%s1 + $0x148] sm:$0xff]
    %v4034 = vld [vmem:[%s1 + $0x150] sm:$0xff]
    %v4035 = vld [vmem:[%s1 + $0x158] sm:$0xff]
    %v4036 = vld [vmem:[%s1 + $0x160] sm:$0xff]
    %v4037 = vld [vmem:[%s1 + $0x168] sm:$0xff]
    %v4038 = vld [vmem:[%s1 + $0x170] sm:$0xff]
    %v4039 = vld [vmem:[%s1 + $0x178] sm:$0xff]
    %v4040 = vld [vmem:[%s1 + $0x180] sm:$0xff]
    %v4041 = vld [vmem:[%s1 + $0x188] sm:$0xff]
    %v4042 = vld [vmem:[%s1 + $0x190] sm:$0xff]
    %v4043 = vld [vmem:[%s1 + $0x198] sm:$0xff]
    %v4044 = vld [vmem:[%s1 + $0x1a0] sm:$0xff]
    %v4045 = vld [vmem:[%s1 + $0x1a8] sm:$0xff]
    %v4046 = vld [vmem:[%s1 + $0x1b0] sm:$0xff]
    %v4047 = vld [vmem:[%s1 + $0x1b8] sm:$0xff]
    %v4048 = vld [vmem:[%s1 + $0x1c0] sm:$0xff]
    %v4049 = vld [vmem:[%s1 + $0x1c8] sm:$0xff]
    %v4050 = vld [vmem:[%s1 + $0x1d0] sm:$0xff]
    %v4051 = vld [vmem:[%s1 + $0x1d8] sm:$0xff]
    %v4052 = vld [vmem:[%s1 + $0x1e0] sm:$0xff]
    %v4053 = vld [vmem:[%s1 + $0x1e8] sm:$0xff]
    %v4054 = vld [vmem:[%s1 + $0x1f0] sm:$0xff]
    %v4055 = vld [vmem:[%s1 + $0x1f8] sm:$0xff]
    %4056 = vmatprep.subr.mxu0 %v3993
    %4057 = vmatpush1.msra.mxu0 %v3992
    %4058 = vmatprep.subr.mxu0 %v3997
    %4059 = vmatpush1.msra.mxu0 %v3996
    %4060 = vmatprep.subr.mxu0 %v4001
    %4061 = vmatpush1.msra.mxu0 %v4000
    %4062 = vmatprep.subr.mxu0 %v4005
    %4063 = vmatpush1.msra.mxu0 %v4004
    %4064 = vmatprep.subr.mxu0 %v4009
    %4065 = vmatpush1.msra.mxu0 %v4008
    %4066 = vmatprep.subr.mxu0 %v4013
    %4067 = vmatpush1.msra.mxu0 %v4012
    %4068 = vmatprep.subr.mxu0 %v4017
    %4069 = vmatpush1.msra.mxu0 %v4016
    %4070 = vmatprep.subr.mxu0 %v4021
    %4071 = vmatpush1.msra.mxu0 %v4020
    %4072 = vmatprep.subr.mxu0 %v4025
    %4073 = vmatpush1.msra.mxu0 %v4024
    %4074 = vmatprep.subr.mxu0 %v4029
    %4075 = vmatpush1.msra.mxu0 %v4028
    %4076 = vmatprep.subr.mxu0 %v4033
    %4077 = vmatpush1.msra.mxu0 %v4032
    %4078 = vmatprep.subr.mxu0 %v4037
    %4079 = vmatpush1.msra.mxu0 %v4036
    %4080 = vmatprep.subr.mxu0 %v4041
    %4081 = vmatpush1.msra.mxu0 %v4040
    %4082 = vmatprep.subr.mxu0 %v4045
    %4083 = vmatpush1.msra.mxu0 %v4044
    %4084 = vmatprep.subr.mxu0 %v4049
    %4085 = vmatpush1.msra.mxu0 %v4048
    %4086 = vmatprep.subr.mxu0 %v4053
    %4087 = vmatpush1.msra.mxu0 %v4052
    %4088 = vmatprep.subr.mxu0 0.0
    %4089 = vmatpush1.msra.mxu0 0.0
    %4090 = vmatprep.subr.mxu0 0.0
    %4091 = vmatpush1.msra.mxu0 0.0
    %4092 = vmatprep.subr.mxu0 0.0
    %4093 = vmatpush1.msra.mxu0 0.0
    %4094 = vmatprep.subr.mxu0 0.0
    %4095 = vmatpush1.msra.mxu0 0.0
    %4096 = vmatprep.subr.mxu0 0.0
    %4097 = vmatpush1.msra.mxu0 0.0
    %4098 = vmatprep.subr.mxu0 0.0
    %4099 = vmatpush1.msra.mxu0 0.0
    %4100 = vmatprep.subr.mxu0 0.0
    %4101 = vmatpush1.msra.mxu0 0.0
    %4102 = vmatprep.subr.mxu0 0.0
    %4103 = vmatpush1.msra.mxu0 0.0
    %4104 = vmatprep.subr.mxu0 0.0
    %4105 = vmatpush1.msra.mxu0 0.0
    %4106 = vmatprep.subr.mxu0 0.0
    %4107 = vmatpush1.msra.mxu0 0.0
    %4108 = vmatprep.subr.mxu0 0.0
    %4109 = vmatpush1.msra.mxu0 0.0
    %4110 = vmatprep.subr.mxu0 0.0
    %4111 = vmatpush1.msra.mxu0 0.0
    %4112 = vmatprep.subr.mxu0 0.0
    %4113 = vmatpush1.msra.mxu0 0.0
    %4114 = vmatprep.subr.mxu0 0.0
    %4115 = vmatpush1.msra.mxu0 0.0
    %4116 = vmatprep.subr.mxu0 0.0
    %4117 = vmatpush1.msra.mxu0 0.0
    %4118 = vmatprep.subr.mxu0 0.0
    %4119 = vmatpush1.msra.mxu0 0.0
    %4120 = vmatprep.mubr.f32.mxu0 0.0
    %4121 = vmatmul.mubr.f32.gmra.mrb[0].mxu0 %v3435
    %v4122 = vpop.f32.mrb[0].mxu0
    %v4123 = vadd.f32 0.0, %v4122
    %v4124 = vpop.f32.mrb[0].mxu0
    %v4125 = vadd.f32 0.0, %v4124
    %4126 = vdwg.mxu0
    %4127 = vmatprep.subr.mxu0 %v3995
    %4128 = vmatpush1.msra.mxu0 %v3994
    %4129 = vmatprep.subr.mxu0 %v3999
    %4130 = vmatpush1.msra.mxu0 %v3998
    %4131 = vmatprep.subr.mxu0 %v4003
    %4132 = vmatpush1.msra.mxu0 %v4002
    %4133 = vmatprep.subr.mxu0 %v4007
    %4134 = vmatpush1.msra.mxu0 %v4006
    %4135 = vmatprep.subr.mxu0 %v4011
    %4136 = vmatpush1.msra.mxu0 %v4010
    %4137 = vmatprep.subr.mxu0 %v4015
    %4138 = vmatpush1.msra.mxu0 %v4014
    %4139 = vmatprep.subr.mxu0 %v4019
    %4140 = vmatpush1.msra.mxu0 %v4018
    %4141 = vmatprep.subr.mxu0 %v4023
    %4142 = vmatpush1.msra.mxu0 %v4022
    %4143 = vmatprep.subr.mxu0 %v4027
    %4144 = vmatpush1.msra.mxu0 %v4026
    %4145 = vmatprep.subr.mxu0 %v4031
    %4146 = vmatpush1.msra.mxu0 %v4030
    %4147 = vmatprep.subr.mxu0 %v4035
    %4148 = vmatpush1.msra.mxu0 %v4034
    %4149 = vmatprep.subr.mxu0 %v4039
    %4150 = vmatpush1.msra.mxu0 %v4038
    %4151 = vmatprep.subr.mxu0 %v4043
    %4152 = vmatpush1.msra.mxu0 %v4042
    %4153 = vmatprep.subr.mxu0 %v4047
    %4154 = vmatpush1.msra.mxu0 %v4046
    %4155 = vmatprep.subr.mxu0 %v4051
    %4156 = vmatpush1.msra.mxu0 %v4050
    %4157 = vmatprep.subr.mxu0 %v4055
    %4158 = vmatpush1.msra.mxu0 %v4054
    %4159 = vmatprep.subr.mxu0 0.0
    %4160 = vmatpush1.msra.mxu0 0.0
    %4161 = vmatprep.subr.mxu0 0.0
    %4162 = vmatpush1.msra.mxu0 0.0
    %4163 = vmatprep.subr.mxu0 0.0
    %4164 = vmatpush1.msra.mxu0 0.0
    %4165 = vmatprep.subr.mxu0 0.0
    %4166 = vmatpush1.msra.mxu0 0.0
    %4167 = vmatprep.subr.mxu0 0.0
    %4168 = vmatpush1.msra.mxu0 0.0
    %4169 = vmatprep.subr.mxu0 0.0
    %4170 = vmatpush1.msra.mxu0 0.0
    %4171 = vmatprep.subr.mxu0 0.0
    %4172 = vmatpush1.msra.mxu0 0.0
    %4173 = vmatprep.subr.mxu0 0.0
    %4174 = vmatpush1.msra.mxu0 0.0
    %4175 = vmatprep.subr.mxu0 0.0
    %4176 = vmatpush1.msra.mxu0 0.0
    %4177 = vmatprep.subr.mxu0 0.0
    %4178 = vmatpush1.msra.mxu0 0.0
    %4179 = vmatprep.subr.mxu0 0.0
    %4180 = vmatpush1.msra.mxu0 0.0
    %4181 = vmatprep.subr.mxu0 0.0
    %4182 = vmatpush1.msra.mxu0 0.0
    %4183 = vmatprep.subr.mxu0 0.0
    %4184 = vmatpush1.msra.mxu0 0.0
    %4185 = vmatprep.subr.mxu0 0.0
    %4186 = vmatpush1.msra.mxu0 0.0
    %4187 = vmatprep.subr.mxu0 0.0
    %4188 = vmatpush1.msra.mxu0 0.0
    %4189 = vmatprep.subr.mxu0 0.0
    %4190 = vmatpush1.msra.mxu0 0.0
    %4191 = vmatprep.mubr.f32.mxu0 0.0
    %4192 = vmatmul.mubr.f32.gmra.mrb[0].mxu0 %v3435
    %v4193 = vpop.f32.mrb[0].mxu0
    %v4194 = vadd.f32 0.0, %v4193
    %v4195 = vpop.f32.mrb[0].mxu0
    %v4196 = vadd.f32 0.0, %v4195
    %4197 = vdwg.mxu0
    %v4198 = vadd.f32 %v3988, %v4123
    %v4199 = vadd.f32 %v3989, %v4125
    %v4200 = vadd.f32 %v3990, %v4194
    %v4201 = vadd.f32 %v3991, %v4196
    %v4202 = vmul.f32 %v4198, 0.5
    %v4203 = vtanh.pop %v4202
    %v4204 = vmul.f32 %v4203, 0.5
    %v4205 = vadd.f32 %v4204, 0.5
    %v4206 = vmul.f32 %v4199, 0.5
    %v4207 = vtanh.pop %v4206
    %v4208 = vmul.f32 %v4207, 0.5
    %v4209 = vadd.f32 %v4208, 0.5
    %v4210 = vtanh.pop %v4200
    %v4211 = vmul.f32 %v4201, 0.5
    %v4212 = vtanh.pop %v4211
    %v4213 = vmul.f32 %v4212, 0.5
    %v4214 = vadd.f32 %v4213, 0.5
    %v4215 = vmul.f32 %v4209, %v3433
    %v4216 = vmul.f32 %v4205, %v4210
    %v4217 = vadd.f32 %v4215, %v4216
    %v4218 = vtanh.pop %v4217
    %v4219 = vmul.f32 %v4214, %v4218
    %v4220 = vld [vmem:[#allocation7] sm:$0xff]
    %v4221 = vld [vmem:[#allocation7 + $0x8] sm:$0xff]
    %v4222 = vld [vmem:[#allocation7 + $0x10] sm:$0xff]
    %v4223 = vld [vmem:[#allocation7 + $0x18] sm:$0xff]
    %v4224 = vld [vmem:[#allocation7 + $0x20] sm:$0xff]
    %v4225 = vld [vmem:[#allocation7 + $0x28] sm:$0xff]
    %v4226 = vld [vmem:[#allocation7 + $0x30] sm:$0xff]
    %v4227 = vld [vmem:[#allocation7 + $0x38] sm:$0xff]
    %v4228 = vld [vmem:[#allocation7 + $0x40] sm:$0xff]
    %v4229 = vld [vmem:[#allocation7 + $0x48] sm:$0xff]
    %v4230 = vld [vmem:[#allocation7 + $0x50] sm:$0xff]
    %v4231 = vld [vmem:[#allocation7 + $0x58] sm:$0xff]
    %v4232 = vld [vmem:[#allocation7 + $0x60] sm:$0xff]
    %v4233 = vld [vmem:[#allocation7 + $0x68] sm:$0xff]
    %v4234 = vld [vmem:[#allocation7 + $0x70] sm:$0xff]
    %v4235 = vld [vmem:[#allocation7 + $0x78] sm:$0xff]
    %v4236 = vld [vmem:[#allocation7 + $0x80] sm:$0xff]
    %v4237 = vld [vmem:[#allocation7 + $0x88] sm:$0xff]
    %v4238 = vld [vmem:[#allocation7 + $0x90] sm:$0xff]
    %v4239 = vld [vmem:[#allocation7 + $0x98] sm:$0xff]
    %v4240 = vld [vmem:[#allocation7 + $0xa0] sm:$0xff]
    %v4241 = vld [vmem:[#allocation7 + $0xa8] sm:$0xff]
    %v4242 = vld [vmem:[#allocation7 + $0xb0] sm:$0xff]
    %v4243 = vld [vmem:[#allocation7 + $0xb8] sm:$0xff]
    %v4244 = vld [vmem:[#allocation7 + $0xc0] sm:$0xff]
    %v4245 = vld [vmem:[#allocation7 + $0xc8] sm:$0xff]
    %v4246 = vld [vmem:[#allocation7 + $0xd0] sm:$0xff]
    %v4247 = vld [vmem:[#allocation7 + $0xd8] sm:$0xff]
    %v4248 = vld [vmem:[#allocation7 + $0xe0] sm:$0xff]
    %v4249 = vld [vmem:[#allocation7 + $0xe8] sm:$0xff]
    %v4250 = vld [vmem:[#allocation7 + $0xf0] sm:$0xff]
    %v4251 = vld [vmem:[#allocation7 + $0xf8] sm:$0xff]
    %v4252 = vld [vmem:[#allocation7 + $0x100] sm:$0xff]
    %v4253 = vld [vmem:[#allocation7 + $0x108] sm:$0xff]
    %v4254 = vld [vmem:[#allocation7 + $0x110] sm:$0xff]
    %v4255 = vld [vmem:[#allocation7 + $0x118] sm:$0xff]
    %v4256 = vld [vmem:[#allocation7 + $0x120] sm:$0xff]
    %v4257 = vld [vmem:[#allocation7 + $0x128] sm:$0xff]
    %v4258 = vld [vmem:[#allocation7 + $0x130] sm:$0xff]
    %v4259 = vld [vmem:[#allocation7 + $0x138] sm:$0xff]
    %v4260 = vld [vmem:[#allocation7 + $0x140] sm:$0xff]
    %v4261 = vld [vmem:[#allocation7 + $0x148] sm:$0xff]
    %v4262 = vld [vmem:[#allocation7 + $0x150] sm:$0xff]
    %v4263 = vld [vmem:[#allocation7 + $0x158] sm:$0xff]
    %v4264 = vld [vmem:[#allocation7 + $0x160] sm:$0xff]
    %v4265 = vld [vmem:[#allocation7 + $0x168] sm:$0xff]
    %v4266 = vld [vmem:[#allocation7 + $0x170] sm:$0xff]
    %v4267 = vld [vmem:[#allocation7 + $0x178] sm:$0xff]
    %v4268 = vld [vmem:[#allocation7 + $0x180] sm:$0xff]
    %v4269 = vld [vmem:[#allocation7 + $0x188] sm:$0xff]
    %v4270 = vld [vmem:[#allocation7 + $0x190] sm:$0xff]
    %v4271 = vld [vmem:[#allocation7 + $0x198] sm:$0xff]
    %v4272 = vld [vmem:[#allocation7 + $0x1a0] sm:$0xff]
    %v4273 = vld [vmem:[#allocation7 + $0x1a8] sm:$0xff]
    %v4274 = vld [vmem:[#allocation7 + $0x1b0] sm:$0xff]
    %v4275 = vld [vmem:[#allocation7 + $0x1b8] sm:$0xff]
    %v4276 = vld [vmem:[#allocation7 + $0x1c0] sm:$0xff]
    %v4277 = vld [vmem:[#allocation7 + $0x1c8] sm:$0xff]
    %v4278 = vld [vmem:[#allocation7 + $0x1d0] sm:$0xff]
    %v4279 = vld [vmem:[#allocation7 + $0x1d8] sm:$0xff]
    %v4280 = vld [vmem:[#allocation7 + $0x1e0] sm:$0xff]
    %v4281 = vld [vmem:[#allocation7 + $0x1e8] sm:$0xff]
    %v4282 = vld [vmem:[#allocation7 + $0x1f0] sm:$0xff]
    %v4283 = vld [vmem:[#allocation7 + $0x1f8] sm:$0xff]
    %v4284 = vld [vmem:[#allocation9] sm:$0xff]
    %v4285 = vld [vmem:[#allocation9 + $0x8] sm:$0xff]
    %v4286 = vld [vmem:[#allocation9 + $0x10] sm:$0xff]
    %v4287 = vld [vmem:[#allocation9 + $0x18] sm:$0xff]
    %v4288 = vld [vmem:[#allocation9 + $0x20] sm:$0xff]
    %v4289 = vld [vmem:[#allocation9 + $0x28] sm:$0xff]
    %v4290 = vld [vmem:[#allocation9 + $0x30] sm:$0xff]
    %v4291 = vld [vmem:[#allocation9 + $0x38] sm:$0xff]
    %v4292 = vld [vmem:[#allocation9 + $0x40] sm:$0xff]
    %v4293 = vld [vmem:[#allocation9 + $0x48] sm:$0xff]
    %v4294 = vld [vmem:[#allocation9 + $0x50] sm:$0xff]
    %v4295 = vld [vmem:[#allocation9 + $0x58] sm:$0xff]
    %v4296 = vld [vmem:[#allocation9 + $0x60] sm:$0xff]
    %v4297 = vld [vmem:[#allocation9 + $0x68] sm:$0xff]
    %v4298 = vld [vmem:[#allocation9 + $0x70] sm:$0xff]
    %v4299 = vld [vmem:[#allocation9 + $0x78] sm:$0xff]
    %v4300 = vld [vmem:[#allocation9 + $0x80] sm:$0xff]
    %v4301 = vld [vmem:[#allocation9 + $0x88] sm:$0xff]
    %v4302 = vld [vmem:[#allocation9 + $0x90] sm:$0xff]
    %v4303 = vld [vmem:[#allocation9 + $0x98] sm:$0xff]
    %v4304 = vld [vmem:[#allocation9 + $0xa0] sm:$0xff]
    %v4305 = vld [vmem:[#allocation9 + $0xa8] sm:$0xff]
    %v4306 = vld [vmem:[#allocation9 + $0xb0] sm:$0xff]
    %v4307 = vld [vmem:[#allocation9 + $0xb8] sm:$0xff]
    %v4308 = vld [vmem:[#allocation9 + $0xc0] sm:$0xff]
    %v4309 = vld [vmem:[#allocation9 + $0xc8] sm:$0xff]
    %v4310 = vld [vmem:[#allocation9 + $0xd0] sm:$0xff]
    %v4311 = vld [vmem:[#allocation9 + $0xd8] sm:$0xff]
    %v4312 = vld [vmem:[#allocation9 + $0xe0] sm:$0xff]
    %v4313 = vld [vmem:[#allocation9 + $0xe8] sm:$0xff]
    %v4314 = vld [vmem:[#allocation9 + $0xf0] sm:$0xff]
    %v4315 = vld [vmem:[#allocation9 + $0xf8] sm:$0xff]
    %v4316 = vld [vmem:[#allocation9 + $0x100] sm:$0xff]
    %v4317 = vld [vmem:[#allocation9 + $0x108] sm:$0xff]
    %v4318 = vld [vmem:[#allocation9 + $0x110] sm:$0xff]
    %v4319 = vld [vmem:[#allocation9 + $0x118] sm:$0xff]
    %v4320 = vld [vmem:[#allocation9 + $0x120] sm:$0xff]
    %v4321 = vld [vmem:[#allocation9 + $0x128] sm:$0xff]
    %v4322 = vld [vmem:[#allocation9 + $0x130] sm:$0xff]
    %v4323 = vld [vmem:[#allocation9 + $0x138] sm:$0xff]
    %v4324 = vld [vmem:[#allocation9 + $0x140] sm:$0xff]
    %v4325 = vld [vmem:[#allocation9 + $0x148] sm:$0xff]
    %v4326 = vld [vmem:[#allocation9 + $0x150] sm:$0xff]
    %v4327 = vld [vmem:[#allocation9 + $0x158] sm:$0xff]
    %v4328 = vld [vmem:[#allocation9 + $0x160] sm:$0xff]
    %v4329 = vld [vmem:[#allocation9 + $0x168] sm:$0xff]
    %v4330 = vld [vmem:[#allocation9 + $0x170] sm:$0xff]
    %v4331 = vld [vmem:[#allocation9 + $0x178] sm:$0xff]
    %v4332 = vld [vmem:[#allocation9 + $0x180] sm:$0xff]
    %v4333 = vld [vmem:[#allocation9 + $0x188] sm:$0xff]
    %v4334 = vld [vmem:[#allocation9 + $0x190] sm:$0xff]
    %v4335 = vld [vmem:[#allocation9 + $0x198] sm:$0xff]
    %v4336 = vld [vmem:[#allocation9 + $0x1a0] sm:$0xff]
    %v4337 = vld [vmem:[#allocation9 + $0x1a8] sm:$0xff]
    %v4338 = vld [vmem:[#allocation9 + $0x1b0] sm:$0xff]
    %v4339 = vld [vmem:[#allocation9 + $0x1b8] sm:$0xff]
    %v4340 = vld [vmem:[#allocation9 + $0x1c0] sm:$0xff]
    %v4341 = vld [vmem:[#allocation9 + $0x1c8] sm:$0xff]
    %v4342 = vld [vmem:[#allocation9 + $0x1d0] sm:$0xff]
    %v4343 = vld [vmem:[#allocation9 + $0x1d8] sm:$0xff]
    %v4344 = vld [vmem:[#allocation9 + $0x1e0] sm:$0xff]
    %v4345 = vld [vmem:[#allocation9 + $0x1e8] sm:$0xff]
    %v4346 = vld [vmem:[#allocation9 + $0x1f0] sm:$0xff]
    %v4347 = vld [vmem:[#allocation9 + $0x1f8] sm:$0xff]
    %4348 = vmatprep.subr.mxu0 %v4285
    %4349 = vmatpush1.msra.mxu0 %v4284
    %4350 = vmatprep.subr.mxu0 %v4289
    %4351 = vmatpush1.msra.mxu0 %v4288
    %4352 = vmatprep.subr.mxu0 %v4293
    %4353 = vmatpush1.msra.mxu0 %v4292
    %4354 = vmatprep.subr.mxu0 %v4297
    %4355 = vmatpush1.msra.mxu0 %v4296
    %4356 = vmatprep.subr.mxu0 %v4301
    %4357 = vmatpush1.msra.mxu0 %v4300
    %4358 = vmatprep.subr.mxu0 %v4305
    %4359 = vmatpush1.msra.mxu0 %v4304
    %4360 = vmatprep.subr.mxu0 %v4309
    %4361 = vmatpush1.msra.mxu0 %v4308
    %4362 = vmatprep.subr.mxu0 %v4313
    %4363 = vmatpush1.msra.mxu0 %v4312
    %4364 = vmatprep.subr.mxu0 %v4317
    %4365 = vmatpush1.msra.mxu0 %v4316
    %4366 = vmatprep.subr.mxu0 %v4321
    %4367 = vmatpush1.msra.mxu0 %v4320
    %4368 = vmatprep.subr.mxu0 %v4325
    %4369 = vmatpush1.msra.mxu0 %v4324
    %4370 = vmatprep.subr.mxu0 %v4329
    %4371 = vmatpush1.msra.mxu0 %v4328
    %4372 = vmatprep.subr.mxu0 %v4333
    %4373 = vmatpush1.msra.mxu0 %v4332
    %4374 = vmatprep.subr.mxu0 %v4337
    %4375 = vmatpush1.msra.mxu0 %v4336
    %4376 = vmatprep.subr.mxu0 %v4341
    %4377 = vmatpush1.msra.mxu0 %v4340
    %4378 = vmatprep.subr.mxu0 %v4345
    %4379 = vmatpush1.msra.mxu0 %v4344
    %4380 = vmatprep.subr.mxu0 0.0
    %4381 = vmatpush1.msra.mxu0 0.0
    %4382 = vmatprep.subr.mxu0 0.0
    %4383 = vmatpush1.msra.mxu0 0.0
    %4384 = vmatprep.subr.mxu0 0.0
    %4385 = vmatpush1.msra.mxu0 0.0
    %4386 = vmatprep.subr.mxu0 0.0
    %4387 = vmatpush1.msra.mxu0 0.0
    %4388 = vmatprep.subr.mxu0 0.0
    %4389 = vmatpush1.msra.mxu0 0.0
    %4390 = vmatprep.subr.mxu0 0.0
    %4391 = vmatpush1.msra.mxu0 0.0
    %4392 = vmatprep.subr.mxu0 0.0
    %4393 = vmatpush1.msra.mxu0 0.0
    %4394 = vmatprep.subr.mxu0 0.0
    %4395 = vmatpush1.msra.mxu0 0.0
    %4396 = vmatprep.subr.mxu0 0.0
    %4397 = vmatpush1.msra.mxu0 0.0
    %4398 = vmatprep.subr.mxu0 0.0
    %4399 = vmatpush1.msra.mxu0 0.0
    %4400 = vmatprep.subr.mxu0 0.0
    %4401 = vmatpush1.msra.mxu0 0.0
    %4402 = vmatprep.subr.mxu0 0.0
    %4403 = vmatpush1.msra.mxu0 0.0
    %4404 = vmatprep.subr.mxu0 0.0
    %4405 = vmatpush1.msra.mxu0 0.0
    %4406 = vmatprep.subr.mxu0 0.0
    %4407 = vmatpush1.msra.mxu0 0.0
    %4408 = vmatprep.subr.mxu0 0.0
    %4409 = vmatpush1.msra.mxu0 0.0
    %4410 = vmatprep.subr.mxu0 0.0
    %4411 = vmatpush1.msra.mxu0 0.0
    %4412 = vmatprep.mubr.f32.mxu0 0.0
    %4413 = vmatmul.mubr.f32.gmra.mrb[0].mxu0 %v3891
    %v4414 = vpop.f32.mrb[0].mxu0
    %v4415 = vadd.f32 0.0, %v4414
    %v4416 = vpop.f32.mrb[0].mxu0
    %v4417 = vadd.f32 0.0, %v4416
    %4418 = vdwg.mxu0
    %4419 = vmatprep.subr.mxu0 %v4287
    %4420 = vmatpush1.msra.mxu0 %v4286
    %4421 = vmatprep.subr.mxu0 %v4291
    %4422 = vmatpush1.msra.mxu0 %v4290
    %4423 = vmatprep.subr.mxu0 %v4295
    %4424 = vmatpush1.msra.mxu0 %v4294
    %4425 = vmatprep.subr.mxu0 %v4299
    %4426 = vmatpush1.msra.mxu0 %v4298
    %4427 = vmatprep.subr.mxu0 %v4303
    %4428 = vmatpush1.msra.mxu0 %v4302
    %4429 = vmatprep.subr.mxu0 %v4307
    %4430 = vmatpush1.msra.mxu0 %v4306
    %4431 = vmatprep.subr.mxu0 %v4311
    %4432 = vmatpush1.msra.mxu0 %v4310
    %4433 = vmatprep.subr.mxu0 %v4315
    %4434 = vmatpush1.msra.mxu0 %v4314
    %4435 = vmatprep.subr.mxu0 %v4319
    %4436 = vmatpush1.msra.mxu0 %v4318
    %4437 = vmatprep.subr.mxu0 %v4323
    %4438 = vmatpush1.msra.mxu0 %v4322
    %4439 = vmatprep.subr.mxu0 %v4327
    %4440 = vmatpush1.msra.mxu0 %v4326
    %4441 = vmatprep.subr.mxu0 %v4331
    %4442 = vmatpush1.msra.mxu0 %v4330
    %4443 = vmatprep.subr.mxu0 %v4335
    %4444 = vmatpush1.msra.mxu0 %v4334
    %4445 = vmatprep.subr.mxu0 %v4339
    %4446 = vmatpush1.msra.mxu0 %v4338
    %4447 = vmatprep.subr.mxu0 %v4343
    %4448 = vmatpush1.msra.mxu0 %v4342
    %4449 = vmatprep.subr.mxu0 %v4347
    %4450 = vmatpush1.msra.mxu0 %v4346
    %4451 = vmatprep.subr.mxu0 0.0
    %4452 = vmatpush1.msra.mxu0 0.0
    %4453 = vmatprep.subr.mxu0 0.0
    %4454 = vmatpush1.msra.mxu0 0.0
    %4455 = vmatprep.subr.mxu0 0.0
    %4456 = vmatpush1.msra.mxu0 0.0
    %4457 = vmatprep.subr.mxu0 0.0
    %4458 = vmatpush1.msra.mxu0 0.0
    %4459 = vmatprep.subr.mxu0 0.0
    %4460 = vmatpush1.msra.mxu0 0.0
    %4461 = vmatprep.subr.mxu0 0.0
    %4462 = vmatpush1.msra.mxu0 0.0
    %4463 = vmatprep.subr.mxu0 0.0
    %4464 = vmatpush1.msra.mxu0 0.0
    %4465 = vmatprep.subr.mxu0 0.0
    %4466 = vmatpush1.msra.mxu0 0.0
    %4467 = vmatprep.subr.mxu0 0.0
    %4468 = vmatpush1.msra.mxu0 0.0
    %4469 = vmatprep.subr.mxu0 0.0
    %4470 = vmatpush1.msra.mxu0 0.0
    %4471 = vmatprep.subr.mxu0 0.0
    %4472 = vmatpush1.msra.mxu0 0.0
    %4473 = vmatprep.subr.mxu0 0.0
    %4474 = vmatpush1.msra.mxu0 0.0
    %4475 = vmatprep.subr.mxu0 0.0
    %4476 = vmatpush1.msra.mxu0 0.0
    %4477 = vmatprep.subr.mxu0 0.0
    %4478 = vmatpush1.msra.mxu0 0.0
    %4479 = vmatprep.subr.mxu0 0.0
    %4480 = vmatpush1.msra.mxu0 0.0
    %4481 = vmatprep.subr.mxu0 0.0
    %4482 = vmatpush1.msra.mxu0 0.0
    %4483 = vmatprep.mubr.f32.mxu0 0.0
    %4484 = vmatmul.mubr.f32.gmra.mrb[0].mxu0 %v3891
    %v4485 = vpop.f32.mrb[0].mxu0
    %v4486 = vadd.f32 0.0, %v4485
    %v4487 = vpop.f32.mrb[0].mxu0
    %v4488 = vadd.f32 0.0, %v4487
    %4489 = vdwg.mxu0
    %4490 = vmatprep.subr.mxu0 %v4221
    %4491 = vmatpush1.msra.mxu0 %v4220
    %4492 = vmatprep.subr.mxu0 %v4225
    %4493 = vmatpush1.msra.mxu0 %v4224
    %4494 = vmatprep.subr.mxu0 %v4229
    %4495 = vmatpush1.msra.mxu0 %v4228
    %4496 = vmatprep.subr.mxu0 %v4233
    %4497 = vmatpush1.msra.mxu0 %v4232
    %4498 = vmatprep.subr.mxu0 %v4237
    %4499 = vmatpush1.msra.mxu0 %v4236
    %4500 = vmatprep.subr.mxu0 %v4241
    %4501 = vmatpush1.msra.mxu0 %v4240
    %4502 = vmatprep.subr.mxu0 %v4245
    %4503 = vmatpush1.msra.mxu0 %v4244
    %4504 = vmatprep.subr.mxu0 %v4249
    %4505 = vmatpush1.msra.mxu0 %v4248
    %4506 = vmatprep.subr.mxu0 %v4253
    %4507 = vmatpush1.msra.mxu0 %v4252
    %4508 = vmatprep.subr.mxu0 %v4257
    %4509 = vmatpush1.msra.mxu0 %v4256
    %4510 = vmatprep.subr.mxu0 %v4261
    %4511 = vmatpush1.msra.mxu0 %v4260
    %4512 = vmatprep.subr.mxu0 %v4265
    %4513 = vmatpush1.msra.mxu0 %v4264
    %4514 = vmatprep.subr.mxu0 %v4269
    %4515 = vmatpush1.msra.mxu0 %v4268
    %4516 = vmatprep.subr.mxu0 %v4273
    %4517 = vmatpush1.msra.mxu0 %v4272
    %4518 = vmatprep.subr.mxu0 %v4277
    %4519 = vmatpush1.msra.mxu0 %v4276
    %4520 = vmatprep.subr.mxu0 %v4281
    %4521 = vmatpush1.msra.mxu0 %v4280
    %4522 = vmatprep.subr.mxu0 0.0
    %4523 = vmatpush1.msra.mxu0 0.0
    %4524 = vmatprep.subr.mxu0 0.0
    %4525 = vmatpush1.msra.mxu0 0.0
    %4526 = vmatprep.subr.mxu0 0.0
    %4527 = vmatpush1.msra.mxu0 0.0
    %4528 = vmatprep.subr.mxu0 0.0
    %4529 = vmatpush1.msra.mxu0 0.0
    %4530 = vmatprep.subr.mxu0 0.0
    %4531 = vmatpush1.msra.mxu0 0.0
    %4532 = vmatprep.subr.mxu0 0.0
    %4533 = vmatpush1.msra.mxu0 0.0
    %4534 = vmatprep.subr.mxu0 0.0
    %4535 = vmatpush1.msra.mxu0 0.0
    %4536 = vmatprep.subr.mxu0 0.0
    %4537 = vmatpush1.msra.mxu0 0.0
    %4538 = vmatprep.subr.mxu0 0.0
    %4539 = vmatpush1.msra.mxu0 0.0
    %4540 = vmatprep.subr.mxu0 0.0
    %4541 = vmatpush1.msra.mxu0 0.0
    %4542 = vmatprep.subr.mxu0 0.0
    %4543 = vmatpush1.msra.mxu0 0.0
    %4544 = vmatprep.subr.mxu0 0.0
    %4545 = vmatpush1.msra.mxu0 0.0
    %4546 = vmatprep.subr.mxu0 0.0
    %4547 = vmatpush1.msra.mxu0 0.0
    %4548 = vmatprep.subr.mxu0 0.0
    %4549 = vmatpush1.msra.mxu0 0.0
    %4550 = vmatprep.subr.mxu0 0.0
    %4551 = vmatpush1.msra.mxu0 0.0
    %4552 = vmatprep.subr.mxu0 0.0
    %4553 = vmatpush1.msra.mxu0 0.0
    %4554 = vmatprep.mubr.f32.mxu0 0.0
    %4555 = vmatmul.mubr.f32.gmra.mrb[0].mxu0 %v4219
    %v4556 = vpop.f32.mrb[0].mxu0
    %v4557 = vadd.f32 %v4415, %v4556
    %v4558 = vpop.f32.mrb[0].mxu0
    %v4559 = vadd.f32 %v4417, %v4558
    %4560 = vdwg.mxu0
    %4561 = vmatprep.subr.mxu0 %v4223
    %4562 = vmatpush1.msra.mxu0 %v4222
    %4563 = vmatprep.subr.mxu0 %v4227
    %4564 = vmatpush1.msra.mxu0 %v4226
    %4565 = vmatprep.subr.mxu0 %v4231
    %4566 = vmatpush1.msra.mxu0 %v4230
    %4567 = vmatprep.subr.mxu0 %v4235
    %4568 = vmatpush1.msra.mxu0 %v4234
    %4569 = vmatprep.subr.mxu0 %v4239
    %4570 = vmatpush1.msra.mxu0 %v4238
    %4571 = vmatprep.subr.mxu0 %v4243
    %4572 = vmatpush1.msra.mxu0 %v4242
    %4573 = vmatprep.subr.mxu0 %v4247
    %4574 = vmatpush1.msra.mxu0 %v4246
    %4575 = vmatprep.subr.mxu0 %v4251
    %4576 = vmatpush1.msra.mxu0 %v4250
    %4577 = vmatprep.subr.mxu0 %v4255
    %4578 = vmatpush1.msra.mxu0 %v4254
    %4579 = vmatprep.subr.mxu0 %v4259
    %4580 = vmatpush1.msra.mxu0 %v4258
    %4581 = vmatprep.subr.mxu0 %v4263
    %4582 = vmatpush1.msra.mxu0 %v4262
    %4583 = vmatprep.subr.mxu0 %v4267
    %4584 = vmatpush1.msra.mxu0 %v4266
    %4585 = vmatprep.subr.mxu0 %v4271
    %4586 = vmatpush1.msra.mxu0 %v4270
    %4587 = vmatprep.subr.mxu0 %v4275
    %4588 = vmatpush1.msra.mxu0 %v4274
    %4589 = vmatprep.subr.mxu0 %v4279
    %4590 = vmatpush1.msra.mxu0 %v4278
    %4591 = vmatprep.subr.mxu0 %v4283
    %4592 = vmatpush1.msra.mxu0 %v4282
    %4593 = vmatprep.subr.mxu0 0.0
    %4594 = vmatpush1.msra.mxu0 0.0
    %4595 = vmatprep.subr.mxu0 0.0
    %4596 = vmatpush1.msra.mxu0 0.0
    %4597 = vmatprep.subr.mxu0 0.0
    %4598 = vmatpush1.msra.mxu0 0.0
    %4599 = vmatprep.subr.mxu0 0.0
    %4600 = vmatpush1.msra.mxu0 0.0
    %4601 = vmatprep.subr.mxu0 0.0
    %4602 = vmatpush1.msra.mxu0 0.0
    %4603 = vmatprep.subr.mxu0 0.0
    %4604 = vmatpush1.msra.mxu0 0.0
    %4605 = vmatprep.subr.mxu0 0.0
    %4606 = vmatpush1.msra.mxu0 0.0
    %4607 = vmatprep.subr.mxu0 0.0
    %4608 = vmatpush1.msra.mxu0 0.0
    %4609 = vmatprep.subr.mxu0 0.0
    %4610 = vmatpush1.msra.mxu0 0.0
    %4611 = vmatprep.subr.mxu0 0.0
    %4612 = vmatpush1.msra.mxu0 0.0
    %4613 = vmatprep.subr.mxu0 0.0
    %4614 = vmatpush1.msra.mxu0 0.0
    %4615 = vmatprep.subr.mxu0 0.0
    %4616 = vmatpush1.msra.mxu0 0.0
    %4617 = vmatprep.subr.mxu0 0.0
    %4618 = vmatpush1.msra.mxu0 0.0
    %4619 = vmatprep.subr.mxu0 0.0
    %4620 = vmatpush1.msra.mxu0 0.0
    %4621 = vmatprep.subr.mxu0 0.0
    %4622 = vmatpush1.msra.mxu0 0.0
    %4623 = vmatprep.subr.mxu0 0.0
    %4624 = vmatpush1.msra.mxu0 0.0
    %4625 = vmatprep.mubr.f32.mxu0 0.0
    %4626 = vmatmul.mubr.f32.gmra.mrb[0].mxu0 %v4219
    %v4627 = vpop.f32.mrb[0].mxu0
    %v4628 = vadd.f32 %v4486, %v4627
    %v4629 = vpop.f32.mrb[0].mxu0
    %v4630 = vadd.f32 %v4488, %v4629
    %4631 = vdwg.mxu0
    %v4632 = vld [vmem:[%s4] sm:$0xf]
    %v4634 = vlaneseq
    %v4635 = vshrl.u32 %v4634, 7
    %v4636 = vsub.s32 0, %v4635
    %v4637 = vrot.slane %v4632, %v4636
    %v4638 = vlaneseq
    %v4639 = vshrl.u32 %v4638, 7
    %v4640 = vsub.s32 1, %v4639
    %v4641 = vrot.slane %v4632, %v4640
    %v4642 = vlaneseq
    %v4643 = vshrl.u32 %v4642, 7
    %v4644 = vsub.s32 2, %v4643
    %v4645 = vrot.slane %v4632, %v4644
    %v4646 = vlaneseq
    %v4647 = vshrl.u32 %v4646, 7
    %v4648 = vsub.s32 3, %v4647
    %v4649 = vrot.slane %v4632, %v4648
    %v4654 = vadd.f32 %v4557, %v4637
    %v4655 = vadd.f32 %v4559, %v4641
    %v4656 = vadd.f32 %v4628, %v4645
    %v4657 = vadd.f32 %v4630, %v4649
    %v4658 = vmul.f32 %v4654, 0.5
    %v4659 = vtanh.pop %v4658
    %v4660 = vmul.f32 %v4659, 0.5
    %v4661 = vadd.f32 %v4660, 0.5
    %v4662 = vmul.f32 %v4655, 0.5
    %v4663 = vtanh.pop %v4662
    %v4664 = vmul.f32 %v4663, 0.5
    %v4665 = vadd.f32 %v4664, 0.5
    %v4666 = vtanh.pop %v4656
    %v4667 = vmul.f32 %v4657, 0.5
    %v4668 = vtanh.pop %v4667
    %v4669 = vmul.f32 %v4668, 0.5
    %v4670 = vadd.f32 %v4669, 0.5
    %v4671 = vmul.f32 %v4665, %v3889
    %v4672 = vmul.f32 %v4661, %v4666
    %v4673 = vadd.f32 %v4671, %v4672
    %v4674 = vtanh.pop %v4673
    %v4675 = vmul.f32 %v4670, %v4674
    %v4676 = vld [vmem:[%s5] sm:$0xff]
    %v4677 = vld [vmem:[%s5 + $0x8] sm:$0xff]
    %v4678 = vld [vmem:[%s5 + $0x10] sm:$0xff]
    %v4679 = vld [vmem:[%s5 + $0x18] sm:$0xff]
    %v4680 = vld [vmem:[%s5 + $0x20] sm:$0xff]
    %v4681 = vld [vmem:[%s5 + $0x28] sm:$0xff]
    %v4682 = vld [vmem:[%s5 + $0x30] sm:$0xff]
    %v4683 = vld [vmem:[%s5 + $0x38] sm:$0xff]
    %v4684 = vld [vmem:[%s5 + $0x40] sm:$0xff]
    %v4685 = vld [vmem:[%s5 + $0x48] sm:$0xff]
    %v4686 = vld [vmem:[%s5 + $0x50] sm:$0xff]
    %v4687 = vld [vmem:[%s5 + $0x58] sm:$0xff]
    %v4688 = vld [vmem:[%s5 + $0x60] sm:$0xff]
    %v4689 = vld [vmem:[%s5 + $0x68] sm:$0xff]
    %v4690 = vld [vmem:[%s5 + $0x70] sm:$0xff]
    %v4691 = vld [vmem:[%s5 + $0x78] sm:$0xff]
    %v4692 = vld [vmem:[#allocation6] sm:$0x1]
    %v4694 = vlaneseq
    %v4695 = vshrl.u32 %v4694, 7
    %v4696 = vsub.s32 0, %v4695
    %v4697 = vrot.slane %v4692, %v4696
    %4699 = vmatprep.subr.mxu0 0.0
    %4700 = vmatpush1.msra.mxu0 %v4676
    %4701 = vmatprep.subr.mxu0 0.0
    %4702 = vmatpush1.msra.mxu0 %v4677
    %4703 = vmatprep.subr.mxu0 0.0
    %4704 = vmatpush1.msra.mxu0 %v4678
    %4705 = vmatprep.subr.mxu0 0.0
    %4706 = vmatpush1.msra.mxu0 %v4679
    %4707 = vmatprep.subr.mxu0 0.0
    %4708 = vmatpush1.msra.mxu0 %v4680
    %4709 = vmatprep.subr.mxu0 0.0
    %4710 = vmatpush1.msra.mxu0 %v4681
    %4711 = vmatprep.subr.mxu0 0.0
    %4712 = vmatpush1.msra.mxu0 %v4682
    %4713 = vmatprep.subr.mxu0 0.0
    %4714 = vmatpush1.msra.mxu0 %v4683
    %4715 = vmatprep.subr.mxu0 0.0
    %4716 = vmatpush1.msra.mxu0 %v4684
    %4717 = vmatprep.subr.mxu0 0.0
    %4718 = vmatpush1.msra.mxu0 %v4685
    %4719 = vmatprep.subr.mxu0 0.0
    %4720 = vmatpush1.msra.mxu0 %v4686
    %4721 = vmatprep.subr.mxu0 0.0
    %4722 = vmatpush1.msra.mxu0 %v4687
    %4723 = vmatprep.subr.mxu0 0.0
    %4724 = vmatpush1.msra.mxu0 %v4688
    %4725 = vmatprep.subr.mxu0 0.0
    %4726 = vmatpush1.msra.mxu0 %v4689
    %4727 = vmatprep.subr.mxu0 0.0
    %4728 = vmatpush1.msra.mxu0 %v4690
    %4729 = vmatprep.subr.mxu0 0.0
    %4730 = vmatpush1.msra.mxu0 %v4691
    %4731 = vmatprep.subr.mxu0 0.0
    %4732 = vmatpush1.msra.mxu0 0.0
    %4733 = vmatprep.subr.mxu0 0.0
    %4734 = vmatpush1.msra.mxu0 0.0
    %4735 = vmatprep.subr.mxu0 0.0
    %4736 = vmatpush1.msra.mxu0 0.0
    %4737 = vmatprep.subr.mxu0 0.0
    %4738 = vmatpush1.msra.mxu0 0.0
    %4739 = vmatprep.subr.mxu0 0.0
    %4740 = vmatpush1.msra.mxu0 0.0
    %4741 = vmatprep.subr.mxu0 0.0
    %4742 = vmatpush1.msra.mxu0 0.0
    %4743 = vmatprep.subr.mxu0 0.0
    %4744 = vmatpush1.msra.mxu0 0.0
    %4745 = vmatprep.subr.mxu0 0.0
    %4746 = vmatpush1.msra.mxu0 0.0
    %4747 = vmatprep.subr.mxu0 0.0
    %4748 = vmatpush1.msra.mxu0 0.0
    %4749 = vmatprep.subr.mxu0 0.0
    %4750 = vmatpush1.msra.mxu0 0.0
    %4751 = vmatprep.subr.mxu0 0.0
    %4752 = vmatpush1.msra.mxu0 0.0
    %4753 = vmatprep.subr.mxu0 0.0
    %4754 = vmatpush1.msra.mxu0 0.0
    %4755 = vmatprep.subr.mxu0 0.0
    %4756 = vmatpush1.msra.mxu0 0.0
    %4757 = vmatprep.subr.mxu0 0.0
    %4758 = vmatpush1.msra.mxu0 0.0
    %4759 = vmatprep.subr.mxu0 0.0
    %4760 = vmatpush1.msra.mxu0 0.0
    %4761 = vmatprep.subr.mxu0 0.0
    %4762 = vmatpush1.msra.mxu0 0.0
    %4763 = vmatprep.mubr.f32.mxu0 0.0
    %4764 = vmatmul.mubr.f32.gmra.mrb[0].mxu0 %v4675
    %v4765 = vpop.f32.mrb[0].mxu0
    %v4766 = vadd.f32 %v4697, %v4765
    %v4767 = vpop.f32.mrb[0].mxu0
    %4768 = vdwg.mxu0
    %s4769 = scalar_lea.vmem %s7, 40
    %4770 = vst.msk [vmem:[%s4769] sm:$0xff] %vm849, %v4766
    %s4771 = scalar_lea.vmem %s0, 192
    %v4772 = vld [vmem:[%s4771] sm:$0xff]
    %v4773 = vld [vmem:[%s4771 + $0x8] sm:$0xff]
    %v4774 = vld [vmem:[%s4771 + $0x10] sm:$0xff]
    %v4775 = vld [vmem:[%s4771 + $0x18] sm:$0xff]
    %v4776 = vld [vmem:[%s1] sm:$0xff]
    %v4777 = vld [vmem:[%s1 + $0x8] sm:$0xff]
    %v4778 = vld [vmem:[%s1 + $0x10] sm:$0xff]
    %v4779 = vld [vmem:[%s1 + $0x18] sm:$0xff]
    %v4780 = vld [vmem:[%s1 + $0x20] sm:$0xff]
    %v4781 = vld [vmem:[%s1 + $0x28] sm:$0xff]
    %v4782 = vld [vmem:[%s1 + $0x30] sm:$0xff]
    %v4783 = vld [vmem:[%s1 + $0x38] sm:$0xff]
    %v4784 = vld [vmem:[%s1 + $0x40] sm:$0xff]
    %v4785 = vld [vmem:[%s1 + $0x48] sm:$0xff]
    %v4786 = vld [vmem:[%s1 + $0x50] sm:$0xff]
    %v4787 = vld [vmem:[%s1 + $0x58] sm:$0xff]
    %v4788 = vld [vmem:[%s1 + $0x60] sm:$0xff]
    %v4789 = vld [vmem:[%s1 + $0x68] sm:$0xff]
    %v4790 = vld [vmem:[%s1 + $0x70] sm:$0xff]
    %v4791 = vld [vmem:[%s1 + $0x78] sm:$0xff]
    %v4792 = vld [vmem:[%s1 + $0x80] sm:$0xff]
    %v4793 = vld [vmem:[%s1 + $0x88] sm:$0xff]
    %v4794 = vld [vmem:[%s1 + $0x90] sm:$0xff]
    %v4795 = vld [vmem:[%s1 + $0x98] sm:$0xff]
    %v4796 = vld [vmem:[%s1 + $0xa0] sm:$0xff]
    %v4797 = vld [vmem:[%s1 + $0xa8] sm:$0xff]
    %v4798 = vld [vmem:[%s1 + $0xb0] sm:$0xff]
    %v4799 = vld [vmem:[%s1 + $0xb8] sm:$0xff]
    %v4800 = vld [vmem:[%s1 + $0xc0] sm:$0xff]
    %v4801 = vld [vmem:[%s1 + $0xc8] sm:$0xff]
    %v4802 = vld [vmem:[%s1 + $0xd0] sm:$0xff]
    %v4803 = vld [vmem:[%s1 + $0xd8] sm:$0xff]
    %v4804 = vld [vmem:[%s1 + $0xe0] sm:$0xff]
    %v4805 = vld [vmem:[%s1 + $0xe8] sm:$0xff]
    %v4806 = vld [vmem:[%s1 + $0xf0] sm:$0xff]
    %v4807 = vld [vmem:[%s1 + $0xf8] sm:$0xff]
    %v4808 = vld [vmem:[%s1 + $0x100] sm:$0xff]
    %v4809 = vld [vmem:[%s1 + $0x108] sm:$0xff]
    %v4810 = vld [vmem:[%s1 + $0x110] sm:$0xff]
    %v4811 = vld [vmem:[%s1 + $0x118] sm:$0xff]
    %v4812 = vld [vmem:[%s1 + $0x120] sm:$0xff]
    %v4813 = vld [vmem:[%s1 + $0x128] sm:$0xff]
    %v4814 = vld [vmem:[%s1 + $0x130] sm:$0xff]
    %v4815 = vld [vmem:[%s1 + $0x138] sm:$0xff]
    %v4816 = vld [vmem:[%s1 + $0x140] sm:$0xff]
    %v4817 = vld [vmem:[%s1 + $0x148] sm:$0xff]
    %v4818 = vld [vmem:[%s1 + $0x150] sm:$0xff]
    %v4819 = vld [vmem:[%s1 + $0x158] sm:$0xff]
    %v4820 = vld [vmem:[%s1 + $0x160] sm:$0xff]
    %v4821 = vld [vmem:[%s1 + $0x168] sm:$0xff]
    %v4822 = vld [vmem:[%s1 + $0x170] sm:$0xff]
    %v4823 = vld [vmem:[%s1 + $0x178] sm:$0xff]
    %v4824 = vld [vmem:[%s1 + $0x180] sm:$0xff]
    %v4825 = vld [vmem:[%s1 + $0x188] sm:$0xff]
    %v4826 = vld [vmem:[%s1 + $0x190] sm:$0xff]
    %v4827 = vld [vmem:[%s1 + $0x198] sm:$0xff]
    %v4828 = vld [vmem:[%s1 + $0x1a0] sm:$0xff]
    %v4829 = vld [vmem:[%s1 + $0x1a8] sm:$0xff]
    %v4830 = vld [vmem:[%s1 + $0x1b0] sm:$0xff]
    %v4831 = vld [vmem:[%s1 + $0x1b8] sm:$0xff]
    %v4832 = vld [vmem:[%s1 + $0x1c0] sm:$0xff]
    %v4833 = vld [vmem:[%s1 + $0x1c8] sm:$0xff]
    %v4834 = vld [vmem:[%s1 + $0x1d0] sm:$0xff]
    %v4835 = vld [vmem:[%s1 + $0x1d8] sm:$0xff]
    %v4836 = vld [vmem:[%s1 + $0x1e0] sm:$0xff]
    %v4837 = vld [vmem:[%s1 + $0x1e8] sm:$0xff]
    %v4838 = vld [vmem:[%s1 + $0x1f0] sm:$0xff]
    %v4839 = vld [vmem:[%s1 + $0x1f8] sm:$0xff]
    %4840 = vmatprep.subr.mxu0 %v4777
    %4841 = vmatpush1.msra.mxu0 %v4776
    %4842 = vmatprep.subr.mxu0 %v4781
    %4843 = vmatpush1.msra.mxu0 %v4780
    %4844 = vmatprep.subr.mxu0 %v4785
    %4845 = vmatpush1.msra.mxu0 %v4784
    %4846 = vmatprep.subr.mxu0 %v4789
    %4847 = vmatpush1.msra.mxu0 %v4788
    %4848 = vmatprep.subr.mxu0 %v4793
    %4849 = vmatpush1.msra.mxu0 %v4792
    %4850 = vmatprep.subr.mxu0 %v4797
    %4851 = vmatpush1.msra.mxu0 %v4796
    %4852 = vmatprep.subr.mxu0 %v4801
    %4853 = vmatpush1.msra.mxu0 %v4800
    %4854 = vmatprep.subr.mxu0 %v4805
    %4855 = vmatpush1.msra.mxu0 %v4804
    %4856 = vmatprep.subr.mxu0 %v4809
    %4857 = vmatpush1.msra.mxu0 %v4808
    %4858 = vmatprep.subr.mxu0 %v4813
    %4859 = vmatpush1.msra.mxu0 %v4812
    %4860 = vmatprep.subr.mxu0 %v4817
    %4861 = vmatpush1.msra.mxu0 %v4816
    %4862 = vmatprep.subr.mxu0 %v4821
    %4863 = vmatpush1.msra.mxu0 %v4820
    %4864 = vmatprep.subr.mxu0 %v4825
    %4865 = vmatpush1.msra.mxu0 %v4824
    %4866 = vmatprep.subr.mxu0 %v4829
    %4867 = vmatpush1.msra.mxu0 %v4828
    %4868 = vmatprep.subr.mxu0 %v4833
    %4869 = vmatpush1.msra.mxu0 %v4832
    %4870 = vmatprep.subr.mxu0 %v4837
    %4871 = vmatpush1.msra.mxu0 %v4836
    %4872 = vmatprep.subr.mxu0 0.0
    %4873 = vmatpush1.msra.mxu0 0.0
    %4874 = vmatprep.subr.mxu0 0.0
    %4875 = vmatpush1.msra.mxu0 0.0
    %4876 = vmatprep.subr.mxu0 0.0
    %4877 = vmatpush1.msra.mxu0 0.0
    %4878 = vmatprep.subr.mxu0 0.0
    %4879 = vmatpush1.msra.mxu0 0.0
    %4880 = vmatprep.subr.mxu0 0.0
    %4881 = vmatpush1.msra.mxu0 0.0
    %4882 = vmatprep.subr.mxu0 0.0
    %4883 = vmatpush1.msra.mxu0 0.0
    %4884 = vmatprep.subr.mxu0 0.0
    %4885 = vmatpush1.msra.mxu0 0.0
    %4886 = vmatprep.subr.mxu0 0.0
    %4887 = vmatpush1.msra.mxu0 0.0
    %4888 = vmatprep.subr.mxu0 0.0
    %4889 = vmatpush1.msra.mxu0 0.0
    %4890 = vmatprep.subr.mxu0 0.0
    %4891 = vmatpush1.msra.mxu0 0.0
    %4892 = vmatprep.subr.mxu0 0.0
    %4893 = vmatpush1.msra.mxu0 0.0
    %4894 = vmatprep.subr.mxu0 0.0
    %4895 = vmatpush1.msra.mxu0 0.0
    %4896 = vmatprep.subr.mxu0 0.0
    %4897 = vmatpush1.msra.mxu0 0.0
    %4898 = vmatprep.subr.mxu0 0.0
    %4899 = vmatpush1.msra.mxu0 0.0
    %4900 = vmatprep.subr.mxu0 0.0
    %4901 = vmatpush1.msra.mxu0 0.0
    %4902 = vmatprep.subr.mxu0 0.0
    %4903 = vmatpush1.msra.mxu0 0.0
    %4904 = vmatprep.mubr.f32.mxu0 0.0
    %4905 = vmatmul.mubr.f32.gmra.mrb[0].mxu0 %v4219
    %v4906 = vpop.f32.mrb[0].mxu0
    %v4907 = vadd.f32 0.0, %v4906
    %v4908 = vpop.f32.mrb[0].mxu0
    %v4909 = vadd.f32 0.0, %v4908
    %4910 = vdwg.mxu0
    %4911 = vmatprep.subr.mxu0 %v4779
    %4912 = vmatpush1.msra.mxu0 %v4778
    %4913 = vmatprep.subr.mxu0 %v4783
    %4914 = vmatpush1.msra.mxu0 %v4782
    %4915 = vmatprep.subr.mxu0 %v4787
    %4916 = vmatpush1.msra.mxu0 %v4786
    %4917 = vmatprep.subr.mxu0 %v4791
    %4918 = vmatpush1.msra.mxu0 %v4790
    %4919 = vmatprep.subr.mxu0 %v4795
    %4920 = vmatpush1.msra.mxu0 %v4794
    %4921 = vmatprep.subr.mxu0 %v4799
    %4922 = vmatpush1.msra.mxu0 %v4798
    %4923 = vmatprep.subr.mxu0 %v4803
    %4924 = vmatpush1.msra.mxu0 %v4802
    %4925 = vmatprep.subr.mxu0 %v4807
    %4926 = vmatpush1.msra.mxu0 %v4806
    %4927 = vmatprep.subr.mxu0 %v4811
    %4928 = vmatpush1.msra.mxu0 %v4810
    %4929 = vmatprep.subr.mxu0 %v4815
    %4930 = vmatpush1.msra.mxu0 %v4814
    %4931 = vmatprep.subr.mxu0 %v4819
    %4932 = vmatpush1.msra.mxu0 %v4818
    %4933 = vmatprep.subr.mxu0 %v4823
    %4934 = vmatpush1.msra.mxu0 %v4822
    %4935 = vmatprep.subr.mxu0 %v4827
    %4936 = vmatpush1.msra.mxu0 %v4826
    %4937 = vmatprep.subr.mxu0 %v4831
    %4938 = vmatpush1.msra.mxu0 %v4830
    %4939 = vmatprep.subr.mxu0 %v4835
    %4940 = vmatpush1.msra.mxu0 %v4834
    %4941 = vmatprep.subr.mxu0 %v4839
    %4942 = vmatpush1.msra.mxu0 %v4838
    %4943 = vmatprep.subr.mxu0 0.0
    %4944 = vmatpush1.msra.mxu0 0.0
    %4945 = vmatprep.subr.mxu0 0.0
    %4946 = vmatpush1.msra.mxu0 0.0
    %4947 = vmatprep.subr.mxu0 0.0
    %4948 = vmatpush1.msra.mxu0 0.0
    %4949 = vmatprep.subr.mxu0 0.0
    %4950 = vmatpush1.msra.mxu0 0.0
    %4951 = vmatprep.subr.mxu0 0.0
    %4952 = vmatpush1.msra.mxu0 0.0
    %4953 = vmatprep.subr.mxu0 0.0
    %4954 = vmatpush1.msra.mxu0 0.0
    %4955 = vmatprep.subr.mxu0 0.0
    %4956 = vmatpush1.msra.mxu0 0.0
    %4957 = vmatprep.subr.mxu0 0.0
    %4958 = vmatpush1.msra.mxu0 0.0
    %4959 = vmatprep.subr.mxu0 0.0
    %4960 = vmatpush1.msra.mxu0 0.0
    %4961 = vmatprep.subr.mxu0 0.0
    %4962 = vmatpush1.msra.mxu0 0.0
    %4963 = vmatprep.subr.mxu0 0.0
    %4964 = vmatpush1.msra.mxu0 0.0
    %4965 = vmatprep.subr.mxu0 0.0
    %4966 = vmatpush1.msra.mxu0 0.0
    %4967 = vmatprep.subr.mxu0 0.0
    %4968 = vmatpush1.msra.mxu0 0.0
    %4969 = vmatprep.subr.mxu0 0.0
    %4970 = vmatpush1.msra.mxu0 0.0
    %4971 = vmatprep.subr.mxu0 0.0
    %4972 = vmatpush1.msra.mxu0 0.0
    %4973 = vmatprep.subr.mxu0 0.0
    %4974 = vmatpush1.msra.mxu0 0.0
    %4975 = vmatprep.mubr.f32.mxu0 0.0
    %4976 = vmatmul.mubr.f32.gmra.mrb[0].mxu0 %v4219
    %v4977 = vpop.f32.mrb[0].mxu0
    %v4978 = vadd.f32 0.0, %v4977
    %v4979 = vpop.f32.mrb[0].mxu0
    %v4980 = vadd.f32 0.0, %v4979
    %4981 = vdwg.mxu0
    %v4982 = vadd.f32 %v4772, %v4907
    %v4983 = vadd.f32 %v4773, %v4909
    %v4984 = vadd.f32 %v4774, %v4978
    %v4985 = vadd.f32 %v4775, %v4980
    %v4986 = vmul.f32 %v4982, 0.5
    %v4987 = vtanh.pop %v4986
    %v4988 = vmul.f32 %v4987, 0.5
    %v4989 = vadd.f32 %v4988, 0.5
    %v4990 = vmul.f32 %v4983, 0.5
    %v4991 = vtanh.pop %v4990
    %v4992 = vmul.f32 %v4991, 0.5
    %v4993 = vadd.f32 %v4992, 0.5
    %v4994 = vtanh.pop %v4984
    %v4995 = vmul.f32 %v4985, 0.5
    %v4996 = vtanh.pop %v4995
    %v4997 = vmul.f32 %v4996, 0.5
    %v4998 = vadd.f32 %v4997, 0.5
    %v4999 = vmul.f32 %v4993, %v4217
    %v5000 = vmul.f32 %v4989, %v4994
    %v5001 = vadd.f32 %v4999, %v5000
    %v5002 = vtanh.pop %v5001
    %v5003 = vmul.f32 %v4998, %v5002
    %v5004 = vld [vmem:[#allocation7] sm:$0xff]
    %v5005 = vld [vmem:[#allocation7 + $0x8] sm:$0xff]
    %v5006 = vld [vmem:[#allocation7 + $0x10] sm:$0xff]
    %v5007 = vld [vmem:[#allocation7 + $0x18] sm:$0xff]
    %v5008 = vld [vmem:[#allocation7 + $0x20] sm:$0xff]
    %v5009 = vld [vmem:[#allocation7 + $0x28] sm:$0xff]
    %v5010 = vld [vmem:[#allocation7 + $0x30] sm:$0xff]
    %v5011 = vld [vmem:[#allocation7 + $0x38] sm:$0xff]
    %v5012 = vld [vmem:[#allocation7 + $0x40] sm:$0xff]
    %v5013 = vld [vmem:[#allocation7 + $0x48] sm:$0xff]
    %v5014 = vld [vmem:[#allocation7 + $0x50] sm:$0xff]
    %v5015 = vld [vmem:[#allocation7 + $0x58] sm:$0xff]
    %v5016 = vld [vmem:[#allocation7 + $0x60] sm:$0xff]
    %v5017 = vld [vmem:[#allocation7 + $0x68] sm:$0xff]
    %v5018 = vld [vmem:[#allocation7 + $0x70] sm:$0xff]
    %v5019 = vld [vmem:[#allocation7 + $0x78] sm:$0xff]
    %v5020 = vld [vmem:[#allocation7 + $0x80] sm:$0xff]
    %v5021 = vld [vmem:[#allocation7 + $0x88] sm:$0xff]
    %v5022 = vld [vmem:[#allocation7 + $0x90] sm:$0xff]
    %v5023 = vld [vmem:[#allocation7 + $0x98] sm:$0xff]
    %v5024 = vld [vmem:[#allocation7 + $0xa0] sm:$0xff]
    %v5025 = vld [vmem:[#allocation7 + $0xa8] sm:$0xff]
    %v5026 = vld [vmem:[#allocation7 + $0xb0] sm:$0xff]
    %v5027 = vld [vmem:[#allocation7 + $0xb8] sm:$0xff]
    %v5028 = vld [vmem:[#allocation7 + $0xc0] sm:$0xff]
    %v5029 = vld [vmem:[#allocation7 + $0xc8] sm:$0xff]
    %v5030 = vld [vmem:[#allocation7 + $0xd0] sm:$0xff]
    %v5031 = vld [vmem:[#allocation7 + $0xd8] sm:$0xff]
    %v5032 = vld [vmem:[#allocation7 + $0xe0] sm:$0xff]
    %v5033 = vld [vmem:[#allocation7 + $0xe8] sm:$0xff]
    %v5034 = vld [vmem:[#allocation7 + $0xf0] sm:$0xff]
    %v5035 = vld [vmem:[#allocation7 + $0xf8] sm:$0xff]
    %v5036 = vld [vmem:[#allocation7 + $0x100] sm:$0xff]
    %v5037 = vld [vmem:[#allocation7 + $0x108] sm:$0xff]
    %v5038 = vld [vmem:[#allocation7 + $0x110] sm:$0xff]
    %v5039 = vld [vmem:[#allocation7 + $0x118] sm:$0xff]
    %v5040 = vld [vmem:[#allocation7 + $0x120] sm:$0xff]
    %v5041 = vld [vmem:[#allocation7 + $0x128] sm:$0xff]
    %v5042 = vld [vmem:[#allocation7 + $0x130] sm:$0xff]
    %v5043 = vld [vmem:[#allocation7 + $0x138] sm:$0xff]
    %v5044 = vld [vmem:[#allocation7 + $0x140] sm:$0xff]
    %v5045 = vld [vmem:[#allocation7 + $0x148] sm:$0xff]
    %v5046 = vld [vmem:[#allocation7 + $0x150] sm:$0xff]
    %v5047 = vld [vmem:[#allocation7 + $0x158] sm:$0xff]
    %v5048 = vld [vmem:[#allocation7 + $0x160] sm:$0xff]
    %v5049 = vld [vmem:[#allocation7 + $0x168] sm:$0xff]
    %v5050 = vld [vmem:[#allocation7 + $0x170] sm:$0xff]
    %v5051 = vld [vmem:[#allocation7 + $0x178] sm:$0xff]
    %v5052 = vld [vmem:[#allocation7 + $0x180] sm:$0xff]
    %v5053 = vld [vmem:[#allocation7 + $0x188] sm:$0xff]
    %v5054 = vld [vmem:[#allocation7 + $0x190] sm:$0xff]
    %v5055 = vld [vmem:[#allocation7 + $0x198] sm:$0xff]
    %v5056 = vld [vmem:[#allocation7 + $0x1a0] sm:$0xff]
    %v5057 = vld [vmem:[#allocation7 + $0x1a8] sm:$0xff]
    %v5058 = vld [vmem:[#allocation7 + $0x1b0] sm:$0xff]
    %v5059 = vld [vmem:[#allocation7 + $0x1b8] sm:$0xff]
    %v5060 = vld [vmem:[#allocation7 + $0x1c0] sm:$0xff]
    %v5061 = vld [vmem:[#allocation7 + $0x1c8] sm:$0xff]
    %v5062 = vld [vmem:[#allocation7 + $0x1d0] sm:$0xff]
    %v5063 = vld [vmem:[#allocation7 + $0x1d8] sm:$0xff]
    %v5064 = vld [vmem:[#allocation7 + $0x1e0] sm:$0xff]
    %v5065 = vld [vmem:[#allocation7 + $0x1e8] sm:$0xff]
    %v5066 = vld [vmem:[#allocation7 + $0x1f0] sm:$0xff]
    %v5067 = vld [vmem:[#allocation7 + $0x1f8] sm:$0xff]
    %v5068 = vld [vmem:[#allocation9] sm:$0xff]
    %v5069 = vld [vmem:[#allocation9 + $0x8] sm:$0xff]
    %v5070 = vld [vmem:[#allocation9 + $0x10] sm:$0xff]
    %v5071 = vld [vmem:[#allocation9 + $0x18] sm:$0xff]
    %v5072 = vld [vmem:[#allocation9 + $0x20] sm:$0xff]
    %v5073 = vld [vmem:[#allocation9 + $0x28] sm:$0xff]
    %v5074 = vld [vmem:[#allocation9 + $0x30] sm:$0xff]
    %v5075 = vld [vmem:[#allocation9 + $0x38] sm:$0xff]
    %v5076 = vld [vmem:[#allocation9 + $0x40] sm:$0xff]
    %v5077 = vld [vmem:[#allocation9 + $0x48] sm:$0xff]
    %v5078 = vld [vmem:[#allocation9 + $0x50] sm:$0xff]
    %v5079 = vld [vmem:[#allocation9 + $0x58] sm:$0xff]
    %v5080 = vld [vmem:[#allocation9 + $0x60] sm:$0xff]
    %v5081 = vld [vmem:[#allocation9 + $0x68] sm:$0xff]
    %v5082 = vld [vmem:[#allocation9 + $0x70] sm:$0xff]
    %v5083 = vld [vmem:[#allocation9 + $0x78] sm:$0xff]
    %v5084 = vld [vmem:[#allocation9 + $0x80] sm:$0xff]
    %v5085 = vld [vmem:[#allocation9 + $0x88] sm:$0xff]
    %v5086 = vld [vmem:[#allocation9 + $0x90] sm:$0xff]
    %v5087 = vld [vmem:[#allocation9 + $0x98] sm:$0xff]
    %v5088 = vld [vmem:[#allocation9 + $0xa0] sm:$0xff]
    %v5089 = vld [vmem:[#allocation9 + $0xa8] sm:$0xff]
    %v5090 = vld [vmem:[#allocation9 + $0xb0] sm:$0xff]
    %v5091 = vld [vmem:[#allocation9 + $0xb8] sm:$0xff]
    %v5092 = vld [vmem:[#allocation9 + $0xc0] sm:$0xff]
    %v5093 = vld [vmem:[#allocation9 + $0xc8] sm:$0xff]
    %v5094 = vld [vmem:[#allocation9 + $0xd0] sm:$0xff]
    %v5095 = vld [vmem:[#allocation9 + $0xd8] sm:$0xff]
    %v5096 = vld [vmem:[#allocation9 + $0xe0] sm:$0xff]
    %v5097 = vld [vmem:[#allocation9 + $0xe8] sm:$0xff]
    %v5098 = vld [vmem:[#allocation9 + $0xf0] sm:$0xff]
    %v5099 = vld [vmem:[#allocation9 + $0xf8] sm:$0xff]
    %v5100 = vld [vmem:[#allocation9 + $0x100] sm:$0xff]
    %v5101 = vld [vmem:[#allocation9 + $0x108] sm:$0xff]
    %v5102 = vld [vmem:[#allocation9 + $0x110] sm:$0xff]
    %v5103 = vld [vmem:[#allocation9 + $0x118] sm:$0xff]
    %v5104 = vld [vmem:[#allocation9 + $0x120] sm:$0xff]
    %v5105 = vld [vmem:[#allocation9 + $0x128] sm:$0xff]
    %v5106 = vld [vmem:[#allocation9 + $0x130] sm:$0xff]
    %v5107 = vld [vmem:[#allocation9 + $0x138] sm:$0xff]
    %v5108 = vld [vmem:[#allocation9 + $0x140] sm:$0xff]
    %v5109 = vld [vmem:[#allocation9 + $0x148] sm:$0xff]
    %v5110 = vld [vmem:[#allocation9 + $0x150] sm:$0xff]
    %v5111 = vld [vmem:[#allocation9 + $0x158] sm:$0xff]
    %v5112 = vld [vmem:[#allocation9 + $0x160] sm:$0xff]
    %v5113 = vld [vmem:[#allocation9 + $0x168] sm:$0xff]
    %v5114 = vld [vmem:[#allocation9 + $0x170] sm:$0xff]
    %v5115 = vld [vmem:[#allocation9 + $0x178] sm:$0xff]
    %v5116 = vld [vmem:[#allocation9 + $0x180] sm:$0xff]
    %v5117 = vld [vmem:[#allocation9 + $0x188] sm:$0xff]
    %v5118 = vld [vmem:[#allocation9 + $0x190] sm:$0xff]
    %v5119 = vld [vmem:[#allocation9 + $0x198] sm:$0xff]
    %v5120 = vld [vmem:[#allocation9 + $0x1a0] sm:$0xff]
    %v5121 = vld [vmem:[#allocation9 + $0x1a8] sm:$0xff]
    %v5122 = vld [vmem:[#allocation9 + $0x1b0] sm:$0xff]
    %v5123 = vld [vmem:[#allocation9 + $0x1b8] sm:$0xff]
    %v5124 = vld [vmem:[#allocation9 + $0x1c0] sm:$0xff]
    %v5125 = vld [vmem:[#allocation9 + $0x1c8] sm:$0xff]
    %v5126 = vld [vmem:[#allocation9 + $0x1d0] sm:$0xff]
    %v5127 = vld [vmem:[#allocation9 + $0x1d8] sm:$0xff]
    %v5128 = vld [vmem:[#allocation9 + $0x1e0] sm:$0xff]
    %v5129 = vld [vmem:[#allocation9 + $0x1e8] sm:$0xff]
    %v5130 = vld [vmem:[#allocation9 + $0x1f0] sm:$0xff]
    %v5131 = vld [vmem:[#allocation9 + $0x1f8] sm:$0xff]
    %5132 = vmatprep.subr.mxu0 %v5069
    %5133 = vmatpush1.msra.mxu0 %v5068
    %5134 = vmatprep.subr.mxu0 %v5073
    %5135 = vmatpush1.msra.mxu0 %v5072
    %5136 = vmatprep.subr.mxu0 %v5077
    %5137 = vmatpush1.msra.mxu0 %v5076
    %5138 = vmatprep.subr.mxu0 %v5081
    %5139 = vmatpush1.msra.mxu0 %v5080
    %5140 = vmatprep.subr.mxu0 %v5085
    %5141 = vmatpush1.msra.mxu0 %v5084
    %5142 = vmatprep.subr.mxu0 %v5089
    %5143 = vmatpush1.msra.mxu0 %v5088
    %5144 = vmatprep.subr.mxu0 %v5093
    %5145 = vmatpush1.msra.mxu0 %v5092
    %5146 = vmatprep.subr.mxu0 %v5097
    %5147 = vmatpush1.msra.mxu0 %v5096
    %5148 = vmatprep.subr.mxu0 %v5101
    %5149 = vmatpush1.msra.mxu0 %v5100
    %5150 = vmatprep.subr.mxu0 %v5105
    %5151 = vmatpush1.msra.mxu0 %v5104
    %5152 = vmatprep.subr.mxu0 %v5109
    %5153 = vmatpush1.msra.mxu0 %v5108
    %5154 = vmatprep.subr.mxu0 %v5113
    %5155 = vmatpush1.msra.mxu0 %v5112
    %5156 = vmatprep.subr.mxu0 %v5117
    %5157 = vmatpush1.msra.mxu0 %v5116
    %5158 = vmatprep.subr.mxu0 %v5121
    %5159 = vmatpush1.msra.mxu0 %v5120
    %5160 = vmatprep.subr.mxu0 %v5125
    %5161 = vmatpush1.msra.mxu0 %v5124
    %5162 = vmatprep.subr.mxu0 %v5129
    %5163 = vmatpush1.msra.mxu0 %v5128
    %5164 = vmatprep.subr.mxu0 0.0
    %5165 = vmatpush1.msra.mxu0 0.0
    %5166 = vmatprep.subr.mxu0 0.0
    %5167 = vmatpush1.msra.mxu0 0.0
    %5168 = vmatprep.subr.mxu0 0.0
    %5169 = vmatpush1.msra.mxu0 0.0
    %5170 = vmatprep.subr.mxu0 0.0
    %5171 = vmatpush1.msra.mxu0 0.0
    %5172 = vmatprep.subr.mxu0 0.0
    %5173 = vmatpush1.msra.mxu0 0.0
    %5174 = vmatprep.subr.mxu0 0.0
    %5175 = vmatpush1.msra.mxu0 0.0
    %5176 = vmatprep.subr.mxu0 0.0
    %5177 = vmatpush1.msra.mxu0 0.0
    %5178 = vmatprep.subr.mxu0 0.0
    %5179 = vmatpush1.msra.mxu0 0.0
    %5180 = vmatprep.subr.mxu0 0.0
    %5181 = vmatpush1.msra.mxu0 0.0
    %5182 = vmatprep.subr.mxu0 0.0
    %5183 = vmatpush1.msra.mxu0 0.0
    %5184 = vmatprep.subr.mxu0 0.0
    %5185 = vmatpush1.msra.mxu0 0.0
    %5186 = vmatprep.subr.mxu0 0.0
    %5187 = vmatpush1.msra.mxu0 0.0
    %5188 = vmatprep.subr.mxu0 0.0
    %5189 = vmatpush1.msra.mxu0 0.0
    %5190 = vmatprep.subr.mxu0 0.0
    %5191 = vmatpush1.msra.mxu0 0.0
    %5192 = vmatprep.subr.mxu0 0.0
    %5193 = vmatpush1.msra.mxu0 0.0
    %5194 = vmatprep.subr.mxu0 0.0
    %5195 = vmatpush1.msra.mxu0 0.0
    %5196 = vmatprep.mubr.f32.mxu0 0.0
    %5197 = vmatmul.mubr.f32.gmra.mrb[0].mxu0 %v4675
    %v5198 = vpop.f32.mrb[0].mxu0
    %v5199 = vadd.f32 0.0, %v5198
    %v5200 = vpop.f32.mrb[0].mxu0
    %v5201 = vadd.f32 0.0, %v5200
    %5202 = vdwg.mxu0
    %5203 = vmatprep.subr.mxu0 %v5071
    %5204 = vmatpush1.msra.mxu0 %v5070
    %5205 = vmatprep.subr.mxu0 %v5075
    %5206 = vmatpush1.msra.mxu0 %v5074
    %5207 = vmatprep.subr.mxu0 %v5079
    %5208 = vmatpush1.msra.mxu0 %v5078
    %5209 = vmatprep.subr.mxu0 %v5083
    %5210 = vmatpush1.msra.mxu0 %v5082
    %5211 = vmatprep.subr.mxu0 %v5087
    %5212 = vmatpush1.msra.mxu0 %v5086
    %5213 = vmatprep.subr.mxu0 %v5091
    %5214 = vmatpush1.msra.mxu0 %v5090
    %5215 = vmatprep.subr.mxu0 %v5095
    %5216 = vmatpush1.msra.mxu0 %v5094
    %5217 = vmatprep.subr.mxu0 %v5099
    %5218 = vmatpush1.msra.mxu0 %v5098
    %5219 = vmatprep.subr.mxu0 %v5103
    %5220 = vmatpush1.msra.mxu0 %v5102
    %5221 = vmatprep.subr.mxu0 %v5107
    %5222 = vmatpush1.msra.mxu0 %v5106
    %5223 = vmatprep.subr.mxu0 %v5111
    %5224 = vmatpush1.msra.mxu0 %v5110
    %5225 = vmatprep.subr.mxu0 %v5115
    %5226 = vmatpush1.msra.mxu0 %v5114
    %5227 = vmatprep.subr.mxu0 %v5119
    %5228 = vmatpush1.msra.mxu0 %v5118
    %5229 = vmatprep.subr.mxu0 %v5123
    %5230 = vmatpush1.msra.mxu0 %v5122
    %5231 = vmatprep.subr.mxu0 %v5127
    %5232 = vmatpush1.msra.mxu0 %v5126
    %5233 = vmatprep.subr.mxu0 %v5131
    %5234 = vmatpush1.msra.mxu0 %v5130
    %5235 = vmatprep.subr.mxu0 0.0
    %5236 = vmatpush1.msra.mxu0 0.0
    %5237 = vmatprep.subr.mxu0 0.0
    %5238 = vmatpush1.msra.mxu0 0.0
    %5239 = vmatprep.subr.mxu0 0.0
    %5240 = vmatpush1.msra.mxu0 0.0
    %5241 = vmatprep.subr.mxu0 0.0
    %5242 = vmatpush1.msra.mxu0 0.0
    %5243 = vmatprep.subr.mxu0 0.0
    %5244 = vmatpush1.msra.mxu0 0.0
    %5245 = vmatprep.subr.mxu0 0.0
    %5246 = vmatpush1.msra.mxu0 0.0
    %5247 = vmatprep.subr.mxu0 0.0
    %5248 = vmatpush1.msra.mxu0 0.0
    %5249 = vmatprep.subr.mxu0 0.0
    %5250 = vmatpush1.msra.mxu0 0.0
    %5251 = vmatprep.subr.mxu0 0.0
    %5252 = vmatpush1.msra.mxu0 0.0
    %5253 = vmatprep.subr.mxu0 0.0
    %5254 = vmatpush1.msra.mxu0 0.0
    %5255 = vmatprep.subr.mxu0 0.0
    %5256 = vmatpush1.msra.mxu0 0.0
    %5257 = vmatprep.subr.mxu0 0.0
    %5258 = vmatpush1.msra.mxu0 0.0
    %5259 = vmatprep.subr.mxu0 0.0
    %5260 = vmatpush1.msra.mxu0 0.0
    %5261 = vmatprep.subr.mxu0 0.0
    %5262 = vmatpush1.msra.mxu0 0.0
    %5263 = vmatprep.subr.mxu0 0.0
    %5264 = vmatpush1.msra.mxu0 0.0
    %5265 = vmatprep.subr.mxu0 0.0
    %5266 = vmatpush1.msra.mxu0 0.0
    %5267 = vmatprep.mubr.f32.mxu0 0.0
    %5268 = vmatmul.mubr.f32.gmra.mrb[0].mxu0 %v4675
    %v5269 = vpop.f32.mrb[0].mxu0
    %v5270 = vadd.f32 0.0, %v5269
    %v5271 = vpop.f32.mrb[0].mxu0
    %v5272 = vadd.f32 0.0, %v5271
    %5273 = vdwg.mxu0
    %5274 = vmatprep.subr.mxu0 %v5005
    %5275 = vmatpush1.msra.mxu0 %v5004
    %5276 = vmatprep.subr.mxu0 %v5009
    %5277 = vmatpush1.msra.mxu0 %v5008
    %5278 = vmatprep.subr.mxu0 %v5013
    %5279 = vmatpush1.msra.mxu0 %v5012
    %5280 = vmatprep.subr.mxu0 %v5017
    %5281 = vmatpush1.msra.mxu0 %v5016
    %5282 = vmatprep.subr.mxu0 %v5021
    %5283 = vmatpush1.msra.mxu0 %v5020
    %5284 = vmatprep.subr.mxu0 %v5025
    %5285 = vmatpush1.msra.mxu0 %v5024
    %5286 = vmatprep.subr.mxu0 %v5029
    %5287 = vmatpush1.msra.mxu0 %v5028
    %5288 = vmatprep.subr.mxu0 %v5033
    %5289 = vmatpush1.msra.mxu0 %v5032
    %5290 = vmatprep.subr.mxu0 %v5037
    %5291 = vmatpush1.msra.mxu0 %v5036
    %5292 = vmatprep.subr.mxu0 %v5041
    %5293 = vmatpush1.msra.mxu0 %v5040
    %5294 = vmatprep.subr.mxu0 %v5045
    %5295 = vmatpush1.msra.mxu0 %v5044
    %5296 = vmatprep.subr.mxu0 %v5049
    %5297 = vmatpush1.msra.mxu0 %v5048
    %5298 = vmatprep.subr.mxu0 %v5053
    %5299 = vmatpush1.msra.mxu0 %v5052
    %5300 = vmatprep.subr.mxu0 %v5057
    %5301 = vmatpush1.msra.mxu0 %v5056
    %5302 = vmatprep.subr.mxu0 %v5061
    %5303 = vmatpush1.msra.mxu0 %v5060
    %5304 = vmatprep.subr.mxu0 %v5065
    %5305 = vmatpush1.msra.mxu0 %v5064
    %5306 = vmatprep.subr.mxu0 0.0
    %5307 = vmatpush1.msra.mxu0 0.0
    %5308 = vmatprep.subr.mxu0 0.0
    %5309 = vmatpush1.msra.mxu0 0.0
    %5310 = vmatprep.subr.mxu0 0.0
    %5311 = vmatpush1.msra.mxu0 0.0
    %5312 = vmatprep.subr.mxu0 0.0
    %5313 = vmatpush1.msra.mxu0 0.0
    %5314 = vmatprep.subr.mxu0 0.0
    %5315 = vmatpush1.msra.mxu0 0.0
    %5316 = vmatprep.subr.mxu0 0.0
    %5317 = vmatpush1.msra.mxu0 0.0
    %5318 = vmatprep.subr.mxu0 0.0
    %5319 = vmatpush1.msra.mxu0 0.0
    %5320 = vmatprep.subr.mxu0 0.0
    %5321 = vmatpush1.msra.mxu0 0.0
    %5322 = vmatprep.subr.mxu0 0.0
    %5323 = vmatpush1.msra.mxu0 0.0
    %5324 = vmatprep.subr.mxu0 0.0
    %5325 = vmatpush1.msra.mxu0 0.0
    %5326 = vmatprep.subr.mxu0 0.0
    %5327 = vmatpush1.msra.mxu0 0.0
    %5328 = vmatprep.subr.mxu0 0.0
    %5329 = vmatpush1.msra.mxu0 0.0
    %5330 = vmatprep.subr.mxu0 0.0
    %5331 = vmatpush1.msra.mxu0 0.0
    %5332 = vmatprep.subr.mxu0 0.0
    %5333 = vmatpush1.msra.mxu0 0.0
    %5334 = vmatprep.subr.mxu0 0.0
    %5335 = vmatpush1.msra.mxu0 0.0
    %5336 = vmatprep.subr.mxu0 0.0
    %5337 = vmatpush1.msra.mxu0 0.0
    %5338 = vmatprep.mubr.f32.mxu0 0.0
    %5339 = vmatmul.mubr.f32.gmra.mrb[0].mxu0 %v5003
    %v5340 = vpop.f32.mrb[0].mxu0
    %v5341 = vadd.f32 %v5199, %v5340
    %v5342 = vpop.f32.mrb[0].mxu0
    %v5343 = vadd.f32 %v5201, %v5342
    %5344 = vdwg.mxu0
    %5345 = vmatprep.subr.mxu0 %v5007
    %5346 = vmatpush1.msra.mxu0 %v5006
    %5347 = vmatprep.subr.mxu0 %v5011
    %5348 = vmatpush1.msra.mxu0 %v5010
    %5349 = vmatprep.subr.mxu0 %v5015
    %5350 = vmatpush1.msra.mxu0 %v5014
    %5351 = vmatprep.subr.mxu0 %v5019
    %5352 = vmatpush1.msra.mxu0 %v5018
    %5353 = vmatprep.subr.mxu0 %v5023
    %5354 = vmatpush1.msra.mxu0 %v5022
    %5355 = vmatprep.subr.mxu0 %v5027
    %5356 = vmatpush1.msra.mxu0 %v5026
    %5357 = vmatprep.subr.mxu0 %v5031
    %5358 = vmatpush1.msra.mxu0 %v5030
    %5359 = vmatprep.subr.mxu0 %v5035
    %5360 = vmatpush1.msra.mxu0 %v5034
    %5361 = vmatprep.subr.mxu0 %v5039
    %5362 = vmatpush1.msra.mxu0 %v5038
    %5363 = vmatprep.subr.mxu0 %v5043
    %5364 = vmatpush1.msra.mxu0 %v5042
    %5365 = vmatprep.subr.mxu0 %v5047
    %5366 = vmatpush1.msra.mxu0 %v5046
    %5367 = vmatprep.subr.mxu0 %v5051
    %5368 = vmatpush1.msra.mxu0 %v5050
    %5369 = vmatprep.subr.mxu0 %v5055
    %5370 = vmatpush1.msra.mxu0 %v5054
    %5371 = vmatprep.subr.mxu0 %v5059
    %5372 = vmatpush1.msra.mxu0 %v5058
    %5373 = vmatprep.subr.mxu0 %v5063
    %5374 = vmatpush1.msra.mxu0 %v5062
    %5375 = vmatprep.subr.mxu0 %v5067
    %5376 = vmatpush1.msra.mxu0 %v5066
    %5377 = vmatprep.subr.mxu0 0.0
    %5378 = vmatpush1.msra.mxu0 0.0
    %5379 = vmatprep.subr.mxu0 0.0
    %5380 = vmatpush1.msra.mxu0 0.0
    %5381 = vmatprep.subr.mxu0 0.0
    %5382 = vmatpush1.msra.mxu0 0.0
    %5383 = vmatprep.subr.mxu0 0.0
    %5384 = vmatpush1.msra.mxu0 0.0
    %5385 = vmatprep.subr.mxu0 0.0
    %5386 = vmatpush1.msra.mxu0 0.0
    %5387 = vmatprep.subr.mxu0 0.0
    %5388 = vmatpush1.msra.mxu0 0.0
    %5389 = vmatprep.subr.mxu0 0.0
    %5390 = vmatpush1.msra.mxu0 0.0
    %5391 = vmatprep.subr.mxu0 0.0
    %5392 = vmatpush1.msra.mxu0 0.0
    %5393 = vmatprep.subr.mxu0 0.0
    %5394 = vmatpush1.msra.mxu0 0.0
    %5395 = vmatprep.subr.mxu0 0.0
    %5396 = vmatpush1.msra.mxu0 0.0
    %5397 = vmatprep.subr.mxu0 0.0
    %5398 = vmatpush1.msra.mxu0 0.0
    %5399 = vmatprep.subr.mxu0 0.0
    %5400 = vmatpush1.msra.mxu0 0.0
    %5401 = vmatprep.subr.mxu0 0.0
    %5402 = vmatpush1.msra.mxu0 0.0
    %5403 = vmatprep.subr.mxu0 0.0
    %5404 = vmatpush1.msra.mxu0 0.0
    %5405 = vmatprep.subr.mxu0 0.0
    %5406 = vmatpush1.msra.mxu0 0.0
    %5407 = vmatprep.subr.mxu0 0.0
    %5408 = vmatpush1.msra.mxu0 0.0
    %5409 = vmatprep.mubr.f32.mxu0 0.0
    %5410 = vmatmul.mubr.f32.gmra.mrb[0].mxu0 %v5003
    %v5411 = vpop.f32.mrb[0].mxu0
    %v5412 = vadd.f32 %v5270, %v5411
    %v5413 = vpop.f32.mrb[0].mxu0
    %v5414 = vadd.f32 %v5272, %v5413
    %5415 = vdwg.mxu0
    %v5416 = vld [vmem:[%s4] sm:$0xf]
    %v5418 = vlaneseq
    %v5419 = vshrl.u32 %v5418, 7
    %v5420 = vsub.s32 0, %v5419
    %v5421 = vrot.slane %v5416, %v5420
    %v5422 = vlaneseq
    %v5423 = vshrl.u32 %v5422, 7
    %v5424 = vsub.s32 1, %v5423
    %v5425 = vrot.slane %v5416, %v5424
    %v5426 = vlaneseq
    %v5427 = vshrl.u32 %v5426, 7
    %v5428 = vsub.s32 2, %v5427
    %v5429 = vrot.slane %v5416, %v5428
    %v5430 = vlaneseq
    %v5431 = vshrl.u32 %v5430, 7
    %v5432 = vsub.s32 3, %v5431
    %v5433 = vrot.slane %v5416, %v5432
    %v5438 = vadd.f32 %v5341, %v5421
    %v5439 = vadd.f32 %v5343, %v5425
    %v5440 = vadd.f32 %v5412, %v5429
    %v5441 = vadd.f32 %v5414, %v5433
    %v5442 = vmul.f32 %v5438, 0.5
    %v5443 = vtanh.pop %v5442
    %v5444 = vmul.f32 %v5443, 0.5
    %v5445 = vadd.f32 %v5444, 0.5
    %v5446 = vmul.f32 %v5439, 0.5
    %v5447 = vtanh.pop %v5446
    %v5448 = vmul.f32 %v5447, 0.5
    %v5449 = vadd.f32 %v5448, 0.5
    %v5450 = vtanh.pop %v5440
    %v5451 = vmul.f32 %v5441, 0.5
    %v5452 = vtanh.pop %v5451
    %v5453 = vmul.f32 %v5452, 0.5
    %v5454 = vadd.f32 %v5453, 0.5
    %v5455 = vmul.f32 %v5449, %v4673
    %v5456 = vmul.f32 %v5445, %v5450
    %v5457 = vadd.f32 %v5455, %v5456
    %v5458 = vtanh.pop %v5457
    %v5459 = vmul.f32 %v5454, %v5458
    %v5460 = vld [vmem:[%s5] sm:$0xff]
    %v5461 = vld [vmem:[%s5 + $0x8] sm:$0xff]
    %v5462 = vld [vmem:[%s5 + $0x10] sm:$0xff]
    %v5463 = vld [vmem:[%s5 + $0x18] sm:$0xff]
    %v5464 = vld [vmem:[%s5 + $0x20] sm:$0xff]
    %v5465 = vld [vmem:[%s5 + $0x28] sm:$0xff]
    %v5466 = vld [vmem:[%s5 + $0x30] sm:$0xff]
    %v5467 = vld [vmem:[%s5 + $0x38] sm:$0xff]
    %v5468 = vld [vmem:[%s5 + $0x40] sm:$0xff]
    %v5469 = vld [vmem:[%s5 + $0x48] sm:$0xff]
    %v5470 = vld [vmem:[%s5 + $0x50] sm:$0xff]
    %v5471 = vld [vmem:[%s5 + $0x58] sm:$0xff]
    %v5472 = vld [vmem:[%s5 + $0x60] sm:$0xff]
    %v5473 = vld [vmem:[%s5 + $0x68] sm:$0xff]
    %v5474 = vld [vmem:[%s5 + $0x70] sm:$0xff]
    %v5475 = vld [vmem:[%s5 + $0x78] sm:$0xff]
    %v5476 = vld [vmem:[#allocation6] sm:$0x1]
    %v5478 = vlaneseq
    %v5479 = vshrl.u32 %v5478, 7
    %v5480 = vsub.s32 0, %v5479
    %v5481 = vrot.slane %v5476, %v5480
    %5483 = vmatprep.subr.mxu0 0.0
    %5484 = vmatpush1.msra.mxu0 %v5460
    %5485 = vmatprep.subr.mxu0 0.0
    %5486 = vmatpush1.msra.mxu0 %v5461
    %5487 = vmatprep.subr.mxu0 0.0
    %5488 = vmatpush1.msra.mxu0 %v5462
    %5489 = vmatprep.subr.mxu0 0.0
    %5490 = vmatpush1.msra.mxu0 %v5463
    %5491 = vmatprep.subr.mxu0 0.0
    %5492 = vmatpush1.msra.mxu0 %v5464
    %5493 = vmatprep.subr.mxu0 0.0
    %5494 = vmatpush1.msra.mxu0 %v5465
    %5495 = vmatprep.subr.mxu0 0.0
    %5496 = vmatpush1.msra.mxu0 %v5466
    %5497 = vmatprep.subr.mxu0 0.0
    %5498 = vmatpush1.msra.mxu0 %v5467
    %5499 = vmatprep.subr.mxu0 0.0
    %5500 = vmatpush1.msra.mxu0 %v5468
    %5501 = vmatprep.subr.mxu0 0.0
    %5502 = vmatpush1.msra.mxu0 %v5469
    %5503 = vmatprep.subr.mxu0 0.0
    %5504 = vmatpush1.msra.mxu0 %v5470
    %5505 = vmatprep.subr.mxu0 0.0
    %5506 = vmatpush1.msra.mxu0 %v5471
    %5507 = vmatprep.subr.mxu0 0.0
    %5508 = vmatpush1.msra.mxu0 %v5472
    %5509 = vmatprep.subr.mxu0 0.0
    %5510 = vmatpush1.msra.mxu0 %v5473
    %5511 = vmatprep.subr.mxu0 0.0
    %5512 = vmatpush1.msra.mxu0 %v5474
    %5513 = vmatprep.subr.mxu0 0.0
    %5514 = vmatpush1.msra.mxu0 %v5475
    %5515 = vmatprep.subr.mxu0 0.0
    %5516 = vmatpush1.msra.mxu0 0.0
    %5517 = vmatprep.subr.mxu0 0.0
    %5518 = vmatpush1.msra.mxu0 0.0
    %5519 = vmatprep.subr.mxu0 0.0
    %5520 = vmatpush1.msra.mxu0 0.0
    %5521 = vmatprep.subr.mxu0 0.0
    %5522 = vmatpush1.msra.mxu0 0.0
    %5523 = vmatprep.subr.mxu0 0.0
    %5524 = vmatpush1.msra.mxu0 0.0
    %5525 = vmatprep.subr.mxu0 0.0
    %5526 = vmatpush1.msra.mxu0 0.0
    %5527 = vmatprep.subr.mxu0 0.0
    %5528 = vmatpush1.msra.mxu0 0.0
    %5529 = vmatprep.subr.mxu0 0.0
    %5530 = vmatpush1.msra.mxu0 0.0
    %5531 = vmatprep.subr.mxu0 0.0
    %5532 = vmatpush1.msra.mxu0 0.0
    %5533 = vmatprep.subr.mxu0 0.0
    %5534 = vmatpush1.msra.mxu0 0.0
    %5535 = vmatprep.subr.mxu0 0.0
    %5536 = vmatpush1.msra.mxu0 0.0
    %5537 = vmatprep.subr.mxu0 0.0
    %5538 = vmatpush1.msra.mxu0 0.0
    %5539 = vmatprep.subr.mxu0 0.0
    %5540 = vmatpush1.msra.mxu0 0.0
    %5541 = vmatprep.subr.mxu0 0.0
    %5542 = vmatpush1.msra.mxu0 0.0
    %5543 = vmatprep.subr.mxu0 0.0
    %5544 = vmatpush1.msra.mxu0 0.0
    %5545 = vmatprep.subr.mxu0 0.0
    %5546 = vmatpush1.msra.mxu0 0.0
    %5547 = vmatprep.mubr.f32.mxu0 0.0
    %5548 = vmatmul.mubr.f32.gmra.mrb[0].mxu0 %v5459
    %v5549 = vpop.f32.mrb[0].mxu0
    %v5550 = vadd.f32 %v5481, %v5549
    %v5551 = vpop.f32.mrb[0].mxu0
    %5552 = vdwg.mxu0
    %s5553 = scalar_lea.vmem %s7, 48
    %5554 = vst.msk [vmem:[%s5553] sm:$0xff] %vm849, %v5550
    %s5555 = scalar_lea.vmem %s0, 224
    %v5556 = vld [vmem:[%s5555] sm:$0xff]
    %v5557 = vld [vmem:[%s5555 + $0x8] sm:$0xff]
    %v5558 = vld [vmem:[%s5555 + $0x10] sm:$0xff]
    %v5559 = vld [vmem:[%s5555 + $0x18] sm:$0xff]
    %v5560 = vld [vmem:[%s1] sm:$0xff]
    %v5561 = vld [vmem:[%s1 + $0x8] sm:$0xff]
    %v5562 = vld [vmem:[%s1 + $0x10] sm:$0xff]
    %v5563 = vld [vmem:[%s1 + $0x18] sm:$0xff]
    %v5564 = vld [vmem:[%s1 + $0x20] sm:$0xff]
    %v5565 = vld [vmem:[%s1 + $0x28] sm:$0xff]
    %v5566 = vld [vmem:[%s1 + $0x30] sm:$0xff]
    %v5567 = vld [vmem:[%s1 + $0x38] sm:$0xff]
    %v5568 = vld [vmem:[%s1 + $0x40] sm:$0xff]
    %v5569 = vld [vmem:[%s1 + $0x48] sm:$0xff]
    %v5570 = vld [vmem:[%s1 + $0x50] sm:$0xff]
    %v5571 = vld [vmem:[%s1 + $0x58] sm:$0xff]
    %v5572 = vld [vmem:[%s1 + $0x60] sm:$0xff]
    %v5573 = vld [vmem:[%s1 + $0x68] sm:$0xff]
    %v5574 = vld [vmem:[%s1 + $0x70] sm:$0xff]
    %v5575 = vld [vmem:[%s1 + $0x78] sm:$0xff]
    %v5576 = vld [vmem:[%s1 + $0x80] sm:$0xff]
    %v5577 = vld [vmem:[%s1 + $0x88] sm:$0xff]
    %v5578 = vld [vmem:[%s1 + $0x90] sm:$0xff]
    %v5579 = vld [vmem:[%s1 + $0x98] sm:$0xff]
    %v5580 = vld [vmem:[%s1 + $0xa0] sm:$0xff]
    %v5581 = vld [vmem:[%s1 + $0xa8] sm:$0xff]
    %v5582 = vld [vmem:[%s1 + $0xb0] sm:$0xff]
    %v5583 = vld [vmem:[%s1 + $0xb8] sm:$0xff]
    %v5584 = vld [vmem:[%s1 + $0xc0] sm:$0xff]
    %v5585 = vld [vmem:[%s1 + $0xc8] sm:$0xff]
    %v5586 = vld [vmem:[%s1 + $0xd0] sm:$0xff]
    %v5587 = vld [vmem:[%s1 + $0xd8] sm:$0xff]
    %v5588 = vld [vmem:[%s1 + $0xe0] sm:$0xff]
    %v5589 = vld [vmem:[%s1 + $0xe8] sm:$0xff]
    %v5590 = vld [vmem:[%s1 + $0xf0] sm:$0xff]
    %v5591 = vld [vmem:[%s1 + $0xf8] sm:$0xff]
    %v5592 = vld [vmem:[%s1 + $0x100] sm:$0xff]
    %v5593 = vld [vmem:[%s1 + $0x108] sm:$0xff]
    %v5594 = vld [vmem:[%s1 + $0x110] sm:$0xff]
    %v5595 = vld [vmem:[%s1 + $0x118] sm:$0xff]
    %v5596 = vld [vmem:[%s1 + $0x120] sm:$0xff]
    %v5597 = vld [vmem:[%s1 + $0x128] sm:$0xff]
    %v5598 = vld [vmem:[%s1 + $0x130] sm:$0xff]
    %v5599 = vld [vmem:[%s1 + $0x138] sm:$0xff]
    %v5600 = vld [vmem:[%s1 + $0x140] sm:$0xff]
    %v5601 = vld [vmem:[%s1 + $0x148] sm:$0xff]
    %v5602 = vld [vmem:[%s1 + $0x150] sm:$0xff]
    %v5603 = vld [vmem:[%s1 + $0x158] sm:$0xff]
    %v5604 = vld [vmem:[%s1 + $0x160] sm:$0xff]
    %v5605 = vld [vmem:[%s1 + $0x168] sm:$0xff]
    %v5606 = vld [vmem:[%s1 + $0x170] sm:$0xff]
    %v5607 = vld [vmem:[%s1 + $0x178] sm:$0xff]
    %v5608 = vld [vmem:[%s1 + $0x180] sm:$0xff]
    %v5609 = vld [vmem:[%s1 + $0x188] sm:$0xff]
    %v5610 = vld [vmem:[%s1 + $0x190] sm:$0xff]
    %v5611 = vld [vmem:[%s1 + $0x198] sm:$0xff]
    %v5612 = vld [vmem:[%s1 + $0x1a0] sm:$0xff]
    %v5613 = vld [vmem:[%s1 + $0x1a8] sm:$0xff]
    %v5614 = vld [vmem:[%s1 + $0x1b0] sm:$0xff]
    %v5615 = vld [vmem:[%s1 + $0x1b8] sm:$0xff]
    %v5616 = vld [vmem:[%s1 + $0x1c0] sm:$0xff]
    %v5617 = vld [vmem:[%s1 + $0x1c8] sm:$0xff]
    %v5618 = vld [vmem:[%s1 + $0x1d0] sm:$0xff]
    %v5619 = vld [vmem:[%s1 + $0x1d8] sm:$0xff]
    %v5620 = vld [vmem:[%s1 + $0x1e0] sm:$0xff]
    %v5621 = vld [vmem:[%s1 + $0x1e8] sm:$0xff]
    %v5622 = vld [vmem:[%s1 + $0x1f0] sm:$0xff]
    %v5623 = vld [vmem:[%s1 + $0x1f8] sm:$0xff]
    %5624 = vmatprep.subr.mxu0 %v5561
    %5625 = vmatpush1.msra.mxu0 %v5560
    %5626 = vmatprep.subr.mxu0 %v5565
    %5627 = vmatpush1.msra.mxu0 %v5564
    %5628 = vmatprep.subr.mxu0 %v5569
    %5629 = vmatpush1.msra.mxu0 %v5568
    %5630 = vmatprep.subr.mxu0 %v5573
    %5631 = vmatpush1.msra.mxu0 %v5572
    %5632 = vmatprep.subr.mxu0 %v5577
    %5633 = vmatpush1.msra.mxu0 %v5576
    %5634 = vmatprep.subr.mxu0 %v5581
    %5635 = vmatpush1.msra.mxu0 %v5580
    %5636 = vmatprep.subr.mxu0 %v5585
    %5637 = vmatpush1.msra.mxu0 %v5584
    %5638 = vmatprep.subr.mxu0 %v5589
    %5639 = vmatpush1.msra.mxu0 %v5588
    %5640 = vmatprep.subr.mxu0 %v5593
    %5641 = vmatpush1.msra.mxu0 %v5592
    %5642 = vmatprep.subr.mxu0 %v5597
    %5643 = vmatpush1.msra.mxu0 %v5596
    %5644 = vmatprep.subr.mxu0 %v5601
    %5645 = vmatpush1.msra.mxu0 %v5600
    %5646 = vmatprep.subr.mxu0 %v5605
    %5647 = vmatpush1.msra.mxu0 %v5604
    %5648 = vmatprep.subr.mxu0 %v5609
    %5649 = vmatpush1.msra.mxu0 %v5608
    %5650 = vmatprep.subr.mxu0 %v5613
    %5651 = vmatpush1.msra.mxu0 %v5612
    %5652 = vmatprep.subr.mxu0 %v5617
    %5653 = vmatpush1.msra.mxu0 %v5616
    %5654 = vmatprep.subr.mxu0 %v5621
    %5655 = vmatpush1.msra.mxu0 %v5620
    %5656 = vmatprep.subr.mxu0 0.0
    %5657 = vmatpush1.msra.mxu0 0.0
    %5658 = vmatprep.subr.mxu0 0.0
    %5659 = vmatpush1.msra.mxu0 0.0
    %5660 = vmatprep.subr.mxu0 0.0
    %5661 = vmatpush1.msra.mxu0 0.0
    %5662 = vmatprep.subr.mxu0 0.0
    %5663 = vmatpush1.msra.mxu0 0.0
    %5664 = vmatprep.subr.mxu0 0.0
    %5665 = vmatpush1.msra.mxu0 0.0
    %5666 = vmatprep.subr.mxu0 0.0
    %5667 = vmatpush1.msra.mxu0 0.0
    %5668 = vmatprep.subr.mxu0 0.0
    %5669 = vmatpush1.msra.mxu0 0.0
    %5670 = vmatprep.subr.mxu0 0.0
    %5671 = vmatpush1.msra.mxu0 0.0
    %5672 = vmatprep.subr.mxu0 0.0
    %5673 = vmatpush1.msra.mxu0 0.0
    %5674 = vmatprep.subr.mxu0 0.0
    %5675 = vmatpush1.msra.mxu0 0.0
    %5676 = vmatprep.subr.mxu0 0.0
    %5677 = vmatpush1.msra.mxu0 0.0
    %5678 = vmatprep.subr.mxu0 0.0
    %5679 = vmatpush1.msra.mxu0 0.0
    %5680 = vmatprep.subr.mxu0 0.0
    %5681 = vmatpush1.msra.mxu0 0.0
    %5682 = vmatprep.subr.mxu0 0.0
    %5683 = vmatpush1.msra.mxu0 0.0
    %5684 = vmatprep.subr.mxu0 0.0
    %5685 = vmatpush1.msra.mxu0 0.0
    %5686 = vmatprep.subr.mxu0 0.0
    %5687 = vmatpush1.msra.mxu0 0.0
    %5688 = vmatprep.mubr.f32.mxu0 0.0
    %5689 = vmatmul.mubr.f32.gmra.mrb[0].mxu0 %v5003
    %v5690 = vpop.f32.mrb[0].mxu0
    %v5691 = vadd.f32 0.0, %v5690
    %v5692 = vpop.f32.mrb[0].mxu0
    %v5693 = vadd.f32 0.0, %v5692
    %5694 = vdwg.mxu0
    %5695 = vmatprep.subr.mxu0 %v5563
    %5696 = vmatpush1.msra.mxu0 %v5562
    %5697 = vmatprep.subr.mxu0 %v5567
    %5698 = vmatpush1.msra.mxu0 %v5566
    %5699 = vmatprep.subr.mxu0 %v5571
    %5700 = vmatpush1.msra.mxu0 %v5570
    %5701 = vmatprep.subr.mxu0 %v5575
    %5702 = vmatpush1.msra.mxu0 %v5574
    %5703 = vmatprep.subr.mxu0 %v5579
    %5704 = vmatpush1.msra.mxu0 %v5578
    %5705 = vmatprep.subr.mxu0 %v5583
    %5706 = vmatpush1.msra.mxu0 %v5582
    %5707 = vmatprep.subr.mxu0 %v5587
    %5708 = vmatpush1.msra.mxu0 %v5586
    %5709 = vmatprep.subr.mxu0 %v5591
    %5710 = vmatpush1.msra.mxu0 %v5590
    %5711 = vmatprep.subr.mxu0 %v5595
    %5712 = vmatpush1.msra.mxu0 %v5594
    %5713 = vmatprep.subr.mxu0 %v5599
    %5714 = vmatpush1.msra.mxu0 %v5598
    %5715 = vmatprep.subr.mxu0 %v5603
    %5716 = vmatpush1.msra.mxu0 %v5602
    %5717 = vmatprep.subr.mxu0 %v5607
    %5718 = vmatpush1.msra.mxu0 %v5606
    %5719 = vmatprep.subr.mxu0 %v5611
    %5720 = vmatpush1.msra.mxu0 %v5610
    %5721 = vmatprep.subr.mxu0 %v5615
    %5722 = vmatpush1.msra.mxu0 %v5614
    %5723 = vmatprep.subr.mxu0 %v5619
    %5724 = vmatpush1.msra.mxu0 %v5618
    %5725 = vmatprep.subr.mxu0 %v5623
    %5726 = vmatpush1.msra.mxu0 %v5622
    %5727 = vmatprep.subr.mxu0 0.0
    %5728 = vmatpush1.msra.mxu0 0.0
    %5729 = vmatprep.subr.mxu0 0.0
    %5730 = vmatpush1.msra.mxu0 0.0
    %5731 = vmatprep.subr.mxu0 0.0
    %5732 = vmatpush1.msra.mxu0 0.0
    %5733 = vmatprep.subr.mxu0 0.0
    %5734 = vmatpush1.msra.mxu0 0.0
    %5735 = vmatprep.subr.mxu0 0.0
    %5736 = vmatpush1.msra.mxu0 0.0
    %5737 = vmatprep.subr.mxu0 0.0
    %5738 = vmatpush1.msra.mxu0 0.0
    %5739 = vmatprep.subr.mxu0 0.0
    %5740 = vmatpush1.msra.mxu0 0.0
    %5741 = vmatprep.subr.mxu0 0.0
    %5742 = vmatpush1.msra.mxu0 0.0
    %5743 = vmatprep.subr.mxu0 0.0
    %5744 = vmatpush1.msra.mxu0 0.0
    %5745 = vmatprep.subr.mxu0 0.0
    %5746 = vmatpush1.msra.mxu0 0.0
    %5747 = vmatprep.subr.mxu0 0.0
    %5748 = vmatpush1.msra.mxu0 0.0
    %5749 = vmatprep.subr.mxu0 0.0
    %5750 = vmatpush1.msra.mxu0 0.0
    %5751 = vmatprep.subr.mxu0 0.0
    %5752 = vmatpush1.msra.mxu0 0.0
    %5753 = vmatprep.subr.mxu0 0.0
    %5754 = vmatpush1.msra.mxu0 0.0
    %5755 = vmatprep.subr.mxu0 0.0
    %5756 = vmatpush1.msra.mxu0 0.0
    %5757 = vmatprep.subr.mxu0 0.0
    %5758 = vmatpush1.msra.mxu0 0.0
    %5759 = vmatprep.mubr.f32.mxu0 0.0
    %5760 = vmatmul.mubr.f32.gmra.mrb[0].mxu0 %v5003
    %v5761 = vpop.f32.mrb[0].mxu0
    %v5762 = vadd.f32 0.0, %v5761
    %v5763 = vpop.f32.mrb[0].mxu0
    %v5764 = vadd.f32 0.0, %v5763
    %5765 = vdwg.mxu0
    %v5766 = vadd.f32 %v5556, %v5691
    %v5767 = vadd.f32 %v5557, %v5693
    %v5768 = vadd.f32 %v5558, %v5762
    %v5769 = vadd.f32 %v5559, %v5764
    %v5770 = vmul.f32 %v5766, 0.5
    %v5771 = vtanh.pop %v5770
    %v5772 = vmul.f32 %v5771, 0.5
    %v5773 = vadd.f32 %v5772, 0.5
    %v5774 = vmul.f32 %v5767, 0.5
    %v5775 = vtanh.pop %v5774
    %v5776 = vmul.f32 %v5775, 0.5
    %v5777 = vadd.f32 %v5776, 0.5
    %v5778 = vtanh.pop %v5768
    %v5779 = vmul.f32 %v5769, 0.5
    %v5780 = vtanh.pop %v5779
    %v5781 = vmul.f32 %v5780, 0.5
    %v5782 = vadd.f32 %v5781, 0.5
    %v5783 = vmul.f32 %v5777, %v5001
    %v5784 = vmul.f32 %v5773, %v5778
    %v5785 = vadd.f32 %v5783, %v5784
    %v5786 = vtanh.pop %v5785
    %v5787 = vmul.f32 %v5782, %v5786
    %v5788 = vld [vmem:[#allocation7] sm:$0xff]
    %v5789 = vld [vmem:[#allocation7 + $0x8] sm:$0xff]
    %v5790 = vld [vmem:[#allocation7 + $0x10] sm:$0xff]
    %v5791 = vld [vmem:[#allocation7 + $0x18] sm:$0xff]
    %v5792 = vld [vmem:[#allocation7 + $0x20] sm:$0xff]
    %v5793 = vld [vmem:[#allocation7 + $0x28] sm:$0xff]
    %v5794 = vld [vmem:[#allocation7 + $0x30] sm:$0xff]
    %v5795 = vld [vmem:[#allocation7 + $0x38] sm:$0xff]
    %v5796 = vld [vmem:[#allocation7 + $0x40] sm:$0xff]
    %v5797 = vld [vmem:[#allocation7 + $0x48] sm:$0xff]
    %v5798 = vld [vmem:[#allocation7 + $0x50] sm:$0xff]
    %v5799 = vld [vmem:[#allocation7 + $0x58] sm:$0xff]
    %v5800 = vld [vmem:[#allocation7 + $0x60] sm:$0xff]
    %v5801 = vld [vmem:[#allocation7 + $0x68] sm:$0xff]
    %v5802 = vld [vmem:[#allocation7 + $0x70] sm:$0xff]
    %v5803 = vld [vmem:[#allocation7 + $0x78] sm:$0xff]
    %v5804 = vld [vmem:[#allocation7 + $0x80] sm:$0xff]
    %v5805 = vld [vmem:[#allocation7 + $0x88] sm:$0xff]
    %v5806 = vld [vmem:[#allocation7 + $0x90] sm:$0xff]
    %v5807 = vld [vmem:[#allocation7 + $0x98] sm:$0xff]
    %v5808 = vld [vmem:[#allocation7 + $0xa0] sm:$0xff]
    %v5809 = vld [vmem:[#allocation7 + $0xa8] sm:$0xff]
    %v5810 = vld [vmem:[#allocation7 + $0xb0] sm:$0xff]
    %v5811 = vld [vmem:[#allocation7 + $0xb8] sm:$0xff]
    %v5812 = vld [vmem:[#allocation7 + $0xc0] sm:$0xff]
    %v5813 = vld [vmem:[#allocation7 + $0xc8] sm:$0xff]
    %v5814 = vld [vmem:[#allocation7 + $0xd0] sm:$0xff]
    %v5815 = vld [vmem:[#allocation7 + $0xd8] sm:$0xff]
    %v5816 = vld [vmem:[#allocation7 + $0xe0] sm:$0xff]
    %v5817 = vld [vmem:[#allocation7 + $0xe8] sm:$0xff]
    %v5818 = vld [vmem:[#allocation7 + $0xf0] sm:$0xff]
    %v5819 = vld [vmem:[#allocation7 + $0xf8] sm:$0xff]
    %v5820 = vld [vmem:[#allocation7 + $0x100] sm:$0xff]
    %v5821 = vld [vmem:[#allocation7 + $0x108] sm:$0xff]
    %v5822 = vld [vmem:[#allocation7 + $0x110] sm:$0xff]
    %v5823 = vld [vmem:[#allocation7 + $0x118] sm:$0xff]
    %v5824 = vld [vmem:[#allocation7 + $0x120] sm:$0xff]
    %v5825 = vld [vmem:[#allocation7 + $0x128] sm:$0xff]
    %v5826 = vld [vmem:[#allocation7 + $0x130] sm:$0xff]
    %v5827 = vld [vmem:[#allocation7 + $0x138] sm:$0xff]
    %v5828 = vld [vmem:[#allocation7 + $0x140] sm:$0xff]
    %v5829 = vld [vmem:[#allocation7 + $0x148] sm:$0xff]
    %v5830 = vld [vmem:[#allocation7 + $0x150] sm:$0xff]
    %v5831 = vld [vmem:[#allocation7 + $0x158] sm:$0xff]
    %v5832 = vld [vmem:[#allocation7 + $0x160] sm:$0xff]
    %v5833 = vld [vmem:[#allocation7 + $0x168] sm:$0xff]
    %v5834 = vld [vmem:[#allocation7 + $0x170] sm:$0xff]
    %v5835 = vld [vmem:[#allocation7 + $0x178] sm:$0xff]
    %v5836 = vld [vmem:[#allocation7 + $0x180] sm:$0xff]
    %v5837 = vld [vmem:[#allocation7 + $0x188] sm:$0xff]
    %v5838 = vld [vmem:[#allocation7 + $0x190] sm:$0xff]
    %v5839 = vld [vmem:[#allocation7 + $0x198] sm:$0xff]
    %v5840 = vld [vmem:[#allocation7 + $0x1a0] sm:$0xff]
    %v5841 = vld [vmem:[#allocation7 + $0x1a8] sm:$0xff]
    %v5842 = vld [vmem:[#allocation7 + $0x1b0] sm:$0xff]
    %v5843 = vld [vmem:[#allocation7 + $0x1b8] sm:$0xff]
    %v5844 = vld [vmem:[#allocation7 + $0x1c0] sm:$0xff]
    %v5845 = vld [vmem:[#allocation7 + $0x1c8] sm:$0xff]
    %v5846 = vld [vmem:[#allocation7 + $0x1d0] sm:$0xff]
    %v5847 = vld [vmem:[#allocation7 + $0x1d8] sm:$0xff]
    %v5848 = vld [vmem:[#allocation7 + $0x1e0] sm:$0xff]
    %v5849 = vld [vmem:[#allocation7 + $0x1e8] sm:$0xff]
    %v5850 = vld [vmem:[#allocation7 + $0x1f0] sm:$0xff]
    %v5851 = vld [vmem:[#allocation7 + $0x1f8] sm:$0xff]
    %v5852 = vld [vmem:[#allocation9] sm:$0xff]
    %v5853 = vld [vmem:[#allocation9 + $0x8] sm:$0xff]
    %v5854 = vld [vmem:[#allocation9 + $0x10] sm:$0xff]
    %v5855 = vld [vmem:[#allocation9 + $0x18] sm:$0xff]
    %v5856 = vld [vmem:[#allocation9 + $0x20] sm:$0xff]
    %v5857 = vld [vmem:[#allocation9 + $0x28] sm:$0xff]
    %v5858 = vld [vmem:[#allocation9 + $0x30] sm:$0xff]
    %v5859 = vld [vmem:[#allocation9 + $0x38] sm:$0xff]
    %v5860 = vld [vmem:[#allocation9 + $0x40] sm:$0xff]
    %v5861 = vld [vmem:[#allocation9 + $0x48] sm:$0xff]
    %v5862 = vld [vmem:[#allocation9 + $0x50] sm:$0xff]
    %v5863 = vld [vmem:[#allocation9 + $0x58] sm:$0xff]
    %v5864 = vld [vmem:[#allocation9 + $0x60] sm:$0xff]
    %v5865 = vld [vmem:[#allocation9 + $0x68] sm:$0xff]
    %v5866 = vld [vmem:[#allocation9 + $0x70] sm:$0xff]
    %v5867 = vld [vmem:[#allocation9 + $0x78] sm:$0xff]
    %v5868 = vld [vmem:[#allocation9 + $0x80] sm:$0xff]
    %v5869 = vld [vmem:[#allocation9 + $0x88] sm:$0xff]
    %v5870 = vld [vmem:[#allocation9 + $0x90] sm:$0xff]
    %v5871 = vld [vmem:[#allocation9 + $0x98] sm:$0xff]
    %v5872 = vld [vmem:[#allocation9 + $0xa0] sm:$0xff]
    %v5873 = vld [vmem:[#allocation9 + $0xa8] sm:$0xff]
    %v5874 = vld [vmem:[#allocation9 + $0xb0] sm:$0xff]
    %v5875 = vld [vmem:[#allocation9 + $0xb8] sm:$0xff]
    %v5876 = vld [vmem:[#allocation9 + $0xc0] sm:$0xff]
    %v5877 = vld [vmem:[#allocation9 + $0xc8] sm:$0xff]
    %v5878 = vld [vmem:[#allocation9 + $0xd0] sm:$0xff]
    %v5879 = vld [vmem:[#allocation9 + $0xd8] sm:$0xff]
    %v5880 = vld [vmem:[#allocation9 + $0xe0] sm:$0xff]
    %v5881 = vld [vmem:[#allocation9 + $0xe8] sm:$0xff]
    %v5882 = vld [vmem:[#allocation9 + $0xf0] sm:$0xff]
    %v5883 = vld [vmem:[#allocation9 + $0xf8] sm:$0xff]
    %v5884 = vld [vmem:[#allocation9 + $0x100] sm:$0xff]
    %v5885 = vld [vmem:[#allocation9 + $0x108] sm:$0xff]
    %v5886 = vld [vmem:[#allocation9 + $0x110] sm:$0xff]
    %v5887 = vld [vmem:[#allocation9 + $0x118] sm:$0xff]
    %v5888 = vld [vmem:[#allocation9 + $0x120] sm:$0xff]
    %v5889 = vld [vmem:[#allocation9 + $0x128] sm:$0xff]
    %v5890 = vld [vmem:[#allocation9 + $0x130] sm:$0xff]
    %v5891 = vld [vmem:[#allocation9 + $0x138] sm:$0xff]
    %v5892 = vld [vmem:[#allocation9 + $0x140] sm:$0xff]
    %v5893 = vld [vmem:[#allocation9 + $0x148] sm:$0xff]
    %v5894 = vld [vmem:[#allocation9 + $0x150] sm:$0xff]
    %v5895 = vld [vmem:[#allocation9 + $0x158] sm:$0xff]
    %v5896 = vld [vmem:[#allocation9 + $0x160] sm:$0xff]
    %v5897 = vld [vmem:[#allocation9 + $0x168] sm:$0xff]
    %v5898 = vld [vmem:[#allocation9 + $0x170] sm:$0xff]
    %v5899 = vld [vmem:[#allocation9 + $0x178] sm:$0xff]
    %v5900 = vld [vmem:[#allocation9 + $0x180] sm:$0xff]
    %v5901 = vld [vmem:[#allocation9 + $0x188] sm:$0xff]
    %v5902 = vld [vmem:[#allocation9 + $0x190] sm:$0xff]
    %v5903 = vld [vmem:[#allocation9 + $0x198] sm:$0xff]
    %v5904 = vld [vmem:[#allocation9 + $0x1a0] sm:$0xff]
    %v5905 = vld [vmem:[#allocation9 + $0x1a8] sm:$0xff]
    %v5906 = vld [vmem:[#allocation9 + $0x1b0] sm:$0xff]
    %v5907 = vld [vmem:[#allocation9 + $0x1b8] sm:$0xff]
    %v5908 = vld [vmem:[#allocation9 + $0x1c0] sm:$0xff]
    %v5909 = vld [vmem:[#allocation9 + $0x1c8] sm:$0xff]
    %v5910 = vld [vmem:[#allocation9 + $0x1d0] sm:$0xff]
    %v5911 = vld [vmem:[#allocation9 + $0x1d8] sm:$0xff]
    %v5912 = vld [vmem:[#allocation9 + $0x1e0] sm:$0xff]
    %v5913 = vld [vmem:[#allocation9 + $0x1e8] sm:$0xff]
    %v5914 = vld [vmem:[#allocation9 + $0x1f0] sm:$0xff]
    %v5915 = vld [vmem:[#allocation9 + $0x1f8] sm:$0xff]
    %5916 = vmatprep.subr.mxu0 %v5853
    %5917 = vmatpush1.msra.mxu0 %v5852
    %5918 = vmatprep.subr.mxu0 %v5857
    %5919 = vmatpush1.msra.mxu0 %v5856
    %5920 = vmatprep.subr.mxu0 %v5861
    %5921 = vmatpush1.msra.mxu0 %v5860
    %5922 = vmatprep.subr.mxu0 %v5865
    %5923 = vmatpush1.msra.mxu0 %v5864
    %5924 = vmatprep.subr.mxu0 %v5869
    %5925 = vmatpush1.msra.mxu0 %v5868
    %5926 = vmatprep.subr.mxu0 %v5873
    %5927 = vmatpush1.msra.mxu0 %v5872
    %5928 = vmatprep.subr.mxu0 %v5877
    %5929 = vmatpush1.msra.mxu0 %v5876
    %5930 = vmatprep.subr.mxu0 %v5881
    %5931 = vmatpush1.msra.mxu0 %v5880
    %5932 = vmatprep.subr.mxu0 %v5885
    %5933 = vmatpush1.msra.mxu0 %v5884
    %5934 = vmatprep.subr.mxu0 %v5889
    %5935 = vmatpush1.msra.mxu0 %v5888
    %5936 = vmatprep.subr.mxu0 %v5893
    %5937 = vmatpush1.msra.mxu0 %v5892
    %5938 = vmatprep.subr.mxu0 %v5897
    %5939 = vmatpush1.msra.mxu0 %v5896
    %5940 = vmatprep.subr.mxu0 %v5901
    %5941 = vmatpush1.msra.mxu0 %v5900
    %5942 = vmatprep.subr.mxu0 %v5905
    %5943 = vmatpush1.msra.mxu0 %v5904
    %5944 = vmatprep.subr.mxu0 %v5909
    %5945 = vmatpush1.msra.mxu0 %v5908
    %5946 = vmatprep.subr.mxu0 %v5913
    %5947 = vmatpush1.msra.mxu0 %v5912
    %5948 = vmatprep.subr.mxu0 0.0
    %5949 = vmatpush1.msra.mxu0 0.0
    %5950 = vmatprep.subr.mxu0 0.0
    %5951 = vmatpush1.msra.mxu0 0.0
    %5952 = vmatprep.subr.mxu0 0.0
    %5953 = vmatpush1.msra.mxu0 0.0
    %5954 = vmatprep.subr.mxu0 0.0
    %5955 = vmatpush1.msra.mxu0 0.0
    %5956 = vmatprep.subr.mxu0 0.0
    %5957 = vmatpush1.msra.mxu0 0.0
    %5958 = vmatprep.subr.mxu0 0.0
    %5959 = vmatpush1.msra.mxu0 0.0
    %5960 = vmatprep.subr.mxu0 0.0
    %5961 = vmatpush1.msra.mxu0 0.0
    %5962 = vmatprep.subr.mxu0 0.0
    %5963 = vmatpush1.msra.mxu0 0.0
    %5964 = vmatprep.subr.mxu0 0.0
    %5965 = vmatpush1.msra.mxu0 0.0
    %5966 = vmatprep.subr.mxu0 0.0
    %5967 = vmatpush1.msra.mxu0 0.0
    %5968 = vmatprep.subr.mxu0 0.0
    %5969 = vmatpush1.msra.mxu0 0.0
    %5970 = vmatprep.subr.mxu0 0.0
    %5971 = vmatpush1.msra.mxu0 0.0
    %5972 = vmatprep.subr.mxu0 0.0
    %5973 = vmatpush1.msra.mxu0 0.0
    %5974 = vmatprep.subr.mxu0 0.0
    %5975 = vmatpush1.msra.mxu0 0.0
    %5976 = vmatprep.subr.mxu0 0.0
    %5977 = vmatpush1.msra.mxu0 0.0
    %5978 = vmatprep.subr.mxu0 0.0
    %5979 = vmatpush1.msra.mxu0 0.0
    %5980 = vmatprep.mubr.f32.mxu0 0.0
    %5981 = vmatmul.mubr.f32.gmra.mrb[0].mxu0 %v5459
    %v5982 = vpop.f32.mrb[0].mxu0
    %v5983 = vadd.f32 0.0, %v5982
    %v5984 = vpop.f32.mrb[0].mxu0
    %v5985 = vadd.f32 0.0, %v5984
    %5986 = vdwg.mxu0
    %5987 = vmatprep.subr.mxu0 %v5855
    %5988 = vmatpush1.msra.mxu0 %v5854
    %5989 = vmatprep.subr.mxu0 %v5859
    %5990 = vmatpush1.msra.mxu0 %v5858
    %5991 = vmatprep.subr.mxu0 %v5863
    %5992 = vmatpush1.msra.mxu0 %v5862
    %5993 = vmatprep.subr.mxu0 %v5867
    %5994 = vmatpush1.msra.mxu0 %v5866
    %5995 = vmatprep.subr.mxu0 %v5871
    %5996 = vmatpush1.msra.mxu0 %v5870
    %5997 = vmatprep.subr.mxu0 %v5875
    %5998 = vmatpush1.msra.mxu0 %v5874
    %5999 = vmatprep.subr.mxu0 %v5879
    %6000 = vmatpush1.msra.mxu0 %v5878
    %6001 = vmatprep.subr.mxu0 %v5883
    %6002 = vmatpush1.msra.mxu0 %v5882
    %6003 = vmatprep.subr.mxu0 %v5887
    %6004 = vmatpush1.msra.mxu0 %v5886
    %6005 = vmatprep.subr.mxu0 %v5891
    %6006 = vmatpush1.msra.mxu0 %v5890
    %6007 = vmatprep.subr.mxu0 %v5895
    %6008 = vmatpush1.msra.mxu0 %v5894
    %6009 = vmatprep.subr.mxu0 %v5899
    %6010 = vmatpush1.msra.mxu0 %v5898
    %6011 = vmatprep.subr.mxu0 %v5903
    %6012 = vmatpush1.msra.mxu0 %v5902
    %6013 = vmatprep.subr.mxu0 %v5907
    %6014 = vmatpush1.msra.mxu0 %v5906
    %6015 = vmatprep.subr.mxu0 %v5911
    %6016 = vmatpush1.msra.mxu0 %v5910
    %6017 = vmatprep.subr.mxu0 %v5915
    %6018 = vmatpush1.msra.mxu0 %v5914
    %6019 = vmatprep.subr.mxu0 0.0
    %6020 = vmatpush1.msra.mxu0 0.0
    %6021 = vmatprep.subr.mxu0 0.0
    %6022 = vmatpush1.msra.mxu0 0.0
    %6023 = vmatprep.subr.mxu0 0.0
    %6024 = vmatpush1.msra.mxu0 0.0
    %6025 = vmatprep.subr.mxu0 0.0
    %6026 = vmatpush1.msra.mxu0 0.0
    %6027 = vmatprep.subr.mxu0 0.0
    %6028 = vmatpush1.msra.mxu0 0.0
    %6029 = vmatprep.subr.mxu0 0.0
    %6030 = vmatpush1.msra.mxu0 0.0
    %6031 = vmatprep.subr.mxu0 0.0
    %6032 = vmatpush1.msra.mxu0 0.0
    %6033 = vmatprep.subr.mxu0 0.0
    %6034 = vmatpush1.msra.mxu0 0.0
    %6035 = vmatprep.subr.mxu0 0.0
    %6036 = vmatpush1.msra.mxu0 0.0
    %6037 = vmatprep.subr.mxu0 0.0
    %6038 = vmatpush1.msra.mxu0 0.0
    %6039 = vmatprep.subr.mxu0 0.0
    %6040 = vmatpush1.msra.mxu0 0.0
    %6041 = vmatprep.subr.mxu0 0.0
    %6042 = vmatpush1.msra.mxu0 0.0
    %6043 = vmatprep.subr.mxu0 0.0
    %6044 = vmatpush1.msra.mxu0 0.0
    %6045 = vmatprep.subr.mxu0 0.0
    %6046 = vmatpush1.msra.mxu0 0.0
    %6047 = vmatprep.subr.mxu0 0.0
    %6048 = vmatpush1.msra.mxu0 0.0
    %6049 = vmatprep.subr.mxu0 0.0
    %6050 = vmatpush1.msra.mxu0 0.0
    %6051 = vmatprep.mubr.f32.mxu0 0.0
    %6052 = vmatmul.mubr.f32.gmra.mrb[0].mxu0 %v5459
    %v6053 = vpop.f32.mrb[0].mxu0
    %v6054 = vadd.f32 0.0, %v6053
    %v6055 = vpop.f32.mrb[0].mxu0
    %v6056 = vadd.f32 0.0, %v6055
    %6057 = vdwg.mxu0
    %6058 = vmatprep.subr.mxu0 %v5789
    %6059 = vmatpush1.msra.mxu0 %v5788
    %6060 = vmatprep.subr.mxu0 %v5793
    %6061 = vmatpush1.msra.mxu0 %v5792
    %6062 = vmatprep.subr.mxu0 %v5797
    %6063 = vmatpush1.msra.mxu0 %v5796
    %6064 = vmatprep.subr.mxu0 %v5801
    %6065 = vmatpush1.msra.mxu0 %v5800
    %6066 = vmatprep.subr.mxu0 %v5805
    %6067 = vmatpush1.msra.mxu0 %v5804
    %6068 = vmatprep.subr.mxu0 %v5809
    %6069 = vmatpush1.msra.mxu0 %v5808
    %6070 = vmatprep.subr.mxu0 %v5813
    %6071 = vmatpush1.msra.mxu0 %v5812
    %6072 = vmatprep.subr.mxu0 %v5817
    %6073 = vmatpush1.msra.mxu0 %v5816
    %6074 = vmatprep.subr.mxu0 %v5821
    %6075 = vmatpush1.msra.mxu0 %v5820
    %6076 = vmatprep.subr.mxu0 %v5825
    %6077 = vmatpush1.msra.mxu0 %v5824
    %6078 = vmatprep.subr.mxu0 %v5829
    %6079 = vmatpush1.msra.mxu0 %v5828
    %6080 = vmatprep.subr.mxu0 %v5833
    %6081 = vmatpush1.msra.mxu0 %v5832
    %6082 = vmatprep.subr.mxu0 %v5837
    %6083 = vmatpush1.msra.mxu0 %v5836
    %6084 = vmatprep.subr.mxu0 %v5841
    %6085 = vmatpush1.msra.mxu0 %v5840
    %6086 = vmatprep.subr.mxu0 %v5845
    %6087 = vmatpush1.msra.mxu0 %v5844
    %6088 = vmatprep.subr.mxu0 %v5849
    %6089 = vmatpush1.msra.mxu0 %v5848
    %6090 = vmatprep.subr.mxu0 0.0
    %6091 = vmatpush1.msra.mxu0 0.0
    %6092 = vmatprep.subr.mxu0 0.0
    %6093 = vmatpush1.msra.mxu0 0.0
    %6094 = vmatprep.subr.mxu0 0.0
    %6095 = vmatpush1.msra.mxu0 0.0
    %6096 = vmatprep.subr.mxu0 0.0
    %6097 = vmatpush1.msra.mxu0 0.0
    %6098 = vmatprep.subr.mxu0 0.0
    %6099 = vmatpush1.msra.mxu0 0.0
    %6100 = vmatprep.subr.mxu0 0.0
    %6101 = vmatpush1.msra.mxu0 0.0
    %6102 = vmatprep.subr.mxu0 0.0
    %6103 = vmatpush1.msra.mxu0 0.0
    %6104 = vmatprep.subr.mxu0 0.0
    %6105 = vmatpush1.msra.mxu0 0.0
    %6106 = vmatprep.subr.mxu0 0.0
    %6107 = vmatpush1.msra.mxu0 0.0
    %6108 = vmatprep.subr.mxu0 0.0
    %6109 = vmatpush1.msra.mxu0 0.0
    %6110 = vmatprep.subr.mxu0 0.0
    %6111 = vmatpush1.msra.mxu0 0.0
    %6112 = vmatprep.subr.mxu0 0.0
    %6113 = vmatpush1.msra.mxu0 0.0
    %6114 = vmatprep.subr.mxu0 0.0
    %6115 = vmatpush1.msra.mxu0 0.0
    %6116 = vmatprep.subr.mxu0 0.0
    %6117 = vmatpush1.msra.mxu0 0.0
    %6118 = vmatprep.subr.mxu0 0.0
    %6119 = vmatpush1.msra.mxu0 0.0
    %6120 = vmatprep.subr.mxu0 0.0
    %6121 = vmatpush1.msra.mxu0 0.0
    %6122 = vmatprep.mubr.f32.mxu0 0.0
    %6123 = vmatmul.mubr.f32.gmra.mrb[0].mxu0 %v5787
    %v6124 = vpop.f32.mrb[0].mxu0
    %v6125 = vadd.f32 %v5983, %v6124
    %v6126 = vpop.f32.mrb[0].mxu0
    %v6127 = vadd.f32 %v5985, %v6126
    %6128 = vdwg.mxu0
    %6129 = vmatprep.subr.mxu0 %v5791
    %6130 = vmatpush1.msra.mxu0 %v5790
    %6131 = vmatprep.subr.mxu0 %v5795
    %6132 = vmatpush1.msra.mxu0 %v5794
    %6133 = vmatprep.subr.mxu0 %v5799
    %6134 = vmatpush1.msra.mxu0 %v5798
    %6135 = vmatprep.subr.mxu0 %v5803
    %6136 = vmatpush1.msra.mxu0 %v5802
    %6137 = vmatprep.subr.mxu0 %v5807
    %6138 = vmatpush1.msra.mxu0 %v5806
    %6139 = vmatprep.subr.mxu0 %v5811
    %6140 = vmatpush1.msra.mxu0 %v5810
    %6141 = vmatprep.subr.mxu0 %v5815
    %6142 = vmatpush1.msra.mxu0 %v5814
    %6143 = vmatprep.subr.mxu0 %v5819
    %6144 = vmatpush1.msra.mxu0 %v5818
    %6145 = vmatprep.subr.mxu0 %v5823
    %6146 = vmatpush1.msra.mxu0 %v5822
    %6147 = vmatprep.subr.mxu0 %v5827
    %6148 = vmatpush1.msra.mxu0 %v5826
    %6149 = vmatprep.subr.mxu0 %v5831
    %6150 = vmatpush1.msra.mxu0 %v5830
    %6151 = vmatprep.subr.mxu0 %v5835
    %6152 = vmatpush1.msra.mxu0 %v5834
    %6153 = vmatprep.subr.mxu0 %v5839
    %6154 = vmatpush1.msra.mxu0 %v5838
    %6155 = vmatprep.subr.mxu0 %v5843
    %6156 = vmatpush1.msra.mxu0 %v5842
    %6157 = vmatprep.subr.mxu0 %v5847
    %6158 = vmatpush1.msra.mxu0 %v5846
    %6159 = vmatprep.subr.mxu0 %v5851
    %6160 = vmatpush1.msra.mxu0 %v5850
    %6161 = vmatprep.subr.mxu0 0.0
    %6162 = vmatpush1.msra.mxu0 0.0
    %6163 = vmatprep.subr.mxu0 0.0
    %6164 = vmatpush1.msra.mxu0 0.0
    %6165 = vmatprep.subr.mxu0 0.0
    %6166 = vmatpush1.msra.mxu0 0.0
    %6167 = vmatprep.subr.mxu0 0.0
    %6168 = vmatpush1.msra.mxu0 0.0
    %6169 = vmatprep.subr.mxu0 0.0
    %6170 = vmatpush1.msra.mxu0 0.0
    %6171 = vmatprep.subr.mxu0 0.0
    %6172 = vmatpush1.msra.mxu0 0.0
    %6173 = vmatprep.subr.mxu0 0.0
    %6174 = vmatpush1.msra.mxu0 0.0
    %6175 = vmatprep.subr.mxu0 0.0
    %6176 = vmatpush1.msra.mxu0 0.0
    %6177 = vmatprep.subr.mxu0 0.0
    %6178 = vmatpush1.msra.mxu0 0.0
    %6179 = vmatprep.subr.mxu0 0.0
    %6180 = vmatpush1.msra.mxu0 0.0
    %6181 = vmatprep.subr.mxu0 0.0
    %6182 = vmatpush1.msra.mxu0 0.0
    %6183 = vmatprep.subr.mxu0 0.0
    %6184 = vmatpush1.msra.mxu0 0.0
    %6185 = vmatprep.subr.mxu0 0.0
    %6186 = vmatpush1.msra.mxu0 0.0
    %6187 = vmatprep.subr.mxu0 0.0
    %6188 = vmatpush1.msra.mxu0 0.0
    %6189 = vmatprep.subr.mxu0 0.0
    %6190 = vmatpush1.msra.mxu0 0.0
    %6191 = vmatprep.subr.mxu0 0.0
    %6192 = vmatpush1.msra.mxu0 0.0
    %6193 = vmatprep.mubr.f32.mxu0 0.0
    %6194 = vmatmul.mubr.f32.gmra.mrb[0].mxu0 %v5787
    %v6195 = vpop.f32.mrb[0].mxu0
    %v6196 = vadd.f32 %v6054, %v6195
    %v6197 = vpop.f32.mrb[0].mxu0
    %v6198 = vadd.f32 %v6056, %v6197
    %6199 = vdwg.mxu0
    %v6200 = vld [vmem:[%s4] sm:$0xf]
    %v6202 = vlaneseq
    %v6203 = vshrl.u32 %v6202, 7
    %v6204 = vsub.s32 0, %v6203
    %v6205 = vrot.slane %v6200, %v6204
    %v6206 = vlaneseq
    %v6207 = vshrl.u32 %v6206, 7
    %v6208 = vsub.s32 1, %v6207
    %v6209 = vrot.slane %v6200, %v6208
    %v6210 = vlaneseq
    %v6211 = vshrl.u32 %v6210, 7
    %v6212 = vsub.s32 2, %v6211
    %v6213 = vrot.slane %v6200, %v6212
    %v6214 = vlaneseq
    %v6215 = vshrl.u32 %v6214, 7
    %v6216 = vsub.s32 3, %v6215
    %v6217 = vrot.slane %v6200, %v6216
    %v6222 = vadd.f32 %v6125, %v6205
    %v6223 = vadd.f32 %v6127, %v6209
    %v6224 = vadd.f32 %v6196, %v6213
    %v6225 = vadd.f32 %v6198, %v6217
    %v6226 = vmul.f32 %v6222, 0.5
    %v6227 = vtanh.pop %v6226
    %v6228 = vmul.f32 %v6227, 0.5
    %v6229 = vadd.f32 %v6228, 0.5
    %v6230 = vmul.f32 %v6223, 0.5
    %v6231 = vtanh.pop %v6230
    %v6232 = vmul.f32 %v6231, 0.5
    %v6233 = vadd.f32 %v6232, 0.5
    %v6234 = vtanh.pop %v6224
    %v6235 = vmul.f32 %v6225, 0.5
    %v6236 = vtanh.pop %v6235
    %v6237 = vmul.f32 %v6236, 0.5
    %v6238 = vadd.f32 %v6237, 0.5
    %v6239 = vmul.f32 %v6233, %v5457
    %v6240 = vmul.f32 %v6229, %v6234
    %v6241 = vadd.f32 %v6239, %v6240
    %v6242 = vtanh.pop %v6241
    %v6243 = vmul.f32 %v6238, %v6242
    %v6244 = vld [vmem:[%s5] sm:$0xff]
    %v6245 = vld [vmem:[%s5 + $0x8] sm:$0xff]
    %v6246 = vld [vmem:[%s5 + $0x10] sm:$0xff]
    %v6247 = vld [vmem:[%s5 + $0x18] sm:$0xff]
    %v6248 = vld [vmem:[%s5 + $0x20] sm:$0xff]
    %v6249 = vld [vmem:[%s5 + $0x28] sm:$0xff]
    %v6250 = vld [vmem:[%s5 + $0x30] sm:$0xff]
    %v6251 = vld [vmem:[%s5 + $0x38] sm:$0xff]
    %v6252 = vld [vmem:[%s5 + $0x40] sm:$0xff]
    %v6253 = vld [vmem:[%s5 + $0x48] sm:$0xff]
    %v6254 = vld [vmem:[%s5 + $0x50] sm:$0xff]
    %v6255 = vld [vmem:[%s5 + $0x58] sm:$0xff]
    %v6256 = vld [vmem:[%s5 + $0x60] sm:$0xff]
    %v6257 = vld [vmem:[%s5 + $0x68] sm:$0xff]
    %v6258 = vld [vmem:[%s5 + $0x70] sm:$0xff]
    %v6259 = vld [vmem:[%s5 + $0x78] sm:$0xff]
    %v6260 = vld [vmem:[#allocation6] sm:$0x1]
    %v6262 = vlaneseq
    %v6263 = vshrl.u32 %v6262, 7
    %v6264 = vsub.s32 0, %v6263
    %v6265 = vrot.slane %v6260, %v6264
    %6267 = vmatprep.subr.mxu0 0.0
    %6268 = vmatpush1.msra.mxu0 %v6244
    %6269 = vmatprep.subr.mxu0 0.0
    %6270 = vmatpush1.msra.mxu0 %v6245
    %6271 = vmatprep.subr.mxu0 0.0
    %6272 = vmatpush1.msra.mxu0 %v6246
    %6273 = vmatprep.subr.mxu0 0.0
    %6274 = vmatpush1.msra.mxu0 %v6247
    %6275 = vmatprep.subr.mxu0 0.0
    %6276 = vmatpush1.msra.mxu0 %v6248
    %6277 = vmatprep.subr.mxu0 0.0
    %6278 = vmatpush1.msra.mxu0 %v6249
    %6279 = vmatprep.subr.mxu0 0.0
    %6280 = vmatpush1.msra.mxu0 %v6250
    %6281 = vmatprep.subr.mxu0 0.0
    %6282 = vmatpush1.msra.mxu0 %v6251
    %6283 = vmatprep.subr.mxu0 0.0
    %6284 = vmatpush1.msra.mxu0 %v6252
    %6285 = vmatprep.subr.mxu0 0.0
    %6286 = vmatpush1.msra.mxu0 %v6253
    %6287 = vmatprep.subr.mxu0 0.0
    %6288 = vmatpush1.msra.mxu0 %v6254
    %6289 = vmatprep.subr.mxu0 0.0
    %6290 = vmatpush1.msra.mxu0 %v6255
    %6291 = vmatprep.subr.mxu0 0.0
    %6292 = vmatpush1.msra.mxu0 %v6256
    %6293 = vmatprep.subr.mxu0 0.0
    %6294 = vmatpush1.msra.mxu0 %v6257
    %6295 = vmatprep.subr.mxu0 0.0
    %6296 = vmatpush1.msra.mxu0 %v6258
    %6297 = vmatprep.subr.mxu0 0.0
    %6298 = vmatpush1.msra.mxu0 %v6259
    %6299 = vmatprep.subr.mxu0 0.0
    %6300 = vmatpush1.msra.mxu0 0.0
    %6301 = vmatprep.subr.mxu0 0.0
    %6302 = vmatpush1.msra.mxu0 0.0
    %6303 = vmatprep.subr.mxu0 0.0
    %6304 = vmatpush1.msra.mxu0 0.0
    %6305 = vmatprep.subr.mxu0 0.0
    %6306 = vmatpush1.msra.mxu0 0.0
    %6307 = vmatprep.subr.mxu0 0.0
    %6308 = vmatpush1.msra.mxu0 0.0
    %6309 = vmatprep.subr.mxu0 0.0
    %6310 = vmatpush1.msra.mxu0 0.0
    %6311 = vmatprep.subr.mxu0 0.0
    %6312 = vmatpush1.msra.mxu0 0.0
    %6313 = vmatprep.subr.mxu0 0.0
    %6314 = vmatpush1.msra.mxu0 0.0
    %6315 = vmatprep.subr.mxu0 0.0
    %6316 = vmatpush1.msra.mxu0 0.0
    %6317 = vmatprep.subr.mxu0 0.0
    %6318 = vmatpush1.msra.mxu0 0.0
    %6319 = vmatprep.subr.mxu0 0.0
    %6320 = vmatpush1.msra.mxu0 0.0
    %6321 = vmatprep.subr.mxu0 0.0
    %6322 = vmatpush1.msra.mxu0 0.0
    %6323 = vmatprep.subr.mxu0 0.0
    %6324 = vmatpush1.msra.mxu0 0.0
    %6325 = vmatprep.subr.mxu0 0.0
    %6326 = vmatpush1.msra.mxu0 0.0
    %6327 = vmatprep.subr.mxu0 0.0
    %6328 = vmatpush1.msra.mxu0 0.0
    %6329 = vmatprep.subr.mxu0 0.0
    %6330 = vmatpush1.msra.mxu0 0.0
    %6331 = vmatprep.mubr.f32.mxu0 0.0
    %6332 = vmatmul.mubr.f32.gmra.mrb[0].mxu0 %v6243
    %v6333 = vpop.f32.mrb[0].mxu0
    %v6334 = vadd.f32 %v6265, %v6333
    %v6335 = vpop.f32.mrb[0].mxu0
    %6336 = vdwg.mxu0
    %s6337 = scalar_lea.vmem %s7, 56
    %6338 = vst.msk [vmem:[%s6337] sm:$0xff] %vm849, %v6334
    %6339 = vst [vmem:[#allocation2] sm:$0xff] %v5787
    %6340 = vst [vmem:[#allocation3] sm:$0xff] %v5785
    %6341 = vst [vmem:[#allocation4] sm:$0xff] %v6243
    %6342 = vst [vmem:[#allocation5] sm:$0xff] %v6241
    // Predicated region
    $region42: #{lstm_model_forward.3} parent=1 // pred_check
      _
    $region43: #{lstm_model_forward.3} parent=1 // pred_check_branch
      %6344 = sbr.rel (0) target = $region45
    $region44: #{lstm_model_forward.3} parent=1 // pred_region
      _
    $region45: #{lstm_model_forward.3} parent=1 // pred_fallthru
      _
    // Predicated region
    $region46: #{lstm_model_forward.3} parent=1 // pred_check
      _
    $region47: #{lstm_model_forward.3} parent=1 // pred_check_branch
      %6346 = sbr.rel (0) target = $region49
    $region48: #{lstm_model_forward.3} parent=1 // pred_region
      _
    $region49: #{lstm_model_forward.3} parent=1 // pred_fallthru
      _
    %6347 = vsyncpa [#allocation8], 1
    %6348 = vsyncpa [#allocation10], 1

</llo_original>
